<compile_context>
chip_gen: v7x
topology: tpu7x:2x2x1
jax: 0.10.0
libtpu: 0.0.40
codegen_flags: <defaults>
</compile_context>

<pallas_src>
import numpy as np
import jax
import jax.numpy as jnp
from jax import lax
from jax.experimental import pallas as pl
from jax.experimental.pallas import tpu as pltpu

# ----- problem sizes (small, consistent with the module) -----
B, H, W = 2, 16, 16          # batch, spatial
CIN, COUT = 32, 64           # dim, dim_out
GROUPS = 8                   # norm_groups (divides CIN and COUT)
EMB = 32                     # noise_level_emb_dim
RATIO = 16                   # CLAM reduction ratio
HID = COUT // RATIO          # CLAM hidden channels
EPS = 1e-5                   # GroupNorm eps (PyTorch default)
HW = H * W


# ---------------------------------------------------------------------------
# in-kernel helpers (trace-time Python; fully unrolled)
# ---------------------------------------------------------------------------
def _gn_swish(x, pn, gamma, beta):
    """GroupNorm(GROUPS) + Swish on a (C, HW) tile.

    pn is a symmetric (C, C) constant with pn[c', c] = 1/(HW*Cg) when c', c
    share a group, so `pn @ rowsum` broadcasts group statistics to channels.
    Variance is two-pass (sum of squared deviations) for stability.
    """
    mean_c = jnp.dot(pn, jnp.sum(x, axis=1, keepdims=True),
                     preferred_element_type=jnp.float32)             # (C, 1)
    d = x - mean_c
    var_c = jnp.dot(pn, jnp.sum(d * d, axis=1, keepdims=True),
                    preferred_element_type=jnp.float32)              # (C, 1)
    xn = d * lax.rsqrt(var_c + EPS) * gamma + beta
    return xn * jax.nn.sigmoid(xn)                                   # Swish


def _shift_lanes(a, off):
    """result[:, p] = a[:, (p + off) mod HW]  (wrapped lanes masked by caller)."""
    s = off % a.shape[1]
    if s == 0:
        return a
    return jnp.concatenate([a[:, s:], a[:, :s]], axis=1)


def _im2col(a, mask, ksize):
    """im2col of a (C, HW) activation for a ksize x ksize 'SAME' conv.

    Returns (ksize*ksize*C, HW), tap-major / channel-minor, matching a conv
    weight reshaped from HWIO (k, k, Cin, Cout) to (Cout, k*k*Cin).
    `mask` is the precomputed (k*k, HW) zero-padding validity mask.
    """
    pad = ksize // 2
    pieces = []
    for t in range(ksize * ksize):
        dy, dx = t // ksize, t % ksize
        off = (dy - pad) * W + (dx - pad)
        pieces.append(_shift_lanes(a, off) * mask[t:t + 1, :])
    return jnp.concatenate(pieces, axis=0)


# ---------------------------------------------------------------------------
# fused kernel (grid = (B,); one batch element per program)
# ---------------------------------------------------------------------------
def fused_kernel(x_ref, temb_ref,
                 pn1_ref, g1_ref, b1g_ref, w1_ref, b1_ref,
                 wn_ref, bn_ref,
                 pn2_ref, g2_ref, b2g_ref, w2_ref, b2_ref,
                 wres_ref, bres_ref,
                 wfc1_ref, wfc2_ref, ksa_ref,
                 mask3_ref, mask7_ref,
                 out_ref):
    x = x_ref[0]                                     # (CIN, HW)
    mask3 = mask3_ref[...]                           # (9, HW)
    mask7 = mask7_ref[...]                           # (49, HW)

    # ---- Block1: GroupNorm -> Swish -> 3x3 conv (im2col + one matmul) ------
    a1 = _gn_swish(x, pn1_ref[...], g1_ref[...], b1g_ref[...])
    h = jnp.dot(w1_ref[...], _im2col(a1, mask3, 3),
                preferred_element_type=jnp.float32) + b1_ref[...]    # (COUT, HW)

    # ---- FeatureWiseAffine: add noise-embedding projection -----------------
    h = h + (jnp.dot(wn_ref[...], temb_ref[0],
                     preferred_element_type=jnp.float32) + bn_ref[...])  # (COUT,1) bcast

    # ---- Block2 + 1x1 residual conv -----------------------------------------
    a2 = _gn_swish(h, pn2_ref[...], g2_ref[...], b2g_ref[...])
    h2 = jnp.dot(w2_ref[...], _im2col(a2, mask3, 3),
                 preferred_element_type=jnp.float32) + b2_ref[...]
    y = h2 + jnp.dot(wres_ref[...], x,
                     preferred_element_type=jnp.float32) + bres_ref[...]

    # ---- CLAM channel attention (avg & max pooled, stacked MLP) -------------
    pooled = jnp.concatenate([jnp.mean(y, axis=1, keepdims=True),
                              jnp.max(y, axis=1, keepdims=True)], axis=1)  # (COUT, 2)
    hid = jnp.maximum(jnp.dot(wfc1_ref[...], pooled,
                              preferred_element_type=jnp.float32), 0.0)    # (HID, 2)
    logits = jnp.dot(wfc2_ref[...], hid,
                     preferred_element_type=jnp.float32)                   # (COUT, 2)
    y = y * jax.nn.sigmoid(logits[:, 0:1] + logits[:, 1:2])

    # ---- SLAM spatial attention (7x7 conv as im2col + one matmul) -----------
    smap = jnp.concatenate([jnp.mean(y, axis=0, keepdims=True),
                            jnp.max(y, axis=0, keepdims=True)], axis=0)    # (2, HW)
    att = jax.nn.sigmoid(jnp.dot(ksa_ref[...], _im2col(smap, mask7, 7),
                                 preferred_element_type=jnp.float32))      # (1, HW)
    out_ref[0] = y * att                                                    # (COUT, HW)


# ---------------------------------------------------------------------------
# host-side constants & pallas_call wrapper
# ---------------------------------------------------------------------------
def _group_avg_matrix(c):
    cg = c // GROUPS
    g = np.arange(c) // cg
    same = (g[:, None] == g[None, :]).astype(np.float32)
    return jnp.asarray(same / float(HW * cg))                 # (C, C), symmetric


def _tap_mask(ksize):
    pad = ksize // 2
    p = np.arange(HW)
    hh, ww = p // W, p % W
    rows = []
    for t in range(ksize * ksize):
        dy, dx = t // ksize, t % ksize
        h2, w2 = hh + dy - pad, ww + dx - pad
        rows.append((h2 >= 0) & (h2 < H) & (w2 >= 0) & (w2 < W))
    return jnp.asarray(np.stack(rows, axis=0).astype(np.float32))   # (k*k, HW)


def _const_spec(shape):
    zeros = (0,) * len(shape)
    return pl.BlockSpec(tuple(shape), lambda b, _z=zeros: _z)


def _batch_spec(shape):
    tail = (0,) * (len(shape) - 1)
    return pl.BlockSpec((1,) + tuple(shape[1:]), lambda b, _t=tail: (b,) + _t)


def forward_pallas(x_nchw, temb, p):
    """x_nchw: (B, CIN, H, W) torch layout; temb: (B, EMB). Returns (B, COUT, H, W)."""
    xf = x_nchw.reshape(B, CIN, HW)
    temb3 = temb.reshape(B, EMB, 1)
    # conv weights HWIO -> (Cout, k*k*Cin), tap-major / channel-minor
    w1m = jnp.transpose(p["w1"], (3, 0, 1, 2)).reshape(COUT, 9 * CIN)
    w2m = jnp.transpose(p["w2"], (3, 0, 1, 2)).reshape(COUT, 9 * COUT)
    ksam = jnp.transpose(p["k_sa"], (3, 0, 1, 2)).reshape(1, 49 * 2)
    col = lambda v: v.reshape(-1, 1)          # row (1, C) -> column (C, 1)
    args = (xf, temb3,
            _group_avg_matrix(CIN), col(p["gn1_g"]), col(p["gn1_b"]), w1m, col(p["b1"]),
            p["wn"].T, col(p["bn"]),
            _group_avg_matrix(COUT), col(p["gn2_g"]), col(p["gn2_b"]), w2m, col(p["b2"]),
            p["wres"].T, col(p["bres"]),
            p["wfc1"].T, p["wfc2"].T, ksam,
            _tap_mask(3), _tap_mask(7))
    in_specs = [_batch_spec(a.shape) if i < 2 else _const_spec(a.shape)
                for i, a in enumerate(args)]
    out = pl.pallas_call(
        fused_kernel,
        out_shape=jax.ShapeDtypeStruct((B, COUT, HW), jnp.float32),
        grid=(B,),
        in_specs=in_specs,
        out_specs=_batch_spec((B, COUT, HW)),
        compiler_params=pltpu.CompilerParams(
            dimension_semantics=("parallel",)),   # batch shards across v7x TCs
    )(*args)
    return out.reshape(B, COUT, H, W)


# ---------------------------------------------------------------------------
# parameters (deterministic, synthetic) + pure-JAX reference
# ---------------------------------------------------------------------------
def init_params(key):
    ks = jax.random.split(key, 15)
    rnd = lambda k, s, sc: (jax.random.normal(k, s, jnp.float32) * sc)
    p = {}
    p["gn1_g"] = 1.0 + rnd(ks[0], (1, CIN), 0.1)
    p["gn1_b"] = rnd(ks[1], (1, CIN), 0.1)
    p["w1"] = rnd(ks[2], (3, 3, CIN, COUT), 1.0 / float(9 * CIN) ** 0.5)
    p["b1"] = rnd(ks[3], (1, COUT), 0.1)
    p["wn"] = rnd(ks[4], (EMB, COUT), 1.0 / float(EMB) ** 0.5)
    p["bn"] = rnd(ks[5], (1, COUT), 0.1)
    p["gn2_g"] = 1.0 + rnd(ks[6], (1, COUT), 0.1)
    p["gn2_b"] = rnd(ks[7], (1, COUT), 0.1)
    p["w2"] = rnd(ks[8], (3, 3, COUT, COUT), 1.0 / float(9 * COUT) ** 0.5)
    p["b2"] = rnd(ks[9], (1, COUT), 0.1)
    if CIN != COUT:   # res_conv = Conv2d(dim, dim_out, 1)
        p["wres"] = rnd(ks[10], (CIN, COUT), 1.0 / float(CIN) ** 0.5)
        p["bres"] = rnd(ks[11], (1, COUT), 0.1)
    else:             # res_conv = nn.Identity()
        p["wres"] = jnp.eye(CIN, dtype=jnp.float32)
        p["bres"] = jnp.zeros((1, COUT), jnp.float32)
    p["wfc1"] = rnd(ks[12], (COUT, HID), 1.0 / float(COUT) ** 0.5)   # CLAM fc1 (no bias)
    p["wfc2"] = rnd(ks[13], (HID, COUT), 1.0 / float(HID) ** 0.5)    # CLAM fc2 (no bias)
    p["k_sa"] = rnd(ks[14], (7, 7, 2, 1), 1.0 / float(98) ** 0.5)    # SLAM 7x7 conv (no bias)
    return p


def forward_reference(x, temb, p):
    """Pure-JAX NHWC reference of ResnetBlocWithAttn(with_attn=True).forward."""
    def gn(v, g, b):
        b_, h_, w_, c_ = v.shape
        cg = c_ // GROUPS
        vr = v.reshape(b_, h_, w_, GROUPS, cg)
        mean = vr.mean(axis=(1, 2, 4), keepdims=True)
        var = vr.var(axis=(1, 2, 4), keepdims=True)
        vn = ((vr - mean) / jnp.sqrt(var + EPS)).reshape(b_, h_, w_, c_)
        return vn * g.reshape(1, 1, 1, c_) + b.reshape(1, 1, 1, c_)

    swish = lambda v: v * jax.nn.sigmoid(v)
    conv = lambda v, w: lax.conv_general_dilated(
        v, w, (1, 1), "SAME", dimension_numbers=("NHWC", "HWIO", "NHWC"))

    h = conv(swish(gn(x, p["gn1_g"], p["gn1_b"])), p["w1"]) + p["b1"].reshape(1, 1, 1, COUT)
    noise = temb @ p["wn"] + p["bn"]
    h = h + noise[:, None, None, :]
    h2 = conv(swish(gn(h, p["gn2_g"], p["gn2_b"])), p["w2"]) + p["b2"].reshape(1, 1, 1, COUT)
    xres = jnp.einsum("bhwc,cd->bhwd", x, p["wres"]) + p["bres"].reshape(1, 1, 1, COUT)
    y = h2 + xres
    # CLAM
    avg = y.mean(axis=(1, 2)); mx = y.max(axis=(1, 2))
    mlp = lambda v: jnp.maximum(v @ p["wfc1"], 0.0) @ p["wfc2"]
    y = y * jax.nn.sigmoid(mlp(avg) + mlp(mx))[:, None, None, :]
    # SLAM
    sm = jnp.concatenate([y.mean(axis=3, keepdims=True), y.max(axis=3, keepdims=True)], axis=3)
    att = lax.conv_general_dilated(sm, p["k_sa"], (1, 1), "SAME",
                                   dimension_numbers=("NHWC", "HWIO", "NHWC"))
    return y * jax.nn.sigmoid(att)


if __name__ == "__main__":
    key = jax.random.PRNGKey(0)
    kx, kt, kp = jax.random.split(key, 3)
    x_nchw = jax.random.normal(kx, (B, CIN, H, W), jnp.float32)   # torch NCHW (2,32,16,16)
    time_emb = jax.random.normal(kt, (B, EMB), jnp.float32)
    params = init_params(kp)

    y = forward_pallas(x_nchw, time_emb, params)
    y = jax.block_until_ready(y)

    x_nhwc = jnp.transpose(x_nchw, (0, 2, 3, 1))
    y_ref = jnp.transpose(forward_reference(x_nhwc, time_emb, params), (0, 3, 1, 2))
    assert y.shape == (B, COUT, H, W)
    assert bool(jnp.isfinite(y).all())
    max_err = float(jnp.max(jnp.abs(y - y_ref)))
    assert max_err < 5e-2, f"mismatch vs reference: {max_err}"
    print("KERNEL_OK")
</pallas_src>

<mosaic_0001>
module attributes {stable_mosaic.version = 11 : i64} {
  func.func @fused_kernel(%arg0: i32, %arg1: memref<1x32x256xf32, #tpu.memory_space<vmem>>, %arg2: memref<1x32x1xf32, #tpu.memory_space<vmem>>, %arg3: memref<32x32xf32, #tpu.memory_space<vmem>>, %arg4: memref<32x1xf32, #tpu.memory_space<vmem>>, %arg5: memref<32x1xf32, #tpu.memory_space<vmem>>, %arg6: memref<64x288xf32, #tpu.memory_space<vmem>>, %arg7: memref<64x1xf32, #tpu.memory_space<vmem>>, %arg8: memref<64x32xf32, #tpu.memory_space<vmem>>, %arg9: memref<64x1xf32, #tpu.memory_space<vmem>>, %arg10: memref<64x64xf32, #tpu.memory_space<vmem>>, %arg11: memref<64x1xf32, #tpu.memory_space<vmem>>, %arg12: memref<64x1xf32, #tpu.memory_space<vmem>>, %arg13: memref<64x576xf32, #tpu.memory_space<vmem>>, %arg14: memref<64x1xf32, #tpu.memory_space<vmem>>, %arg15: memref<64x32xf32, #tpu.memory_space<vmem>>, %arg16: memref<64x1xf32, #tpu.memory_space<vmem>>, %arg17: memref<4x64xf32, #tpu.memory_space<vmem>>, %arg18: memref<64x4xf32, #tpu.memory_space<vmem>>, %arg19: memref<1x98xf32, #tpu.memory_space<vmem>>, %arg20: memref<9x256xf32, #tpu.memory_space<vmem>>, %arg21: memref<49x256xf32, #tpu.memory_space<vmem>>, %arg22: memref<1x64x256xf32, #tpu.memory_space<vmem>>) attributes {dimension_semantics = [#tpu.dimension_semantics<parallel>], iteration_bounds = array<i64: 2>, scalar_prefetch = 0 : i64, scratch_operands = 0 : i64, tpu.core_type = #tpu.core_type<tc>, window_params = [{transform_indices = @transform_0, window_bounds = array<i64: 1, 32, 256>}, {transform_indices = @transform_1, window_bounds = array<i64: 1, 32, 1>}, {pipeline_mode = #tpu.pipeline_mode<synchronous>, transform_indices = @transform_2, window_bounds = array<i64: 32, 32>}, {pipeline_mode = #tpu.pipeline_mode<synchronous>, transform_indices = @transform_3, window_bounds = array<i64: 32, 1>}, {pipeline_mode = #tpu.pipeline_mode<synchronous>, transform_indices = @transform_4, window_bounds = array<i64: 32, 1>}, {pipeline_mode = #tpu.pipeline_mode<synchronous>, transform_indices = @transform_5, window_bounds = array<i64: 64, 288>}, {pipeline_mode = #tpu.pipeline_mode<synchronous>, transform_indices = @transform_6, window_bounds = array<i64: 64, 1>}, {pipeline_mode = #tpu.pipeline_mode<synchronous>, transform_indices = @transform_7, window_bounds = array<i64: 64, 32>}, {pipeline_mode = #tpu.pipeline_mode<synchronous>, transform_indices = @transform_8, window_bounds = array<i64: 64, 1>}, {pipeline_mode = #tpu.pipeline_mode<synchronous>, transform_indices = @transform_9, window_bounds = array<i64: 64, 64>}, {pipeline_mode = #tpu.pipeline_mode<synchronous>, transform_indices = @transform_10, window_bounds = array<i64: 64, 1>}, {pipeline_mode = #tpu.pipeline_mode<synchronous>, transform_indices = @transform_11, window_bounds = array<i64: 64, 1>}, {pipeline_mode = #tpu.pipeline_mode<synchronous>, transform_indices = @transform_12, window_bounds = array<i64: 64, 576>}, {pipeline_mode = #tpu.pipeline_mode<synchronous>, transform_indices = @transform_13, window_bounds = array<i64: 64, 1>}, {pipeline_mode = #tpu.pipeline_mode<synchronous>, transform_indices = @transform_14, window_bounds = array<i64: 64, 32>}, {pipeline_mode = #tpu.pipeline_mode<synchronous>, transform_indices = @transform_15, window_bounds = array<i64: 64, 1>}, {pipeline_mode = #tpu.pipeline_mode<synchronous>, transform_indices = @transform_16, window_bounds = array<i64: 4, 64>}, {pipeline_mode = #tpu.pipeline_mode<synchronous>, transform_indices = @transform_17, window_bounds = array<i64: 64, 4>}, {pipeline_mode = #tpu.pipeline_mode<synchronous>, transform_indices = @transform_18, window_bounds = array<i64: 1, 98>}, {pipeline_mode = #tpu.pipeline_mode<synchronous>, transform_indices = @transform_19, window_bounds = array<i64: 9, 256>}, {pipeline_mode = #tpu.pipeline_mode<synchronous>, transform_indices = @transform_20, window_bounds = array<i64: 49, 256>}, {transform_indices = @transform_21, window_bounds = array<i64: 1, 64, 256>}]} {
    %c0 = arith.constant 0 : index
    %c0_0 = arith.constant 0 : index
    %c0_1 = arith.constant 0 : index
    %0 = vector.load %arg1[%c0, %c0_0, %c0_1] : memref<1x32x256xf32, #tpu.memory_space<vmem>>, vector<1x32x256xf32>
    %1 = vector.shape_cast %0 : vector<1x32x256xf32> to vector<32x256xf32>
    %c0_2 = arith.constant 0 : index
    %c0_3 = arith.constant 0 : index
    %2 = vector.load %arg20[%c0_2, %c0_3] : memref<9x256xf32, #tpu.memory_space<vmem>>, vector<9x256xf32>
    %c0_4 = arith.constant 0 : index
    %c0_5 = arith.constant 0 : index
    %3 = vector.load %arg21[%c0_4, %c0_5] : memref<49x256xf32, #tpu.memory_space<vmem>>, vector<49x256xf32>
    %c0_6 = arith.constant 0 : index
    %c0_7 = arith.constant 0 : index
    %4 = vector.load %arg3[%c0_6, %c0_7] : memref<32x32xf32, #tpu.memory_space<vmem>>, vector<32x32xf32>
    %c0_8 = arith.constant 0 : index
    %c0_9 = arith.constant 0 : index
    %5 = vector.load %arg4[%c0_8, %c0_9] : memref<32x1xf32, #tpu.memory_space<vmem>>, vector<32x1xf32>
    %c0_10 = arith.constant 0 : index
    %c0_11 = arith.constant 0 : index
    %6 = vector.load %arg5[%c0_10, %c0_11] : memref<32x1xf32, #tpu.memory_space<vmem>>, vector<32x1xf32>
    %cst = arith.constant dense<0.000000e+00> : vector<32xf32>
    %7 = vector.multi_reduction <add>, %1, %cst [1] : vector<32x256xf32> to vector<32xf32>
    %8 = vector.shape_cast %7 : vector<32xf32> to vector<32x1xf32>
    %cst_12 = arith.constant dense<0.000000e+00> : vector<32x1xf32>
    %9 = tpu.matmul %4, %8, %cst_12 {dimension_numbers = #tpu.dot_dimension_numbers<[1], [0], [0], [1], [0, 0, 1, 1], [], []>} : vector<32x32xf32>, vector<32x1xf32>, vector<32x1xf32> -> vector<32x1xf32>
    %10 = vector.broadcast %9 : vector<32x1xf32> to vector<32x256xf32>
    %11 = arith.subf %1, %10 : vector<32x256xf32>
    %12 = arith.mulf %11, %11 : vector<32x256xf32>
    %cst_13 = arith.constant dense<0.000000e+00> : vector<32xf32>
    %13 = vector.multi_reduction <add>, %12, %cst_13 [1] : vector<32x256xf32> to vector<32xf32>
    %14 = vector.shape_cast %13 : vector<32xf32> to vector<32x1xf32>
    %cst_14 = arith.constant dense<0.000000e+00> : vector<32x1xf32>
    %15 = tpu.matmul %4, %14, %cst_14 {dimension_numbers = #tpu.dot_dimension_numbers<[1], [0], [0], [1], [0, 0, 1, 1], [], []>} : vector<32x32xf32>, vector<32x1xf32>, vector<32x1xf32> -> vector<32x1xf32>
    %cst_15 = arith.constant 9.99999974E-6 : f32
    %16 = vector.broadcast %cst_15 : f32 to vector<32x1xf32>
    %17 = arith.addf %15, %16 : vector<32x1xf32>
    %18 = math.rsqrt %17 : vector<32x1xf32>
    %19 = vector.broadcast %18 : vector<32x1xf32> to vector<32x256xf32>
    %20 = arith.mulf %11, %19 : vector<32x256xf32>
    %21 = vector.broadcast %5 : vector<32x1xf32> to vector<32x256xf32>
    %22 = arith.mulf %20, %21 : vector<32x256xf32>
    %23 = vector.broadcast %6 : vector<32x1xf32> to vector<32x256xf32>
    %24 = arith.addf %22, %23 : vector<32x256xf32>
    %25 = arith.negf %24 : vector<32x256xf32>
    %26 = math.exp %25 : vector<32x256xf32>
    %cst_16 = arith.constant 1.000000e+00 : f32
    %27 = vector.broadcast %cst_16 : f32 to vector<32x256xf32>
    %28 = arith.addf %27, %26 : vector<32x256xf32>
    %29 = arith.divf %27, %28 : vector<32x256xf32>
    %30 = arith.mulf %24, %29 : vector<32x256xf32>
    %c0_17 = arith.constant 0 : index
    %c0_18 = arith.constant 0 : index
    %31 = vector.load %arg6[%c0_17, %c0_18] : memref<64x288xf32, #tpu.memory_space<vmem>>, vector<64x288xf32>
    %32 = vector.extract_strided_slice %30 {offsets = [0, 239], sizes = [32, 17], strides = [1, 1]} : vector<32x256xf32> to vector<32x17xf32>
    %33 = vector.extract_strided_slice %30 {offsets = [0, 0], sizes = [32, 239], strides = [1, 1]} : vector<32x256xf32> to vector<32x239xf32>
    %34 = tpu.concatenate %32, %33 in 1 : vector<32x17xf32>, vector<32x239xf32> -> vector<32x256xf32>
    %35 = vector.extract_strided_slice %2 {offsets = [0, 0], sizes = [1, 256], strides = [1, 1]} : vector<9x256xf32> to vector<1x256xf32>
    %36 = vector.broadcast %35 : vector<1x256xf32> to vector<32x256xf32>
    %37 = arith.mulf %34, %36 : vector<32x256xf32>
    %38 = vector.extract_strided_slice %30 {offsets = [0, 240], sizes = [32, 16], strides = [1, 1]} : vector<32x256xf32> to vector<32x16xf32>
    %39 = vector.extract_strided_slice %30 {offsets = [0, 0], sizes = [32, 240], strides = [1, 1]} : vector<32x256xf32> to vector<32x240xf32>
    %40 = tpu.concatenate %38, %39 in 1 : vector<32x16xf32>, vector<32x240xf32> -> vector<32x256xf32>
    %41 = vector.extract_strided_slice %2 {offsets = [1, 0], sizes = [1, 256], strides = [1, 1]} : vector<9x256xf32> to vector<1x256xf32>
    %42 = vector.broadcast %41 : vector<1x256xf32> to vector<32x256xf32>
    %43 = arith.mulf %40, %42 : vector<32x256xf32>
    %44 = vector.extract_strided_slice %30 {offsets = [0, 241], sizes = [32, 15], strides = [1, 1]} : vector<32x256xf32> to vector<32x15xf32>
    %45 = vector.extract_strided_slice %30 {offsets = [0, 0], sizes = [32, 241], strides = [1, 1]} : vector<32x256xf32> to vector<32x241xf32>
    %46 = tpu.concatenate %44, %45 in 1 : vector<32x15xf32>, vector<32x241xf32> -> vector<32x256xf32>
    %47 = vector.extract_strided_slice %2 {offsets = [2, 0], sizes = [1, 256], strides = [1, 1]} : vector<9x256xf32> to vector<1x256xf32>
    %48 = vector.broadcast %47 : vector<1x256xf32> to vector<32x256xf32>
    %49 = arith.mulf %46, %48 : vector<32x256xf32>
    %50 = vector.extract_strided_slice %30 {offsets = [0, 255], sizes = [32, 1], strides = [1, 1]} : vector<32x256xf32> to vector<32x1xf32>
    %51 = vector.extract_strided_slice %30 {offsets = [0, 0], sizes = [32, 255], strides = [1, 1]} : vector<32x256xf32> to vector<32x255xf32>
    %52 = tpu.concatenate %50, %51 in 1 : vector<32x1xf32>, vector<32x255xf32> -> vector<32x256xf32>
    %53 = vector.extract_strided_slice %2 {offsets = [3, 0], sizes = [1, 256], strides = [1, 1]} : vector<9x256xf32> to vector<1x256xf32>
    %54 = vector.broadcast %53 : vector<1x256xf32> to vector<32x256xf32>
    %55 = arith.mulf %52, %54 : vector<32x256xf32>
    %56 = vector.extract_strided_slice %2 {offsets = [4, 0], sizes = [1, 256], strides = [1, 1]} : vector<9x256xf32> to vector<1x256xf32>
    %57 = vector.broadcast %56 : vector<1x256xf32> to vector<32x256xf32>
    %58 = arith.mulf %30, %57 : vector<32x256xf32>
    %59 = vector.extract_strided_slice %30 {offsets = [0, 1], sizes = [32, 255], strides = [1, 1]} : vector<32x256xf32> to vector<32x255xf32>
    %60 = vector.extract_strided_slice %30 {offsets = [0, 0], sizes = [32, 1], strides = [1, 1]} : vector<32x256xf32> to vector<32x1xf32>
    %61 = tpu.concatenate %59, %60 in 1 : vector<32x255xf32>, vector<32x1xf32> -> vector<32x256xf32>
    %62 = vector.extract_strided_slice %2 {offsets = [5, 0], sizes = [1, 256], strides = [1, 1]} : vector<9x256xf32> to vector<1x256xf32>
    %63 = vector.broadcast %62 : vector<1x256xf32> to vector<32x256xf32>
    %64 = arith.mulf %61, %63 : vector<32x256xf32>
    %65 = vector.extract_strided_slice %30 {offsets = [0, 15], sizes = [32, 241], strides = [1, 1]} : vector<32x256xf32> to vector<32x241xf32>
    %66 = vector.extract_strided_slice %30 {offsets = [0, 0], sizes = [32, 15], strides = [1, 1]} : vector<32x256xf32> to vector<32x15xf32>
    %67 = tpu.concatenate %65, %66 in 1 : vector<32x241xf32>, vector<32x15xf32> -> vector<32x256xf32>
    %68 = vector.extract_strided_slice %2 {offsets = [6, 0], sizes = [1, 256], strides = [1, 1]} : vector<9x256xf32> to vector<1x256xf32>
    %69 = vector.broadcast %68 : vector<1x256xf32> to vector<32x256xf32>
    %70 = arith.mulf %67, %69 : vector<32x256xf32>
    %71 = vector.extract_strided_slice %30 {offsets = [0, 16], sizes = [32, 240], strides = [1, 1]} : vector<32x256xf32> to vector<32x240xf32>
    %72 = vector.extract_strided_slice %30 {offsets = [0, 0], sizes = [32, 16], strides = [1, 1]} : vector<32x256xf32> to vector<32x16xf32>
    %73 = tpu.concatenate %71, %72 in 1 : vector<32x240xf32>, vector<32x16xf32> -> vector<32x256xf32>
    %74 = vector.extract_strided_slice %2 {offsets = [7, 0], sizes = [1, 256], strides = [1, 1]} : vector<9x256xf32> to vector<1x256xf32>
    %75 = vector.broadcast %74 : vector<1x256xf32> to vector<32x256xf32>
    %76 = arith.mulf %73, %75 : vector<32x256xf32>
    %77 = vector.extract_strided_slice %30 {offsets = [0, 17], sizes = [32, 239], strides = [1, 1]} : vector<32x256xf32> to vector<32x239xf32>
    %78 = vector.extract_strided_slice %30 {offsets = [0, 0], sizes = [32, 17], strides = [1, 1]} : vector<32x256xf32> to vector<32x17xf32>
    %79 = tpu.concatenate %77, %78 in 1 : vector<32x239xf32>, vector<32x17xf32> -> vector<32x256xf32>
    %80 = vector.extract_strided_slice %2 {offsets = [8, 0], sizes = [1, 256], strides = [1, 1]} : vector<9x256xf32> to vector<1x256xf32>
    %81 = vector.broadcast %80 : vector<1x256xf32> to vector<32x256xf32>
    %82 = arith.mulf %79, %81 : vector<32x256xf32>
    %83 = tpu.concatenate %37, %43, %49, %55, %58, %64, %70, %76, %82 in 0 : vector<32x256xf32>, vector<32x256xf32>, vector<32x256xf32>, vector<32x256xf32>, vector<32x256xf32>, vector<32x256xf32>, vector<32x256xf32>, vector<32x256xf32>, vector<32x256xf32> -> vector<288x256xf32>
    %cst_19 = arith.constant dense<0.000000e+00> : vector<64x256xf32>
    %84 = tpu.matmul %31, %83, %cst_19 {dimension_numbers = #tpu.dot_dimension_numbers<[1], [0], [0], [1], [0, 0, 1, 1], [], []>} : vector<64x288xf32>, vector<288x256xf32>, vector<64x256xf32> -> vector<64x256xf32>
    %c0_20 = arith.constant 0 : index
    %c0_21 = arith.constant 0 : index
    %85 = vector.load %arg7[%c0_20, %c0_21] : memref<64x1xf32, #tpu.memory_space<vmem>>, vector<64x1xf32>
    %86 = vector.broadcast %85 : vector<64x1xf32> to vector<64x256xf32>
    %87 = arith.addf %84, %86 : vector<64x256xf32>
    %c0_22 = arith.constant 0 : index
    %c0_23 = arith.constant 0 : index
    %88 = vector.load %arg8[%c0_22, %c0_23] : memref<64x32xf32, #tpu.memory_space<vmem>>, vector<64x32xf32>
    %c0_24 = arith.constant 0 : index
    %c0_25 = arith.constant 0 : index
    %c0_26 = arith.constant 0 : index
    %89 = vector.load %arg2[%c0_24, %c0_25, %c0_26] : memref<1x32x1xf32, #tpu.memory_space<vmem>>, vector<1x32x1xf32>
    %90 = vector.shape_cast %89 : vector<1x32x1xf32> to vector<32x1xf32>
    %cst_27 = arith.constant dense<0.000000e+00> : vector<64x1xf32>
    %91 = tpu.matmul %88, %90, %cst_27 {dimension_numbers = #tpu.dot_dimension_numbers<[1], [0], [0], [1], [0, 0, 1, 1], [], []>} : vector<64x32xf32>, vector<32x1xf32>, vector<64x1xf32> -> vector<64x1xf32>
    %c0_28 = arith.constant 0 : index
    %c0_29 = arith.constant 0 : index
    %92 = vector.load %arg9[%c0_28, %c0_29] : memref<64x1xf32, #tpu.memory_space<vmem>>, vector<64x1xf32>
    %93 = arith.addf %91, %92 : vector<64x1xf32>
    %94 = vector.broadcast %93 : vector<64x1xf32> to vector<64x256xf32>
    %95 = arith.addf %87, %94 : vector<64x256xf32>
    %c0_30 = arith.constant 0 : index
    %c0_31 = arith.constant 0 : index
    %96 = vector.load %arg10[%c0_30, %c0_31] : memref<64x64xf32, #tpu.memory_space<vmem>>, vector<64x64xf32>
    %c0_32 = arith.constant 0 : index
    %c0_33 = arith.constant 0 : index
    %97 = vector.load %arg11[%c0_32, %c0_33] : memref<64x1xf32, #tpu.memory_space<vmem>>, vector<64x1xf32>
    %c0_34 = arith.constant 0 : index
    %c0_35 = arith.constant 0 : index
    %98 = vector.load %arg12[%c0_34, %c0_35] : memref<64x1xf32, #tpu.memory_space<vmem>>, vector<64x1xf32>
    %cst_36 = arith.constant dense<0.000000e+00> : vector<64xf32>
    %99 = vector.multi_reduction <add>, %95, %cst_36 [1] : vector<64x256xf32> to vector<64xf32>
    %100 = vector.shape_cast %99 : vector<64xf32> to vector<64x1xf32>
    %cst_37 = arith.constant dense<0.000000e+00> : vector<64x1xf32>
    %101 = tpu.matmul %96, %100, %cst_37 {dimension_numbers = #tpu.dot_dimension_numbers<[1], [0], [0], [1], [0, 0, 1, 1], [], []>} : vector<64x64xf32>, vector<64x1xf32>, vector<64x1xf32> -> vector<64x1xf32>
    %102 = vector.broadcast %101 : vector<64x1xf32> to vector<64x256xf32>
    %103 = arith.subf %95, %102 : vector<64x256xf32>
    %104 = arith.mulf %103, %103 : vector<64x256xf32>
    %cst_38 = arith.constant dense<0.000000e+00> : vector<64xf32>
    %105 = vector.multi_reduction <add>, %104, %cst_38 [1] : vector<64x256xf32> to vector<64xf32>
    %106 = vector.shape_cast %105 : vector<64xf32> to vector<64x1xf32>
    %cst_39 = arith.constant dense<0.000000e+00> : vector<64x1xf32>
    %107 = tpu.matmul %96, %106, %cst_39 {dimension_numbers = #tpu.dot_dimension_numbers<[1], [0], [0], [1], [0, 0, 1, 1], [], []>} : vector<64x64xf32>, vector<64x1xf32>, vector<64x1xf32> -> vector<64x1xf32>
    %cst_40 = arith.constant 9.99999974E-6 : f32
    %108 = vector.broadcast %cst_40 : f32 to vector<64x1xf32>
    %109 = arith.addf %107, %108 : vector<64x1xf32>
    %110 = math.rsqrt %109 : vector<64x1xf32>
    %111 = vector.broadcast %110 : vector<64x1xf32> to vector<64x256xf32>
    %112 = arith.mulf %103, %111 : vector<64x256xf32>
    %113 = vector.broadcast %97 : vector<64x1xf32> to vector<64x256xf32>
    %114 = arith.mulf %112, %113 : vector<64x256xf32>
    %115 = vector.broadcast %98 : vector<64x1xf32> to vector<64x256xf32>
    %116 = arith.addf %114, %115 : vector<64x256xf32>
    %117 = arith.negf %116 : vector<64x256xf32>
    %118 = math.exp %117 : vector<64x256xf32>
    %cst_41 = arith.constant 1.000000e+00 : f32
    %119 = vector.broadcast %cst_41 : f32 to vector<64x256xf32>
    %120 = arith.addf %119, %118 : vector<64x256xf32>
    %121 = arith.divf %119, %120 : vector<64x256xf32>
    %122 = arith.mulf %116, %121 : vector<64x256xf32>
    %c0_42 = arith.constant 0 : index
    %c0_43 = arith.constant 0 : index
    %123 = vector.load %arg13[%c0_42, %c0_43] : memref<64x576xf32, #tpu.memory_space<vmem>>, vector<64x576xf32>
    %124 = vector.extract_strided_slice %122 {offsets = [0, 239], sizes = [64, 17], strides = [1, 1]} : vector<64x256xf32> to vector<64x17xf32>
    %125 = vector.extract_strided_slice %122 {offsets = [0, 0], sizes = [64, 239], strides = [1, 1]} : vector<64x256xf32> to vector<64x239xf32>
    %126 = tpu.concatenate %124, %125 in 1 : vector<64x17xf32>, vector<64x239xf32> -> vector<64x256xf32>
    %127 = vector.extract_strided_slice %2 {offsets = [0, 0], sizes = [1, 256], strides = [1, 1]} : vector<9x256xf32> to vector<1x256xf32>
    %128 = vector.broadcast %127 : vector<1x256xf32> to vector<64x256xf32>
    %129 = arith.mulf %126, %128 : vector<64x256xf32>
    %130 = vector.extract_strided_slice %122 {offsets = [0, 240], sizes = [64, 16], strides = [1, 1]} : vector<64x256xf32> to vector<64x16xf32>
    %131 = vector.extract_strided_slice %122 {offsets = [0, 0], sizes = [64, 240], strides = [1, 1]} : vector<64x256xf32> to vector<64x240xf32>
    %132 = tpu.concatenate %130, %131 in 1 : vector<64x16xf32>, vector<64x240xf32> -> vector<64x256xf32>
    %133 = vector.extract_strided_slice %2 {offsets = [1, 0], sizes = [1, 256], strides = [1, 1]} : vector<9x256xf32> to vector<1x256xf32>
    %134 = vector.broadcast %133 : vector<1x256xf32> to vector<64x256xf32>
    %135 = arith.mulf %132, %134 : vector<64x256xf32>
    %136 = vector.extract_strided_slice %122 {offsets = [0, 241], sizes = [64, 15], strides = [1, 1]} : vector<64x256xf32> to vector<64x15xf32>
    %137 = vector.extract_strided_slice %122 {offsets = [0, 0], sizes = [64, 241], strides = [1, 1]} : vector<64x256xf32> to vector<64x241xf32>
    %138 = tpu.concatenate %136, %137 in 1 : vector<64x15xf32>, vector<64x241xf32> -> vector<64x256xf32>
    %139 = vector.extract_strided_slice %2 {offsets = [2, 0], sizes = [1, 256], strides = [1, 1]} : vector<9x256xf32> to vector<1x256xf32>
    %140 = vector.broadcast %139 : vector<1x256xf32> to vector<64x256xf32>
    %141 = arith.mulf %138, %140 : vector<64x256xf32>
    %142 = vector.extract_strided_slice %122 {offsets = [0, 255], sizes = [64, 1], strides = [1, 1]} : vector<64x256xf32> to vector<64x1xf32>
    %143 = vector.extract_strided_slice %122 {offsets = [0, 0], sizes = [64, 255], strides = [1, 1]} : vector<64x256xf32> to vector<64x255xf32>
    %144 = tpu.concatenate %142, %143 in 1 : vector<64x1xf32>, vector<64x255xf32> -> vector<64x256xf32>
    %145 = vector.extract_strided_slice %2 {offsets = [3, 0], sizes = [1, 256], strides = [1, 1]} : vector<9x256xf32> to vector<1x256xf32>
    %146 = vector.broadcast %145 : vector<1x256xf32> to vector<64x256xf32>
    %147 = arith.mulf %144, %146 : vector<64x256xf32>
    %148 = vector.extract_strided_slice %2 {offsets = [4, 0], sizes = [1, 256], strides = [1, 1]} : vector<9x256xf32> to vector<1x256xf32>
    %149 = vector.broadcast %148 : vector<1x256xf32> to vector<64x256xf32>
    %150 = arith.mulf %122, %149 : vector<64x256xf32>
    %151 = vector.extract_strided_slice %122 {offsets = [0, 1], sizes = [64, 255], strides = [1, 1]} : vector<64x256xf32> to vector<64x255xf32>
    %152 = vector.extract_strided_slice %122 {offsets = [0, 0], sizes = [64, 1], strides = [1, 1]} : vector<64x256xf32> to vector<64x1xf32>
    %153 = tpu.concatenate %151, %152 in 1 : vector<64x255xf32>, vector<64x1xf32> -> vector<64x256xf32>
    %154 = vector.extract_strided_slice %2 {offsets = [5, 0], sizes = [1, 256], strides = [1, 1]} : vector<9x256xf32> to vector<1x256xf32>
    %155 = vector.broadcast %154 : vector<1x256xf32> to vector<64x256xf32>
    %156 = arith.mulf %153, %155 : vector<64x256xf32>
    %157 = vector.extract_strided_slice %122 {offsets = [0, 15], sizes = [64, 241], strides = [1, 1]} : vector<64x256xf32> to vector<64x241xf32>
    %158 = vector.extract_strided_slice %122 {offsets = [0, 0], sizes = [64, 15], strides = [1, 1]} : vector<64x256xf32> to vector<64x15xf32>
    %159 = tpu.concatenate %157, %158 in 1 : vector<64x241xf32>, vector<64x15xf32> -> vector<64x256xf32>
    %160 = vector.extract_strided_slice %2 {offsets = [6, 0], sizes = [1, 256], strides = [1, 1]} : vector<9x256xf32> to vector<1x256xf32>
    %161 = vector.broadcast %160 : vector<1x256xf32> to vector<64x256xf32>
    %162 = arith.mulf %159, %161 : vector<64x256xf32>
    %163 = vector.extract_strided_slice %122 {offsets = [0, 16], sizes = [64, 240], strides = [1, 1]} : vector<64x256xf32> to vector<64x240xf32>
    %164 = vector.extract_strided_slice %122 {offsets = [0, 0], sizes = [64, 16], strides = [1, 1]} : vector<64x256xf32> to vector<64x16xf32>
    %165 = tpu.concatenate %163, %164 in 1 : vector<64x240xf32>, vector<64x16xf32> -> vector<64x256xf32>
    %166 = vector.extract_strided_slice %2 {offsets = [7, 0], sizes = [1, 256], strides = [1, 1]} : vector<9x256xf32> to vector<1x256xf32>
    %167 = vector.broadcast %166 : vector<1x256xf32> to vector<64x256xf32>
    %168 = arith.mulf %165, %167 : vector<64x256xf32>
    %169 = vector.extract_strided_slice %122 {offsets = [0, 17], sizes = [64, 239], strides = [1, 1]} : vector<64x256xf32> to vector<64x239xf32>
    %170 = vector.extract_strided_slice %122 {offsets = [0, 0], sizes = [64, 17], strides = [1, 1]} : vector<64x256xf32> to vector<64x17xf32>
    %171 = tpu.concatenate %169, %170 in 1 : vector<64x239xf32>, vector<64x17xf32> -> vector<64x256xf32>
    %172 = vector.extract_strided_slice %2 {offsets = [8, 0], sizes = [1, 256], strides = [1, 1]} : vector<9x256xf32> to vector<1x256xf32>
    %173 = vector.broadcast %172 : vector<1x256xf32> to vector<64x256xf32>
    %174 = arith.mulf %171, %173 : vector<64x256xf32>
    %175 = tpu.concatenate %129, %135, %141, %147, %150, %156, %162, %168, %174 in 0 : vector<64x256xf32>, vector<64x256xf32>, vector<64x256xf32>, vector<64x256xf32>, vector<64x256xf32>, vector<64x256xf32>, vector<64x256xf32>, vector<64x256xf32>, vector<64x256xf32> -> vector<576x256xf32>
    %cst_44 = arith.constant dense<0.000000e+00> : vector<64x256xf32>
    %176 = tpu.matmul %123, %175, %cst_44 {dimension_numbers = #tpu.dot_dimension_numbers<[1], [0], [0], [1], [0, 0, 1, 1], [], []>} : vector<64x576xf32>, vector<576x256xf32>, vector<64x256xf32> -> vector<64x256xf32>
    %c0_45 = arith.constant 0 : index
    %c0_46 = arith.constant 0 : index
    %177 = vector.load %arg14[%c0_45, %c0_46] : memref<64x1xf32, #tpu.memory_space<vmem>>, vector<64x1xf32>
    %178 = vector.broadcast %177 : vector<64x1xf32> to vector<64x256xf32>
    %179 = arith.addf %176, %178 : vector<64x256xf32>
    %c0_47 = arith.constant 0 : index
    %c0_48 = arith.constant 0 : index
    %180 = vector.load %arg15[%c0_47, %c0_48] : memref<64x32xf32, #tpu.memory_space<vmem>>, vector<64x32xf32>
    %cst_49 = arith.constant dense<0.000000e+00> : vector<64x256xf32>
    %181 = tpu.matmul %180, %1, %cst_49 {dimension_numbers = #tpu.dot_dimension_numbers<[1], [0], [0], [1], [0, 0, 1, 1], [], []>} : vector<64x32xf32>, vector<32x256xf32>, vector<64x256xf32> -> vector<64x256xf32>
    %182 = arith.addf %179, %181 : vector<64x256xf32>
    %c0_50 = arith.constant 0 : index
    %c0_51 = arith.constant 0 : index
    %183 = vector.load %arg16[%c0_50, %c0_51] : memref<64x1xf32, #tpu.memory_space<vmem>>, vector<64x1xf32>
    %184 = vector.broadcast %183 : vector<64x1xf32> to vector<64x256xf32>
    %185 = arith.addf %182, %184 : vector<64x256xf32>
    %cst_52 = arith.constant dense<0.000000e+00> : vector<64xf32>
    %186 = vector.multi_reduction <add>, %185, %cst_52 [1] : vector<64x256xf32> to vector<64xf32>
    %187 = vector.shape_cast %186 : vector<64xf32> to vector<64x1xf32>
    %cst_53 = arith.constant 2.560000e+02 : f32
    %188 = vector.broadcast %cst_53 : f32 to vector<64x1xf32>
    %189 = arith.divf %187, %188 : vector<64x1xf32>
    %cst_54 = arith.constant dense<0xFF800000> : vector<64xf32>
    %190 = vector.multi_reduction <maximumf>, %185, %cst_54 [1] : vector<64x256xf32> to vector<64xf32>
    %191 = vector.shape_cast %190 : vector<64xf32> to vector<64x1xf32>
    %192 = tpu.concatenate %189, %191 in 1 : vector<64x1xf32>, vector<64x1xf32> -> vector<64x2xf32>
    %c0_55 = arith.constant 0 : index
    %c0_56 = arith.constant 0 : index
    %193 = vector.load %arg17[%c0_55, %c0_56] : memref<4x64xf32, #tpu.memory_space<vmem>>, vector<4x64xf32>
    %cst_57 = arith.constant dense<0.000000e+00> : vector<4x2xf32>
    %194 = tpu.matmul %193, %192, %cst_57 {dimension_numbers = #tpu.dot_dimension_numbers<[1], [0], [0], [1], [0, 0, 1, 1], [], []>} : vector<4x64xf32>, vector<64x2xf32>, vector<4x2xf32> -> vector<4x2xf32>
    %cst_58 = arith.constant 0.000000e+00 : f32
    %195 = vector.broadcast %cst_58 : f32 to vector<4x2xf32>
    %196 = arith.maximumf %194, %195 : vector<4x2xf32>
    %c0_59 = arith.constant 0 : index
    %c0_60 = arith.constant 0 : index
    %197 = vector.load %arg18[%c0_59, %c0_60] : memref<64x4xf32, #tpu.memory_space<vmem>>, vector<64x4xf32>
    %cst_61 = arith.constant dense<0.000000e+00> : vector<64x2xf32>
    %198 = tpu.matmul %197, %196, %cst_61 {dimension_numbers = #tpu.dot_dimension_numbers<[1], [0], [0], [1], [0, 0, 1, 1], [], []>} : vector<64x4xf32>, vector<4x2xf32>, vector<64x2xf32> -> vector<64x2xf32>
    %199 = vector.extract_strided_slice %198 {offsets = [0, 0], sizes = [64, 1], strides = [1, 1]} : vector<64x2xf32> to vector<64x1xf32>
    %200 = vector.extract_strided_slice %198 {offsets = [0, 1], sizes = [64, 1], strides = [1, 1]} : vector<64x2xf32> to vector<64x1xf32>
    %201 = arith.addf %199, %200 : vector<64x1xf32>
    %202 = arith.negf %201 : vector<64x1xf32>
    %203 = math.exp %202 : vector<64x1xf32>
    %cst_62 = arith.constant 1.000000e+00 : f32
    %204 = vector.broadcast %cst_62 : f32 to vector<64x1xf32>
    %205 = arith.addf %204, %203 : vector<64x1xf32>
    %206 = arith.divf %204, %205 : vector<64x1xf32>
    %207 = vector.broadcast %206 : vector<64x1xf32> to vector<64x256xf32>
    %208 = arith.mulf %185, %207 : vector<64x256xf32>
    %cst_63 = arith.constant dense<0.000000e+00> : vector<256xf32>
    %209 = vector.multi_reduction <add>, %208, %cst_63 [0] : vector<64x256xf32> to vector<256xf32>
    %210 = vector.shape_cast %209 : vector<256xf32> to vector<1x256xf32>
    %cst_64 = arith.constant 6.400000e+01 : f32
    %211 = vector.broadcast %cst_64 : f32 to vector<1x256xf32>
    %212 = arith.divf %210, %211 : vector<1x256xf32>
    %cst_65 = arith.constant dense<0xFF800000> : vector<256xf32>
    %213 = vector.multi_reduction <maximumf>, %208, %cst_65 [0] : vector<64x256xf32> to vector<256xf32>
    %214 = vector.shape_cast %213 : vector<256xf32> to vector<1x256xf32>
    %215 = tpu.concatenate %212, %214 in 0 : vector<1x256xf32>, vector<1x256xf32> -> vector<2x256xf32>
    %c0_66 = arith.constant 0 : index
    %c0_67 = arith.constant 0 : index
    %216 = vector.load %arg19[%c0_66, %c0_67] : memref<1x98xf32, #tpu.memory_space<vmem>>, vector<1x98xf32>
    %217 = vector.extract_strided_slice %215 {offsets = [0, 205], sizes = [2, 51], strides = [1, 1]} : vector<2x256xf32> to vector<2x51xf32>
    %218 = vector.extract_strided_slice %215 {offsets = [0, 0], sizes = [2, 205], strides = [1, 1]} : vector<2x256xf32> to vector<2x205xf32>
    %219 = tpu.concatenate %217, %218 in 1 : vector<2x51xf32>, vector<2x205xf32> -> vector<2x256xf32>
    %220 = vector.extract_strided_slice %3 {offsets = [0, 0], sizes = [1, 256], strides = [1, 1]} : vector<49x256xf32> to vector<1x256xf32>
    %221 = vector.broadcast %220 : vector<1x256xf32> to vector<2x256xf32>
    %222 = arith.mulf %219, %221 : vector<2x256xf32>
    %223 = vector.extract_strided_slice %215 {offsets = [0, 206], sizes = [2, 50], strides = [1, 1]} : vector<2x256xf32> to vector<2x50xf32>
    %224 = vector.extract_strided_slice %215 {offsets = [0, 0], sizes = [2, 206], strides = [1, 1]} : vector<2x256xf32> to vector<2x206xf32>
    %225 = tpu.concatenate %223, %224 in 1 : vector<2x50xf32>, vector<2x206xf32> -> vector<2x256xf32>
    %226 = vector.extract_strided_slice %3 {offsets = [1, 0], sizes = [1, 256], strides = [1, 1]} : vector<49x256xf32> to vector<1x256xf32>
    %227 = vector.broadcast %226 : vector<1x256xf32> to vector<2x256xf32>
    %228 = arith.mulf %225, %227 : vector<2x256xf32>
    %229 = vector.extract_strided_slice %215 {offsets = [0, 207], sizes = [2, 49], strides = [1, 1]} : vector<2x256xf32> to vector<2x49xf32>
    %230 = vector.extract_strided_slice %215 {offsets = [0, 0], sizes = [2, 207], strides = [1, 1]} : vector<2x256xf32> to vector<2x207xf32>
    %231 = tpu.concatenate %229, %230 in 1 : vector<2x49xf32>, vector<2x207xf32> -> vector<2x256xf32>
    %232 = vector.extract_strided_slice %3 {offsets = [2, 0], sizes = [1, 256], strides = [1, 1]} : vector<49x256xf32> to vector<1x256xf32>
    %233 = vector.broadcast %232 : vector<1x256xf32> to vector<2x256xf32>
    %234 = arith.mulf %231, %233 : vector<2x256xf32>
    %235 = vector.extract_strided_slice %215 {offsets = [0, 208], sizes = [2, 48], strides = [1, 1]} : vector<2x256xf32> to vector<2x48xf32>
    %236 = vector.extract_strided_slice %215 {offsets = [0, 0], sizes = [2, 208], strides = [1, 1]} : vector<2x256xf32> to vector<2x208xf32>
    %237 = tpu.concatenate %235, %236 in 1 : vector<2x48xf32>, vector<2x208xf32> -> vector<2x256xf32>
    %238 = vector.extract_strided_slice %3 {offsets = [3, 0], sizes = [1, 256], strides = [1, 1]} : vector<49x256xf32> to vector<1x256xf32>
    %239 = vector.broadcast %238 : vector<1x256xf32> to vector<2x256xf32>
    %240 = arith.mulf %237, %239 : vector<2x256xf32>
    %241 = vector.extract_strided_slice %215 {offsets = [0, 209], sizes = [2, 47], strides = [1, 1]} : vector<2x256xf32> to vector<2x47xf32>
    %242 = vector.extract_strided_slice %215 {offsets = [0, 0], sizes = [2, 209], strides = [1, 1]} : vector<2x256xf32> to vector<2x209xf32>
    %243 = tpu.concatenate %241, %242 in 1 : vector<2x47xf32>, vector<2x209xf32> -> vector<2x256xf32>
    %244 = vector.extract_strided_slice %3 {offsets = [4, 0], sizes = [1, 256], strides = [1, 1]} : vector<49x256xf32> to vector<1x256xf32>
    %245 = vector.broadcast %244 : vector<1x256xf32> to vector<2x256xf32>
    %246 = arith.mulf %243, %245 : vector<2x256xf32>
    %247 = vector.extract_strided_slice %215 {offsets = [0, 210], sizes = [2, 46], strides = [1, 1]} : vector<2x256xf32> to vector<2x46xf32>
    %248 = vector.extract_strided_slice %215 {offsets = [0, 0], sizes = [2, 210], strides = [1, 1]} : vector<2x256xf32> to vector<2x210xf32>
    %249 = tpu.concatenate %247, %248 in 1 : vector<2x46xf32>, vector<2x210xf32> -> vector<2x256xf32>
    %250 = vector.extract_strided_slice %3 {offsets = [5, 0], sizes = [1, 256], strides = [1, 1]} : vector<49x256xf32> to vector<1x256xf32>
    %251 = vector.broadcast %250 : vector<1x256xf32> to vector<2x256xf32>
    %252 = arith.mulf %249, %251 : vector<2x256xf32>
    %253 = vector.extract_strided_slice %215 {offsets = [0, 211], sizes = [2, 45], strides = [1, 1]} : vector<2x256xf32> to vector<2x45xf32>
    %254 = vector.extract_strided_slice %215 {offsets = [0, 0], sizes = [2, 211], strides = [1, 1]} : vector<2x256xf32> to vector<2x211xf32>
    %255 = tpu.concatenate %253, %254 in 1 : vector<2x45xf32>, vector<2x211xf32> -> vector<2x256xf32>
    %256 = vector.extract_strided_slice %3 {offsets = [6, 0], sizes = [1, 256], strides = [1, 1]} : vector<49x256xf32> to vector<1x256xf32>
    %257 = vector.broadcast %256 : vector<1x256xf32> to vector<2x256xf32>
    %258 = arith.mulf %255, %257 : vector<2x256xf32>
    %259 = vector.extract_strided_slice %215 {offsets = [0, 221], sizes = [2, 35], strides = [1, 1]} : vector<2x256xf32> to vector<2x35xf32>
    %260 = vector.extract_strided_slice %215 {offsets = [0, 0], sizes = [2, 221], strides = [1, 1]} : vector<2x256xf32> to vector<2x221xf32>
    %261 = tpu.concatenate %259, %260 in 1 : vector<2x35xf32>, vector<2x221xf32> -> vector<2x256xf32>
    %262 = vector.extract_strided_slice %3 {offsets = [7, 0], sizes = [1, 256], strides = [1, 1]} : vector<49x256xf32> to vector<1x256xf32>
    %263 = vector.broadcast %262 : vector<1x256xf32> to vector<2x256xf32>
    %264 = arith.mulf %261, %263 : vector<2x256xf32>
    %265 = vector.extract_strided_slice %215 {offsets = [0, 222], sizes = [2, 34], strides = [1, 1]} : vector<2x256xf32> to vector<2x34xf32>
    %266 = vector.extract_strided_slice %215 {offsets = [0, 0], sizes = [2, 222], strides = [1, 1]} : vector<2x256xf32> to vector<2x222xf32>
    %267 = tpu.concatenate %265, %266 in 1 : vector<2x34xf32>, vector<2x222xf32> -> vector<2x256xf32>
    %268 = vector.extract_strided_slice %3 {offsets = [8, 0], sizes = [1, 256], strides = [1, 1]} : vector<49x256xf32> to vector<1x256xf32>
    %269 = vector.broadcast %268 : vector<1x256xf32> to vector<2x256xf32>
    %270 = arith.mulf %267, %269 : vector<2x256xf32>
    %271 = vector.extract_strided_slice %215 {offsets = [0, 223], sizes = [2, 33], strides = [1, 1]} : vector<2x256xf32> to vector<2x33xf32>
    %272 = vector.extract_strided_slice %215 {offsets = [0, 0], sizes = [2, 223], strides = [1, 1]} : vector<2x256xf32> to vector<2x223xf32>
    %273 = tpu.concatenate %271, %272 in 1 : vector<2x33xf32>, vector<2x223xf32> -> vector<2x256xf32>
    %274 = vector.extract_strided_slice %3 {offsets = [9, 0], sizes = [1, 256], strides = [1, 1]} : vector<49x256xf32> to vector<1x256xf32>
    %275 = vector.broadcast %274 : vector<1x256xf32> to vector<2x256xf32>
    %276 = arith.mulf %273, %275 : vector<2x256xf32>
    %277 = vector.extract_strided_slice %215 {offsets = [0, 224], sizes = [2, 32], strides = [1, 1]} : vector<2x256xf32> to vector<2x32xf32>
    %278 = vector.extract_strided_slice %215 {offsets = [0, 0], sizes = [2, 224], strides = [1, 1]} : vector<2x256xf32> to vector<2x224xf32>
    %279 = tpu.concatenate %277, %278 in 1 : vector<2x32xf32>, vector<2x224xf32> -> vector<2x256xf32>
    %280 = vector.extract_strided_slice %3 {offsets = [10, 0], sizes = [1, 256], strides = [1, 1]} : vector<49x256xf32> to vector<1x256xf32>
    %281 = vector.broadcast %280 : vector<1x256xf32> to vector<2x256xf32>
    %282 = arith.mulf %279, %281 : vector<2x256xf32>
    %283 = vector.extract_strided_slice %215 {offsets = [0, 225], sizes = [2, 31], strides = [1, 1]} : vector<2x256xf32> to vector<2x31xf32>
    %284 = vector.extract_strided_slice %215 {offsets = [0, 0], sizes = [2, 225], strides = [1, 1]} : vector<2x256xf32> to vector<2x225xf32>
    %285 = tpu.concatenate %283, %284 in 1 : vector<2x31xf32>, vector<2x225xf32> -> vector<2x256xf32>
    %286 = vector.extract_strided_slice %3 {offsets = [11, 0], sizes = [1, 256], strides = [1, 1]} : vector<49x256xf32> to vector<1x256xf32>
    %287 = vector.broadcast %286 : vector<1x256xf32> to vector<2x256xf32>
    %288 = arith.mulf %285, %287 : vector<2x256xf32>
    %289 = vector.extract_strided_slice %215 {offsets = [0, 226], sizes = [2, 30], strides = [1, 1]} : vector<2x256xf32> to vector<2x30xf32>
    %290 = vector.extract_strided_slice %215 {offsets = [0, 0], sizes = [2, 226], strides = [1, 1]} : vector<2x256xf32> to vector<2x226xf32>
    %291 = tpu.concatenate %289, %290 in 1 : vector<2x30xf32>, vector<2x226xf32> -> vector<2x256xf32>
    %292 = vector.extract_strided_slice %3 {offsets = [12, 0], sizes = [1, 256], strides = [1, 1]} : vector<49x256xf32> to vector<1x256xf32>
    %293 = vector.broadcast %292 : vector<1x256xf32> to vector<2x256xf32>
    %294 = arith.mulf %291, %293 : vector<2x256xf32>
    %295 = vector.extract_strided_slice %215 {offsets = [0, 227], sizes = [2, 29], strides = [1, 1]} : vector<2x256xf32> to vector<2x29xf32>
    %296 = vector.extract_strided_slice %215 {offsets = [0, 0], sizes = [2, 227], strides = [1, 1]} : vector<2x256xf32> to vector<2x227xf32>
    %297 = tpu.concatenate %295, %296 in 1 : vector<2x29xf32>, vector<2x227xf32> -> vector<2x256xf32>
    %298 = vector.extract_strided_slice %3 {offsets = [13, 0], sizes = [1, 256], strides = [1, 1]} : vector<49x256xf32> to vector<1x256xf32>
    %299 = vector.broadcast %298 : vector<1x256xf32> to vector<2x256xf32>
    %300 = arith.mulf %297, %299 : vector<2x256xf32>
    %301 = vector.extract_strided_slice %215 {offsets = [0, 237], sizes = [2, 19], strides = [1, 1]} : vector<2x256xf32> to vector<2x19xf32>
    %302 = vector.extract_strided_slice %215 {offsets = [0, 0], sizes = [2, 237], strides = [1, 1]} : vector<2x256xf32> to vector<2x237xf32>
    %303 = tpu.concatenate %301, %302 in 1 : vector<2x19xf32>, vector<2x237xf32> -> vector<2x256xf32>
    %304 = vector.extract_strided_slice %3 {offsets = [14, 0], sizes = [1, 256], strides = [1, 1]} : vector<49x256xf32> to vector<1x256xf32>
    %305 = vector.broadcast %304 : vector<1x256xf32> to vector<2x256xf32>
    %306 = arith.mulf %303, %305 : vector<2x256xf32>
    %307 = vector.extract_strided_slice %215 {offsets = [0, 238], sizes = [2, 18], strides = [1, 1]} : vector<2x256xf32> to vector<2x18xf32>
    %308 = vector.extract_strided_slice %215 {offsets = [0, 0], sizes = [2, 238], strides = [1, 1]} : vector<2x256xf32> to vector<2x238xf32>
    %309 = tpu.concatenate %307, %308 in 1 : vector<2x18xf32>, vector<2x238xf32> -> vector<2x256xf32>
    %310 = vector.extract_strided_slice %3 {offsets = [15, 0], sizes = [1, 256], strides = [1, 1]} : vector<49x256xf32> to vector<1x256xf32>
    %311 = vector.broadcast %310 : vector<1x256xf32> to vector<2x256xf32>
    %312 = arith.mulf %309, %311 : vector<2x256xf32>
    %313 = vector.extract_strided_slice %215 {offsets = [0, 239], sizes = [2, 17], strides = [1, 1]} : vector<2x256xf32> to vector<2x17xf32>
    %314 = vector.extract_strided_slice %215 {offsets = [0, 0], sizes = [2, 239], strides = [1, 1]} : vector<2x256xf32> to vector<2x239xf32>
    %315 = tpu.concatenate %313, %314 in 1 : vector<2x17xf32>, vector<2x239xf32> -> vector<2x256xf32>
    %316 = vector.extract_strided_slice %3 {offsets = [16, 0], sizes = [1, 256], strides = [1, 1]} : vector<49x256xf32> to vector<1x256xf32>
    %317 = vector.broadcast %316 : vector<1x256xf32> to vector<2x256xf32>
    %318 = arith.mulf %315, %317 : vector<2x256xf32>
    %319 = vector.extract_strided_slice %215 {offsets = [0, 240], sizes = [2, 16], strides = [1, 1]} : vector<2x256xf32> to vector<2x16xf32>
    %320 = vector.extract_strided_slice %215 {offsets = [0, 0], sizes = [2, 240], strides = [1, 1]} : vector<2x256xf32> to vector<2x240xf32>
    %321 = tpu.concatenate %319, %320 in 1 : vector<2x16xf32>, vector<2x240xf32> -> vector<2x256xf32>
    %322 = vector.extract_strided_slice %3 {offsets = [17, 0], sizes = [1, 256], strides = [1, 1]} : vector<49x256xf32> to vector<1x256xf32>
    %323 = vector.broadcast %322 : vector<1x256xf32> to vector<2x256xf32>
    %324 = arith.mulf %321, %323 : vector<2x256xf32>
    %325 = vector.extract_strided_slice %215 {offsets = [0, 241], sizes = [2, 15], strides = [1, 1]} : vector<2x256xf32> to vector<2x15xf32>
    %326 = vector.extract_strided_slice %215 {offsets = [0, 0], sizes = [2, 241], strides = [1, 1]} : vector<2x256xf32> to vector<2x241xf32>
    %327 = tpu.concatenate %325, %326 in 1 : vector<2x15xf32>, vector<2x241xf32> -> vector<2x256xf32>
    %328 = vector.extract_strided_slice %3 {offsets = [18, 0], sizes = [1, 256], strides = [1, 1]} : vector<49x256xf32> to vector<1x256xf32>
    %329 = vector.broadcast %328 : vector<1x256xf32> to vector<2x256xf32>
    %330 = arith.mulf %327, %329 : vector<2x256xf32>
    %331 = vector.extract_strided_slice %215 {offsets = [0, 242], sizes = [2, 14], strides = [1, 1]} : vector<2x256xf32> to vector<2x14xf32>
    %332 = vector.extract_strided_slice %215 {offsets = [0, 0], sizes = [2, 242], strides = [1, 1]} : vector<2x256xf32> to vector<2x242xf32>
    %333 = tpu.concatenate %331, %332 in 1 : vector<2x14xf32>, vector<2x242xf32> -> vector<2x256xf32>
    %334 = vector.extract_strided_slice %3 {offsets = [19, 0], sizes = [1, 256], strides = [1, 1]} : vector<49x256xf32> to vector<1x256xf32>
    %335 = vector.broadcast %334 : vector<1x256xf32> to vector<2x256xf32>
    %336 = arith.mulf %333, %335 : vector<2x256xf32>
    %337 = vector.extract_strided_slice %215 {offsets = [0, 243], sizes = [2, 13], strides = [1, 1]} : vector<2x256xf32> to vector<2x13xf32>
    %338 = vector.extract_strided_slice %215 {offsets = [0, 0], sizes = [2, 243], strides = [1, 1]} : vector<2x256xf32> to vector<2x243xf32>
    %339 = tpu.concatenate %337, %338 in 1 : vector<2x13xf32>, vector<2x243xf32> -> vector<2x256xf32>
    %340 = vector.extract_strided_slice %3 {offsets = [20, 0], sizes = [1, 256], strides = [1, 1]} : vector<49x256xf32> to vector<1x256xf32>
    %341 = vector.broadcast %340 : vector<1x256xf32> to vector<2x256xf32>
    %342 = arith.mulf %339, %341 : vector<2x256xf32>
    %343 = vector.extract_strided_slice %215 {offsets = [0, 253], sizes = [2, 3], strides = [1, 1]} : vector<2x256xf32> to vector<2x3xf32>
    %344 = vector.extract_strided_slice %215 {offsets = [0, 0], sizes = [2, 253], strides = [1, 1]} : vector<2x256xf32> to vector<2x253xf32>
    %345 = tpu.concatenate %343, %344 in 1 : vector<2x3xf32>, vector<2x253xf32> -> vector<2x256xf32>
    %346 = vector.extract_strided_slice %3 {offsets = [21, 0], sizes = [1, 256], strides = [1, 1]} : vector<49x256xf32> to vector<1x256xf32>
    %347 = vector.broadcast %346 : vector<1x256xf32> to vector<2x256xf32>
    %348 = arith.mulf %345, %347 : vector<2x256xf32>
    %349 = vector.extract_strided_slice %215 {offsets = [0, 254], sizes = [2, 2], strides = [1, 1]} : vector<2x256xf32> to vector<2x2xf32>
    %350 = vector.extract_strided_slice %215 {offsets = [0, 0], sizes = [2, 254], strides = [1, 1]} : vector<2x256xf32> to vector<2x254xf32>
    %351 = tpu.concatenate %349, %350 in 1 : vector<2x2xf32>, vector<2x254xf32> -> vector<2x256xf32>
    %352 = vector.extract_strided_slice %3 {offsets = [22, 0], sizes = [1, 256], strides = [1, 1]} : vector<49x256xf32> to vector<1x256xf32>
    %353 = vector.broadcast %352 : vector<1x256xf32> to vector<2x256xf32>
    %354 = arith.mulf %351, %353 : vector<2x256xf32>
    %355 = vector.extract_strided_slice %215 {offsets = [0, 255], sizes = [2, 1], strides = [1, 1]} : vector<2x256xf32> to vector<2x1xf32>
    %356 = vector.extract_strided_slice %215 {offsets = [0, 0], sizes = [2, 255], strides = [1, 1]} : vector<2x256xf32> to vector<2x255xf32>
    %357 = tpu.concatenate %355, %356 in 1 : vector<2x1xf32>, vector<2x255xf32> -> vector<2x256xf32>
    %358 = vector.extract_strided_slice %3 {offsets = [23, 0], sizes = [1, 256], strides = [1, 1]} : vector<49x256xf32> to vector<1x256xf32>
    %359 = vector.broadcast %358 : vector<1x256xf32> to vector<2x256xf32>
    %360 = arith.mulf %357, %359 : vector<2x256xf32>
    %361 = vector.extract_strided_slice %3 {offsets = [24, 0], sizes = [1, 256], strides = [1, 1]} : vector<49x256xf32> to vector<1x256xf32>
    %362 = vector.broadcast %361 : vector<1x256xf32> to vector<2x256xf32>
    %363 = arith.mulf %215, %362 : vector<2x256xf32>
    %364 = vector.extract_strided_slice %215 {offsets = [0, 1], sizes = [2, 255], strides = [1, 1]} : vector<2x256xf32> to vector<2x255xf32>
    %365 = vector.extract_strided_slice %215 {offsets = [0, 0], sizes = [2, 1], strides = [1, 1]} : vector<2x256xf32> to vector<2x1xf32>
    %366 = tpu.concatenate %364, %365 in 1 : vector<2x255xf32>, vector<2x1xf32> -> vector<2x256xf32>
    %367 = vector.extract_strided_slice %3 {offsets = [25, 0], sizes = [1, 256], strides = [1, 1]} : vector<49x256xf32> to vector<1x256xf32>
    %368 = vector.broadcast %367 : vector<1x256xf32> to vector<2x256xf32>
    %369 = arith.mulf %366, %368 : vector<2x256xf32>
    %370 = vector.extract_strided_slice %215 {offsets = [0, 2], sizes = [2, 254], strides = [1, 1]} : vector<2x256xf32> to vector<2x254xf32>
    %371 = vector.extract_strided_slice %215 {offsets = [0, 0], sizes = [2, 2], strides = [1, 1]} : vector<2x256xf32> to vector<2x2xf32>
    %372 = tpu.concatenate %370, %371 in 1 : vector<2x254xf32>, vector<2x2xf32> -> vector<2x256xf32>
    %373 = vector.extract_strided_slice %3 {offsets = [26, 0], sizes = [1, 256], strides = [1, 1]} : vector<49x256xf32> to vector<1x256xf32>
    %374 = vector.broadcast %373 : vector<1x256xf32> to vector<2x256xf32>
    %375 = arith.mulf %372, %374 : vector<2x256xf32>
    %376 = vector.extract_strided_slice %215 {offsets = [0, 3], sizes = [2, 253], strides = [1, 1]} : vector<2x256xf32> to vector<2x253xf32>
    %377 = vector.extract_strided_slice %215 {offsets = [0, 0], sizes = [2, 3], strides = [1, 1]} : vector<2x256xf32> to vector<2x3xf32>
    %378 = tpu.concatenate %376, %377 in 1 : vector<2x253xf32>, vector<2x3xf32> -> vector<2x256xf32>
    %379 = vector.extract_strided_slice %3 {offsets = [27, 0], sizes = [1, 256], strides = [1, 1]} : vector<49x256xf32> to vector<1x256xf32>
    %380 = vector.broadcast %379 : vector<1x256xf32> to vector<2x256xf32>
    %381 = arith.mulf %378, %380 : vector<2x256xf32>
    %382 = vector.extract_strided_slice %215 {offsets = [0, 13], sizes = [2, 243], strides = [1, 1]} : vector<2x256xf32> to vector<2x243xf32>
    %383 = vector.extract_strided_slice %215 {offsets = [0, 0], sizes = [2, 13], strides = [1, 1]} : vector<2x256xf32> to vector<2x13xf32>
    %384 = tpu.concatenate %382, %383 in 1 : vector<2x243xf32>, vector<2x13xf32> -> vector<2x256xf32>
    %385 = vector.extract_strided_slice %3 {offsets = [28, 0], sizes = [1, 256], strides = [1, 1]} : vector<49x256xf32> to vector<1x256xf32>
    %386 = vector.broadcast %385 : vector<1x256xf32> to vector<2x256xf32>
    %387 = arith.mulf %384, %386 : vector<2x256xf32>
    %388 = vector.extract_strided_slice %215 {offsets = [0, 14], sizes = [2, 242], strides = [1, 1]} : vector<2x256xf32> to vector<2x242xf32>
    %389 = vector.extract_strided_slice %215 {offsets = [0, 0], sizes = [2, 14], strides = [1, 1]} : vector<2x256xf32> to vector<2x14xf32>
    %390 = tpu.concatenate %388, %389 in 1 : vector<2x242xf32>, vector<2x14xf32> -> vector<2x256xf32>
    %391 = vector.extract_strided_slice %3 {offsets = [29, 0], sizes = [1, 256], strides = [1, 1]} : vector<49x256xf32> to vector<1x256xf32>
    %392 = vector.broadcast %391 : vector<1x256xf32> to vector<2x256xf32>
    %393 = arith.mulf %390, %392 : vector<2x256xf32>
    %394 = vector.extract_strided_slice %215 {offsets = [0, 15], sizes = [2, 241], strides = [1, 1]} : vector<2x256xf32> to vector<2x241xf32>
    %395 = vector.extract_strided_slice %215 {offsets = [0, 0], sizes = [2, 15], strides = [1, 1]} : vector<2x256xf32> to vector<2x15xf32>
    %396 = tpu.concatenate %394, %395 in 1 : vector<2x241xf32>, vector<2x15xf32> -> vector<2x256xf32>
    %397 = vector.extract_strided_slice %3 {offsets = [30, 0], sizes = [1, 256], strides = [1, 1]} : vector<49x256xf32> to vector<1x256xf32>
    %398 = vector.broadcast %397 : vector<1x256xf32> to vector<2x256xf32>
    %399 = arith.mulf %396, %398 : vector<2x256xf32>
    %400 = vector.extract_strided_slice %215 {offsets = [0, 16], sizes = [2, 240], strides = [1, 1]} : vector<2x256xf32> to vector<2x240xf32>
    %401 = vector.extract_strided_slice %215 {offsets = [0, 0], sizes = [2, 16], strides = [1, 1]} : vector<2x256xf32> to vector<2x16xf32>
    %402 = tpu.concatenate %400, %401 in 1 : vector<2x240xf32>, vector<2x16xf32> -> vector<2x256xf32>
    %403 = vector.extract_strided_slice %3 {offsets = [31, 0], sizes = [1, 256], strides = [1, 1]} : vector<49x256xf32> to vector<1x256xf32>
    %404 = vector.broadcast %403 : vector<1x256xf32> to vector<2x256xf32>
    %405 = arith.mulf %402, %404 : vector<2x256xf32>
    %406 = vector.extract_strided_slice %215 {offsets = [0, 17], sizes = [2, 239], strides = [1, 1]} : vector<2x256xf32> to vector<2x239xf32>
    %407 = vector.extract_strided_slice %215 {offsets = [0, 0], sizes = [2, 17], strides = [1, 1]} : vector<2x256xf32> to vector<2x17xf32>
    %408 = tpu.concatenate %406, %407 in 1 : vector<2x239xf32>, vector<2x17xf32> -> vector<2x256xf32>
    %409 = vector.extract_strided_slice %3 {offsets = [32, 0], sizes = [1, 256], strides = [1, 1]} : vector<49x256xf32> to vector<1x256xf32>
    %410 = vector.broadcast %409 : vector<1x256xf32> to vector<2x256xf32>
    %411 = arith.mulf %408, %410 : vector<2x256xf32>
    %412 = vector.extract_strided_slice %215 {offsets = [0, 18], sizes = [2, 238], strides = [1, 1]} : vector<2x256xf32> to vector<2x238xf32>
    %413 = vector.extract_strided_slice %215 {offsets = [0, 0], sizes = [2, 18], strides = [1, 1]} : vector<2x256xf32> to vector<2x18xf32>
    %414 = tpu.concatenate %412, %413 in 1 : vector<2x238xf32>, vector<2x18xf32> -> vector<2x256xf32>
    %415 = vector.extract_strided_slice %3 {offsets = [33, 0], sizes = [1, 256], strides = [1, 1]} : vector<49x256xf32> to vector<1x256xf32>
    %416 = vector.broadcast %415 : vector<1x256xf32> to vector<2x256xf32>
    %417 = arith.mulf %414, %416 : vector<2x256xf32>
    %418 = vector.extract_strided_slice %215 {offsets = [0, 19], sizes = [2, 237], strides = [1, 1]} : vector<2x256xf32> to vector<2x237xf32>
    %419 = vector.extract_strided_slice %215 {offsets = [0, 0], sizes = [2, 19], strides = [1, 1]} : vector<2x256xf32> to vector<2x19xf32>
    %420 = tpu.concatenate %418, %419 in 1 : vector<2x237xf32>, vector<2x19xf32> -> vector<2x256xf32>
    %421 = vector.extract_strided_slice %3 {offsets = [34, 0], sizes = [1, 256], strides = [1, 1]} : vector<49x256xf32> to vector<1x256xf32>
    %422 = vector.broadcast %421 : vector<1x256xf32> to vector<2x256xf32>
    %423 = arith.mulf %420, %422 : vector<2x256xf32>
    %424 = vector.extract_strided_slice %215 {offsets = [0, 29], sizes = [2, 227], strides = [1, 1]} : vector<2x256xf32> to vector<2x227xf32>
    %425 = vector.extract_strided_slice %215 {offsets = [0, 0], sizes = [2, 29], strides = [1, 1]} : vector<2x256xf32> to vector<2x29xf32>
    %426 = tpu.concatenate %424, %425 in 1 : vector<2x227xf32>, vector<2x29xf32> -> vector<2x256xf32>
    %427 = vector.extract_strided_slice %3 {offsets = [35, 0], sizes = [1, 256], strides = [1, 1]} : vector<49x256xf32> to vector<1x256xf32>
    %428 = vector.broadcast %427 : vector<1x256xf32> to vector<2x256xf32>
    %429 = arith.mulf %426, %428 : vector<2x256xf32>
    %430 = vector.extract_strided_slice %215 {offsets = [0, 30], sizes = [2, 226], strides = [1, 1]} : vector<2x256xf32> to vector<2x226xf32>
    %431 = vector.extract_strided_slice %215 {offsets = [0, 0], sizes = [2, 30], strides = [1, 1]} : vector<2x256xf32> to vector<2x30xf32>
    %432 = tpu.concatenate %430, %431 in 1 : vector<2x226xf32>, vector<2x30xf32> -> vector<2x256xf32>
    %433 = vector.extract_strided_slice %3 {offsets = [36, 0], sizes = [1, 256], strides = [1, 1]} : vector<49x256xf32> to vector<1x256xf32>
    %434 = vector.broadcast %433 : vector<1x256xf32> to vector<2x256xf32>
    %435 = arith.mulf %432, %434 : vector<2x256xf32>
    %436 = vector.extract_strided_slice %215 {offsets = [0, 31], sizes = [2, 225], strides = [1, 1]} : vector<2x256xf32> to vector<2x225xf32>
    %437 = vector.extract_strided_slice %215 {offsets = [0, 0], sizes = [2, 31], strides = [1, 1]} : vector<2x256xf32> to vector<2x31xf32>
    %438 = tpu.concatenate %436, %437 in 1 : vector<2x225xf32>, vector<2x31xf32> -> vector<2x256xf32>
    %439 = vector.extract_strided_slice %3 {offsets = [37, 0], sizes = [1, 256], strides = [1, 1]} : vector<49x256xf32> to vector<1x256xf32>
    %440 = vector.broadcast %439 : vector<1x256xf32> to vector<2x256xf32>
    %441 = arith.mulf %438, %440 : vector<2x256xf32>
    %442 = vector.extract_strided_slice %215 {offsets = [0, 32], sizes = [2, 224], strides = [1, 1]} : vector<2x256xf32> to vector<2x224xf32>
    %443 = vector.extract_strided_slice %215 {offsets = [0, 0], sizes = [2, 32], strides = [1, 1]} : vector<2x256xf32> to vector<2x32xf32>
    %444 = tpu.concatenate %442, %443 in 1 : vector<2x224xf32>, vector<2x32xf32> -> vector<2x256xf32>
    %445 = vector.extract_strided_slice %3 {offsets = [38, 0], sizes = [1, 256], strides = [1, 1]} : vector<49x256xf32> to vector<1x256xf32>
    %446 = vector.broadcast %445 : vector<1x256xf32> to vector<2x256xf32>
    %447 = arith.mulf %444, %446 : vector<2x256xf32>
    %448 = vector.extract_strided_slice %215 {offsets = [0, 33], sizes = [2, 223], strides = [1, 1]} : vector<2x256xf32> to vector<2x223xf32>
    %449 = vector.extract_strided_slice %215 {offsets = [0, 0], sizes = [2, 33], strides = [1, 1]} : vector<2x256xf32> to vector<2x33xf32>
    %450 = tpu.concatenate %448, %449 in 1 : vector<2x223xf32>, vector<2x33xf32> -> vector<2x256xf32>
    %451 = vector.extract_strided_slice %3 {offsets = [39, 0], sizes = [1, 256], strides = [1, 1]} : vector<49x256xf32> to vector<1x256xf32>
    %452 = vector.broadcast %451 : vector<1x256xf32> to vector<2x256xf32>
    %453 = arith.mulf %450, %452 : vector<2x256xf32>
    %454 = vector.extract_strided_slice %215 {offsets = [0, 34], sizes = [2, 222], strides = [1, 1]} : vector<2x256xf32> to vector<2x222xf32>
    %455 = vector.extract_strided_slice %215 {offsets = [0, 0], sizes = [2, 34], strides = [1, 1]} : vector<2x256xf32> to vector<2x34xf32>
    %456 = tpu.concatenate %454, %455 in 1 : vector<2x222xf32>, vector<2x34xf32> -> vector<2x256xf32>
    %457 = vector.extract_strided_slice %3 {offsets = [40, 0], sizes = [1, 256], strides = [1, 1]} : vector<49x256xf32> to vector<1x256xf32>
    %458 = vector.broadcast %457 : vector<1x256xf32> to vector<2x256xf32>
    %459 = arith.mulf %456, %458 : vector<2x256xf32>
    %460 = vector.extract_strided_slice %215 {offsets = [0, 35], sizes = [2, 221], strides = [1, 1]} : vector<2x256xf32> to vector<2x221xf32>
    %461 = vector.extract_strided_slice %215 {offsets = [0, 0], sizes = [2, 35], strides = [1, 1]} : vector<2x256xf32> to vector<2x35xf32>
    %462 = tpu.concatenate %460, %461 in 1 : vector<2x221xf32>, vector<2x35xf32> -> vector<2x256xf32>
    %463 = vector.extract_strided_slice %3 {offsets = [41, 0], sizes = [1, 256], strides = [1, 1]} : vector<49x256xf32> to vector<1x256xf32>
    %464 = vector.broadcast %463 : vector<1x256xf32> to vector<2x256xf32>
    %465 = arith.mulf %462, %464 : vector<2x256xf32>
    %466 = vector.extract_strided_slice %215 {offsets = [0, 45], sizes = [2, 211], strides = [1, 1]} : vector<2x256xf32> to vector<2x211xf32>
    %467 = vector.extract_strided_slice %215 {offsets = [0, 0], sizes = [2, 45], strides = [1, 1]} : vector<2x256xf32> to vector<2x45xf32>
    %468 = tpu.concatenate %466, %467 in 1 : vector<2x211xf32>, vector<2x45xf32> -> vector<2x256xf32>
    %469 = vector.extract_strided_slice %3 {offsets = [42, 0], sizes = [1, 256], strides = [1, 1]} : vector<49x256xf32> to vector<1x256xf32>
    %470 = vector.broadcast %469 : vector<1x256xf32> to vector<2x256xf32>
    %471 = arith.mulf %468, %470 : vector<2x256xf32>
    %472 = vector.extract_strided_slice %215 {offsets = [0, 46], sizes = [2, 210], strides = [1, 1]} : vector<2x256xf32> to vector<2x210xf32>
    %473 = vector.extract_strided_slice %215 {offsets = [0, 0], sizes = [2, 46], strides = [1, 1]} : vector<2x256xf32> to vector<2x46xf32>
    %474 = tpu.concatenate %472, %473 in 1 : vector<2x210xf32>, vector<2x46xf32> -> vector<2x256xf32>
    %475 = vector.extract_strided_slice %3 {offsets = [43, 0], sizes = [1, 256], strides = [1, 1]} : vector<49x256xf32> to vector<1x256xf32>
    %476 = vector.broadcast %475 : vector<1x256xf32> to vector<2x256xf32>
    %477 = arith.mulf %474, %476 : vector<2x256xf32>
    %478 = vector.extract_strided_slice %215 {offsets = [0, 47], sizes = [2, 209], strides = [1, 1]} : vector<2x256xf32> to vector<2x209xf32>
    %479 = vector.extract_strided_slice %215 {offsets = [0, 0], sizes = [2, 47], strides = [1, 1]} : vector<2x256xf32> to vector<2x47xf32>
    %480 = tpu.concatenate %478, %479 in 1 : vector<2x209xf32>, vector<2x47xf32> -> vector<2x256xf32>
    %481 = vector.extract_strided_slice %3 {offsets = [44, 0], sizes = [1, 256], strides = [1, 1]} : vector<49x256xf32> to vector<1x256xf32>
    %482 = vector.broadcast %481 : vector<1x256xf32> to vector<2x256xf32>
    %483 = arith.mulf %480, %482 : vector<2x256xf32>
    %484 = vector.extract_strided_slice %215 {offsets = [0, 48], sizes = [2, 208], strides = [1, 1]} : vector<2x256xf32> to vector<2x208xf32>
    %485 = vector.extract_strided_slice %215 {offsets = [0, 0], sizes = [2, 48], strides = [1, 1]} : vector<2x256xf32> to vector<2x48xf32>
    %486 = tpu.concatenate %484, %485 in 1 : vector<2x208xf32>, vector<2x48xf32> -> vector<2x256xf32>
    %487 = vector.extract_strided_slice %3 {offsets = [45, 0], sizes = [1, 256], strides = [1, 1]} : vector<49x256xf32> to vector<1x256xf32>
    %488 = vector.broadcast %487 : vector<1x256xf32> to vector<2x256xf32>
    %489 = arith.mulf %486, %488 : vector<2x256xf32>
    %490 = vector.extract_strided_slice %215 {offsets = [0, 49], sizes = [2, 207], strides = [1, 1]} : vector<2x256xf32> to vector<2x207xf32>
    %491 = vector.extract_strided_slice %215 {offsets = [0, 0], sizes = [2, 49], strides = [1, 1]} : vector<2x256xf32> to vector<2x49xf32>
    %492 = tpu.concatenate %490, %491 in 1 : vector<2x207xf32>, vector<2x49xf32> -> vector<2x256xf32>
    %493 = vector.extract_strided_slice %3 {offsets = [46, 0], sizes = [1, 256], strides = [1, 1]} : vector<49x256xf32> to vector<1x256xf32>
    %494 = vector.broadcast %493 : vector<1x256xf32> to vector<2x256xf32>
    %495 = arith.mulf %492, %494 : vector<2x256xf32>
    %496 = vector.extract_strided_slice %215 {offsets = [0, 50], sizes = [2, 206], strides = [1, 1]} : vector<2x256xf32> to vector<2x206xf32>
    %497 = vector.extract_strided_slice %215 {offsets = [0, 0], sizes = [2, 50], strides = [1, 1]} : vector<2x256xf32> to vector<2x50xf32>
    %498 = tpu.concatenate %496, %497 in 1 : vector<2x206xf32>, vector<2x50xf32> -> vector<2x256xf32>
    %499 = vector.extract_strided_slice %3 {offsets = [47, 0], sizes = [1, 256], strides = [1, 1]} : vector<49x256xf32> to vector<1x256xf32>
    %500 = vector.broadcast %499 : vector<1x256xf32> to vector<2x256xf32>
    %501 = arith.mulf %498, %500 : vector<2x256xf32>
    %502 = vector.extract_strided_slice %215 {offsets = [0, 51], sizes = [2, 205], strides = [1, 1]} : vector<2x256xf32> to vector<2x205xf32>
    %503 = vector.extract_strided_slice %215 {offsets = [0, 0], sizes = [2, 51], strides = [1, 1]} : vector<2x256xf32> to vector<2x51xf32>
    %504 = tpu.concatenate %502, %503 in 1 : vector<2x205xf32>, vector<2x51xf32> -> vector<2x256xf32>
    %505 = vector.extract_strided_slice %3 {offsets = [48, 0], sizes = [1, 256], strides = [1, 1]} : vector<49x256xf32> to vector<1x256xf32>
    %506 = vector.broadcast %505 : vector<1x256xf32> to vector<2x256xf32>
    %507 = arith.mulf %504, %506 : vector<2x256xf32>
    %508 = tpu.concatenate %222, %228, %234, %240, %246, %252, %258, %264, %270, %276, %282, %288, %294, %300, %306, %312 in 0 : vector<2x256xf32>, vector<2x256xf32>, vector<2x256xf32>, vector<2x256xf32>, vector<2x256xf32>, vector<2x256xf32>, vector<2x256xf32>, vector<2x256xf32>, vector<2x256xf32>, vector<2x256xf32>, vector<2x256xf32>, vector<2x256xf32>, vector<2x256xf32>, vector<2x256xf32>, vector<2x256xf32>, vector<2x256xf32> -> vector<32x256xf32>
    %509 = tpu.concatenate %318, %324, %330, %336, %342, %348, %354, %360, %363, %369, %375, %381, %387, %393, %399, %405 in 0 : vector<2x256xf32>, vector<2x256xf32>, vector<2x256xf32>, vector<2x256xf32>, vector<2x256xf32>, vector<2x256xf32>, vector<2x256xf32>, vector<2x256xf32>, vector<2x256xf32>, vector<2x256xf32>, vector<2x256xf32>, vector<2x256xf32>, vector<2x256xf32>, vector<2x256xf32>, vector<2x256xf32>, vector<2x256xf32> -> vector<32x256xf32>
    %510 = tpu.concatenate %411, %417, %423, %429, %435, %441, %447, %453, %459, %465, %471, %477, %483, %489, %495, %501 in 0 : vector<2x256xf32>, vector<2x256xf32>, vector<2x256xf32>, vector<2x256xf32>, vector<2x256xf32>, vector<2x256xf32>, vector<2x256xf32>, vector<2x256xf32>, vector<2x256xf32>, vector<2x256xf32>, vector<2x256xf32>, vector<2x256xf32>, vector<2x256xf32>, vector<2x256xf32>, vector<2x256xf32>, vector<2x256xf32> -> vector<32x256xf32>
    %511 = tpu.concatenate %508, %509, %510, %507 in 0 : vector<32x256xf32>, vector<32x256xf32>, vector<32x256xf32>, vector<2x256xf32> -> vector<98x256xf32>
    %cst_68 = arith.constant dense<0.000000e+00> : vector<1x256xf32>
    %512 = tpu.matmul %216, %511, %cst_68 {dimension_numbers = #tpu.dot_dimension_numbers<[1], [0], [0], [1], [0, 0, 1, 1], [], []>} : vector<1x98xf32>, vector<98x256xf32>, vector<1x256xf32> -> vector<1x256xf32>
    %513 = arith.negf %512 : vector<1x256xf32>
    %514 = math.exp %513 : vector<1x256xf32>
    %cst_69 = arith.constant 1.000000e+00 : f32
    %515 = vector.broadcast %cst_69 : f32 to vector<1x256xf32>
    %516 = arith.addf %515, %514 : vector<1x256xf32>
    %517 = arith.divf %515, %516 : vector<1x256xf32>
    %518 = vector.broadcast %517 : vector<1x256xf32> to vector<64x256xf32>
    %519 = arith.mulf %208, %518 : vector<64x256xf32>
    %c0_70 = arith.constant 0 : index
    %c0_71 = arith.constant 0 : index
    %c0_72 = arith.constant 0 : index
    %520 = vector.load %arg22[%c0_70, %c0_71, %c0_72] : memref<1x64x256xf32, #tpu.memory_space<vmem>>, vector<1x64x256xf32>
    %521 = vector.shape_cast %520 : vector<1x64x256xf32> to vector<64x256xf32>
    %522 = vector.shape_cast %519 : vector<64x256xf32> to vector<1x64x256xf32>
    tpu.vector_store %arg22[%c0_70, %c0_71, %c0_72], %522 {strides = array<i32>} : memref<1x64x256xf32, #tpu.memory_space<vmem>>, vector<1x64x256xf32>,
    return
  }
  func.func @transform_0(%arg0: i32) -> (i32, i32, i32) {
    %c0_i32 = arith.constant 0 : i32
    %c0_i32_0 = arith.constant 0 : i32
    %c0_i32_1 = arith.constant 0 : i32
    return %arg0, %c0_i32, %c0_i32_0 : i32, i32, i32
  }
  func.func @transform_1(%arg0: i32) -> (i32, i32, i32) {
    %c0_i32 = arith.constant 0 : i32
    %c0_i32_0 = arith.constant 0 : i32
    %c0_i32_1 = arith.constant 0 : i32
    return %arg0, %c0_i32, %c0_i32_0 : i32, i32, i32
  }
  func.func @transform_2(%arg0: i32) -> (i32, i32) {
    %c0_i32 = arith.constant 0 : i32
    %c0_i32_0 = arith.constant 0 : i32
    %c0_i32_1 = arith.constant 0 : i32
    return %c0_i32, %c0_i32_0 : i32, i32
  }
  func.func @transform_3(%arg0: i32) -> (i32, i32) {
    %c0_i32 = arith.constant 0 : i32
    %c0_i32_0 = arith.constant 0 : i32
    %c0_i32_1 = arith.constant 0 : i32
    return %c0_i32, %c0_i32_0 : i32, i32
  }
  func.func @transform_4(%arg0: i32) -> (i32, i32) {
    %c0_i32 = arith.constant 0 : i32
    %c0_i32_0 = arith.constant 0 : i32
    %c0_i32_1 = arith.constant 0 : i32
    return %c0_i32, %c0_i32_0 : i32, i32
  }
  func.func @transform_5(%arg0: i32) -> (i32, i32) {
    %c0_i32 = arith.constant 0 : i32
    %c0_i32_0 = arith.constant 0 : i32
    %c0_i32_1 = arith.constant 0 : i32
    return %c0_i32, %c0_i32_0 : i32, i32
  }
  func.func @transform_6(%arg0: i32) -> (i32, i32) {
    %c0_i32 = arith.constant 0 : i32
    %c0_i32_0 = arith.constant 0 : i32
    %c0_i32_1 = arith.constant 0 : i32
    return %c0_i32, %c0_i32_0 : i32, i32
  }
  func.func @transform_7(%arg0: i32) -> (i32, i32) {
    %c0_i32 = arith.constant 0 : i32
    %c0_i32_0 = arith.constant 0 : i32
    %c0_i32_1 = arith.constant 0 : i32
    return %c0_i32, %c0_i32_0 : i32, i32
  }
  func.func @transform_8(%arg0: i32) -> (i32, i32) {
    %c0_i32 = arith.constant 0 : i32
    %c0_i32_0 = arith.constant 0 : i32
    %c0_i32_1 = arith.constant 0 : i32
    return %c0_i32, %c0_i32_0 : i32, i32
  }
  func.func @transform_9(%arg0: i32) -> (i32, i32) {
    %c0_i32 = arith.constant 0 : i32
    %c0_i32_0 = arith.constant 0 : i32
    %c0_i32_1 = arith.constant 0 : i32
    return %c0_i32, %c0_i32_0 : i32, i32
  }
  func.func @transform_10(%arg0: i32) -> (i32, i32) {
    %c0_i32 = arith.constant 0 : i32
    %c0_i32_0 = arith.constant 0 : i32
    %c0_i32_1 = arith.constant 0 : i32
    return %c0_i32, %c0_i32_0 : i32, i32
  }
  func.func @transform_11(%arg0: i32) -> (i32, i32) {
    %c0_i32 = arith.constant 0 : i32
    %c0_i32_0 = arith.constant 0 : i32
    %c0_i32_1 = arith.constant 0 : i32
    return %c0_i32, %c0_i32_0 : i32, i32
  }
  func.func @transform_12(%arg0: i32) -> (i32, i32) {
    %c0_i32 = arith.constant 0 : i32
    %c0_i32_0 = arith.constant 0 : i32
    %c0_i32_1 = arith.constant 0 : i32
    return %c0_i32, %c0_i32_0 : i32, i32
  }
  func.func @transform_13(%arg0: i32) -> (i32, i32) {
    %c0_i32 = arith.constant 0 : i32
    %c0_i32_0 = arith.constant 0 : i32
    %c0_i32_1 = arith.constant 0 : i32
    return %c0_i32, %c0_i32_0 : i32, i32
  }
  func.func @transform_14(%arg0: i32) -> (i32, i32) {
    %c0_i32 = arith.constant 0 : i32
    %c0_i32_0 = arith.constant 0 : i32
    %c0_i32_1 = arith.constant 0 : i32
    return %c0_i32, %c0_i32_0 : i32, i32
  }
  func.func @transform_15(%arg0: i32) -> (i32, i32) {
    %c0_i32 = arith.constant 0 : i32
    %c0_i32_0 = arith.constant 0 : i32
    %c0_i32_1 = arith.constant 0 : i32
    return %c0_i32, %c0_i32_0 : i32, i32
  }
  func.func @transform_16(%arg0: i32) -> (i32, i32) {
    %c0_i32 = arith.constant 0 : i32
    %c0_i32_0 = arith.constant 0 : i32
    %c0_i32_1 = arith.constant 0 : i32
    return %c0_i32, %c0_i32_0 : i32, i32
  }
  func.func @transform_17(%arg0: i32) -> (i32, i32) {
    %c0_i32 = arith.constant 0 : i32
    %c0_i32_0 = arith.constant 0 : i32
    %c0_i32_1 = arith.constant 0 : i32
    return %c0_i32, %c0_i32_0 : i32, i32
  }
  func.func @transform_18(%arg0: i32) -> (i32, i32) {
    %c0_i32 = arith.constant 0 : i32
    %c0_i32_0 = arith.constant 0 : i32
    %c0_i32_1 = arith.constant 0 : i32
    return %c0_i32, %c0_i32_0 : i32, i32
  }
  func.func @transform_19(%arg0: i32) -> (i32, i32) {
    %c0_i32 = arith.constant 0 : i32
    %c0_i32_0 = arith.constant 0 : i32
    %c0_i32_1 = arith.constant 0 : i32
    return %c0_i32, %c0_i32_0 : i32, i32
  }
  func.func @transform_20(%arg0: i32) -> (i32, i32) {
    %c0_i32 = arith.constant 0 : i32
    %c0_i32_0 = arith.constant 0 : i32
    %c0_i32_1 = arith.constant 0 : i32
    return %c0_i32, %c0_i32_0 : i32, i32
  }
  func.func @transform_21(%arg0: i32) -> (i32, i32, i32) {
    %c0_i32 = arith.constant 0 : i32
    %c0_i32_0 = arith.constant 0 : i32
    %c0_i32_1 = arith.constant 0 : i32
    return %arg0, %c0_i32, %c0_i32_0 : i32, i32, i32
  }
}

</mosaic_0001>

<llo_original>
// kernel: tpu_custom_call.1
$region0: #{tpu_custom_call.1}
  #allocation0 [shape = 'u32[]', space=smem, size = 0x4, offset = 0x4, fixed_abs, tag = 'smem constant byte address 0x4 - core index']
  #allocation1 [shape = 'u32[144,128]{1,0:T(1,128)}', space=vmem, size = 0x12000, scoped, tag = 'internal scratch']
  %s0 = inlined_call_operand.vmem [shape: f32[2,32,256], index: 0, kind: input, shape index: {}]
  %s1 = inlined_call_operand.vmem [shape: f32[2,32,1], index: 1, kind: input, shape index: {}]
  %s2 = inlined_call_operand.hbm [shape: f32[32,32], index: 2, kind: input, shape index: {}]
  %s3 = inlined_call_operand.vmem [shape: f32[32,1], index: 3, kind: input, shape index: {}]
  %s4 = inlined_call_operand.vmem [shape: f32[32,1], index: 4, kind: input, shape index: {}]
  %s5 = inlined_call_operand.vmem [shape: f32[64,288], index: 5, kind: input, shape index: {}]
  %s6 = inlined_call_operand.vmem [shape: f32[64,1], index: 6, kind: input, shape index: {}]
  %s7 = inlined_call_operand.vmem [shape: f32[64,32], index: 7, kind: input, shape index: {}]
  %s8 = inlined_call_operand.vmem [shape: f32[64,1], index: 8, kind: input, shape index: {}]
  %s9 = inlined_call_operand.vmem [shape: f32[64,64], index: 9, kind: input, shape index: {}]
  %s10 = inlined_call_operand.vmem [shape: f32[64,1], index: 10, kind: input, shape index: {}]
  %s11 = inlined_call_operand.vmem [shape: f32[64,1], index: 11, kind: input, shape index: {}]
  %s12 = inlined_call_operand.vmem [shape: f32[64,576], index: 12, kind: input, shape index: {}]
  %s13 = inlined_call_operand.vmem [shape: f32[64,1], index: 13, kind: input, shape index: {}]
  %s14 = inlined_call_operand.vmem [shape: f32[64,32], index: 14, kind: input, shape index: {}]
  %s15 = inlined_call_operand.vmem [shape: f32[64,1], index: 15, kind: input, shape index: {}]
  %s16 = inlined_call_operand.hbm [shape: f32[4,64], index: 16, kind: input, shape index: {}]
  %s17 = inlined_call_operand.vmem [shape: f32[64,4], index: 17, kind: input, shape index: {}]
  %s18 = inlined_call_operand.hbm [shape: f32[1,98], index: 18, kind: input, shape index: {}]
  %s19 = inlined_call_operand.vmem [shape: f32[9,256], index: 19, kind: input, shape index: {}]
  %s20 = inlined_call_operand.vmem [shape: f32[49,256], index: 20, kind: input, shape index: {}]
  %s21 = inlined_call_operand.hbm [shape: f32[2,64,256], index: 21, kind: output, shape index: {}]
  %s22 = sld [smem:[#allocation0]]
  $region129: #{tpu_custom_call.1} parent=0
    _
  %s24 = ssub.s32 1, %s22
  %s25 = scalar_select 0, %s24, %s22
  $region1: #{tpu_custom_call.1} parent=0
    #allocation2 [shape = 'u8[16384]{0}', space=vmem, size = 0x4000, scoped, tag = 'input window, operand 2, single buffered']
    #allocation3 [shape = 's32[2]{0}', space=sflag, size = 0x8, scoped, tag = 'scoped memory for tpu_custom_call.1']
    #allocation4 [shape = 's32[2]{0}', space=sflag, size = 0x8, scoped, tag = 'scoped memory for tpu_custom_call.1']
    #allocation5 [shape = 'u8[2048]{0}', space=vmem, size = 0x800, scoped, tag = 'input window, operand 16, single buffered']
    #allocation6 [shape = 's32[1]{0}', space=sflag, size = 0x4, scoped, tag = 'scoped memory for tpu_custom_call.1']
    #allocation7 [shape = 'u8[512]{0}', space=vmem, size = 0x400, scoped, tag = 'input window, operand 18, single buffered']
    #allocation8 [shape = 'u8[131072]{0}', space=vmem, size = 0x20000, scoped, tag = 'output window, operand 0']
    %26 = vsyncpa [#allocation3], 0
    %27 = vsyncpa [#allocation6], 0
    %28 = vsyncpa [#allocation4], 0
    %s29 = scalar_lea.sflag [#allocation4], 1
    %30 = vsyncpa %s29, 0
    loop: start=0, step=1, limit=4
    $region2: #{tpu_custom_call.1} parent=1 // loop_pre_header
      _
    $region3: #{tpu_custom_call.1} parent=1 // loop_header
      %s32 = sphi 0, %s36
      %p33 = scmp.ge.s32.totalorder %s32, 4
      %s42 = sphi 0, %s44
      %s45 = sphi 0, %s42
      %s46 = sphi 0, %s45
      %s62 = sphi 0, %s46
      %s68 = sphi 0, %s70
      %s71 = sphi 0, %s68
      %s72 = sphi 0, %s71
      %s88 = sphi 0, %s72
      %s92 = sphi 0, %s92
      %s94 = sphi 0, %s92
      %s95 = sphi 0, %s94
      %s109 = sphi 0, %s95
      %s113 = sphi 0, %s113
      %s115 = sphi 0, %s113
      %s116 = sphi 0, %s115
      %s130 = sphi 0, %s116
      %s134 = sphi 0, %s134
      %s136 = sphi 0, %s134
      %s137 = sphi 0, %s136
      %s151 = sphi 0, %s137
      %s155 = sphi 0, %s155
      %s157 = sphi 0, %s155
      %s158 = sphi 0, %s157
      %s172 = sphi 0, %s158
      %s176 = sphi 0, %s176
      %s178 = sphi 0, %s176
      %s179 = sphi 0, %s178
      %s193 = sphi 0, %s179
      %s197 = sphi 0, %s197
      %s199 = sphi 0, %s197
      %s200 = sphi 0, %s199
      %s214 = sphi 0, %s200
      %s218 = sphi 0, %s218
      %s220 = sphi 0, %s218
      %s221 = sphi 0, %s220
      %s235 = sphi 0, %s221
      %s239 = sphi 0, %s239
      %s241 = sphi 0, %s239
      %s242 = sphi 0, %s241
      %s256 = sphi 0, %s242
      %s260 = sphi 0, %s260
      %s262 = sphi 0, %s260
      %s263 = sphi 0, %s262
      %s277 = sphi 0, %s263
      %s281 = sphi 0, %s281
      %s283 = sphi 0, %s281
      %s284 = sphi 0, %s283
      %s298 = sphi 0, %s284
      %s302 = sphi 0, %s302
      %s304 = sphi 0, %s302
      %s305 = sphi 0, %s304
      %s319 = sphi 0, %s305
      %s323 = sphi 0, %s323
      %s325 = sphi 0, %s323
      %s326 = sphi 0, %s325
      %s340 = sphi 0, %s326
      %s344 = sphi 0, %s344
      %s346 = sphi 0, %s344
      %s347 = sphi 0, %s346
      %s361 = sphi 0, %s347
      %s365 = sphi 0, %s365
      %s367 = sphi 0, %s365
      %s368 = sphi 0, %s367
      %s382 = sphi 0, %s368
      %s386 = sphi 0, %s386
      %s388 = sphi 0, %s386
      %s389 = sphi 0, %s388
      %s403 = sphi 0, %s389
      %s407 = sphi 0, %s407
      %s409 = sphi 0, %s407
      %s410 = sphi 0, %s409
      %s424 = sphi 0, %s410
      %s428 = sphi 0, %s428
      %s430 = sphi 0, %s428
      %s431 = sphi 0, %s430
      %s445 = sphi 0, %s431
      %s449 = sphi 0, %s449
      %s451 = sphi 0, %s449
      %s452 = sphi 0, %s451
      %s466 = sphi 0, %s452
      %s470 = sphi 0, %s470
      %s472 = sphi 0, %s470
      %s473 = sphi 0, %s472
      %s487 = sphi 0, %s473
      %s493 = sphi 0, %s495
      %s496 = sphi 0, %s493
      %s497 = sphi 0, %s496
      %s513 = sphi 0, %s497
    $region4: #{tpu_custom_call.1} parent=1 // loop_header_branch
      %35 = sbr.rel (%p33) target = $region8
    $region5: #{tpu_custom_call.1} parent=1 // loop_body
      %s37 = ssub.s32 %s32, 1
      %s38 = ssub.s32 %s32, 2
      %s39 = sadd.s32 %s32, 1
      %s40 = ssub.s32 %s32, %s39
      %p41 = scmp.eq.s32.totalorder %s40, 0
      %s43 = sadd.s32 %s42, 1
      %s44 = scalar_select %p41, %s42, %s43
      %p47 = pneg %p41
      %p48 = scmp.eq.s32.totalorder %s32, 1
      %p49 = por %p47, %p48
      %p50 = scmp.ne.s32.totalorder %s42, %s45
      %p51 = scmp.eq.s32.totalorder %s32, 0
      %p52 = por %p50, %p51
      %p53 = scmp.ne.s32.totalorder %s42, %s45
      %p54 = scmp.eq.s32.totalorder %s37, 1
      %p55 = por %p53, %p54
      %p56 = scmp.ne.s32.totalorder %s45, %s46
      %p57 = scmp.eq.s32.totalorder %s37, 0
      %p58 = por %p56, %p57
      %p59 = scmp.ne.s32.totalorder %s45, %s46
      %p60 = scmp.eq.s32.totalorder %s38, 1
      %p61 = por %p59, %p60
      %p63 = scmp.ne.s32.totalorder %s46, %s62
      %p64 = scmp.eq.s32.totalorder %s38, 0
      %p65 = por %p63, %p64
      %s66 = ssub.s32 %s32, %s39
      %p67 = scmp.eq.s32.totalorder %s66, 0
      %s69 = sadd.s32 %s68, 1
      %s70 = scalar_select %p67, %s68, %s69
      %p73 = pneg %p67
      %p74 = scmp.eq.s32.totalorder %s32, 1
      %p75 = por %p73, %p74
      %p76 = scmp.ne.s32.totalorder %s68, %s71
      %p77 = scmp.eq.s32.totalorder %s32, 0
      %p78 = por %p76, %p77
      %p79 = scmp.ne.s32.totalorder %s68, %s71
      %p80 = scmp.eq.s32.totalorder %s37, 1
      %p81 = por %p79, %p80
      %p82 = scmp.ne.s32.totalorder %s71, %s72
      %p83 = scmp.eq.s32.totalorder %s37, 0
      %p84 = por %p82, %p83
      %p85 = scmp.ne.s32.totalorder %s71, %s72
      %p86 = scmp.eq.s32.totalorder %s38, 1
      %p87 = por %p85, %p86
      %p89 = scmp.ne.s32.totalorder %s72, %s88
      %p90 = scmp.eq.s32.totalorder %s38, 0
      %p91 = por %p89, %p90
      %s93 = sadd.s32 %s92, 1
      %p96 = scmp.eq.s32.totalorder %s32, 1
      %p97 = scmp.ne.s32.totalorder %s92, %s94
      %p98 = scmp.eq.s32.totalorder %s32, 0
      %p99 = por %p97, %p98
      %p100 = scmp.ne.s32.totalorder %s92, %s94
      %p101 = scmp.eq.s32.totalorder %s37, 1
      %p102 = por %p100, %p101
      %p103 = scmp.ne.s32.totalorder %s94, %s95
      %p104 = scmp.eq.s32.totalorder %s37, 0
      %p105 = por %p103, %p104
      %p106 = scmp.ne.s32.totalorder %s94, %s95
      %p107 = scmp.eq.s32.totalorder %s38, 1
      %p108 = por %p106, %p107
      %p110 = scmp.ne.s32.totalorder %s95, %s109
      %p111 = scmp.eq.s32.totalorder %s38, 0
      %p112 = por %p110, %p111
      %s114 = sadd.s32 %s113, 1
      %p117 = scmp.eq.s32.totalorder %s32, 1
      %p118 = scmp.ne.s32.totalorder %s113, %s115
      %p119 = scmp.eq.s32.totalorder %s32, 0
      %p120 = por %p118, %p119
      %p121 = scmp.ne.s32.totalorder %s113, %s115
      %p122 = scmp.eq.s32.totalorder %s37, 1
      %p123 = por %p121, %p122
      %p124 = scmp.ne.s32.totalorder %s115, %s116
      %p125 = scmp.eq.s32.totalorder %s37, 0
      %p126 = por %p124, %p125
      %p127 = scmp.ne.s32.totalorder %s115, %s116
      %p128 = scmp.eq.s32.totalorder %s38, 1
      %p129 = por %p127, %p128
      %p131 = scmp.ne.s32.totalorder %s116, %s130
      %p132 = scmp.eq.s32.totalorder %s38, 0
      %p133 = por %p131, %p132
      %s135 = sadd.s32 %s134, 1
      %p138 = scmp.eq.s32.totalorder %s32, 1
      %p139 = scmp.ne.s32.totalorder %s134, %s136
      %p140 = scmp.eq.s32.totalorder %s32, 0
      %p141 = por %p139, %p140
      %p142 = scmp.ne.s32.totalorder %s134, %s136
      %p143 = scmp.eq.s32.totalorder %s37, 1
      %p144 = por %p142, %p143
      %p145 = scmp.ne.s32.totalorder %s136, %s137
      %p146 = scmp.eq.s32.totalorder %s37, 0
      %p147 = por %p145, %p146
      %p148 = scmp.ne.s32.totalorder %s136, %s137
      %p149 = scmp.eq.s32.totalorder %s38, 1
      %p150 = por %p148, %p149
      %p152 = scmp.ne.s32.totalorder %s137, %s151
      %p153 = scmp.eq.s32.totalorder %s38, 0
      %p154 = por %p152, %p153
      %s156 = sadd.s32 %s155, 1
      %p159 = scmp.eq.s32.totalorder %s32, 1
      %p160 = scmp.ne.s32.totalorder %s155, %s157
      %p161 = scmp.eq.s32.totalorder %s32, 0
      %p162 = por %p160, %p161
      %p163 = scmp.ne.s32.totalorder %s155, %s157
      %p164 = scmp.eq.s32.totalorder %s37, 1
      %p165 = por %p163, %p164
      %p166 = scmp.ne.s32.totalorder %s157, %s158
      %p167 = scmp.eq.s32.totalorder %s37, 0
      %p168 = por %p166, %p167
      %p169 = scmp.ne.s32.totalorder %s157, %s158
      %p170 = scmp.eq.s32.totalorder %s38, 1
      %p171 = por %p169, %p170
      %p173 = scmp.ne.s32.totalorder %s158, %s172
      %p174 = scmp.eq.s32.totalorder %s38, 0
      %p175 = por %p173, %p174
      %s177 = sadd.s32 %s176, 1
      %p180 = scmp.eq.s32.totalorder %s32, 1
      %p181 = scmp.ne.s32.totalorder %s176, %s178
      %p182 = scmp.eq.s32.totalorder %s32, 0
      %p183 = por %p181, %p182
      %p184 = scmp.ne.s32.totalorder %s176, %s178
      %p185 = scmp.eq.s32.totalorder %s37, 1
      %p186 = por %p184, %p185
      %p187 = scmp.ne.s32.totalorder %s178, %s179
      %p188 = scmp.eq.s32.totalorder %s37, 0
      %p189 = por %p187, %p188
      %p190 = scmp.ne.s32.totalorder %s178, %s179
      %p191 = scmp.eq.s32.totalorder %s38, 1
      %p192 = por %p190, %p191
      %p194 = scmp.ne.s32.totalorder %s179, %s193
      %p195 = scmp.eq.s32.totalorder %s38, 0
      %p196 = por %p194, %p195
      %s198 = sadd.s32 %s197, 1
      %p201 = scmp.eq.s32.totalorder %s32, 1
      %p202 = scmp.ne.s32.totalorder %s197, %s199
      %p203 = scmp.eq.s32.totalorder %s32, 0
      %p204 = por %p202, %p203
      %p205 = scmp.ne.s32.totalorder %s197, %s199
      %p206 = scmp.eq.s32.totalorder %s37, 1
      %p207 = por %p205, %p206
      %p208 = scmp.ne.s32.totalorder %s199, %s200
      %p209 = scmp.eq.s32.totalorder %s37, 0
      %p210 = por %p208, %p209
      %p211 = scmp.ne.s32.totalorder %s199, %s200
      %p212 = scmp.eq.s32.totalorder %s38, 1
      %p213 = por %p211, %p212
      %p215 = scmp.ne.s32.totalorder %s200, %s214
      %p216 = scmp.eq.s32.totalorder %s38, 0
      %p217 = por %p215, %p216
      %s219 = sadd.s32 %s218, 1
      %p222 = scmp.eq.s32.totalorder %s32, 1
      %p223 = scmp.ne.s32.totalorder %s218, %s220
      %p224 = scmp.eq.s32.totalorder %s32, 0
      %p225 = por %p223, %p224
      %p226 = scmp.ne.s32.totalorder %s218, %s220
      %p227 = scmp.eq.s32.totalorder %s37, 1
      %p228 = por %p226, %p227
      %p229 = scmp.ne.s32.totalorder %s220, %s221
      %p230 = scmp.eq.s32.totalorder %s37, 0
      %p231 = por %p229, %p230
      %p232 = scmp.ne.s32.totalorder %s220, %s221
      %p233 = scmp.eq.s32.totalorder %s38, 1
      %p234 = por %p232, %p233
      %p236 = scmp.ne.s32.totalorder %s221, %s235
      %p237 = scmp.eq.s32.totalorder %s38, 0
      %p238 = por %p236, %p237
      %s240 = sadd.s32 %s239, 1
      %p243 = scmp.eq.s32.totalorder %s32, 1
      %p244 = scmp.ne.s32.totalorder %s239, %s241
      %p245 = scmp.eq.s32.totalorder %s32, 0
      %p246 = por %p244, %p245
      %p247 = scmp.ne.s32.totalorder %s239, %s241
      %p248 = scmp.eq.s32.totalorder %s37, 1
      %p249 = por %p247, %p248
      %p250 = scmp.ne.s32.totalorder %s241, %s242
      %p251 = scmp.eq.s32.totalorder %s37, 0
      %p252 = por %p250, %p251
      %p253 = scmp.ne.s32.totalorder %s241, %s242
      %p254 = scmp.eq.s32.totalorder %s38, 1
      %p255 = por %p253, %p254
      %p257 = scmp.ne.s32.totalorder %s242, %s256
      %p258 = scmp.eq.s32.totalorder %s38, 0
      %p259 = por %p257, %p258
      %s261 = sadd.s32 %s260, 1
      %p264 = scmp.eq.s32.totalorder %s32, 1
      %p265 = scmp.ne.s32.totalorder %s260, %s262
      %p266 = scmp.eq.s32.totalorder %s32, 0
      %p267 = por %p265, %p266
      %p268 = scmp.ne.s32.totalorder %s260, %s262
      %p269 = scmp.eq.s32.totalorder %s37, 1
      %p270 = por %p268, %p269
      %p271 = scmp.ne.s32.totalorder %s262, %s263
      %p272 = scmp.eq.s32.totalorder %s37, 0
      %p273 = por %p271, %p272
      %p274 = scmp.ne.s32.totalorder %s262, %s263
      %p275 = scmp.eq.s32.totalorder %s38, 1
      %p276 = por %p274, %p275
      %p278 = scmp.ne.s32.totalorder %s263, %s277
      %p279 = scmp.eq.s32.totalorder %s38, 0
      %p280 = por %p278, %p279
      %s282 = sadd.s32 %s281, 1
      %p285 = scmp.eq.s32.totalorder %s32, 1
      %p286 = scmp.ne.s32.totalorder %s281, %s283
      %p287 = scmp.eq.s32.totalorder %s32, 0
      %p288 = por %p286, %p287
      %p289 = scmp.ne.s32.totalorder %s281, %s283
      %p290 = scmp.eq.s32.totalorder %s37, 1
      %p291 = por %p289, %p290
      %p292 = scmp.ne.s32.totalorder %s283, %s284
      %p293 = scmp.eq.s32.totalorder %s37, 0
      %p294 = por %p292, %p293
      %p295 = scmp.ne.s32.totalorder %s283, %s284
      %p296 = scmp.eq.s32.totalorder %s38, 1
      %p297 = por %p295, %p296
      %p299 = scmp.ne.s32.totalorder %s284, %s298
      %p300 = scmp.eq.s32.totalorder %s38, 0
      %p301 = por %p299, %p300
      %s303 = sadd.s32 %s302, 1
      %p306 = scmp.eq.s32.totalorder %s32, 1
      %p307 = scmp.ne.s32.totalorder %s302, %s304
      %p308 = scmp.eq.s32.totalorder %s32, 0
      %p309 = por %p307, %p308
      %p310 = scmp.ne.s32.totalorder %s302, %s304
      %p311 = scmp.eq.s32.totalorder %s37, 1
      %p312 = por %p310, %p311
      %p313 = scmp.ne.s32.totalorder %s304, %s305
      %p314 = scmp.eq.s32.totalorder %s37, 0
      %p315 = por %p313, %p314
      %p316 = scmp.ne.s32.totalorder %s304, %s305
      %p317 = scmp.eq.s32.totalorder %s38, 1
      %p318 = por %p316, %p317
      %p320 = scmp.ne.s32.totalorder %s305, %s319
      %p321 = scmp.eq.s32.totalorder %s38, 0
      %p322 = por %p320, %p321
      %s324 = sadd.s32 %s323, 1
      %p327 = scmp.eq.s32.totalorder %s32, 1
      %p328 = scmp.ne.s32.totalorder %s323, %s325
      %p329 = scmp.eq.s32.totalorder %s32, 0
      %p330 = por %p328, %p329
      %p331 = scmp.ne.s32.totalorder %s323, %s325
      %p332 = scmp.eq.s32.totalorder %s37, 1
      %p333 = por %p331, %p332
      %p334 = scmp.ne.s32.totalorder %s325, %s326
      %p335 = scmp.eq.s32.totalorder %s37, 0
      %p336 = por %p334, %p335
      %p337 = scmp.ne.s32.totalorder %s325, %s326
      %p338 = scmp.eq.s32.totalorder %s38, 1
      %p339 = por %p337, %p338
      %p341 = scmp.ne.s32.totalorder %s326, %s340
      %p342 = scmp.eq.s32.totalorder %s38, 0
      %p343 = por %p341, %p342
      %s345 = sadd.s32 %s344, 1
      %p348 = scmp.eq.s32.totalorder %s32, 1
      %p349 = scmp.ne.s32.totalorder %s344, %s346
      %p350 = scmp.eq.s32.totalorder %s32, 0
      %p351 = por %p349, %p350
      %p352 = scmp.ne.s32.totalorder %s344, %s346
      %p353 = scmp.eq.s32.totalorder %s37, 1
      %p354 = por %p352, %p353
      %p355 = scmp.ne.s32.totalorder %s346, %s347
      %p356 = scmp.eq.s32.totalorder %s37, 0
      %p357 = por %p355, %p356
      %p358 = scmp.ne.s32.totalorder %s346, %s347
      %p359 = scmp.eq.s32.totalorder %s38, 1
      %p360 = por %p358, %p359
      %p362 = scmp.ne.s32.totalorder %s347, %s361
      %p363 = scmp.eq.s32.totalorder %s38, 0
      %p364 = por %p362, %p363
      %s366 = sadd.s32 %s365, 1
      %p369 = scmp.eq.s32.totalorder %s32, 1
      %p370 = scmp.ne.s32.totalorder %s365, %s367
      %p371 = scmp.eq.s32.totalorder %s32, 0
      %p372 = por %p370, %p371
      %p373 = scmp.ne.s32.totalorder %s365, %s367
      %p374 = scmp.eq.s32.totalorder %s37, 1
      %p375 = por %p373, %p374
      %p376 = scmp.ne.s32.totalorder %s367, %s368
      %p377 = scmp.eq.s32.totalorder %s37, 0
      %p378 = por %p376, %p377
      %p379 = scmp.ne.s32.totalorder %s367, %s368
      %p380 = scmp.eq.s32.totalorder %s38, 1
      %p381 = por %p379, %p380
      %p383 = scmp.ne.s32.totalorder %s368, %s382
      %p384 = scmp.eq.s32.totalorder %s38, 0
      %p385 = por %p383, %p384
      %s387 = sadd.s32 %s386, 1
      %p390 = scmp.eq.s32.totalorder %s32, 1
      %p391 = scmp.ne.s32.totalorder %s386, %s388
      %p392 = scmp.eq.s32.totalorder %s32, 0
      %p393 = por %p391, %p392
      %p394 = scmp.ne.s32.totalorder %s386, %s388
      %p395 = scmp.eq.s32.totalorder %s37, 1
      %p396 = por %p394, %p395
      %p397 = scmp.ne.s32.totalorder %s388, %s389
      %p398 = scmp.eq.s32.totalorder %s37, 0
      %p399 = por %p397, %p398
      %p400 = scmp.ne.s32.totalorder %s388, %s389
      %p401 = scmp.eq.s32.totalorder %s38, 1
      %p402 = por %p400, %p401
      %p404 = scmp.ne.s32.totalorder %s389, %s403
      %p405 = scmp.eq.s32.totalorder %s38, 0
      %p406 = por %p404, %p405
      %s408 = sadd.s32 %s407, 1
      %p411 = scmp.eq.s32.totalorder %s32, 1
      %p412 = scmp.ne.s32.totalorder %s407, %s409
      %p413 = scmp.eq.s32.totalorder %s32, 0
      %p414 = por %p412, %p413
      %p415 = scmp.ne.s32.totalorder %s407, %s409
      %p416 = scmp.eq.s32.totalorder %s37, 1
      %p417 = por %p415, %p416
      %p418 = scmp.ne.s32.totalorder %s409, %s410
      %p419 = scmp.eq.s32.totalorder %s37, 0
      %p420 = por %p418, %p419
      %p421 = scmp.ne.s32.totalorder %s409, %s410
      %p422 = scmp.eq.s32.totalorder %s38, 1
      %p423 = por %p421, %p422
      %p425 = scmp.ne.s32.totalorder %s410, %s424
      %p426 = scmp.eq.s32.totalorder %s38, 0
      %p427 = por %p425, %p426
      %s429 = sadd.s32 %s428, 1
      %p432 = scmp.eq.s32.totalorder %s32, 1
      %p433 = scmp.ne.s32.totalorder %s428, %s430
      %p434 = scmp.eq.s32.totalorder %s32, 0
      %p435 = por %p433, %p434
      %p436 = scmp.ne.s32.totalorder %s428, %s430
      %p437 = scmp.eq.s32.totalorder %s37, 1
      %p438 = por %p436, %p437
      %p439 = scmp.ne.s32.totalorder %s430, %s431
      %p440 = scmp.eq.s32.totalorder %s37, 0
      %p441 = por %p439, %p440
      %p442 = scmp.ne.s32.totalorder %s430, %s431
      %p443 = scmp.eq.s32.totalorder %s38, 1
      %p444 = por %p442, %p443
      %p446 = scmp.ne.s32.totalorder %s431, %s445
      %p447 = scmp.eq.s32.totalorder %s38, 0
      %p448 = por %p446, %p447
      %s450 = sadd.s32 %s449, 1
      %p453 = scmp.eq.s32.totalorder %s32, 1
      %p454 = scmp.ne.s32.totalorder %s449, %s451
      %p455 = scmp.eq.s32.totalorder %s32, 0
      %p456 = por %p454, %p455
      %p457 = scmp.ne.s32.totalorder %s449, %s451
      %p458 = scmp.eq.s32.totalorder %s37, 1
      %p459 = por %p457, %p458
      %p460 = scmp.ne.s32.totalorder %s451, %s452
      %p461 = scmp.eq.s32.totalorder %s37, 0
      %p462 = por %p460, %p461
      %p463 = scmp.ne.s32.totalorder %s451, %s452
      %p464 = scmp.eq.s32.totalorder %s38, 1
      %p465 = por %p463, %p464
      %p467 = scmp.ne.s32.totalorder %s452, %s466
      %p468 = scmp.eq.s32.totalorder %s38, 0
      %p469 = por %p467, %p468
      %s471 = sadd.s32 %s470, 1
      %p474 = scmp.eq.s32.totalorder %s32, 1
      %p475 = scmp.ne.s32.totalorder %s470, %s472
      %p476 = scmp.eq.s32.totalorder %s32, 0
      %p477 = por %p475, %p476
      %p478 = scmp.ne.s32.totalorder %s470, %s472
      %p479 = scmp.eq.s32.totalorder %s37, 1
      %p480 = por %p478, %p479
      %p481 = scmp.ne.s32.totalorder %s472, %s473
      %p482 = scmp.eq.s32.totalorder %s37, 0
      %p483 = por %p481, %p482
      %p484 = scmp.ne.s32.totalorder %s472, %s473
      %p485 = scmp.eq.s32.totalorder %s38, 1
      %p486 = por %p484, %p485
      %p488 = scmp.ne.s32.totalorder %s473, %s487
      %p489 = scmp.eq.s32.totalorder %s38, 0
      %p490 = por %p488, %p489
      %s491 = ssub.s32 %s32, %s39
      %p492 = scmp.eq.s32.totalorder %s491, 0
      %s494 = sadd.s32 %s493, 1
      %s495 = scalar_select %p492, %s493, %s494
      %p498 = pneg %p492
      %p499 = scmp.eq.s32.totalorder %s32, 1
      %p500 = por %p498, %p499
      %p501 = scmp.ne.s32.totalorder %s493, %s496
      %p502 = scmp.eq.s32.totalorder %s32, 0
      %p503 = por %p501, %p502
      %p504 = scmp.ne.s32.totalorder %s493, %s496
      %p505 = scmp.eq.s32.totalorder %s37, 1
      %p506 = por %p504, %p505
      %p507 = scmp.ne.s32.totalorder %s496, %s497
      %p508 = scmp.eq.s32.totalorder %s37, 0
      %p509 = por %p507, %p508
      %p510 = scmp.ne.s32.totalorder %s496, %s497
      %p511 = scmp.eq.s32.totalorder %s38, 1
      %p512 = por %p510, %p511
      %p514 = scmp.ne.s32.totalorder %s497, %s513
      %p515 = scmp.eq.s32.totalorder %s38, 0
      %p516 = por %p514, %p515
      %p517 = scmp.le.s32.totalorder 1, %s32
      %p518 = scmp.lt.s32.totalorder %s32, 3
      %p519 = pnand %p517, %p518
      %p520 = pneg %p519
      // Predicated region
      $region9: #{tpu_custom_call.1} parent=5 // pred_check
        _
      $region10: #{tpu_custom_call.1} parent=5 // pred_check_branch
        %522 = sbr.rel (%p519) target = $region12
      $region11: #{tpu_custom_call.1} parent=5 // pred_region
        %s523 = ssub.s32 %s32, 1
        // Predicated region
        $region13: #{tpu_custom_call.1} parent=11 // pred_check
          %p524 = pneg %p105
        $region14: #{tpu_custom_call.1} parent=11 // pred_check_branch
          %526 = sbr.rel (%p524) target = $region16
        $region15: #{tpu_custom_call.1} parent=11 // pred_region
          %s528 = ssub.s32 512, 512
          %529 = vsyncadd [#allocation3], %s528
          %s530 = sshll.u32 [#allocation2], 4
          %s531 = int_to_ptr.vmem [resolvable:$true] %s530
          %536 = dma.hbm_to_vmem [thread:$0]  %s2, 512, %s531, [#allocation3], 128, 128, 8
        $region16: #{tpu_custom_call.1} parent=11 // pred_fallthru
          _
        // Predicated region
        $region17: #{tpu_custom_call.1} parent=11 // pred_check
          %p537 = pneg %p126
        $region18: #{tpu_custom_call.1} parent=11 // pred_check_branch
          %539 = sbr.rel (%p537) target = $region20
        $region19: #{tpu_custom_call.1} parent=11 // pred_region
          _
        $region20: #{tpu_custom_call.1} parent=11 // pred_fallthru
          _
        // Predicated region
        $region21: #{tpu_custom_call.1} parent=11 // pred_check
          %p540 = pneg %p147
        $region22: #{tpu_custom_call.1} parent=11 // pred_check_branch
          %542 = sbr.rel (%p540) target = $region24
        $region23: #{tpu_custom_call.1} parent=11 // pred_region
          _
        $region24: #{tpu_custom_call.1} parent=11 // pred_fallthru
          _
        // Predicated region
        $region25: #{tpu_custom_call.1} parent=11 // pred_check
          %p543 = pneg %p168
        $region26: #{tpu_custom_call.1} parent=11 // pred_check_branch
          %545 = sbr.rel (%p543) target = $region28
        $region27: #{tpu_custom_call.1} parent=11 // pred_region
          _
        $region28: #{tpu_custom_call.1} parent=11 // pred_fallthru
          _
        // Predicated region
        $region29: #{tpu_custom_call.1} parent=11 // pred_check
          %p546 = pneg %p189
        $region30: #{tpu_custom_call.1} parent=11 // pred_check_branch
          %548 = sbr.rel (%p546) target = $region32
        $region31: #{tpu_custom_call.1} parent=11 // pred_region
          _
        $region32: #{tpu_custom_call.1} parent=11 // pred_fallthru
          _
        // Predicated region
        $region33: #{tpu_custom_call.1} parent=11 // pred_check
          %p549 = pneg %p210
        $region34: #{tpu_custom_call.1} parent=11 // pred_check_branch
          %551 = sbr.rel (%p549) target = $region36
        $region35: #{tpu_custom_call.1} parent=11 // pred_region
          _
        $region36: #{tpu_custom_call.1} parent=11 // pred_fallthru
          _
        // Predicated region
        $region37: #{tpu_custom_call.1} parent=11 // pred_check
          %p552 = pneg %p231
        $region38: #{tpu_custom_call.1} parent=11 // pred_check_branch
          %554 = sbr.rel (%p552) target = $region40
        $region39: #{tpu_custom_call.1} parent=11 // pred_region
          _
        $region40: #{tpu_custom_call.1} parent=11 // pred_fallthru
          _
        // Predicated region
        $region41: #{tpu_custom_call.1} parent=11 // pred_check
          %p555 = pneg %p252
        $region42: #{tpu_custom_call.1} parent=11 // pred_check_branch
          %557 = sbr.rel (%p555) target = $region44
        $region43: #{tpu_custom_call.1} parent=11 // pred_region
          _
        $region44: #{tpu_custom_call.1} parent=11 // pred_fallthru
          _
        // Predicated region
        $region45: #{tpu_custom_call.1} parent=11 // pred_check
          %p558 = pneg %p273
        $region46: #{tpu_custom_call.1} parent=11 // pred_check_branch
          %560 = sbr.rel (%p558) target = $region48
        $region47: #{tpu_custom_call.1} parent=11 // pred_region
          _
        $region48: #{tpu_custom_call.1} parent=11 // pred_fallthru
          _
        // Predicated region
        $region49: #{tpu_custom_call.1} parent=11 // pred_check
          %p561 = pneg %p294
        $region50: #{tpu_custom_call.1} parent=11 // pred_check_branch
          %563 = sbr.rel (%p561) target = $region52
        $region51: #{tpu_custom_call.1} parent=11 // pred_region
          _
        $region52: #{tpu_custom_call.1} parent=11 // pred_fallthru
          _
        // Predicated region
        $region53: #{tpu_custom_call.1} parent=11 // pred_check
          %p564 = pneg %p315
        $region54: #{tpu_custom_call.1} parent=11 // pred_check_branch
          %566 = sbr.rel (%p564) target = $region56
        $region55: #{tpu_custom_call.1} parent=11 // pred_region
          _
        $region56: #{tpu_custom_call.1} parent=11 // pred_fallthru
          _
        // Predicated region
        $region57: #{tpu_custom_call.1} parent=11 // pred_check
          %p567 = pneg %p336
        $region58: #{tpu_custom_call.1} parent=11 // pred_check_branch
          %569 = sbr.rel (%p567) target = $region60
        $region59: #{tpu_custom_call.1} parent=11 // pred_region
          _
        $region60: #{tpu_custom_call.1} parent=11 // pred_fallthru
          _
        // Predicated region
        $region61: #{tpu_custom_call.1} parent=11 // pred_check
          %p570 = pneg %p357
        $region62: #{tpu_custom_call.1} parent=11 // pred_check_branch
          %572 = sbr.rel (%p570) target = $region64
        $region63: #{tpu_custom_call.1} parent=11 // pred_region
          _
        $region64: #{tpu_custom_call.1} parent=11 // pred_fallthru
          _
        // Predicated region
        $region65: #{tpu_custom_call.1} parent=11 // pred_check
          %p573 = pneg %p378
        $region66: #{tpu_custom_call.1} parent=11 // pred_check_branch
          %575 = sbr.rel (%p573) target = $region68
        $region67: #{tpu_custom_call.1} parent=11 // pred_region
          _
        $region68: #{tpu_custom_call.1} parent=11 // pred_fallthru
          _
        // Predicated region
        $region69: #{tpu_custom_call.1} parent=11 // pred_check
          %p576 = pneg %p399
        $region70: #{tpu_custom_call.1} parent=11 // pred_check_branch
          %578 = sbr.rel (%p576) target = $region72
        $region71: #{tpu_custom_call.1} parent=11 // pred_region
          %s580 = ssub.s32 64, 64
          %581 = vsyncadd [#allocation6], %s580
          %s583 = sshll.u32 [#allocation5], 4
          %s584 = int_to_ptr.vmem [resolvable:$true] %s583
          %586 = dma.hbm_to_vmem [thread:$0]  %s16, 64, %s584, [#allocation6]
        $region72: #{tpu_custom_call.1} parent=11 // pred_fallthru
          _
        // Predicated region
        $region73: #{tpu_custom_call.1} parent=11 // pred_check
          %p587 = pneg %p420
        $region74: #{tpu_custom_call.1} parent=11 // pred_check_branch
          %589 = sbr.rel (%p587) target = $region76
        $region75: #{tpu_custom_call.1} parent=11 // pred_region
          _
        $region76: #{tpu_custom_call.1} parent=11 // pred_fallthru
          _
        // Predicated region
        $region77: #{tpu_custom_call.1} parent=11 // pred_check
          %p590 = pneg %p441
        $region78: #{tpu_custom_call.1} parent=11 // pred_check_branch
          %592 = sbr.rel (%p590) target = $region80
        $region79: #{tpu_custom_call.1} parent=11 // pred_region
          %s594 = ssub.s32 16, 16
          %595 = vsyncadd [#allocation6], %s594
          %s597 = sshll.u32 [#allocation7], 4
          %s598 = int_to_ptr.vmem [resolvable:$true] %s597
          %600 = dma.hbm_to_vmem [thread:$0]  %s18, 16, %s598, [#allocation6]
        $region80: #{tpu_custom_call.1} parent=11 // pred_fallthru
          _
        // Predicated region
        $region81: #{tpu_custom_call.1} parent=11 // pred_check
          %p601 = pneg %p462
        $region82: #{tpu_custom_call.1} parent=11 // pred_check_branch
          %603 = sbr.rel (%p601) target = $region84
        $region83: #{tpu_custom_call.1} parent=11 // pred_region
          _
        $region84: #{tpu_custom_call.1} parent=11 // pred_fallthru
          _
        // Predicated region
        $region85: #{tpu_custom_call.1} parent=11 // pred_check
          %p604 = pneg %p483
        $region86: #{tpu_custom_call.1} parent=11 // pred_check_branch
          %606 = sbr.rel (%p604) target = $region88
        $region87: #{tpu_custom_call.1} parent=11 // pred_region
          _
        $region88: #{tpu_custom_call.1} parent=11 // pred_fallthru
          _
      $region12: #{tpu_custom_call.1} parent=5 // pred_fallthru
        _
      %p607 = scmp.lt.s32.totalorder %s32, 2
      // Predicated region
      $region89: #{tpu_custom_call.1} parent=5 // pred_check
        %p608 = pneg %p607
      $region90: #{tpu_custom_call.1} parent=5 // pred_check_branch
        %610 = sbr.rel (%p608) target = $region92
      $region91: #{tpu_custom_call.1} parent=5 // pred_region
        // Predicated region
        $region93: #{tpu_custom_call.1} parent=91 // pred_check
          %p611 = pneg %p52
        $region94: #{tpu_custom_call.1} parent=91 // pred_check_branch
          %613 = sbr.rel (%p611) target = $region96
        $region95: #{tpu_custom_call.1} parent=91 // pred_region
          %p614 = scmp.lt.s32.totalorder %s32, 1
          %s615 = scalar_select %p614, %s32, 1
          %s616 = smul.addr %s615, 8
          %s617 = smul.addr %s616, 8
          %s618 = scalar_lea.vmem %s0, %s617
        $region96: #{tpu_custom_call.1} parent=91 // pred_fallthru
          _
        // Predicated region
        $region97: #{tpu_custom_call.1} parent=91 // pred_check
          %p619 = pneg %p78
        $region98: #{tpu_custom_call.1} parent=91 // pred_check_branch
          %621 = sbr.rel (%p619) target = $region100
        $region99: #{tpu_custom_call.1} parent=91 // pred_region
          %p622 = scmp.lt.s32.totalorder %s32, 1
          %s623 = scalar_select %p622, %s32, 1
          %s624 = smul.addr %s623, 4
          %s625 = smul.addr %s624, 8
          %s626 = scalar_lea.vmem %s1, %s625
        $region100: #{tpu_custom_call.1} parent=91 // pred_fallthru
          _
      $region92: #{tpu_custom_call.1} parent=5 // pred_fallthru
        _
      %p627 = scmp.le.s32.totalorder 1, %s32
      %p628 = scmp.lt.s32.totalorder %s32, 3
      %p629 = pnand %p627, %p628
      %p630 = pneg %p629
      // Predicated region
      $region101: #{tpu_custom_call.1} parent=5 // pred_check
        _
      $region102: #{tpu_custom_call.1} parent=5 // pred_check_branch
        %632 = sbr.rel (%p629) target = $region104
      $region103: #{tpu_custom_call.1} parent=5 // pred_region
        %s633 = ssub.s32 %s32, 1
        // Predicated region
        $region105: #{tpu_custom_call.1} parent=103 // pred_check
          %p634 = pneg %p105
        $region106: #{tpu_custom_call.1} parent=103 // pred_check_branch
          %636 = sbr.rel (%p634) target = $region108
        $region107: #{tpu_custom_call.1} parent=103 // pred_region
          %637 = dma.done [#allocation3], 512
        $region108: #{tpu_custom_call.1} parent=103 // pred_fallthru
          _
        // Predicated region
        $region109: #{tpu_custom_call.1} parent=103 // pred_check
          %p638 = pneg %p399
        $region110: #{tpu_custom_call.1} parent=103 // pred_check_branch
          %640 = sbr.rel (%p638) target = $region112
        $region111: #{tpu_custom_call.1} parent=103 // pred_region
          %641 = dma.done [#allocation6], 64
        $region112: #{tpu_custom_call.1} parent=103 // pred_fallthru
          _
        // Predicated region
        $region113: #{tpu_custom_call.1} parent=103 // pred_check
          %p642 = pneg %p441
        $region114: #{tpu_custom_call.1} parent=103 // pred_check_branch
          %644 = sbr.rel (%p642) target = $region116
        $region115: #{tpu_custom_call.1} parent=103 // pred_region
          %645 = dma.done [#allocation6], 16
        $region116: #{tpu_custom_call.1} parent=103 // pred_fallthru
          _
        %p646 = scmp.lt.s32.totalorder %s37, 1
        %s647 = scalar_select %p646, %s37, 1
        %s648 = smul.addr %s647, 8
        %s649 = smul.addr %s648, 8
        %s650 = scalar_lea.vmem %s0, %s649
        %p651 = pneg %p58
        %p652 = pneg %p55
        %p653 = scmp.lt.s32.totalorder %s37, 1
        %s654 = scalar_select %p653, %s37, 1
        %s655 = smul.addr %s654, 4
        %s656 = smul.addr %s655, 8
        %s657 = scalar_lea.vmem %s1, %s656
        %p658 = pneg %p84
        %p659 = pneg %p81
        %p660 = pneg %p105
        %p661 = pneg %p102
        %p662 = pneg %p126
        %p663 = pneg %p123
        %p664 = pneg %p147
        %p665 = pneg %p144
        %p666 = pneg %p168
        %p667 = pneg %p165
        %p668 = pneg %p189
        %p669 = pneg %p186
        %p670 = pneg %p210
        %p671 = pneg %p207
        %p672 = pneg %p231
        %p673 = pneg %p228
        %p674 = pneg %p252
        %p675 = pneg %p249
        %p676 = pneg %p273
        %p677 = pneg %p270
        %p678 = pneg %p294
        %p679 = pneg %p291
        %p680 = pneg %p315
        %p681 = pneg %p312
        %p682 = pneg %p336
        %p683 = pneg %p333
        %p684 = pneg %p357
        %p685 = pneg %p354
        %p686 = pneg %p378
        %p687 = pneg %p375
        %p688 = pneg %p399
        %p689 = pneg %p396
        %p690 = pneg %p420
        %p691 = pneg %p417
        %p692 = pneg %p441
        %p693 = pneg %p438
        %p694 = pneg %p462
        %p695 = pneg %p459
        %p696 = pneg %p483
        %p697 = pneg %p480
        %p698 = pneg %p509
        %p699 = pneg %p506
        %s700 = sand.u32 %s496, 1
        %s701 = scalar_lea.sflag [#allocation4], %s700
        %s702 = sand.u32 %s496, 1
        %s703 = smul.addr %s702, 128
        %s704 = scalar_lea.vmem [#allocation8], %s703
        %p705 = scmp.lt.s32.totalorder %s37, 1
        %s706 = scalar_select %p705, %s37, 1
        %s707 = smul.addr %s706, 8
        %s708 = smul.addr %s707, 8
        %s709 = scalar_lea.vmem %s0, %s708
        %p710 = scmp.lt.s32.totalorder %s37, 1
        %s711 = scalar_select %p710, %s37, 1
        %s712 = smul.addr %s711, 4
        %s713 = smul.addr %s712, 8
        %s714 = scalar_lea.vmem %s1, %s713
        %v715 = vld [vmem:[%s709] sm:$0xff]
        %v716 = vld [vmem:[%s709 + $0x8] sm:$0xff]
        %v717 = vld [vmem:[%s709 + $0x10] sm:$0xff]
        %v718 = vld [vmem:[%s709 + $0x18] sm:$0xff]
        %v719 = vld [vmem:[%s709 + $0x20] sm:$0xff]
        %v720 = vld [vmem:[%s709 + $0x28] sm:$0xff]
        %v721 = vld [vmem:[%s709 + $0x30] sm:$0xff]
        %v722 = vld [vmem:[%s709 + $0x38] sm:$0xff]
        %v723 = vld [vmem:[%s19] sm:$0xff]
        %v724 = vld [vmem:[%s19 + $0x8] sm:$0xff]
        %v725 = vld [vmem:[%s19 + $0x10] sm:$0x1]
        %v726 = vld [vmem:[%s19 + $0x18] sm:$0x1]
        %v727 = vld [vmem:[%s20] sm:$0xff]
        %v728 = vld [vmem:[%s20 + $0x8] sm:$0xff]
        %v729 = vld [vmem:[%s20 + $0x10] sm:$0xff]
        %v730 = vld [vmem:[%s20 + $0x18] sm:$0xff]
        %v731 = vld [vmem:[%s20 + $0x20] sm:$0xff]
        %v732 = vld [vmem:[%s20 + $0x28] sm:$0xff]
        %v733 = vld [vmem:[%s20 + $0x30] sm:$0xff]
        %v734 = vld [vmem:[%s20 + $0x38] sm:$0xff]
        %v735 = vld [vmem:[%s20 + $0x40] sm:$0xff]
        %v736 = vld [vmem:[%s20 + $0x48] sm:$0xff]
        %v737 = vld [vmem:[%s20 + $0x50] sm:$0xff]
        %v738 = vld [vmem:[%s20 + $0x58] sm:$0xff]
        %v739 = vld [vmem:[%s20 + $0x60] sm:$0x1]
        %v740 = vld [vmem:[%s20 + $0x68] sm:$0x1]
        %v741 = vld [vmem:[#allocation2] sm:$0xff]
        %v742 = vld [vmem:[#allocation2 + $0x8] sm:$0xff]
        %v743 = vld [vmem:[#allocation2 + $0x10] sm:$0xff]
        %v744 = vld [vmem:[#allocation2 + $0x18] sm:$0xff]
        %v745 = vld [vmem:[%s3] sm:$0xff]
        %v746 = vld [vmem:[%s3 + $0x8] sm:$0xff]
        %v747 = vld [vmem:[%s3 + $0x10] sm:$0xff]
        %v748 = vld [vmem:[%s3 + $0x18] sm:$0xff]
        %v749 = vld [vmem:[%s4] sm:$0xff]
        %v750 = vld [vmem:[%s4 + $0x8] sm:$0xff]
        %v751 = vld [vmem:[%s4 + $0x10] sm:$0xff]
        %v752 = vld [vmem:[%s4 + $0x18] sm:$0xff]
        %v753 = vadd.f32 %v715, %v716
        %754 = vadd.xlane.f32.xlu0 %v753
        %v755 = vpop.xlane.xlu0 %754
        %v756 = vadd.f32 %v717, %v718
        %757 = vadd.xlane.f32.xlu0 %v756
        %v758 = vpop.xlane.xlu0 %757
        %v759 = vadd.f32 %v719, %v720
        %760 = vadd.xlane.f32.xlu0 %v759
        %v761 = vpop.xlane.xlu0 %760
        %v762 = vadd.f32 %v721, %v722
        %763 = vadd.xlane.f32.xlu0 %v762
        %v764 = vpop.xlane.xlu0 %763
        %vm765 = vcmask 261120
        %v767 = vsel %vm765, %v741, 0
        %v770 = vsel %vm765, %v742, 0
        %v773 = vsel %vm765, %v743, 0
        %v776 = vsel %vm765, %v744, 0
        %778 = vmatprep.subr.mxu0 0.0
        %779 = vmatpush1.msra.mxu0 %v755
        %780 = vmatprep.subr.mxu0 0.0
        %781 = vmatpush1.msra.mxu0 %v758
        %782 = vmatprep.subr.mxu0 0.0
        %783 = vmatpush1.msra.mxu0 %v761
        %784 = vmatprep.subr.mxu0 0.0
        %785 = vmatpush1.msra.mxu0 %v764
        %786 = vmatprep.subr.mxu0 0.0
        %787 = vmatpush1.msra.mxu0 0.0
        %788 = vmatprep.subr.mxu0 0.0
        %789 = vmatpush1.msra.mxu0 0.0
        %790 = vmatprep.subr.mxu0 0.0
        %791 = vmatpush1.msra.mxu0 0.0
        %792 = vmatprep.subr.mxu0 0.0
        %793 = vmatpush1.msra.mxu0 0.0
        %794 = vmatprep.subr.mxu0 0.0
        %795 = vmatpush1.msra.mxu0 0.0
        %796 = vmatprep.subr.mxu0 0.0
        %797 = vmatpush1.msra.mxu0 0.0
        %798 = vmatprep.subr.mxu0 0.0
        %799 = vmatpush1.msra.mxu0 0.0
        %800 = vmatprep.subr.mxu0 0.0
        %801 = vmatpush1.msra.mxu0 0.0
        %802 = vmatprep.subr.mxu0 0.0
        %803 = vmatpush1.msra.mxu0 0.0
        %804 = vmatprep.subr.mxu0 0.0
        %805 = vmatpush1.msra.mxu0 0.0
        %806 = vmatprep.subr.mxu0 0.0
        %807 = vmatpush1.msra.mxu0 0.0
        %808 = vmatprep.subr.mxu0 0.0
        %809 = vmatpush1.msra.mxu0 0.0
        %810 = vmatprep.subr.mxu0 0.0
        %811 = vmatpush1.msra.mxu0 0.0
        %812 = vmatprep.subr.mxu0 0.0
        %813 = vmatpush1.msra.mxu0 0.0
        %814 = vmatprep.subr.mxu0 0.0
        %815 = vmatpush1.msra.mxu0 0.0
        %816 = vmatprep.subr.mxu0 0.0
        %817 = vmatpush1.msra.mxu0 0.0
        %818 = vmatprep.subr.mxu0 0.0
        %819 = vmatpush1.msra.mxu0 0.0
        %820 = vmatprep.subr.mxu0 0.0
        %821 = vmatpush1.msra.mxu0 0.0
        %822 = vmatprep.subr.mxu0 0.0
        %823 = vmatpush1.msra.mxu0 0.0
        %824 = vmatprep.subr.mxu0 0.0
        %825 = vmatpush1.msra.mxu0 0.0
        %826 = vmatprep.subr.mxu0 0.0
        %827 = vmatpush1.msra.mxu0 0.0
        %828 = vmatprep.subr.mxu0 0.0
        %829 = vmatpush1.msra.mxu0 0.0
        %830 = vmatprep.subr.mxu0 0.0
        %831 = vmatpush1.msra.mxu0 0.0
        %832 = vmatprep.subr.mxu0 0.0
        %833 = vmatpush1.msra.mxu0 0.0
        %834 = vmatprep.subr.mxu0 0.0
        %835 = vmatpush1.msra.mxu0 0.0
        %836 = vmatprep.subr.mxu0 0.0
        %837 = vmatpush1.msra.mxu0 0.0
        %838 = vmatprep.subr.mxu0 0.0
        %839 = vmatpush1.msra.mxu0 0.0
        %840 = vmatprep.subr.mxu0 0.0
        %841 = vmatpush1.msra.mxu0 0.0
        %842 = vmatprep.mubr.f32.mxu0 0.0
        %843 = vmatmul.mubr.f32.gmra.mrb[0].mxu0 %v767
        %v844 = vpop.f32.mrb[0].mxu0
        %v845 = vadd.f32 0.0, %v844
        %v846 = vpop.f32.mrb[0].mxu0
        %847 = vmatprep.mubr.f32.mxu0 0.0
        %848 = vmatmul.mubr.f32.gmra.mrb[0].mxu0 %v770
        %v849 = vpop.f32.mrb[0].mxu0
        %v850 = vadd.f32 0.0, %v849
        %v851 = vpop.f32.mrb[0].mxu0
        %852 = vmatprep.mubr.f32.mxu0 0.0
        %853 = vmatmul.mubr.f32.gmra.mrb[0].mxu0 %v773
        %v854 = vpop.f32.mrb[0].mxu0
        %v855 = vadd.f32 0.0, %v854
        %v856 = vpop.f32.mrb[0].mxu0
        %857 = vmatprep.mubr.f32.mxu0 0.0
        %858 = vmatmul.mubr.f32.gmra.mrb[0].mxu0 %v776
        %v859 = vpop.f32.mrb[0].mxu0
        %v860 = vadd.f32 0.0, %v859
        %v861 = vpop.f32.mrb[0].mxu0
        %862 = vdwg.mxu0
        %864 = vset.pattern.permute.xlu0 0
        %865 = vperm.xlu0 %864, %v845
        %v866 = vpop.permute.xlu0 %865
        %869 = vset.pattern.permute.xlu0 0
        %870 = vperm.xlu0 %869, %v850
        %v871 = vpop.permute.xlu0 %870
        %874 = vset.pattern.permute.xlu0 0
        %875 = vperm.xlu0 %874, %v855
        %v876 = vpop.permute.xlu0 %875
        %879 = vset.pattern.permute.xlu0 0
        %880 = vperm.xlu0 %879, %v860
        %v881 = vpop.permute.xlu0 %880
        %v883 = vsub.f32 %v715, %v866
        %v884 = vsub.f32 %v716, %v866
        %v885 = vsub.f32 %v717, %v871
        %v886 = vsub.f32 %v718, %v871
        %v887 = vsub.f32 %v719, %v876
        %v888 = vsub.f32 %v720, %v876
        %v889 = vsub.f32 %v721, %v881
        %v890 = vsub.f32 %v722, %v881
        %v891 = vmul.f32 %v883, %v883
        %v892 = vmul.f32 %v884, %v884
        %v893 = vmul.f32 %v885, %v885
        %v894 = vmul.f32 %v886, %v886
        %v895 = vmul.f32 %v887, %v887
        %v896 = vmul.f32 %v888, %v888
        %v897 = vmul.f32 %v889, %v889
        %v898 = vmul.f32 %v890, %v890
        %v899 = vadd.f32 %v891, %v892
        %900 = vadd.xlane.f32.xlu0 %v899
        %v901 = vpop.xlane.xlu0 %900
        %v902 = vadd.f32 %v893, %v894
        %903 = vadd.xlane.f32.xlu0 %v902
        %v904 = vpop.xlane.xlu0 %903
        %v905 = vadd.f32 %v895, %v896
        %906 = vadd.xlane.f32.xlu0 %v905
        %v907 = vpop.xlane.xlu0 %906
        %v908 = vadd.f32 %v897, %v898
        %909 = vadd.xlane.f32.xlu0 %v908
        %v910 = vpop.xlane.xlu0 %909
        %911 = vmatprep.subr.mxu0 0.0
        %912 = vmatpush1.msra.mxu0 %v901
        %913 = vmatprep.subr.mxu0 0.0
        %914 = vmatpush1.msra.mxu0 %v904
        %915 = vmatprep.subr.mxu0 0.0
        %916 = vmatpush1.msra.mxu0 %v907
        %917 = vmatprep.subr.mxu0 0.0
        %918 = vmatpush1.msra.mxu0 %v910
        %919 = vmatprep.subr.mxu0 0.0
        %920 = vmatpush1.msra.mxu0 0.0
        %921 = vmatprep.subr.mxu0 0.0
        %922 = vmatpush1.msra.mxu0 0.0
        %923 = vmatprep.subr.mxu0 0.0
        %924 = vmatpush1.msra.mxu0 0.0
        %925 = vmatprep.subr.mxu0 0.0
        %926 = vmatpush1.msra.mxu0 0.0
        %927 = vmatprep.subr.mxu0 0.0
        %928 = vmatpush1.msra.mxu0 0.0
        %929 = vmatprep.subr.mxu0 0.0
        %930 = vmatpush1.msra.mxu0 0.0
        %931 = vmatprep.subr.mxu0 0.0
        %932 = vmatpush1.msra.mxu0 0.0
        %933 = vmatprep.subr.mxu0 0.0
        %934 = vmatpush1.msra.mxu0 0.0
        %935 = vmatprep.subr.mxu0 0.0
        %936 = vmatpush1.msra.mxu0 0.0
        %937 = vmatprep.subr.mxu0 0.0
        %938 = vmatpush1.msra.mxu0 0.0
        %939 = vmatprep.subr.mxu0 0.0
        %940 = vmatpush1.msra.mxu0 0.0
        %941 = vmatprep.subr.mxu0 0.0
        %942 = vmatpush1.msra.mxu0 0.0
        %943 = vmatprep.subr.mxu0 0.0
        %944 = vmatpush1.msra.mxu0 0.0
        %945 = vmatprep.subr.mxu0 0.0
        %946 = vmatpush1.msra.mxu0 0.0
        %947 = vmatprep.subr.mxu0 0.0
        %948 = vmatpush1.msra.mxu0 0.0
        %949 = vmatprep.subr.mxu0 0.0
        %950 = vmatpush1.msra.mxu0 0.0
        %951 = vmatprep.subr.mxu0 0.0
        %952 = vmatpush1.msra.mxu0 0.0
        %953 = vmatprep.subr.mxu0 0.0
        %954 = vmatpush1.msra.mxu0 0.0
        %955 = vmatprep.subr.mxu0 0.0
        %956 = vmatpush1.msra.mxu0 0.0
        %957 = vmatprep.subr.mxu0 0.0
        %958 = vmatpush1.msra.mxu0 0.0
        %959 = vmatprep.subr.mxu0 0.0
        %960 = vmatpush1.msra.mxu0 0.0
        %961 = vmatprep.subr.mxu0 0.0
        %962 = vmatpush1.msra.mxu0 0.0
        %963 = vmatprep.subr.mxu0 0.0
        %964 = vmatpush1.msra.mxu0 0.0
        %965 = vmatprep.subr.mxu0 0.0
        %966 = vmatpush1.msra.mxu0 0.0
        %967 = vmatprep.subr.mxu0 0.0
        %968 = vmatpush1.msra.mxu0 0.0
        %969 = vmatprep.subr.mxu0 0.0
        %970 = vmatpush1.msra.mxu0 0.0
        %971 = vmatprep.subr.mxu0 0.0
        %972 = vmatpush1.msra.mxu0 0.0
        %973 = vmatprep.subr.mxu0 0.0
        %974 = vmatpush1.msra.mxu0 0.0
        %975 = vmatprep.mubr.f32.mxu0 0.0
        %976 = vmatmul.mubr.f32.gmra.mrb[0].mxu0 %v767
        %v977 = vpop.f32.mrb[0].mxu0
        %v978 = vadd.f32 1e-05, %v977
        %v979 = vpop.f32.mrb[0].mxu0
        %980 = vmatprep.mubr.f32.mxu0 0.0
        %981 = vmatmul.mubr.f32.gmra.mrb[0].mxu0 %v770
        %v982 = vpop.f32.mrb[0].mxu0
        %v983 = vadd.f32 1e-05, %v982
        %v984 = vpop.f32.mrb[0].mxu0
        %985 = vmatprep.mubr.f32.mxu0 0.0
        %986 = vmatmul.mubr.f32.gmra.mrb[0].mxu0 %v773
        %v987 = vpop.f32.mrb[0].mxu0
        %v988 = vadd.f32 1e-05, %v987
        %v989 = vpop.f32.mrb[0].mxu0
        %990 = vmatprep.mubr.f32.mxu0 0.0
        %991 = vmatmul.mubr.f32.gmra.mrb[0].mxu0 %v776
        %v992 = vpop.f32.mrb[0].mxu0
        %v993 = vadd.f32 1e-05, %v992
        %v994 = vpop.f32.mrb[0].mxu0
        %995 = vdwg.mxu0
        %v996 = vrsqrt.pop %v978
        %v997 = vrsqrt.pop %v983
        %v998 = vrsqrt.pop %v988
        %v999 = vrsqrt.pop %v993
        %1001 = vset.pattern.permute.xlu0 0
        %1002 = vperm.xlu0 %1001, %v996
        %v1003 = vpop.permute.xlu0 %1002
        %1006 = vset.pattern.permute.xlu0 0
        %1007 = vperm.xlu0 %1006, %v997
        %v1008 = vpop.permute.xlu0 %1007
        %1011 = vset.pattern.permute.xlu0 0
        %1012 = vperm.xlu0 %1011, %v998
        %v1013 = vpop.permute.xlu0 %1012
        %1016 = vset.pattern.permute.xlu0 0
        %1017 = vperm.xlu0 %1016, %v999
        %v1018 = vpop.permute.xlu0 %1017
        %v1020 = vmul.f32 %v883, %v1003
        %v1021 = vmul.f32 %v884, %v1003
        %v1022 = vmul.f32 %v885, %v1008
        %v1023 = vmul.f32 %v886, %v1008
        %v1024 = vmul.f32 %v887, %v1013
        %v1025 = vmul.f32 %v888, %v1013
        %v1026 = vmul.f32 %v889, %v1018
        %v1027 = vmul.f32 %v890, %v1018
        %1029 = vset.pattern.permute.xlu0 0
        %1030 = vperm.xlu0 %1029, %v745
        %v1031 = vpop.permute.xlu0 %1030
        %1034 = vset.pattern.permute.xlu0 0
        %1035 = vperm.xlu0 %1034, %v746
        %v1036 = vpop.permute.xlu0 %1035
        %1039 = vset.pattern.permute.xlu0 0
        %1040 = vperm.xlu0 %1039, %v747
        %v1041 = vpop.permute.xlu0 %1040
        %1044 = vset.pattern.permute.xlu0 0
        %1045 = vperm.xlu0 %1044, %v748
        %v1046 = vpop.permute.xlu0 %1045
        %v1048 = vmul.f32 %v1020, %v1031
        %v1049 = vmul.f32 %v1021, %v1031
        %v1050 = vmul.f32 %v1022, %v1036
        %v1051 = vmul.f32 %v1023, %v1036
        %v1052 = vmul.f32 %v1024, %v1041
        %v1053 = vmul.f32 %v1025, %v1041
        %v1054 = vmul.f32 %v1026, %v1046
        %v1055 = vmul.f32 %v1027, %v1046
        %1057 = vset.pattern.permute.xlu0 0
        %1058 = vperm.xlu0 %1057, %v749
        %v1059 = vpop.permute.xlu0 %1058
        %1062 = vset.pattern.permute.xlu0 0
        %1063 = vperm.xlu0 %1062, %v750
        %v1064 = vpop.permute.xlu0 %1063
        %1067 = vset.pattern.permute.xlu0 0
        %1068 = vperm.xlu0 %1067, %v751
        %v1069 = vpop.permute.xlu0 %1068
        %1072 = vset.pattern.permute.xlu0 0
        %1073 = vperm.xlu0 %1072, %v752
        %v1074 = vpop.permute.xlu0 %1073
        %v1076 = vadd.f32 %v1048, %v1059
        %v1077 = vadd.f32 %v1049, %v1059
        %v1078 = vadd.f32 %v1050, %v1064
        %v1079 = vadd.f32 %v1051, %v1064
        %v1080 = vadd.f32 %v1052, %v1069
        %v1081 = vadd.f32 %v1053, %v1069
        %v1082 = vadd.f32 %v1054, %v1074
        %v1083 = vadd.f32 %v1055, %v1074
        %v1084 = vxor.u32 %v1076, 2147483648
        %v1085 = vxor.u32 %v1077, 2147483648
        %v1086 = vxor.u32 %v1078, 2147483648
        %v1087 = vxor.u32 %v1079, 2147483648
        %v1088 = vxor.u32 %v1080, 2147483648
        %v1089 = vxor.u32 %v1081, 2147483648
        %v1090 = vxor.u32 %v1082, 2147483648
        %v1091 = vxor.u32 %v1083, 2147483648
        %v1092 = vmul.f32 %v1084, 1.442695
        %v1093 = vpow.pop %v1092
        %v1094 = vmul.f32 %v1085, 1.442695
        %v1095 = vpow.pop %v1094
        %v1096 = vmul.f32 %v1086, 1.442695
        %v1097 = vpow.pop %v1096
        %v1098 = vmul.f32 %v1087, 1.442695
        %v1099 = vpow.pop %v1098
        %v1100 = vmul.f32 %v1088, 1.442695
        %v1101 = vpow.pop %v1100
        %v1102 = vmul.f32 %v1089, 1.442695
        %v1103 = vpow.pop %v1102
        %v1104 = vmul.f32 %v1090, 1.442695
        %v1105 = vpow.pop %v1104
        %v1106 = vmul.f32 %v1091, 1.442695
        %v1107 = vpow.pop %v1106
        %v1108 = vadd.f32 %v1093, 1.0
        %v1109 = vadd.f32 %v1095, 1.0
        %v1110 = vadd.f32 %v1097, 1.0
        %v1111 = vadd.f32 %v1099, 1.0
        %v1112 = vadd.f32 %v1101, 1.0
        %v1113 = vadd.f32 %v1103, 1.0
        %v1114 = vadd.f32 %v1105, 1.0
        %v1115 = vadd.f32 %v1107, 1.0
        %v1116 = vrcp.pop %v1108
        %v1117 = vmul.f32 1.0, %v1116
        %v1118 = vrcp.pop %v1109
        %v1119 = vmul.f32 1.0, %v1118
        %v1120 = vrcp.pop %v1110
        %v1121 = vmul.f32 1.0, %v1120
        %v1122 = vrcp.pop %v1111
        %v1123 = vmul.f32 1.0, %v1122
        %v1124 = vrcp.pop %v1112
        %v1125 = vmul.f32 1.0, %v1124
        %v1126 = vrcp.pop %v1113
        %v1127 = vmul.f32 1.0, %v1126
        %v1128 = vrcp.pop %v1114
        %v1129 = vmul.f32 1.0, %v1128
        %v1130 = vrcp.pop %v1115
        %v1131 = vmul.f32 1.0, %v1130
        %v1132 = vmul.f32 %v1076, %v1117
        %v1133 = vmul.f32 %v1077, %v1119
        %v1134 = vmul.f32 %v1078, %v1121
        %v1135 = vmul.f32 %v1079, %v1123
        %v1136 = vmul.f32 %v1080, %v1125
        %v1137 = vmul.f32 %v1081, %v1127
        %v1138 = vmul.f32 %v1082, %v1129
        %v1139 = vmul.f32 %v1083, %v1131
        %v1140 = vld [vmem:[%s5] sm:$0xff]
        %v1141 = vld [vmem:[%s5 + $0x8] sm:$0xff]
        %v1142 = vld [vmem:[%s5 + $0x10] sm:$0xff]
        %v1143 = vld [vmem:[%s5 + $0x18] sm:$0xff]
        %v1144 = vld [vmem:[%s5 + $0x20] sm:$0xff]
        %v1145 = vld [vmem:[%s5 + $0x28] sm:$0xff]
        %v1146 = vld [vmem:[%s5 + $0x30] sm:$0xff]
        %v1147 = vld [vmem:[%s5 + $0x38] sm:$0xff]
        %v1148 = vld [vmem:[%s5 + $0x40] sm:$0xff]
        %v1149 = vld [vmem:[%s5 + $0x48] sm:$0xff]
        %v1150 = vld [vmem:[%s5 + $0x50] sm:$0xff]
        %v1151 = vld [vmem:[%s5 + $0x58] sm:$0xff]
        %v1152 = vld [vmem:[%s5 + $0x60] sm:$0xff]
        %v1153 = vld [vmem:[%s5 + $0x68] sm:$0xff]
        %v1154 = vld [vmem:[%s5 + $0x70] sm:$0xff]
        %v1155 = vld [vmem:[%s5 + $0x78] sm:$0xff]
        %v1156 = vld [vmem:[%s5 + $0x80] sm:$0xff]
        %v1157 = vld [vmem:[%s5 + $0x88] sm:$0xff]
        %v1158 = vld [vmem:[%s5 + $0x90] sm:$0xff]
        %v1159 = vld [vmem:[%s5 + $0x98] sm:$0xff]
        %v1160 = vld [vmem:[%s5 + $0xa0] sm:$0xff]
        %v1161 = vld [vmem:[%s5 + $0xa8] sm:$0xff]
        %v1162 = vld [vmem:[%s5 + $0xb0] sm:$0xff]
        %v1163 = vld [vmem:[%s5 + $0xb8] sm:$0xff]
        %1168 = vrot.lane.b32.xlu0 %v1133, 17
        %v1169 = vpop.permute.xlu0 %1168
        %1170 = vrot.lane.b32.xlu0 %v1135, 17
        %v1171 = vpop.permute.xlu0 %1170
        %1172 = vrot.lane.b32.xlu0 %v1137, 17
        %v1173 = vpop.permute.xlu0 %1172
        %1174 = vrot.lane.b32.xlu0 %v1139, 17
        %v1175 = vpop.permute.xlu0 %1174
        %1184 = vrot.lane.b32.xlu0 %v1132, 17
        %v1185 = vpop.permute.xlu0 %1184
        %1186 = vrot.lane.b32.xlu0 %v1134, 17
        %v1187 = vpop.permute.xlu0 %1186
        %1188 = vrot.lane.b32.xlu0 %v1136, 17
        %v1189 = vpop.permute.xlu0 %1188
        %1190 = vrot.lane.b32.xlu0 %v1138, 17
        %v1191 = vpop.permute.xlu0 %1190
        %vm1192 = vcmask 138240
        %v1193 = vsel %vm1192, %v1185, %v1169
        %v1194 = vsel %vm1192, %v1187, %v1171
        %v1195 = vsel %vm1192, %v1189, %v1173
        %v1196 = vsel %vm1192, %v1191, %v1175
        %v1205 = vsel %vm1192, %v1169, %v1185
        %v1206 = vsel %vm1192, %v1171, %v1187
        %v1207 = vsel %vm1192, %v1173, %v1189
        %v1208 = vsel %vm1192, %v1175, %v1191
        %v1209 = vlaneseq
        %v1210 = vshrl.u32 %v1209, 7
        %v1211 = vsub.s32 0, %v1210
        %v1212 = vrot.slane %v723, %v1211
        %v1213 = vlaneseq
        %v1214 = vshrl.u32 %v1213, 7
        %v1215 = vsub.s32 0, %v1214
        %v1216 = vrot.slane %v724, %v1215
        %v1217 = vmul.f32 %v1205, %v1212
        %v1218 = vmul.f32 %v1193, %v1216
        %v1219 = vmul.f32 %v1206, %v1212
        %v1220 = vmul.f32 %v1194, %v1216
        %v1221 = vmul.f32 %v1207, %v1212
        %v1222 = vmul.f32 %v1195, %v1216
        %v1223 = vmul.f32 %v1208, %v1212
        %v1224 = vmul.f32 %v1196, %v1216
        %1225 = vrot.lane.b32.xlu0 %v1133, 16
        %v1226 = vpop.permute.xlu0 %1225
        %1227 = vrot.lane.b32.xlu0 %v1135, 16
        %v1228 = vpop.permute.xlu0 %1227
        %1229 = vrot.lane.b32.xlu0 %v1137, 16
        %v1230 = vpop.permute.xlu0 %1229
        %1231 = vrot.lane.b32.xlu0 %v1139, 16
        %v1232 = vpop.permute.xlu0 %1231
        %1237 = vrot.lane.b32.xlu0 %v1132, 16
        %v1238 = vpop.permute.xlu0 %1237
        %1239 = vrot.lane.b32.xlu0 %v1134, 16
        %v1240 = vpop.permute.xlu0 %1239
        %1241 = vrot.lane.b32.xlu0 %v1136, 16
        %v1242 = vpop.permute.xlu0 %1241
        %1243 = vrot.lane.b32.xlu0 %v1138, 16
        %v1244 = vpop.permute.xlu0 %1243
        %vm1245 = vcmask 130048
        %v1246 = vsel %vm1245, %v1238, %v1226
        %v1247 = vsel %vm1245, %v1240, %v1228
        %v1248 = vsel %vm1245, %v1242, %v1230
        %v1249 = vsel %vm1245, %v1244, %v1232
        %v1258 = vsel %vm1245, %v1226, %v1238
        %v1259 = vsel %vm1245, %v1228, %v1240
        %v1260 = vsel %vm1245, %v1230, %v1242
        %v1261 = vsel %vm1245, %v1232, %v1244
        %v1262 = vlaneseq
        %v1263 = vshrl.u32 %v1262, 7
        %v1264 = vsub.s32 1, %v1263
        %v1265 = vrot.slane %v723, %v1264
        %v1266 = vlaneseq
        %v1267 = vshrl.u32 %v1266, 7
        %v1268 = vsub.s32 1, %v1267
        %v1269 = vrot.slane %v724, %v1268
        %v1270 = vmul.f32 %v1258, %v1265
        %v1271 = vmul.f32 %v1246, %v1269
        %v1272 = vmul.f32 %v1259, %v1265
        %v1273 = vmul.f32 %v1247, %v1269
        %v1274 = vmul.f32 %v1260, %v1265
        %v1275 = vmul.f32 %v1248, %v1269
        %v1276 = vmul.f32 %v1261, %v1265
        %v1277 = vmul.f32 %v1249, %v1269
        %1278 = vrot.lane.b32.xlu0 %v1133, 15
        %v1279 = vpop.permute.xlu0 %1278
        %1280 = vrot.lane.b32.xlu0 %v1135, 15
        %v1281 = vpop.permute.xlu0 %1280
        %1282 = vrot.lane.b32.xlu0 %v1137, 15
        %v1283 = vpop.permute.xlu0 %1282
        %1284 = vrot.lane.b32.xlu0 %v1139, 15
        %v1285 = vpop.permute.xlu0 %1284
        %1290 = vrot.lane.b32.xlu0 %v1132, 15
        %v1291 = vpop.permute.xlu0 %1290
        %1292 = vrot.lane.b32.xlu0 %v1134, 15
        %v1293 = vpop.permute.xlu0 %1292
        %1294 = vrot.lane.b32.xlu0 %v1136, 15
        %v1295 = vpop.permute.xlu0 %1294
        %1296 = vrot.lane.b32.xlu0 %v1138, 15
        %v1297 = vpop.permute.xlu0 %1296
        %vm1298 = vcmask 121856
        %v1299 = vsel %vm1298, %v1291, %v1279
        %v1300 = vsel %vm1298, %v1293, %v1281
        %v1301 = vsel %vm1298, %v1295, %v1283
        %v1302 = vsel %vm1298, %v1297, %v1285
        %v1311 = vsel %vm1298, %v1279, %v1291
        %v1312 = vsel %vm1298, %v1281, %v1293
        %v1313 = vsel %vm1298, %v1283, %v1295
        %v1314 = vsel %vm1298, %v1285, %v1297
        %v1315 = vlaneseq
        %v1316 = vshrl.u32 %v1315, 7
        %v1317 = vsub.s32 2, %v1316
        %v1318 = vrot.slane %v723, %v1317
        %v1319 = vlaneseq
        %v1320 = vshrl.u32 %v1319, 7
        %v1321 = vsub.s32 2, %v1320
        %v1322 = vrot.slane %v724, %v1321
        %v1323 = vmul.f32 %v1311, %v1318
        %v1324 = vmul.f32 %v1299, %v1322
        %v1325 = vmul.f32 %v1312, %v1318
        %v1326 = vmul.f32 %v1300, %v1322
        %v1327 = vmul.f32 %v1313, %v1318
        %v1328 = vmul.f32 %v1301, %v1322
        %v1329 = vmul.f32 %v1314, %v1318
        %v1330 = vmul.f32 %v1302, %v1322
        %1331 = vrot.lane.b32.xlu0 %v1133, 1
        %v1332 = vpop.permute.xlu0 %1331
        %1333 = vrot.lane.b32.xlu0 %v1135, 1
        %v1334 = vpop.permute.xlu0 %1333
        %1335 = vrot.lane.b32.xlu0 %v1137, 1
        %v1336 = vpop.permute.xlu0 %1335
        %1337 = vrot.lane.b32.xlu0 %v1139, 1
        %v1338 = vpop.permute.xlu0 %1337
        %1343 = vrot.lane.b32.xlu0 %v1132, 1
        %v1344 = vpop.permute.xlu0 %1343
        %1345 = vrot.lane.b32.xlu0 %v1134, 1
        %v1346 = vpop.permute.xlu0 %1345
        %1347 = vrot.lane.b32.xlu0 %v1136, 1
        %v1348 = vpop.permute.xlu0 %1347
        %1349 = vrot.lane.b32.xlu0 %v1138, 1
        %v1350 = vpop.permute.xlu0 %1349
        %vm1351 = vcmask 7168
        %v1352 = vsel %vm1351, %v1344, %v1332
        %v1353 = vsel %vm1351, %v1346, %v1334
        %v1354 = vsel %vm1351, %v1348, %v1336
        %v1355 = vsel %vm1351, %v1350, %v1338
        %v1364 = vsel %vm1351, %v1332, %v1344
        %v1365 = vsel %vm1351, %v1334, %v1346
        %v1366 = vsel %vm1351, %v1336, %v1348
        %v1367 = vsel %vm1351, %v1338, %v1350
        %v1368 = vlaneseq
        %v1369 = vshrl.u32 %v1368, 7
        %v1370 = vsub.s32 3, %v1369
        %v1371 = vrot.slane %v723, %v1370
        %v1372 = vlaneseq
        %v1373 = vshrl.u32 %v1372, 7
        %v1374 = vsub.s32 3, %v1373
        %v1375 = vrot.slane %v724, %v1374
        %v1376 = vmul.f32 %v1364, %v1371
        %v1377 = vmul.f32 %v1352, %v1375
        %v1378 = vmul.f32 %v1365, %v1371
        %v1379 = vmul.f32 %v1353, %v1375
        %v1380 = vmul.f32 %v1366, %v1371
        %v1381 = vmul.f32 %v1354, %v1375
        %v1382 = vmul.f32 %v1367, %v1371
        %v1383 = vmul.f32 %v1355, %v1375
        %v1384 = vlaneseq
        %v1385 = vshrl.u32 %v1384, 7
        %v1386 = vsub.s32 4, %v1385
        %v1387 = vrot.slane %v723, %v1386
        %v1388 = vlaneseq
        %v1389 = vshrl.u32 %v1388, 7
        %v1390 = vsub.s32 4, %v1389
        %v1391 = vrot.slane %v724, %v1390
        %v1392 = vmul.f32 %v1132, %v1387
        %v1393 = vmul.f32 %v1133, %v1391
        %v1394 = vmul.f32 %v1134, %v1387
        %v1395 = vmul.f32 %v1135, %v1391
        %v1396 = vmul.f32 %v1136, %v1387
        %v1397 = vmul.f32 %v1137, %v1391
        %v1398 = vmul.f32 %v1138, %v1387
        %v1399 = vmul.f32 %v1139, %v1391
        %1400 = vrot.lane.b32.xlu0 %v1132, 127
        %v1401 = vpop.permute.xlu0 %1400
        %1402 = vrot.lane.b32.xlu0 %v1133, 127
        %v1403 = vpop.permute.xlu0 %1402
        %1404 = vrot.lane.b32.xlu0 %v1134, 127
        %v1405 = vpop.permute.xlu0 %1404
        %1406 = vrot.lane.b32.xlu0 %v1135, 127
        %v1407 = vpop.permute.xlu0 %1406
        %1408 = vrot.lane.b32.xlu0 %v1136, 127
        %v1409 = vpop.permute.xlu0 %1408
        %1410 = vrot.lane.b32.xlu0 %v1137, 127
        %v1411 = vpop.permute.xlu0 %1410
        %1412 = vrot.lane.b32.xlu0 %v1138, 127
        %v1413 = vpop.permute.xlu0 %1412
        %1414 = vrot.lane.b32.xlu0 %v1139, 127
        %v1415 = vpop.permute.xlu0 %1414
        %vm1416 = vcmask 1039360
        %v1417 = vsel %vm1416, %v1401, %v1403
        %v1418 = vsel %vm1416, %v1405, %v1407
        %v1419 = vsel %vm1416, %v1409, %v1411
        %v1420 = vsel %vm1416, %v1413, %v1415
        %v1433 = vsel %vm1416, %v1403, %v1401
        %v1434 = vsel %vm1416, %v1407, %v1405
        %v1435 = vsel %vm1416, %v1411, %v1409
        %v1436 = vsel %vm1416, %v1415, %v1413
        %v1437 = vlaneseq
        %v1438 = vshrl.u32 %v1437, 7
        %v1439 = vsub.s32 5, %v1438
        %v1440 = vrot.slane %v723, %v1439
        %v1441 = vlaneseq
        %v1442 = vshrl.u32 %v1441, 7
        %v1443 = vsub.s32 5, %v1442
        %v1444 = vrot.slane %v724, %v1443
        %v1445 = vmul.f32 %v1417, %v1440
        %v1446 = vmul.f32 %v1433, %v1444
        %v1447 = vmul.f32 %v1418, %v1440
        %v1448 = vmul.f32 %v1434, %v1444
        %v1449 = vmul.f32 %v1419, %v1440
        %v1450 = vmul.f32 %v1435, %v1444
        %v1451 = vmul.f32 %v1420, %v1440
        %v1452 = vmul.f32 %v1436, %v1444
        %1453 = vrot.lane.b32.xlu0 %v1132, 113
        %v1454 = vpop.permute.xlu0 %1453
        %1455 = vrot.lane.b32.xlu0 %v1133, 113
        %v1456 = vpop.permute.xlu0 %1455
        %1457 = vrot.lane.b32.xlu0 %v1134, 113
        %v1458 = vpop.permute.xlu0 %1457
        %1459 = vrot.lane.b32.xlu0 %v1135, 113
        %v1460 = vpop.permute.xlu0 %1459
        %1461 = vrot.lane.b32.xlu0 %v1136, 113
        %v1462 = vpop.permute.xlu0 %1461
        %1463 = vrot.lane.b32.xlu0 %v1137, 113
        %v1464 = vpop.permute.xlu0 %1463
        %1465 = vrot.lane.b32.xlu0 %v1138, 113
        %v1466 = vpop.permute.xlu0 %1465
        %1467 = vrot.lane.b32.xlu0 %v1139, 113
        %v1468 = vpop.permute.xlu0 %1467
        %vm1469 = vcmask 924672
        %v1470 = vsel %vm1469, %v1454, %v1456
        %v1471 = vsel %vm1469, %v1458, %v1460
        %v1472 = vsel %vm1469, %v1462, %v1464
        %v1473 = vsel %vm1469, %v1466, %v1468
        %v1486 = vsel %vm1469, %v1456, %v1454
        %v1487 = vsel %vm1469, %v1460, %v1458
        %v1488 = vsel %vm1469, %v1464, %v1462
        %v1489 = vsel %vm1469, %v1468, %v1466
        %v1490 = vlaneseq
        %v1491 = vshrl.u32 %v1490, 7
        %v1492 = vsub.s32 6, %v1491
        %v1493 = vrot.slane %v723, %v1492
        %v1494 = vlaneseq
        %v1495 = vshrl.u32 %v1494, 7
        %v1496 = vsub.s32 6, %v1495
        %v1497 = vrot.slane %v724, %v1496
        %v1498 = vmul.f32 %v1470, %v1493
        %v1499 = vmul.f32 %v1486, %v1497
        %v1500 = vmul.f32 %v1471, %v1493
        %v1501 = vmul.f32 %v1487, %v1497
        %v1502 = vmul.f32 %v1472, %v1493
        %v1503 = vmul.f32 %v1488, %v1497
        %v1504 = vmul.f32 %v1473, %v1493
        %v1505 = vmul.f32 %v1489, %v1497
        %1506 = vrot.lane.b32.xlu0 %v1132, 112
        %v1507 = vpop.permute.xlu0 %1506
        %1508 = vrot.lane.b32.xlu0 %v1133, 112
        %v1509 = vpop.permute.xlu0 %1508
        %1510 = vrot.lane.b32.xlu0 %v1134, 112
        %v1511 = vpop.permute.xlu0 %1510
        %1512 = vrot.lane.b32.xlu0 %v1135, 112
        %v1513 = vpop.permute.xlu0 %1512
        %1514 = vrot.lane.b32.xlu0 %v1136, 112
        %v1515 = vpop.permute.xlu0 %1514
        %1516 = vrot.lane.b32.xlu0 %v1137, 112
        %v1517 = vpop.permute.xlu0 %1516
        %1518 = vrot.lane.b32.xlu0 %v1138, 112
        %v1519 = vpop.permute.xlu0 %1518
        %1520 = vrot.lane.b32.xlu0 %v1139, 112
        %v1521 = vpop.permute.xlu0 %1520
        %vm1522 = vcmask 916480
        %v1523 = vsel %vm1522, %v1507, %v1509
        %v1524 = vsel %vm1522, %v1511, %v1513
        %v1525 = vsel %vm1522, %v1515, %v1517
        %v1526 = vsel %vm1522, %v1519, %v1521
        %v1539 = vsel %vm1522, %v1509, %v1507
        %v1540 = vsel %vm1522, %v1513, %v1511
        %v1541 = vsel %vm1522, %v1517, %v1515
        %v1542 = vsel %vm1522, %v1521, %v1519
        %v1543 = vlaneseq
        %v1544 = vshrl.u32 %v1543, 7
        %v1545 = vsub.s32 7, %v1544
        %v1546 = vrot.slane %v723, %v1545
        %v1547 = vlaneseq
        %v1548 = vshrl.u32 %v1547, 7
        %v1549 = vsub.s32 7, %v1548
        %v1550 = vrot.slane %v724, %v1549
        %v1551 = vmul.f32 %v1523, %v1546
        %v1552 = vmul.f32 %v1539, %v1550
        %v1553 = vmul.f32 %v1524, %v1546
        %v1554 = vmul.f32 %v1540, %v1550
        %v1555 = vmul.f32 %v1525, %v1546
        %v1556 = vmul.f32 %v1541, %v1550
        %v1557 = vmul.f32 %v1526, %v1546
        %v1558 = vmul.f32 %v1542, %v1550
        %1559 = vrot.lane.b32.xlu0 %v1132, 111
        %v1560 = vpop.permute.xlu0 %1559
        %1561 = vrot.lane.b32.xlu0 %v1133, 111
        %v1562 = vpop.permute.xlu0 %1561
        %1563 = vrot.lane.b32.xlu0 %v1134, 111
        %v1564 = vpop.permute.xlu0 %1563
        %1565 = vrot.lane.b32.xlu0 %v1135, 111
        %v1566 = vpop.permute.xlu0 %1565
        %1567 = vrot.lane.b32.xlu0 %v1136, 111
        %v1568 = vpop.permute.xlu0 %1567
        %1569 = vrot.lane.b32.xlu0 %v1137, 111
        %v1570 = vpop.permute.xlu0 %1569
        %1571 = vrot.lane.b32.xlu0 %v1138, 111
        %v1572 = vpop.permute.xlu0 %1571
        %1573 = vrot.lane.b32.xlu0 %v1139, 111
        %v1574 = vpop.permute.xlu0 %1573
        %vm1575 = vcmask 908288
        %v1576 = vsel %vm1575, %v1560, %v1562
        %v1577 = vsel %vm1575, %v1564, %v1566
        %v1578 = vsel %vm1575, %v1568, %v1570
        %v1579 = vsel %vm1575, %v1572, %v1574
        %v1592 = vsel %vm1575, %v1562, %v1560
        %v1593 = vsel %vm1575, %v1566, %v1564
        %v1594 = vsel %vm1575, %v1570, %v1568
        %v1595 = vsel %vm1575, %v1574, %v1572
        %v1596 = vlaneseq
        %v1597 = vshrl.u32 %v1596, 7
        %v1598 = vsub.s32 0, %v1597
        %v1599 = vrot.slane %v725, %v1598
        %v1600 = vlaneseq
        %v1601 = vshrl.u32 %v1600, 7
        %v1602 = vsub.s32 0, %v1601
        %v1603 = vrot.slane %v726, %v1602
        %v1604 = vmul.f32 %v1576, %v1599
        %v1605 = vmul.f32 %v1592, %v1603
        %v1606 = vmul.f32 %v1577, %v1599
        %v1607 = vmul.f32 %v1593, %v1603
        %v1608 = vmul.f32 %v1578, %v1599
        %v1609 = vmul.f32 %v1594, %v1603
        %v1610 = vmul.f32 %v1579, %v1599
        %v1611 = vmul.f32 %v1595, %v1603
        %v1612 = vld [vmem:[%s6] sm:$0xff]
        %v1613 = vld [vmem:[%s6 + $0x8] sm:$0xff]
        %v1614 = vld [vmem:[%s6 + $0x10] sm:$0xff]
        %v1615 = vld [vmem:[%s6 + $0x18] sm:$0xff]
        %v1616 = vld [vmem:[%s6 + $0x20] sm:$0xff]
        %v1617 = vld [vmem:[%s6 + $0x28] sm:$0xff]
        %v1618 = vld [vmem:[%s6 + $0x30] sm:$0xff]
        %v1619 = vld [vmem:[%s6 + $0x38] sm:$0xff]
        %1621 = vset.pattern.permute.xlu0 0
        %1622 = vperm.xlu0 %1621, %v1612
        %v1623 = vpop.permute.xlu0 %1622
        %1626 = vset.pattern.permute.xlu0 0
        %1627 = vperm.xlu0 %1626, %v1613
        %v1628 = vpop.permute.xlu0 %1627
        %1631 = vset.pattern.permute.xlu0 0
        %1632 = vperm.xlu0 %1631, %v1614
        %v1633 = vpop.permute.xlu0 %1632
        %1636 = vset.pattern.permute.xlu0 0
        %1637 = vperm.xlu0 %1636, %v1615
        %v1638 = vpop.permute.xlu0 %1637
        %1641 = vset.pattern.permute.xlu0 0
        %1642 = vperm.xlu0 %1641, %v1616
        %v1643 = vpop.permute.xlu0 %1642
        %1646 = vset.pattern.permute.xlu0 0
        %1647 = vperm.xlu0 %1646, %v1617
        %v1648 = vpop.permute.xlu0 %1647
        %1651 = vset.pattern.permute.xlu0 0
        %1652 = vperm.xlu0 %1651, %v1618
        %v1653 = vpop.permute.xlu0 %1652
        %1656 = vset.pattern.permute.xlu0 0
        %1657 = vperm.xlu0 %1656, %v1619
        %v1658 = vpop.permute.xlu0 %1657
        %v1661 = vsel %vm765, %v1142, 0
        %v1664 = vsel %vm765, %v1145, 0
        %v1667 = vsel %vm765, %v1148, 0
        %v1670 = vsel %vm765, %v1151, 0
        %v1673 = vsel %vm765, %v1154, 0
        %v1676 = vsel %vm765, %v1157, 0
        %v1679 = vsel %vm765, %v1160, 0
        %v1682 = vsel %vm765, %v1163, 0
        %1684 = vmatprep.subr.mxu0 %v1218
        %1685 = vmatpush1.msra.mxu0 %v1217
        %1686 = vmatprep.subr.mxu0 %v1220
        %1687 = vmatpush1.msra.mxu0 %v1219
        %1688 = vmatprep.subr.mxu0 %v1222
        %1689 = vmatpush1.msra.mxu0 %v1221
        %1690 = vmatprep.subr.mxu0 %v1224
        %1691 = vmatpush1.msra.mxu0 %v1223
        %1692 = vmatprep.subr.mxu0 %v1271
        %1693 = vmatpush1.msra.mxu0 %v1270
        %1694 = vmatprep.subr.mxu0 %v1273
        %1695 = vmatpush1.msra.mxu0 %v1272
        %1696 = vmatprep.subr.mxu0 %v1275
        %1697 = vmatpush1.msra.mxu0 %v1274
        %1698 = vmatprep.subr.mxu0 %v1277
        %1699 = vmatpush1.msra.mxu0 %v1276
        %1700 = vmatprep.subr.mxu0 %v1324
        %1701 = vmatpush1.msra.mxu0 %v1323
        %1702 = vmatprep.subr.mxu0 %v1326
        %1703 = vmatpush1.msra.mxu0 %v1325
        %1704 = vmatprep.subr.mxu0 %v1328
        %1705 = vmatpush1.msra.mxu0 %v1327
        %1706 = vmatprep.subr.mxu0 %v1330
        %1707 = vmatpush1.msra.mxu0 %v1329
        %1708 = vmatprep.subr.mxu0 %v1377
        %1709 = vmatpush1.msra.mxu0 %v1376
        %1710 = vmatprep.subr.mxu0 %v1379
        %1711 = vmatpush1.msra.mxu0 %v1378
        %1712 = vmatprep.subr.mxu0 %v1381
        %1713 = vmatpush1.msra.mxu0 %v1380
        %1714 = vmatprep.subr.mxu0 %v1383
        %1715 = vmatpush1.msra.mxu0 %v1382
        %1716 = vmatprep.subr.mxu0 %v1393
        %1717 = vmatpush1.msra.mxu0 %v1392
        %1718 = vmatprep.subr.mxu0 %v1395
        %1719 = vmatpush1.msra.mxu0 %v1394
        %1720 = vmatprep.subr.mxu0 %v1397
        %1721 = vmatpush1.msra.mxu0 %v1396
        %1722 = vmatprep.subr.mxu0 %v1399
        %1723 = vmatpush1.msra.mxu0 %v1398
        %1724 = vmatprep.subr.mxu0 %v1446
        %1725 = vmatpush1.msra.mxu0 %v1445
        %1726 = vmatprep.subr.mxu0 %v1448
        %1727 = vmatpush1.msra.mxu0 %v1447
        %1728 = vmatprep.subr.mxu0 %v1450
        %1729 = vmatpush1.msra.mxu0 %v1449
        %1730 = vmatprep.subr.mxu0 %v1452
        %1731 = vmatpush1.msra.mxu0 %v1451
        %1732 = vmatprep.subr.mxu0 %v1499
        %1733 = vmatpush1.msra.mxu0 %v1498
        %1734 = vmatprep.subr.mxu0 %v1501
        %1735 = vmatpush1.msra.mxu0 %v1500
        %1736 = vmatprep.subr.mxu0 %v1503
        %1737 = vmatpush1.msra.mxu0 %v1502
        %1738 = vmatprep.subr.mxu0 %v1505
        %1739 = vmatpush1.msra.mxu0 %v1504
        %1740 = vmatprep.subr.mxu0 %v1552
        %1741 = vmatpush1.msra.mxu0 %v1551
        %1742 = vmatprep.subr.mxu0 %v1554
        %1743 = vmatpush1.msra.mxu0 %v1553
        %1744 = vmatprep.subr.mxu0 %v1556
        %1745 = vmatpush1.msra.mxu0 %v1555
        %1746 = vmatprep.subr.mxu0 %v1558
        %1747 = vmatpush1.msra.mxu0 %v1557
        %1748 = vmatprep.mubr.f32.mxu0 %v1141
        %1749 = vmatmul.mubr.f32.gmra.mrb[0].mxu0 %v1140
        %v1750 = vpop.f32.mrb[0].mxu0
        %v1751 = vadd.f32 %v1623, %v1750
        %v1752 = vpop.f32.mrb[0].mxu0
        %v1753 = vadd.f32 %v1623, %v1752
        %1754 = vmatprep.mubr.f32.mxu0 %v1144
        %1755 = vmatmul.mubr.f32.gmra.mrb[0].mxu0 %v1143
        %v1756 = vpop.f32.mrb[0].mxu0
        %v1757 = vadd.f32 %v1628, %v1756
        %v1758 = vpop.f32.mrb[0].mxu0
        %v1759 = vadd.f32 %v1628, %v1758
        %1760 = vmatprep.mubr.f32.mxu0 %v1147
        %1761 = vmatmul.mubr.f32.gmra.mrb[0].mxu0 %v1146
        %v1762 = vpop.f32.mrb[0].mxu0
        %v1763 = vadd.f32 %v1633, %v1762
        %v1764 = vpop.f32.mrb[0].mxu0
        %v1765 = vadd.f32 %v1633, %v1764
        %1766 = vmatprep.mubr.f32.mxu0 %v1150
        %1767 = vmatmul.mubr.f32.gmra.mrb[0].mxu0 %v1149
        %v1768 = vpop.f32.mrb[0].mxu0
        %v1769 = vadd.f32 %v1638, %v1768
        %v1770 = vpop.f32.mrb[0].mxu0
        %v1771 = vadd.f32 %v1638, %v1770
        %1772 = vmatprep.mubr.f32.mxu0 %v1153
        %1773 = vmatmul.mubr.f32.gmra.mrb[0].mxu0 %v1152
        %v1774 = vpop.f32.mrb[0].mxu0
        %v1775 = vadd.f32 %v1643, %v1774
        %v1776 = vpop.f32.mrb[0].mxu0
        %v1777 = vadd.f32 %v1643, %v1776
        %1778 = vmatprep.mubr.f32.mxu0 %v1156
        %1779 = vmatmul.mubr.f32.gmra.mrb[0].mxu0 %v1155
        %v1780 = vpop.f32.mrb[0].mxu0
        %v1781 = vadd.f32 %v1648, %v1780
        %v1782 = vpop.f32.mrb[0].mxu0
        %v1783 = vadd.f32 %v1648, %v1782
        %1784 = vmatprep.mubr.f32.mxu0 %v1159
        %1785 = vmatmul.mubr.f32.gmra.mrb[0].mxu0 %v1158
        %v1786 = vpop.f32.mrb[0].mxu0
        %v1787 = vadd.f32 %v1653, %v1786
        %v1788 = vpop.f32.mrb[0].mxu0
        %v1789 = vadd.f32 %v1653, %v1788
        %1790 = vmatprep.mubr.f32.mxu0 %v1162
        %1791 = vmatmul.mubr.f32.gmra.mrb[0].mxu0 %v1161
        %v1792 = vpop.f32.mrb[0].mxu0
        %v1793 = vadd.f32 %v1658, %v1792
        %v1794 = vpop.f32.mrb[0].mxu0
        %v1795 = vadd.f32 %v1658, %v1794
        %1796 = vdwg.mxu0
        %1797 = vmatprep.subr.mxu0 %v1605
        %1798 = vmatpush1.msra.mxu0 %v1604
        %1799 = vmatprep.subr.mxu0 %v1607
        %1800 = vmatpush1.msra.mxu0 %v1606
        %1801 = vmatprep.subr.mxu0 %v1609
        %1802 = vmatpush1.msra.mxu0 %v1608
        %1803 = vmatprep.subr.mxu0 %v1611
        %1804 = vmatpush1.msra.mxu0 %v1610
        %1805 = vmatprep.subr.mxu0 0.0
        %1806 = vmatpush1.msra.mxu0 0.0
        %1807 = vmatprep.subr.mxu0 0.0
        %1808 = vmatpush1.msra.mxu0 0.0
        %1809 = vmatprep.subr.mxu0 0.0
        %1810 = vmatpush1.msra.mxu0 0.0
        %1811 = vmatprep.subr.mxu0 0.0
        %1812 = vmatpush1.msra.mxu0 0.0
        %1813 = vmatprep.subr.mxu0 0.0
        %1814 = vmatpush1.msra.mxu0 0.0
        %1815 = vmatprep.subr.mxu0 0.0
        %1816 = vmatpush1.msra.mxu0 0.0
        %1817 = vmatprep.subr.mxu0 0.0
        %1818 = vmatpush1.msra.mxu0 0.0
        %1819 = vmatprep.subr.mxu0 0.0
        %1820 = vmatpush1.msra.mxu0 0.0
        %1821 = vmatprep.subr.mxu0 0.0
        %1822 = vmatpush1.msra.mxu0 0.0
        %1823 = vmatprep.subr.mxu0 0.0
        %1824 = vmatpush1.msra.mxu0 0.0
        %1825 = vmatprep.subr.mxu0 0.0
        %1826 = vmatpush1.msra.mxu0 0.0
        %1827 = vmatprep.subr.mxu0 0.0
        %1828 = vmatpush1.msra.mxu0 0.0
        %1829 = vmatprep.subr.mxu0 0.0
        %1830 = vmatpush1.msra.mxu0 0.0
        %1831 = vmatprep.subr.mxu0 0.0
        %1832 = vmatpush1.msra.mxu0 0.0
        %1833 = vmatprep.subr.mxu0 0.0
        %1834 = vmatpush1.msra.mxu0 0.0
        %1835 = vmatprep.subr.mxu0 0.0
        %1836 = vmatpush1.msra.mxu0 0.0
        %1837 = vmatprep.subr.mxu0 0.0
        %1838 = vmatpush1.msra.mxu0 0.0
        %1839 = vmatprep.subr.mxu0 0.0
        %1840 = vmatpush1.msra.mxu0 0.0
        %1841 = vmatprep.subr.mxu0 0.0
        %1842 = vmatpush1.msra.mxu0 0.0
        %1843 = vmatprep.subr.mxu0 0.0
        %1844 = vmatpush1.msra.mxu0 0.0
        %1845 = vmatprep.subr.mxu0 0.0
        %1846 = vmatpush1.msra.mxu0 0.0
        %1847 = vmatprep.subr.mxu0 0.0
        %1848 = vmatpush1.msra.mxu0 0.0
        %1849 = vmatprep.subr.mxu0 0.0
        %1850 = vmatpush1.msra.mxu0 0.0
        %1851 = vmatprep.subr.mxu0 0.0
        %1852 = vmatpush1.msra.mxu0 0.0
        %1853 = vmatprep.subr.mxu0 0.0
        %1854 = vmatpush1.msra.mxu0 0.0
        %1855 = vmatprep.subr.mxu0 0.0
        %1856 = vmatpush1.msra.mxu0 0.0
        %1857 = vmatprep.subr.mxu0 0.0
        %1858 = vmatpush1.msra.mxu0 0.0
        %1859 = vmatprep.subr.mxu0 0.0
        %1860 = vmatpush1.msra.mxu0 0.0
        %1861 = vmatprep.mubr.f32.mxu0 0.0
        %1862 = vmatmul.mubr.f32.gmra.mrb[0].mxu0 %v1661
        %v1863 = vpop.f32.mrb[0].mxu0
        %v1864 = vadd.f32 %v1751, %v1863
        %v1865 = vpop.f32.mrb[0].mxu0
        %v1866 = vadd.f32 %v1753, %v1865
        %1867 = vmatprep.mubr.f32.mxu0 0.0
        %1868 = vmatmul.mubr.f32.gmra.mrb[0].mxu0 %v1664
        %v1869 = vpop.f32.mrb[0].mxu0
        %v1870 = vadd.f32 %v1757, %v1869
        %v1871 = vpop.f32.mrb[0].mxu0
        %v1872 = vadd.f32 %v1759, %v1871
        %1873 = vmatprep.mubr.f32.mxu0 0.0
        %1874 = vmatmul.mubr.f32.gmra.mrb[0].mxu0 %v1667
        %v1875 = vpop.f32.mrb[0].mxu0
        %v1876 = vadd.f32 %v1763, %v1875
        %v1877 = vpop.f32.mrb[0].mxu0
        %v1878 = vadd.f32 %v1765, %v1877
        %1879 = vmatprep.mubr.f32.mxu0 0.0
        %1880 = vmatmul.mubr.f32.gmra.mrb[0].mxu0 %v1670
        %v1881 = vpop.f32.mrb[0].mxu0
        %v1882 = vadd.f32 %v1769, %v1881
        %v1883 = vpop.f32.mrb[0].mxu0
        %v1884 = vadd.f32 %v1771, %v1883
        %1885 = vmatprep.mubr.f32.mxu0 0.0
        %1886 = vmatmul.mubr.f32.gmra.mrb[0].mxu0 %v1673
        %v1887 = vpop.f32.mrb[0].mxu0
        %v1888 = vadd.f32 %v1775, %v1887
        %v1889 = vpop.f32.mrb[0].mxu0
        %v1890 = vadd.f32 %v1777, %v1889
        %1891 = vmatprep.mubr.f32.mxu0 0.0
        %1892 = vmatmul.mubr.f32.gmra.mrb[0].mxu0 %v1676
        %v1893 = vpop.f32.mrb[0].mxu0
        %v1894 = vadd.f32 %v1781, %v1893
        %v1895 = vpop.f32.mrb[0].mxu0
        %v1896 = vadd.f32 %v1783, %v1895
        %1897 = vmatprep.mubr.f32.mxu0 0.0
        %1898 = vmatmul.mubr.f32.gmra.mrb[0].mxu0 %v1679
        %v1899 = vpop.f32.mrb[0].mxu0
        %v1900 = vadd.f32 %v1787, %v1899
        %v1901 = vpop.f32.mrb[0].mxu0
        %v1902 = vadd.f32 %v1789, %v1901
        %1903 = vmatprep.mubr.f32.mxu0 0.0
        %1904 = vmatmul.mubr.f32.gmra.mrb[0].mxu0 %v1682
        %v1905 = vpop.f32.mrb[0].mxu0
        %v1906 = vadd.f32 %v1793, %v1905
        %v1907 = vpop.f32.mrb[0].mxu0
        %v1908 = vadd.f32 %v1795, %v1907
        %1909 = vdwg.mxu0
        %v1910 = vld [vmem:[%s7] sm:$0xff]
        %v1911 = vld [vmem:[%s7 + $0x8] sm:$0xff]
        %v1912 = vld [vmem:[%s7 + $0x10] sm:$0xff]
        %v1913 = vld [vmem:[%s7 + $0x18] sm:$0xff]
        %v1914 = vld [vmem:[%s7 + $0x20] sm:$0xff]
        %v1915 = vld [vmem:[%s7 + $0x28] sm:$0xff]
        %v1916 = vld [vmem:[%s7 + $0x30] sm:$0xff]
        %v1917 = vld [vmem:[%s7 + $0x38] sm:$0xff]
        %v1918 = vld [vmem:[%s714] sm:$0xff]
        %v1919 = vld [vmem:[%s714 + $0x8] sm:$0xff]
        %v1920 = vld [vmem:[%s714 + $0x10] sm:$0xff]
        %v1921 = vld [vmem:[%s714 + $0x18] sm:$0xff]
        %v1922 = vld [vmem:[%s8] sm:$0xff]
        %v1923 = vld [vmem:[%s8 + $0x8] sm:$0xff]
        %v1924 = vld [vmem:[%s8 + $0x10] sm:$0xff]
        %v1925 = vld [vmem:[%s8 + $0x18] sm:$0xff]
        %v1926 = vld [vmem:[%s8 + $0x20] sm:$0xff]
        %v1927 = vld [vmem:[%s8 + $0x28] sm:$0xff]
        %v1928 = vld [vmem:[%s8 + $0x30] sm:$0xff]
        %v1929 = vld [vmem:[%s8 + $0x38] sm:$0xff]
        %v1931 = vsel %vm765, %v1910, 0
        %v1934 = vsel %vm765, %v1911, 0
        %v1937 = vsel %vm765, %v1912, 0
        %v1940 = vsel %vm765, %v1913, 0
        %v1943 = vsel %vm765, %v1914, 0
        %v1946 = vsel %vm765, %v1915, 0
        %v1949 = vsel %vm765, %v1916, 0
        %v1952 = vsel %vm765, %v1917, 0
        %1954 = vmatprep.subr.mxu0 0.0
        %1955 = vmatpush1.msra.mxu0 %v1918
        %1956 = vmatprep.subr.mxu0 0.0
        %1957 = vmatpush1.msra.mxu0 %v1919
        %1958 = vmatprep.subr.mxu0 0.0
        %1959 = vmatpush1.msra.mxu0 %v1920
        %1960 = vmatprep.subr.mxu0 0.0
        %1961 = vmatpush1.msra.mxu0 %v1921
        %1962 = vmatprep.subr.mxu0 0.0
        %1963 = vmatpush1.msra.mxu0 0.0
        %1964 = vmatprep.subr.mxu0 0.0
        %1965 = vmatpush1.msra.mxu0 0.0
        %1966 = vmatprep.subr.mxu0 0.0
        %1967 = vmatpush1.msra.mxu0 0.0
        %1968 = vmatprep.subr.mxu0 0.0
        %1969 = vmatpush1.msra.mxu0 0.0
        %1970 = vmatprep.subr.mxu0 0.0
        %1971 = vmatpush1.msra.mxu0 0.0
        %1972 = vmatprep.subr.mxu0 0.0
        %1973 = vmatpush1.msra.mxu0 0.0
        %1974 = vmatprep.subr.mxu0 0.0
        %1975 = vmatpush1.msra.mxu0 0.0
        %1976 = vmatprep.subr.mxu0 0.0
        %1977 = vmatpush1.msra.mxu0 0.0
        %1978 = vmatprep.subr.mxu0 0.0
        %1979 = vmatpush1.msra.mxu0 0.0
        %1980 = vmatprep.subr.mxu0 0.0
        %1981 = vmatpush1.msra.mxu0 0.0
        %1982 = vmatprep.subr.mxu0 0.0
        %1983 = vmatpush1.msra.mxu0 0.0
        %1984 = vmatprep.subr.mxu0 0.0
        %1985 = vmatpush1.msra.mxu0 0.0
        %1986 = vmatprep.subr.mxu0 0.0
        %1987 = vmatpush1.msra.mxu0 0.0
        %1988 = vmatprep.subr.mxu0 0.0
        %1989 = vmatpush1.msra.mxu0 0.0
        %1990 = vmatprep.subr.mxu0 0.0
        %1991 = vmatpush1.msra.mxu0 0.0
        %1992 = vmatprep.subr.mxu0 0.0
        %1993 = vmatpush1.msra.mxu0 0.0
        %1994 = vmatprep.subr.mxu0 0.0
        %1995 = vmatpush1.msra.mxu0 0.0
        %1996 = vmatprep.subr.mxu0 0.0
        %1997 = vmatpush1.msra.mxu0 0.0
        %1998 = vmatprep.subr.mxu0 0.0
        %1999 = vmatpush1.msra.mxu0 0.0
        %2000 = vmatprep.subr.mxu0 0.0
        %2001 = vmatpush1.msra.mxu0 0.0
        %2002 = vmatprep.subr.mxu0 0.0
        %2003 = vmatpush1.msra.mxu0 0.0
        %2004 = vmatprep.subr.mxu0 0.0
        %2005 = vmatpush1.msra.mxu0 0.0
        %2006 = vmatprep.subr.mxu0 0.0
        %2007 = vmatpush1.msra.mxu0 0.0
        %2008 = vmatprep.subr.mxu0 0.0
        %2009 = vmatpush1.msra.mxu0 0.0
        %2010 = vmatprep.subr.mxu0 0.0
        %2011 = vmatpush1.msra.mxu0 0.0
        %2012 = vmatprep.subr.mxu0 0.0
        %2013 = vmatpush1.msra.mxu0 0.0
        %2014 = vmatprep.subr.mxu0 0.0
        %2015 = vmatpush1.msra.mxu0 0.0
        %2016 = vmatprep.subr.mxu0 0.0
        %2017 = vmatpush1.msra.mxu0 0.0
        %2018 = vmatprep.mubr.f32.mxu0 0.0
        %2019 = vmatmul.mubr.f32.gmra.mrb[0].mxu0 %v1931
        %v2020 = vpop.f32.mrb[0].mxu0
        %v2021 = vadd.f32 %v1922, %v2020
        %v2022 = vpop.f32.mrb[0].mxu0
        %2023 = vmatprep.mubr.f32.mxu0 0.0
        %2024 = vmatmul.mubr.f32.gmra.mrb[0].mxu0 %v1934
        %v2025 = vpop.f32.mrb[0].mxu0
        %v2026 = vadd.f32 %v1923, %v2025
        %v2027 = vpop.f32.mrb[0].mxu0
        %2028 = vmatprep.mubr.f32.mxu0 0.0
        %2029 = vmatmul.mubr.f32.gmra.mrb[0].mxu0 %v1937
        %v2030 = vpop.f32.mrb[0].mxu0
        %v2031 = vadd.f32 %v1924, %v2030
        %v2032 = vpop.f32.mrb[0].mxu0
        %2033 = vmatprep.mubr.f32.mxu0 0.0
        %2034 = vmatmul.mubr.f32.gmra.mrb[0].mxu0 %v1940
        %v2035 = vpop.f32.mrb[0].mxu0
        %v2036 = vadd.f32 %v1925, %v2035
        %v2037 = vpop.f32.mrb[0].mxu0
        %2038 = vmatprep.mubr.f32.mxu0 0.0
        %2039 = vmatmul.mubr.f32.gmra.mrb[0].mxu0 %v1943
        %v2040 = vpop.f32.mrb[0].mxu0
        %v2041 = vadd.f32 %v1926, %v2040
        %v2042 = vpop.f32.mrb[0].mxu0
        %2043 = vmatprep.mubr.f32.mxu0 0.0
        %2044 = vmatmul.mubr.f32.gmra.mrb[0].mxu0 %v1946
        %v2045 = vpop.f32.mrb[0].mxu0
        %v2046 = vadd.f32 %v1927, %v2045
        %v2047 = vpop.f32.mrb[0].mxu0
        %2048 = vmatprep.mubr.f32.mxu0 0.0
        %2049 = vmatmul.mubr.f32.gmra.mrb[0].mxu0 %v1949
        %v2050 = vpop.f32.mrb[0].mxu0
        %v2051 = vadd.f32 %v1928, %v2050
        %v2052 = vpop.f32.mrb[0].mxu0
        %2053 = vmatprep.mubr.f32.mxu0 0.0
        %2054 = vmatmul.mubr.f32.gmra.mrb[0].mxu0 %v1952
        %v2055 = vpop.f32.mrb[0].mxu0
        %v2056 = vadd.f32 %v1929, %v2055
        %v2057 = vpop.f32.mrb[0].mxu0
        %2058 = vdwg.mxu0
        %2060 = vset.pattern.permute.xlu0 0
        %2061 = vperm.xlu0 %2060, %v2021
        %v2062 = vpop.permute.xlu0 %2061
        %2065 = vset.pattern.permute.xlu0 0
        %2066 = vperm.xlu0 %2065, %v2026
        %v2067 = vpop.permute.xlu0 %2066
        %2070 = vset.pattern.permute.xlu0 0
        %2071 = vperm.xlu0 %2070, %v2031
        %v2072 = vpop.permute.xlu0 %2071
        %2075 = vset.pattern.permute.xlu0 0
        %2076 = vperm.xlu0 %2075, %v2036
        %v2077 = vpop.permute.xlu0 %2076
        %2080 = vset.pattern.permute.xlu0 0
        %2081 = vperm.xlu0 %2080, %v2041
        %v2082 = vpop.permute.xlu0 %2081
        %2085 = vset.pattern.permute.xlu0 0
        %2086 = vperm.xlu0 %2085, %v2046
        %v2087 = vpop.permute.xlu0 %2086
        %2090 = vset.pattern.permute.xlu0 0
        %2091 = vperm.xlu0 %2090, %v2051
        %v2092 = vpop.permute.xlu0 %2091
        %2095 = vset.pattern.permute.xlu0 0
        %2096 = vperm.xlu0 %2095, %v2056
        %v2097 = vpop.permute.xlu0 %2096
        %v2099 = vadd.f32 %v1864, %v2062
        %v2100 = vadd.f32 %v1866, %v2062
        %v2101 = vadd.f32 %v1870, %v2067
        %v2102 = vadd.f32 %v1872, %v2067
        %v2103 = vadd.f32 %v1876, %v2072
        %v2104 = vadd.f32 %v1878, %v2072
        %v2105 = vadd.f32 %v1882, %v2077
        %v2106 = vadd.f32 %v1884, %v2077
        %v2107 = vadd.f32 %v1888, %v2082
        %v2108 = vadd.f32 %v1890, %v2082
        %v2109 = vadd.f32 %v1894, %v2087
        %v2110 = vadd.f32 %v1896, %v2087
        %v2111 = vadd.f32 %v1900, %v2092
        %v2112 = vadd.f32 %v1902, %v2092
        %v2113 = vadd.f32 %v1906, %v2097
        %v2114 = vadd.f32 %v1908, %v2097
        %v2115 = vld [vmem:[%s9] sm:$0xff]
        %v2116 = vld [vmem:[%s9 + $0x8] sm:$0xff]
        %v2117 = vld [vmem:[%s9 + $0x10] sm:$0xff]
        %v2118 = vld [vmem:[%s9 + $0x18] sm:$0xff]
        %v2119 = vld [vmem:[%s9 + $0x20] sm:$0xff]
        %v2120 = vld [vmem:[%s9 + $0x28] sm:$0xff]
        %v2121 = vld [vmem:[%s9 + $0x30] sm:$0xff]
        %v2122 = vld [vmem:[%s9 + $0x38] sm:$0xff]
        %v2123 = vld [vmem:[%s10] sm:$0xff]
        %v2124 = vld [vmem:[%s10 + $0x8] sm:$0xff]
        %v2125 = vld [vmem:[%s10 + $0x10] sm:$0xff]
        %v2126 = vld [vmem:[%s10 + $0x18] sm:$0xff]
        %v2127 = vld [vmem:[%s10 + $0x20] sm:$0xff]
        %v2128 = vld [vmem:[%s10 + $0x28] sm:$0xff]
        %v2129 = vld [vmem:[%s10 + $0x30] sm:$0xff]
        %v2130 = vld [vmem:[%s10 + $0x38] sm:$0xff]
        %v2131 = vld [vmem:[%s11] sm:$0xff]
        %v2132 = vld [vmem:[%s11 + $0x8] sm:$0xff]
        %v2133 = vld [vmem:[%s11 + $0x10] sm:$0xff]
        %v2134 = vld [vmem:[%s11 + $0x18] sm:$0xff]
        %v2135 = vld [vmem:[%s11 + $0x20] sm:$0xff]
        %v2136 = vld [vmem:[%s11 + $0x28] sm:$0xff]
        %v2137 = vld [vmem:[%s11 + $0x30] sm:$0xff]
        %v2138 = vld [vmem:[%s11 + $0x38] sm:$0xff]
        %v2139 = vadd.f32 %v2099, %v2100
        %2140 = vadd.xlane.f32.xlu0 %v2139
        %v2141 = vpop.xlane.xlu0 %2140
        %v2142 = vadd.f32 %v2101, %v2102
        %2143 = vadd.xlane.f32.xlu0 %v2142
        %v2144 = vpop.xlane.xlu0 %2143
        %v2145 = vadd.f32 %v2103, %v2104
        %2146 = vadd.xlane.f32.xlu0 %v2145
        %v2147 = vpop.xlane.xlu0 %2146
        %v2148 = vadd.f32 %v2105, %v2106
        %2149 = vadd.xlane.f32.xlu0 %v2148
        %v2150 = vpop.xlane.xlu0 %2149
        %v2151 = vadd.f32 %v2107, %v2108
        %2152 = vadd.xlane.f32.xlu0 %v2151
        %v2153 = vpop.xlane.xlu0 %2152
        %v2154 = vadd.f32 %v2109, %v2110
        %2155 = vadd.xlane.f32.xlu0 %v2154
        %v2156 = vpop.xlane.xlu0 %2155
        %v2157 = vadd.f32 %v2111, %v2112
        %2158 = vadd.xlane.f32.xlu0 %v2157
        %v2159 = vpop.xlane.xlu0 %2158
        %v2160 = vadd.f32 %v2113, %v2114
        %2161 = vadd.xlane.f32.xlu0 %v2160
        %v2162 = vpop.xlane.xlu0 %2161
        %vm2163 = vcmask 523264
        %v2165 = vsel %vm2163, %v2115, 0
        %v2168 = vsel %vm2163, %v2116, 0
        %v2171 = vsel %vm2163, %v2117, 0
        %v2174 = vsel %vm2163, %v2118, 0
        %v2177 = vsel %vm2163, %v2119, 0
        %v2180 = vsel %vm2163, %v2120, 0
        %v2183 = vsel %vm2163, %v2121, 0
        %v2186 = vsel %vm2163, %v2122, 0
        %2188 = vmatprep.subr.mxu0 0.0
        %2189 = vmatpush1.msra.mxu0 %v2141
        %2190 = vmatprep.subr.mxu0 0.0
        %2191 = vmatpush1.msra.mxu0 %v2144
        %2192 = vmatprep.subr.mxu0 0.0
        %2193 = vmatpush1.msra.mxu0 %v2147
        %2194 = vmatprep.subr.mxu0 0.0
        %2195 = vmatpush1.msra.mxu0 %v2150
        %2196 = vmatprep.subr.mxu0 0.0
        %2197 = vmatpush1.msra.mxu0 %v2153
        %2198 = vmatprep.subr.mxu0 0.0
        %2199 = vmatpush1.msra.mxu0 %v2156
        %2200 = vmatprep.subr.mxu0 0.0
        %2201 = vmatpush1.msra.mxu0 %v2159
        %2202 = vmatprep.subr.mxu0 0.0
        %2203 = vmatpush1.msra.mxu0 %v2162
        %2204 = vmatprep.subr.mxu0 0.0
        %2205 = vmatpush1.msra.mxu0 0.0
        %2206 = vmatprep.subr.mxu0 0.0
        %2207 = vmatpush1.msra.mxu0 0.0
        %2208 = vmatprep.subr.mxu0 0.0
        %2209 = vmatpush1.msra.mxu0 0.0
        %2210 = vmatprep.subr.mxu0 0.0
        %2211 = vmatpush1.msra.mxu0 0.0
        %2212 = vmatprep.subr.mxu0 0.0
        %2213 = vmatpush1.msra.mxu0 0.0
        %2214 = vmatprep.subr.mxu0 0.0
        %2215 = vmatpush1.msra.mxu0 0.0
        %2216 = vmatprep.subr.mxu0 0.0
        %2217 = vmatpush1.msra.mxu0 0.0
        %2218 = vmatprep.subr.mxu0 0.0
        %2219 = vmatpush1.msra.mxu0 0.0
        %2220 = vmatprep.subr.mxu0 0.0
        %2221 = vmatpush1.msra.mxu0 0.0
        %2222 = vmatprep.subr.mxu0 0.0
        %2223 = vmatpush1.msra.mxu0 0.0
        %2224 = vmatprep.subr.mxu0 0.0
        %2225 = vmatpush1.msra.mxu0 0.0
        %2226 = vmatprep.subr.mxu0 0.0
        %2227 = vmatpush1.msra.mxu0 0.0
        %2228 = vmatprep.subr.mxu0 0.0
        %2229 = vmatpush1.msra.mxu0 0.0
        %2230 = vmatprep.subr.mxu0 0.0
        %2231 = vmatpush1.msra.mxu0 0.0
        %2232 = vmatprep.subr.mxu0 0.0
        %2233 = vmatpush1.msra.mxu0 0.0
        %2234 = vmatprep.subr.mxu0 0.0
        %2235 = vmatpush1.msra.mxu0 0.0
        %2236 = vmatprep.subr.mxu0 0.0
        %2237 = vmatpush1.msra.mxu0 0.0
        %2238 = vmatprep.subr.mxu0 0.0
        %2239 = vmatpush1.msra.mxu0 0.0
        %2240 = vmatprep.subr.mxu0 0.0
        %2241 = vmatpush1.msra.mxu0 0.0
        %2242 = vmatprep.subr.mxu0 0.0
        %2243 = vmatpush1.msra.mxu0 0.0
        %2244 = vmatprep.subr.mxu0 0.0
        %2245 = vmatpush1.msra.mxu0 0.0
        %2246 = vmatprep.subr.mxu0 0.0
        %2247 = vmatpush1.msra.mxu0 0.0
        %2248 = vmatprep.subr.mxu0 0.0
        %2249 = vmatpush1.msra.mxu0 0.0
        %2250 = vmatprep.subr.mxu0 0.0
        %2251 = vmatpush1.msra.mxu0 0.0
        %2252 = vmatprep.mubr.f32.mxu0 0.0
        %2253 = vmatmul.mubr.f32.gmra.mrb[0].mxu0 %v2165
        %v2254 = vpop.f32.mrb[0].mxu0
        %v2255 = vadd.f32 0.0, %v2254
        %v2256 = vpop.f32.mrb[0].mxu0
        %2257 = vmatprep.mubr.f32.mxu0 0.0
        %2258 = vmatmul.mubr.f32.gmra.mrb[0].mxu0 %v2168
        %v2259 = vpop.f32.mrb[0].mxu0
        %v2260 = vadd.f32 0.0, %v2259
        %v2261 = vpop.f32.mrb[0].mxu0
        %2262 = vmatprep.mubr.f32.mxu0 0.0
        %2263 = vmatmul.mubr.f32.gmra.mrb[0].mxu0 %v2171
        %v2264 = vpop.f32.mrb[0].mxu0
        %v2265 = vadd.f32 0.0, %v2264
        %v2266 = vpop.f32.mrb[0].mxu0
        %2267 = vmatprep.mubr.f32.mxu0 0.0
        %2268 = vmatmul.mubr.f32.gmra.mrb[0].mxu0 %v2174
        %v2269 = vpop.f32.mrb[0].mxu0
        %v2270 = vadd.f32 0.0, %v2269
        %v2271 = vpop.f32.mrb[0].mxu0
        %2272 = vmatprep.mubr.f32.mxu0 0.0
        %2273 = vmatmul.mubr.f32.gmra.mrb[0].mxu0 %v2177
        %v2274 = vpop.f32.mrb[0].mxu0
        %v2275 = vadd.f32 0.0, %v2274
        %v2276 = vpop.f32.mrb[0].mxu0
        %2277 = vmatprep.mubr.f32.mxu0 0.0
        %2278 = vmatmul.mubr.f32.gmra.mrb[0].mxu0 %v2180
        %v2279 = vpop.f32.mrb[0].mxu0
        %v2280 = vadd.f32 0.0, %v2279
        %v2281 = vpop.f32.mrb[0].mxu0
        %2282 = vmatprep.mubr.f32.mxu0 0.0
        %2283 = vmatmul.mubr.f32.gmra.mrb[0].mxu0 %v2183
        %v2284 = vpop.f32.mrb[0].mxu0
        %v2285 = vadd.f32 0.0, %v2284
        %v2286 = vpop.f32.mrb[0].mxu0
        %2287 = vmatprep.mubr.f32.mxu0 0.0
        %2288 = vmatmul.mubr.f32.gmra.mrb[0].mxu0 %v2186
        %v2289 = vpop.f32.mrb[0].mxu0
        %v2290 = vadd.f32 0.0, %v2289
        %v2291 = vpop.f32.mrb[0].mxu0
        %2292 = vdwg.mxu0
        %2294 = vset.pattern.permute.xlu0 0
        %2295 = vperm.xlu0 %2294, %v2255
        %v2296 = vpop.permute.xlu0 %2295
        %2299 = vset.pattern.permute.xlu0 0
        %2300 = vperm.xlu0 %2299, %v2260
        %v2301 = vpop.permute.xlu0 %2300
        %2304 = vset.pattern.permute.xlu0 0
        %2305 = vperm.xlu0 %2304, %v2265
        %v2306 = vpop.permute.xlu0 %2305
        %2309 = vset.pattern.permute.xlu0 0
        %2310 = vperm.xlu0 %2309, %v2270
        %v2311 = vpop.permute.xlu0 %2310
        %2314 = vset.pattern.permute.xlu0 0
        %2315 = vperm.xlu0 %2314, %v2275
        %v2316 = vpop.permute.xlu0 %2315
        %2319 = vset.pattern.permute.xlu0 0
        %2320 = vperm.xlu0 %2319, %v2280
        %v2321 = vpop.permute.xlu0 %2320
        %2324 = vset.pattern.permute.xlu0 0
        %2325 = vperm.xlu0 %2324, %v2285
        %v2326 = vpop.permute.xlu0 %2325
        %2329 = vset.pattern.permute.xlu0 0
        %2330 = vperm.xlu0 %2329, %v2290
        %v2331 = vpop.permute.xlu0 %2330
        %v2333 = vsub.f32 %v2099, %v2296
        %v2334 = vsub.f32 %v2100, %v2296
        %v2335 = vsub.f32 %v2101, %v2301
        %v2336 = vsub.f32 %v2102, %v2301
        %v2337 = vsub.f32 %v2103, %v2306
        %v2338 = vsub.f32 %v2104, %v2306
        %v2339 = vsub.f32 %v2105, %v2311
        %v2340 = vsub.f32 %v2106, %v2311
        %v2341 = vsub.f32 %v2107, %v2316
        %v2342 = vsub.f32 %v2108, %v2316
        %v2343 = vsub.f32 %v2109, %v2321
        %v2344 = vsub.f32 %v2110, %v2321
        %v2345 = vsub.f32 %v2111, %v2326
        %v2346 = vsub.f32 %v2112, %v2326
        %v2347 = vsub.f32 %v2113, %v2331
        %v2348 = vsub.f32 %v2114, %v2331
        %v2349 = vmul.f32 %v2333, %v2333
        %v2350 = vmul.f32 %v2334, %v2334
        %v2351 = vmul.f32 %v2335, %v2335
        %v2352 = vmul.f32 %v2336, %v2336
        %v2353 = vmul.f32 %v2337, %v2337
        %v2354 = vmul.f32 %v2338, %v2338
        %v2355 = vmul.f32 %v2339, %v2339
        %v2356 = vmul.f32 %v2340, %v2340
        %v2357 = vmul.f32 %v2341, %v2341
        %v2358 = vmul.f32 %v2342, %v2342
        %v2359 = vmul.f32 %v2343, %v2343
        %v2360 = vmul.f32 %v2344, %v2344
        %v2361 = vmul.f32 %v2345, %v2345
        %v2362 = vmul.f32 %v2346, %v2346
        %v2363 = vmul.f32 %v2347, %v2347
        %v2364 = vmul.f32 %v2348, %v2348
        %v2365 = vadd.f32 %v2349, %v2350
        %2366 = vadd.xlane.f32.xlu0 %v2365
        %v2367 = vpop.xlane.xlu0 %2366
        %v2368 = vadd.f32 %v2351, %v2352
        %2369 = vadd.xlane.f32.xlu0 %v2368
        %v2370 = vpop.xlane.xlu0 %2369
        %v2371 = vadd.f32 %v2353, %v2354
        %2372 = vadd.xlane.f32.xlu0 %v2371
        %v2373 = vpop.xlane.xlu0 %2372
        %v2374 = vadd.f32 %v2355, %v2356
        %2375 = vadd.xlane.f32.xlu0 %v2374
        %v2376 = vpop.xlane.xlu0 %2375
        %v2377 = vadd.f32 %v2357, %v2358
        %2378 = vadd.xlane.f32.xlu0 %v2377
        %v2379 = vpop.xlane.xlu0 %2378
        %v2380 = vadd.f32 %v2359, %v2360
        %2381 = vadd.xlane.f32.xlu0 %v2380
        %v2382 = vpop.xlane.xlu0 %2381
        %v2383 = vadd.f32 %v2361, %v2362
        %2384 = vadd.xlane.f32.xlu0 %v2383
        %v2385 = vpop.xlane.xlu0 %2384
        %v2386 = vadd.f32 %v2363, %v2364
        %2387 = vadd.xlane.f32.xlu0 %v2386
        %v2388 = vpop.xlane.xlu0 %2387
        %2389 = vmatprep.subr.mxu0 0.0
        %2390 = vmatpush1.msra.mxu0 %v2367
        %2391 = vmatprep.subr.mxu0 0.0
        %2392 = vmatpush1.msra.mxu0 %v2370
        %2393 = vmatprep.subr.mxu0 0.0
        %2394 = vmatpush1.msra.mxu0 %v2373
        %2395 = vmatprep.subr.mxu0 0.0
        %2396 = vmatpush1.msra.mxu0 %v2376
        %2397 = vmatprep.subr.mxu0 0.0
        %2398 = vmatpush1.msra.mxu0 %v2379
        %2399 = vmatprep.subr.mxu0 0.0
        %2400 = vmatpush1.msra.mxu0 %v2382
        %2401 = vmatprep.subr.mxu0 0.0
        %2402 = vmatpush1.msra.mxu0 %v2385
        %2403 = vmatprep.subr.mxu0 0.0
        %2404 = vmatpush1.msra.mxu0 %v2388
        %2405 = vmatprep.subr.mxu0 0.0
        %2406 = vmatpush1.msra.mxu0 0.0
        %2407 = vmatprep.subr.mxu0 0.0
        %2408 = vmatpush1.msra.mxu0 0.0
        %2409 = vmatprep.subr.mxu0 0.0
        %2410 = vmatpush1.msra.mxu0 0.0
        %2411 = vmatprep.subr.mxu0 0.0
        %2412 = vmatpush1.msra.mxu0 0.0
        %2413 = vmatprep.subr.mxu0 0.0
        %2414 = vmatpush1.msra.mxu0 0.0
        %2415 = vmatprep.subr.mxu0 0.0
        %2416 = vmatpush1.msra.mxu0 0.0
        %2417 = vmatprep.subr.mxu0 0.0
        %2418 = vmatpush1.msra.mxu0 0.0
        %2419 = vmatprep.subr.mxu0 0.0
        %2420 = vmatpush1.msra.mxu0 0.0
        %2421 = vmatprep.subr.mxu0 0.0
        %2422 = vmatpush1.msra.mxu0 0.0
        %2423 = vmatprep.subr.mxu0 0.0
        %2424 = vmatpush1.msra.mxu0 0.0
        %2425 = vmatprep.subr.mxu0 0.0
        %2426 = vmatpush1.msra.mxu0 0.0
        %2427 = vmatprep.subr.mxu0 0.0
        %2428 = vmatpush1.msra.mxu0 0.0
        %2429 = vmatprep.subr.mxu0 0.0
        %2430 = vmatpush1.msra.mxu0 0.0
        %2431 = vmatprep.subr.mxu0 0.0
        %2432 = vmatpush1.msra.mxu0 0.0
        %2433 = vmatprep.subr.mxu0 0.0
        %2434 = vmatpush1.msra.mxu0 0.0
        %2435 = vmatprep.subr.mxu0 0.0
        %2436 = vmatpush1.msra.mxu0 0.0
        %2437 = vmatprep.subr.mxu0 0.0
        %2438 = vmatpush1.msra.mxu0 0.0
        %2439 = vmatprep.subr.mxu0 0.0
        %2440 = vmatpush1.msra.mxu0 0.0
        %2441 = vmatprep.subr.mxu0 0.0
        %2442 = vmatpush1.msra.mxu0 0.0
        %2443 = vmatprep.subr.mxu0 0.0
        %2444 = vmatpush1.msra.mxu0 0.0
        %2445 = vmatprep.subr.mxu0 0.0
        %2446 = vmatpush1.msra.mxu0 0.0
        %2447 = vmatprep.subr.mxu0 0.0
        %2448 = vmatpush1.msra.mxu0 0.0
        %2449 = vmatprep.subr.mxu0 0.0
        %2450 = vmatpush1.msra.mxu0 0.0
        %2451 = vmatprep.subr.mxu0 0.0
        %2452 = vmatpush1.msra.mxu0 0.0
        %2453 = vmatprep.mubr.f32.mxu0 0.0
        %2454 = vmatmul.mubr.f32.gmra.mrb[0].mxu0 %v2165
        %v2455 = vpop.f32.mrb[0].mxu0
        %v2456 = vadd.f32 1e-05, %v2455
        %v2457 = vpop.f32.mrb[0].mxu0
        %2458 = vmatprep.mubr.f32.mxu0 0.0
        %2459 = vmatmul.mubr.f32.gmra.mrb[0].mxu0 %v2168
        %v2460 = vpop.f32.mrb[0].mxu0
        %v2461 = vadd.f32 1e-05, %v2460
        %v2462 = vpop.f32.mrb[0].mxu0
        %2463 = vmatprep.mubr.f32.mxu0 0.0
        %2464 = vmatmul.mubr.f32.gmra.mrb[0].mxu0 %v2171
        %v2465 = vpop.f32.mrb[0].mxu0
        %v2466 = vadd.f32 1e-05, %v2465
        %v2467 = vpop.f32.mrb[0].mxu0
        %2468 = vmatprep.mubr.f32.mxu0 0.0
        %2469 = vmatmul.mubr.f32.gmra.mrb[0].mxu0 %v2174
        %v2470 = vpop.f32.mrb[0].mxu0
        %v2471 = vadd.f32 1e-05, %v2470
        %v2472 = vpop.f32.mrb[0].mxu0
        %2473 = vmatprep.mubr.f32.mxu0 0.0
        %2474 = vmatmul.mubr.f32.gmra.mrb[0].mxu0 %v2177
        %v2475 = vpop.f32.mrb[0].mxu0
        %v2476 = vadd.f32 1e-05, %v2475
        %v2477 = vpop.f32.mrb[0].mxu0
        %2478 = vmatprep.mubr.f32.mxu0 0.0
        %2479 = vmatmul.mubr.f32.gmra.mrb[0].mxu0 %v2180
        %v2480 = vpop.f32.mrb[0].mxu0
        %v2481 = vadd.f32 1e-05, %v2480
        %v2482 = vpop.f32.mrb[0].mxu0
        %2483 = vmatprep.mubr.f32.mxu0 0.0
        %2484 = vmatmul.mubr.f32.gmra.mrb[0].mxu0 %v2183
        %v2485 = vpop.f32.mrb[0].mxu0
        %v2486 = vadd.f32 1e-05, %v2485
        %v2487 = vpop.f32.mrb[0].mxu0
        %2488 = vmatprep.mubr.f32.mxu0 0.0
        %2489 = vmatmul.mubr.f32.gmra.mrb[0].mxu0 %v2186
        %v2490 = vpop.f32.mrb[0].mxu0
        %v2491 = vadd.f32 1e-05, %v2490
        %v2492 = vpop.f32.mrb[0].mxu0
        %2493 = vdwg.mxu0
        %v2494 = vrsqrt.pop %v2456
        %v2495 = vrsqrt.pop %v2461
        %v2496 = vrsqrt.pop %v2466
        %v2497 = vrsqrt.pop %v2471
        %v2498 = vrsqrt.pop %v2476
        %v2499 = vrsqrt.pop %v2481
        %v2500 = vrsqrt.pop %v2486
        %v2501 = vrsqrt.pop %v2491
        %2503 = vset.pattern.permute.xlu0 0
        %2504 = vperm.xlu0 %2503, %v2494
        %v2505 = vpop.permute.xlu0 %2504
        %2508 = vset.pattern.permute.xlu0 0
        %2509 = vperm.xlu0 %2508, %v2495
        %v2510 = vpop.permute.xlu0 %2509
        %2513 = vset.pattern.permute.xlu0 0
        %2514 = vperm.xlu0 %2513, %v2496
        %v2515 = vpop.permute.xlu0 %2514
        %2518 = vset.pattern.permute.xlu0 0
        %2519 = vperm.xlu0 %2518, %v2497
        %v2520 = vpop.permute.xlu0 %2519
        %2523 = vset.pattern.permute.xlu0 0
        %2524 = vperm.xlu0 %2523, %v2498
        %v2525 = vpop.permute.xlu0 %2524
        %2528 = vset.pattern.permute.xlu0 0
        %2529 = vperm.xlu0 %2528, %v2499
        %v2530 = vpop.permute.xlu0 %2529
        %2533 = vset.pattern.permute.xlu0 0
        %2534 = vperm.xlu0 %2533, %v2500
        %v2535 = vpop.permute.xlu0 %2534
        %2538 = vset.pattern.permute.xlu0 0
        %2539 = vperm.xlu0 %2538, %v2501
        %v2540 = vpop.permute.xlu0 %2539
        %v2542 = vmul.f32 %v2333, %v2505
        %v2543 = vmul.f32 %v2334, %v2505
        %v2544 = vmul.f32 %v2335, %v2510
        %v2545 = vmul.f32 %v2336, %v2510
        %v2546 = vmul.f32 %v2337, %v2515
        %v2547 = vmul.f32 %v2338, %v2515
        %v2548 = vmul.f32 %v2339, %v2520
        %v2549 = vmul.f32 %v2340, %v2520
        %v2550 = vmul.f32 %v2341, %v2525
        %v2551 = vmul.f32 %v2342, %v2525
        %v2552 = vmul.f32 %v2343, %v2530
        %v2553 = vmul.f32 %v2344, %v2530
        %v2554 = vmul.f32 %v2345, %v2535
        %v2555 = vmul.f32 %v2346, %v2535
        %v2556 = vmul.f32 %v2347, %v2540
        %v2557 = vmul.f32 %v2348, %v2540
        %2559 = vset.pattern.permute.xlu0 0
        %2560 = vperm.xlu0 %2559, %v2123
        %v2561 = vpop.permute.xlu0 %2560
        %2564 = vset.pattern.permute.xlu0 0
        %2565 = vperm.xlu0 %2564, %v2124
        %v2566 = vpop.permute.xlu0 %2565
        %2569 = vset.pattern.permute.xlu0 0
        %2570 = vperm.xlu0 %2569, %v2125
        %v2571 = vpop.permute.xlu0 %2570
        %2574 = vset.pattern.permute.xlu0 0
        %2575 = vperm.xlu0 %2574, %v2126
        %v2576 = vpop.permute.xlu0 %2575
        %2579 = vset.pattern.permute.xlu0 0
        %2580 = vperm.xlu0 %2579, %v2127
        %v2581 = vpop.permute.xlu0 %2580
        %2584 = vset.pattern.permute.xlu0 0
        %2585 = vperm.xlu0 %2584, %v2128
        %v2586 = vpop.permute.xlu0 %2585
        %2589 = vset.pattern.permute.xlu0 0
        %2590 = vperm.xlu0 %2589, %v2129
        %v2591 = vpop.permute.xlu0 %2590
        %2594 = vset.pattern.permute.xlu0 0
        %2595 = vperm.xlu0 %2594, %v2130
        %v2596 = vpop.permute.xlu0 %2595
        %v2598 = vmul.f32 %v2542, %v2561
        %v2599 = vmul.f32 %v2543, %v2561
        %v2600 = vmul.f32 %v2544, %v2566
        %v2601 = vmul.f32 %v2545, %v2566
        %v2602 = vmul.f32 %v2546, %v2571
        %v2603 = vmul.f32 %v2547, %v2571
        %v2604 = vmul.f32 %v2548, %v2576
        %v2605 = vmul.f32 %v2549, %v2576
        %v2606 = vmul.f32 %v2550, %v2581
        %v2607 = vmul.f32 %v2551, %v2581
        %v2608 = vmul.f32 %v2552, %v2586
        %v2609 = vmul.f32 %v2553, %v2586
        %v2610 = vmul.f32 %v2554, %v2591
        %v2611 = vmul.f32 %v2555, %v2591
        %v2612 = vmul.f32 %v2556, %v2596
        %v2613 = vmul.f32 %v2557, %v2596
        %2615 = vset.pattern.permute.xlu0 0
        %2616 = vperm.xlu0 %2615, %v2131
        %v2617 = vpop.permute.xlu0 %2616
        %2620 = vset.pattern.permute.xlu0 0
        %2621 = vperm.xlu0 %2620, %v2132
        %v2622 = vpop.permute.xlu0 %2621
        %2625 = vset.pattern.permute.xlu0 0
        %2626 = vperm.xlu0 %2625, %v2133
        %v2627 = vpop.permute.xlu0 %2626
        %2630 = vset.pattern.permute.xlu0 0
        %2631 = vperm.xlu0 %2630, %v2134
        %v2632 = vpop.permute.xlu0 %2631
        %2635 = vset.pattern.permute.xlu0 0
        %2636 = vperm.xlu0 %2635, %v2135
        %v2637 = vpop.permute.xlu0 %2636
        %2640 = vset.pattern.permute.xlu0 0
        %2641 = vperm.xlu0 %2640, %v2136
        %v2642 = vpop.permute.xlu0 %2641
        %2645 = vset.pattern.permute.xlu0 0
        %2646 = vperm.xlu0 %2645, %v2137
        %v2647 = vpop.permute.xlu0 %2646
        %2650 = vset.pattern.permute.xlu0 0
        %2651 = vperm.xlu0 %2650, %v2138
        %v2652 = vpop.permute.xlu0 %2651
        %v2654 = vadd.f32 %v2598, %v2617
        %v2655 = vadd.f32 %v2599, %v2617
        %v2656 = vadd.f32 %v2600, %v2622
        %v2657 = vadd.f32 %v2601, %v2622
        %v2658 = vadd.f32 %v2602, %v2627
        %v2659 = vadd.f32 %v2603, %v2627
        %v2660 = vadd.f32 %v2604, %v2632
        %v2661 = vadd.f32 %v2605, %v2632
        %v2662 = vadd.f32 %v2606, %v2637
        %v2663 = vadd.f32 %v2607, %v2637
        %v2664 = vadd.f32 %v2608, %v2642
        %v2665 = vadd.f32 %v2609, %v2642
        %v2666 = vadd.f32 %v2610, %v2647
        %v2667 = vadd.f32 %v2611, %v2647
        %v2668 = vadd.f32 %v2612, %v2652
        %v2669 = vadd.f32 %v2613, %v2652
        %v2670 = vxor.u32 %v2654, 2147483648
        %v2671 = vxor.u32 %v2655, 2147483648
        %v2672 = vxor.u32 %v2656, 2147483648
        %v2673 = vxor.u32 %v2657, 2147483648
        %v2674 = vxor.u32 %v2658, 2147483648
        %v2675 = vxor.u32 %v2659, 2147483648
        %v2676 = vxor.u32 %v2660, 2147483648
        %v2677 = vxor.u32 %v2661, 2147483648
        %v2678 = vxor.u32 %v2662, 2147483648
        %v2679 = vxor.u32 %v2663, 2147483648
        %v2680 = vxor.u32 %v2664, 2147483648
        %v2681 = vxor.u32 %v2665, 2147483648
        %v2682 = vxor.u32 %v2666, 2147483648
        %v2683 = vxor.u32 %v2667, 2147483648
        %v2684 = vxor.u32 %v2668, 2147483648
        %v2685 = vxor.u32 %v2669, 2147483648
        %v2686 = vmul.f32 %v2670, 1.442695
        %v2687 = vpow.pop %v2686
        %v2688 = vmul.f32 %v2671, 1.442695
        %v2689 = vpow.pop %v2688
        %v2690 = vmul.f32 %v2672, 1.442695
        %v2691 = vpow.pop %v2690
        %v2692 = vmul.f32 %v2673, 1.442695
        %v2693 = vpow.pop %v2692
        %v2694 = vmul.f32 %v2674, 1.442695
        %v2695 = vpow.pop %v2694
        %v2696 = vmul.f32 %v2675, 1.442695
        %v2697 = vpow.pop %v2696
        %v2698 = vmul.f32 %v2676, 1.442695
        %v2699 = vpow.pop %v2698
        %v2700 = vmul.f32 %v2677, 1.442695
        %v2701 = vpow.pop %v2700
        %v2702 = vmul.f32 %v2678, 1.442695
        %v2703 = vpow.pop %v2702
        %v2704 = vmul.f32 %v2679, 1.442695
        %v2705 = vpow.pop %v2704
        %v2706 = vmul.f32 %v2680, 1.442695
        %v2707 = vpow.pop %v2706
        %v2708 = vmul.f32 %v2681, 1.442695
        %v2709 = vpow.pop %v2708
        %v2710 = vmul.f32 %v2682, 1.442695
        %v2711 = vpow.pop %v2710
        %v2712 = vmul.f32 %v2683, 1.442695
        %v2713 = vpow.pop %v2712
        %v2714 = vmul.f32 %v2684, 1.442695
        %v2715 = vpow.pop %v2714
        %v2716 = vmul.f32 %v2685, 1.442695
        %v2717 = vpow.pop %v2716
        %v2718 = vadd.f32 %v2687, 1.0
        %v2719 = vadd.f32 %v2689, 1.0
        %v2720 = vadd.f32 %v2691, 1.0
        %v2721 = vadd.f32 %v2693, 1.0
        %v2722 = vadd.f32 %v2695, 1.0
        %v2723 = vadd.f32 %v2697, 1.0
        %v2724 = vadd.f32 %v2699, 1.0
        %v2725 = vadd.f32 %v2701, 1.0
        %v2726 = vadd.f32 %v2703, 1.0
        %v2727 = vadd.f32 %v2705, 1.0
        %v2728 = vadd.f32 %v2707, 1.0
        %v2729 = vadd.f32 %v2709, 1.0
        %v2730 = vadd.f32 %v2711, 1.0
        %v2731 = vadd.f32 %v2713, 1.0
        %v2732 = vadd.f32 %v2715, 1.0
        %v2733 = vadd.f32 %v2717, 1.0
        %v2734 = vrcp.pop %v2718
        %v2735 = vmul.f32 1.0, %v2734
        %v2736 = vrcp.pop %v2719
        %v2737 = vmul.f32 1.0, %v2736
        %v2738 = vrcp.pop %v2720
        %v2739 = vmul.f32 1.0, %v2738
        %v2740 = vrcp.pop %v2721
        %v2741 = vmul.f32 1.0, %v2740
        %v2742 = vrcp.pop %v2722
        %v2743 = vmul.f32 1.0, %v2742
        %v2744 = vrcp.pop %v2723
        %v2745 = vmul.f32 1.0, %v2744
        %v2746 = vrcp.pop %v2724
        %v2747 = vmul.f32 1.0, %v2746
        %v2748 = vrcp.pop %v2725
        %v2749 = vmul.f32 1.0, %v2748
        %v2750 = vrcp.pop %v2726
        %v2751 = vmul.f32 1.0, %v2750
        %v2752 = vrcp.pop %v2727
        %v2753 = vmul.f32 1.0, %v2752
        %v2754 = vrcp.pop %v2728
        %v2755 = vmul.f32 1.0, %v2754
        %v2756 = vrcp.pop %v2729
        %v2757 = vmul.f32 1.0, %v2756
        %v2758 = vrcp.pop %v2730
        %v2759 = vmul.f32 1.0, %v2758
        %v2760 = vrcp.pop %v2731
        %v2761 = vmul.f32 1.0, %v2760
        %v2762 = vrcp.pop %v2732
        %v2763 = vmul.f32 1.0, %v2762
        %v2764 = vrcp.pop %v2733
        %v2765 = vmul.f32 1.0, %v2764
        %v2766 = vmul.f32 %v2654, %v2735
        %v2767 = vmul.f32 %v2655, %v2737
        %v2768 = vmul.f32 %v2656, %v2739
        %v2769 = vmul.f32 %v2657, %v2741
        %v2770 = vmul.f32 %v2658, %v2743
        %v2771 = vmul.f32 %v2659, %v2745
        %v2772 = vmul.f32 %v2660, %v2747
        %v2773 = vmul.f32 %v2661, %v2749
        %v2774 = vmul.f32 %v2662, %v2751
        %v2775 = vmul.f32 %v2663, %v2753
        %v2776 = vmul.f32 %v2664, %v2755
        %v2777 = vmul.f32 %v2665, %v2757
        %v2778 = vmul.f32 %v2666, %v2759
        %v2779 = vmul.f32 %v2667, %v2761
        %v2780 = vmul.f32 %v2668, %v2763
        %v2781 = vmul.f32 %v2669, %v2765
        %v2782 = vld [vmem:[%s12] sm:$0xff]
        %v2783 = vld [vmem:[%s12 + $0x8] sm:$0xff]
        %v2784 = vld [vmem:[%s12 + $0x10] sm:$0xff]
        %v2785 = vld [vmem:[%s12 + $0x18] sm:$0xff]
        %v2786 = vld [vmem:[%s12 + $0x20] sm:$0xff]
        %v2787 = vld [vmem:[%s12 + $0x28] sm:$0xff]
        %v2788 = vld [vmem:[%s12 + $0x30] sm:$0xff]
        %v2789 = vld [vmem:[%s12 + $0x38] sm:$0xff]
        %v2790 = vld [vmem:[%s12 + $0x40] sm:$0xff]
        %v2791 = vld [vmem:[%s12 + $0x48] sm:$0xff]
        %v2792 = vld [vmem:[%s12 + $0x50] sm:$0xff]
        %v2793 = vld [vmem:[%s12 + $0x58] sm:$0xff]
        %v2794 = vld [vmem:[%s12 + $0x60] sm:$0xff]
        %v2795 = vld [vmem:[%s12 + $0x68] sm:$0xff]
        %v2796 = vld [vmem:[%s12 + $0x70] sm:$0xff]
        %v2797 = vld [vmem:[%s12 + $0x78] sm:$0xff]
        %v2798 = vld [vmem:[%s12 + $0x80] sm:$0xff]
        %v2799 = vld [vmem:[%s12 + $0x88] sm:$0xff]
        %v2800 = vld [vmem:[%s12 + $0x90] sm:$0xff]
        %v2801 = vld [vmem:[%s12 + $0x98] sm:$0xff]
        %v2802 = vld [vmem:[%s12 + $0xa0] sm:$0xff]
        %v2803 = vld [vmem:[%s12 + $0xa8] sm:$0xff]
        %v2804 = vld [vmem:[%s12 + $0xb0] sm:$0xff]
        %v2805 = vld [vmem:[%s12 + $0xb8] sm:$0xff]
        %v2806 = vld [vmem:[%s12 + $0xc0] sm:$0xff]
        %v2807 = vld [vmem:[%s12 + $0xc8] sm:$0xff]
        %v2808 = vld [vmem:[%s12 + $0xd0] sm:$0xff]
        %v2809 = vld [vmem:[%s12 + $0xd8] sm:$0xff]
        %v2810 = vld [vmem:[%s12 + $0xe0] sm:$0xff]
        %v2811 = vld [vmem:[%s12 + $0xe8] sm:$0xff]
        %v2812 = vld [vmem:[%s12 + $0xf0] sm:$0xff]
        %v2813 = vld [vmem:[%s12 + $0xf8] sm:$0xff]
        %v2814 = vld [vmem:[%s12 + $0x100] sm:$0xff]
        %v2815 = vld [vmem:[%s12 + $0x108] sm:$0xff]
        %v2816 = vld [vmem:[%s12 + $0x110] sm:$0xff]
        %v2817 = vld [vmem:[%s12 + $0x118] sm:$0xff]
        %v2818 = vld [vmem:[%s12 + $0x120] sm:$0xff]
        %v2819 = vld [vmem:[%s12 + $0x128] sm:$0xff]
        %v2820 = vld [vmem:[%s12 + $0x130] sm:$0xff]
        %v2821 = vld [vmem:[%s12 + $0x138] sm:$0xff]
        %2830 = vrot.lane.b32.xlu0 %v2767, 17
        %v2831 = vpop.permute.xlu0 %2830
        %2832 = vrot.lane.b32.xlu0 %v2769, 17
        %v2833 = vpop.permute.xlu0 %2832
        %2834 = vrot.lane.b32.xlu0 %v2771, 17
        %v2835 = vpop.permute.xlu0 %2834
        %2836 = vrot.lane.b32.xlu0 %v2773, 17
        %v2837 = vpop.permute.xlu0 %2836
        %2838 = vrot.lane.b32.xlu0 %v2775, 17
        %v2839 = vpop.permute.xlu0 %2838
        %2840 = vrot.lane.b32.xlu0 %v2777, 17
        %v2841 = vpop.permute.xlu0 %2840
        %2842 = vrot.lane.b32.xlu0 %v2779, 17
        %v2843 = vpop.permute.xlu0 %2842
        %2844 = vrot.lane.b32.xlu0 %v2781, 17
        %v2845 = vpop.permute.xlu0 %2844
        %2862 = vrot.lane.b32.xlu0 %v2766, 17
        %v2863 = vpop.permute.xlu0 %2862
        %2864 = vrot.lane.b32.xlu0 %v2768, 17
        %v2865 = vpop.permute.xlu0 %2864
        %2866 = vrot.lane.b32.xlu0 %v2770, 17
        %v2867 = vpop.permute.xlu0 %2866
        %2868 = vrot.lane.b32.xlu0 %v2772, 17
        %v2869 = vpop.permute.xlu0 %2868
        %2870 = vrot.lane.b32.xlu0 %v2774, 17
        %v2871 = vpop.permute.xlu0 %2870
        %2872 = vrot.lane.b32.xlu0 %v2776, 17
        %v2873 = vpop.permute.xlu0 %2872
        %2874 = vrot.lane.b32.xlu0 %v2778, 17
        %v2875 = vpop.permute.xlu0 %2874
        %2876 = vrot.lane.b32.xlu0 %v2780, 17
        %v2877 = vpop.permute.xlu0 %2876
        %v2878 = vsel %vm1192, %v2863, %v2831
        %v2879 = vsel %vm1192, %v2865, %v2833
        %v2880 = vsel %vm1192, %v2867, %v2835
        %v2881 = vsel %vm1192, %v2869, %v2837
        %v2882 = vsel %vm1192, %v2871, %v2839
        %v2883 = vsel %vm1192, %v2873, %v2841
        %v2884 = vsel %vm1192, %v2875, %v2843
        %v2885 = vsel %vm1192, %v2877, %v2845
        %v2902 = vsel %vm1192, %v2831, %v2863
        %v2903 = vsel %vm1192, %v2833, %v2865
        %v2904 = vsel %vm1192, %v2835, %v2867
        %v2905 = vsel %vm1192, %v2837, %v2869
        %v2906 = vsel %vm1192, %v2839, %v2871
        %v2907 = vsel %vm1192, %v2841, %v2873
        %v2908 = vsel %vm1192, %v2843, %v2875
        %v2909 = vsel %vm1192, %v2845, %v2877
        %v2910 = vmul.f32 %v2902, %v1212
        %v2911 = vmul.f32 %v2878, %v1216
        %v2912 = vmul.f32 %v2903, %v1212
        %v2913 = vmul.f32 %v2879, %v1216
        %v2914 = vmul.f32 %v2904, %v1212
        %v2915 = vmul.f32 %v2880, %v1216
        %v2916 = vmul.f32 %v2905, %v1212
        %v2917 = vmul.f32 %v2881, %v1216
        %v2918 = vmul.f32 %v2906, %v1212
        %v2919 = vmul.f32 %v2882, %v1216
        %v2920 = vmul.f32 %v2907, %v1212
        %v2921 = vmul.f32 %v2883, %v1216
        %v2922 = vmul.f32 %v2908, %v1212
        %v2923 = vmul.f32 %v2884, %v1216
        %v2924 = vmul.f32 %v2909, %v1212
        %v2925 = vmul.f32 %v2885, %v1216
        %2926 = vrot.lane.b32.xlu0 %v2767, 16
        %v2927 = vpop.permute.xlu0 %2926
        %2928 = vrot.lane.b32.xlu0 %v2769, 16
        %v2929 = vpop.permute.xlu0 %2928
        %2930 = vrot.lane.b32.xlu0 %v2771, 16
        %v2931 = vpop.permute.xlu0 %2930
        %2932 = vrot.lane.b32.xlu0 %v2773, 16
        %v2933 = vpop.permute.xlu0 %2932
        %2934 = vrot.lane.b32.xlu0 %v2775, 16
        %v2935 = vpop.permute.xlu0 %2934
        %2936 = vrot.lane.b32.xlu0 %v2777, 16
        %v2937 = vpop.permute.xlu0 %2936
        %2938 = vrot.lane.b32.xlu0 %v2779, 16
        %v2939 = vpop.permute.xlu0 %2938
        %2940 = vrot.lane.b32.xlu0 %v2781, 16
        %v2941 = vpop.permute.xlu0 %2940
        %2950 = vrot.lane.b32.xlu0 %v2766, 16
        %v2951 = vpop.permute.xlu0 %2950
        %2952 = vrot.lane.b32.xlu0 %v2768, 16
        %v2953 = vpop.permute.xlu0 %2952
        %2954 = vrot.lane.b32.xlu0 %v2770, 16
        %v2955 = vpop.permute.xlu0 %2954
        %2956 = vrot.lane.b32.xlu0 %v2772, 16
        %v2957 = vpop.permute.xlu0 %2956
        %2958 = vrot.lane.b32.xlu0 %v2774, 16
        %v2959 = vpop.permute.xlu0 %2958
        %2960 = vrot.lane.b32.xlu0 %v2776, 16
        %v2961 = vpop.permute.xlu0 %2960
        %2962 = vrot.lane.b32.xlu0 %v2778, 16
        %v2963 = vpop.permute.xlu0 %2962
        %2964 = vrot.lane.b32.xlu0 %v2780, 16
        %v2965 = vpop.permute.xlu0 %2964
        %v2966 = vsel %vm1245, %v2951, %v2927
        %v2967 = vsel %vm1245, %v2953, %v2929
        %v2968 = vsel %vm1245, %v2955, %v2931
        %v2969 = vsel %vm1245, %v2957, %v2933
        %v2970 = vsel %vm1245, %v2959, %v2935
        %v2971 = vsel %vm1245, %v2961, %v2937
        %v2972 = vsel %vm1245, %v2963, %v2939
        %v2973 = vsel %vm1245, %v2965, %v2941
        %v2990 = vsel %vm1245, %v2927, %v2951
        %v2991 = vsel %vm1245, %v2929, %v2953
        %v2992 = vsel %vm1245, %v2931, %v2955
        %v2993 = vsel %vm1245, %v2933, %v2957
        %v2994 = vsel %vm1245, %v2935, %v2959
        %v2995 = vsel %vm1245, %v2937, %v2961
        %v2996 = vsel %vm1245, %v2939, %v2963
        %v2997 = vsel %vm1245, %v2941, %v2965
        %v2998 = vmul.f32 %v2990, %v1265
        %v2999 = vmul.f32 %v2966, %v1269
        %v3000 = vmul.f32 %v2991, %v1265
        %v3001 = vmul.f32 %v2967, %v1269
        %v3002 = vmul.f32 %v2992, %v1265
        %v3003 = vmul.f32 %v2968, %v1269
        %v3004 = vmul.f32 %v2993, %v1265
        %v3005 = vmul.f32 %v2969, %v1269
        %v3006 = vmul.f32 %v2994, %v1265
        %v3007 = vmul.f32 %v2970, %v1269
        %v3008 = vmul.f32 %v2995, %v1265
        %v3009 = vmul.f32 %v2971, %v1269
        %v3010 = vmul.f32 %v2996, %v1265
        %v3011 = vmul.f32 %v2972, %v1269
        %v3012 = vmul.f32 %v2997, %v1265
        %v3013 = vmul.f32 %v2973, %v1269
        %3014 = vrot.lane.b32.xlu0 %v2767, 15
        %v3015 = vpop.permute.xlu0 %3014
        %3016 = vrot.lane.b32.xlu0 %v2769, 15
        %v3017 = vpop.permute.xlu0 %3016
        %3018 = vrot.lane.b32.xlu0 %v2771, 15
        %v3019 = vpop.permute.xlu0 %3018
        %3020 = vrot.lane.b32.xlu0 %v2773, 15
        %v3021 = vpop.permute.xlu0 %3020
        %3022 = vrot.lane.b32.xlu0 %v2775, 15
        %v3023 = vpop.permute.xlu0 %3022
        %3024 = vrot.lane.b32.xlu0 %v2777, 15
        %v3025 = vpop.permute.xlu0 %3024
        %3026 = vrot.lane.b32.xlu0 %v2779, 15
        %v3027 = vpop.permute.xlu0 %3026
        %3028 = vrot.lane.b32.xlu0 %v2781, 15
        %v3029 = vpop.permute.xlu0 %3028
        %3038 = vrot.lane.b32.xlu0 %v2766, 15
        %v3039 = vpop.permute.xlu0 %3038
        %3040 = vrot.lane.b32.xlu0 %v2768, 15
        %v3041 = vpop.permute.xlu0 %3040
        %3042 = vrot.lane.b32.xlu0 %v2770, 15
        %v3043 = vpop.permute.xlu0 %3042
        %3044 = vrot.lane.b32.xlu0 %v2772, 15
        %v3045 = vpop.permute.xlu0 %3044
        %3046 = vrot.lane.b32.xlu0 %v2774, 15
        %v3047 = vpop.permute.xlu0 %3046
        %3048 = vrot.lane.b32.xlu0 %v2776, 15
        %v3049 = vpop.permute.xlu0 %3048
        %3050 = vrot.lane.b32.xlu0 %v2778, 15
        %v3051 = vpop.permute.xlu0 %3050
        %3052 = vrot.lane.b32.xlu0 %v2780, 15
        %v3053 = vpop.permute.xlu0 %3052
        %v3054 = vsel %vm1298, %v3039, %v3015
        %v3055 = vsel %vm1298, %v3041, %v3017
        %v3056 = vsel %vm1298, %v3043, %v3019
        %v3057 = vsel %vm1298, %v3045, %v3021
        %v3058 = vsel %vm1298, %v3047, %v3023
        %v3059 = vsel %vm1298, %v3049, %v3025
        %v3060 = vsel %vm1298, %v3051, %v3027
        %v3061 = vsel %vm1298, %v3053, %v3029
        %v3078 = vsel %vm1298, %v3015, %v3039
        %v3079 = vsel %vm1298, %v3017, %v3041
        %v3080 = vsel %vm1298, %v3019, %v3043
        %v3081 = vsel %vm1298, %v3021, %v3045
        %v3082 = vsel %vm1298, %v3023, %v3047
        %v3083 = vsel %vm1298, %v3025, %v3049
        %v3084 = vsel %vm1298, %v3027, %v3051
        %v3085 = vsel %vm1298, %v3029, %v3053
        %v3086 = vmul.f32 %v3078, %v1318
        %v3087 = vmul.f32 %v3054, %v1322
        %v3088 = vmul.f32 %v3079, %v1318
        %v3089 = vmul.f32 %v3055, %v1322
        %v3090 = vmul.f32 %v3080, %v1318
        %v3091 = vmul.f32 %v3056, %v1322
        %v3092 = vmul.f32 %v3081, %v1318
        %v3093 = vmul.f32 %v3057, %v1322
        %v3094 = vmul.f32 %v3082, %v1318
        %v3095 = vmul.f32 %v3058, %v1322
        %v3096 = vmul.f32 %v3083, %v1318
        %v3097 = vmul.f32 %v3059, %v1322
        %v3098 = vmul.f32 %v3084, %v1318
        %v3099 = vmul.f32 %v3060, %v1322
        %v3100 = vmul.f32 %v3085, %v1318
        %v3101 = vmul.f32 %v3061, %v1322
        %3102 = vrot.lane.b32.xlu0 %v2767, 1
        %v3103 = vpop.permute.xlu0 %3102
        %3104 = vrot.lane.b32.xlu0 %v2769, 1
        %v3105 = vpop.permute.xlu0 %3104
        %3106 = vrot.lane.b32.xlu0 %v2771, 1
        %v3107 = vpop.permute.xlu0 %3106
        %3108 = vrot.lane.b32.xlu0 %v2773, 1
        %v3109 = vpop.permute.xlu0 %3108
        %3110 = vrot.lane.b32.xlu0 %v2775, 1
        %v3111 = vpop.permute.xlu0 %3110
        %3112 = vrot.lane.b32.xlu0 %v2777, 1
        %v3113 = vpop.permute.xlu0 %3112
        %3114 = vrot.lane.b32.xlu0 %v2779, 1
        %v3115 = vpop.permute.xlu0 %3114
        %3116 = vrot.lane.b32.xlu0 %v2781, 1
        %v3117 = vpop.permute.xlu0 %3116
        %3126 = vrot.lane.b32.xlu0 %v2766, 1
        %v3127 = vpop.permute.xlu0 %3126
        %3128 = vrot.lane.b32.xlu0 %v2768, 1
        %v3129 = vpop.permute.xlu0 %3128
        %3130 = vrot.lane.b32.xlu0 %v2770, 1
        %v3131 = vpop.permute.xlu0 %3130
        %3132 = vrot.lane.b32.xlu0 %v2772, 1
        %v3133 = vpop.permute.xlu0 %3132
        %3134 = vrot.lane.b32.xlu0 %v2774, 1
        %v3135 = vpop.permute.xlu0 %3134
        %3136 = vrot.lane.b32.xlu0 %v2776, 1
        %v3137 = vpop.permute.xlu0 %3136
        %3138 = vrot.lane.b32.xlu0 %v2778, 1
        %v3139 = vpop.permute.xlu0 %3138
        %3140 = vrot.lane.b32.xlu0 %v2780, 1
        %v3141 = vpop.permute.xlu0 %3140
        %v3142 = vsel %vm1351, %v3127, %v3103
        %v3143 = vsel %vm1351, %v3129, %v3105
        %v3144 = vsel %vm1351, %v3131, %v3107
        %v3145 = vsel %vm1351, %v3133, %v3109
        %v3146 = vsel %vm1351, %v3135, %v3111
        %v3147 = vsel %vm1351, %v3137, %v3113
        %v3148 = vsel %vm1351, %v3139, %v3115
        %v3149 = vsel %vm1351, %v3141, %v3117
        %v3166 = vsel %vm1351, %v3103, %v3127
        %v3167 = vsel %vm1351, %v3105, %v3129
        %v3168 = vsel %vm1351, %v3107, %v3131
        %v3169 = vsel %vm1351, %v3109, %v3133
        %v3170 = vsel %vm1351, %v3111, %v3135
        %v3171 = vsel %vm1351, %v3113, %v3137
        %v3172 = vsel %vm1351, %v3115, %v3139
        %v3173 = vsel %vm1351, %v3117, %v3141
        %v3174 = vmul.f32 %v3166, %v1371
        %v3175 = vmul.f32 %v3142, %v1375
        %v3176 = vmul.f32 %v3167, %v1371
        %v3177 = vmul.f32 %v3143, %v1375
        %v3178 = vmul.f32 %v3168, %v1371
        %v3179 = vmul.f32 %v3144, %v1375
        %v3180 = vmul.f32 %v3169, %v1371
        %v3181 = vmul.f32 %v3145, %v1375
        %v3182 = vmul.f32 %v3170, %v1371
        %v3183 = vmul.f32 %v3146, %v1375
        %v3184 = vmul.f32 %v3171, %v1371
        %v3185 = vmul.f32 %v3147, %v1375
        %v3186 = vmul.f32 %v3172, %v1371
        %v3187 = vmul.f32 %v3148, %v1375
        %v3188 = vmul.f32 %v3173, %v1371
        %v3189 = vmul.f32 %v3149, %v1375
        %v3190 = vmul.f32 %v2766, %v1387
        %v3191 = vmul.f32 %v2767, %v1391
        %v3192 = vmul.f32 %v2768, %v1387
        %v3193 = vmul.f32 %v2769, %v1391
        %v3194 = vmul.f32 %v2770, %v1387
        %v3195 = vmul.f32 %v2771, %v1391
        %v3196 = vmul.f32 %v2772, %v1387
        %v3197 = vmul.f32 %v2773, %v1391
        %v3198 = vmul.f32 %v2774, %v1387
        %v3199 = vmul.f32 %v2775, %v1391
        %v3200 = vmul.f32 %v2776, %v1387
        %v3201 = vmul.f32 %v2777, %v1391
        %v3202 = vmul.f32 %v2778, %v1387
        %v3203 = vmul.f32 %v2779, %v1391
        %v3204 = vmul.f32 %v2780, %v1387
        %v3205 = vmul.f32 %v2781, %v1391
        %3206 = vrot.lane.b32.xlu0 %v2766, 127
        %v3207 = vpop.permute.xlu0 %3206
        %3208 = vrot.lane.b32.xlu0 %v2767, 127
        %v3209 = vpop.permute.xlu0 %3208
        %3210 = vrot.lane.b32.xlu0 %v2768, 127
        %v3211 = vpop.permute.xlu0 %3210
        %3212 = vrot.lane.b32.xlu0 %v2769, 127
        %v3213 = vpop.permute.xlu0 %3212
        %3214 = vrot.lane.b32.xlu0 %v2770, 127
        %v3215 = vpop.permute.xlu0 %3214
        %3216 = vrot.lane.b32.xlu0 %v2771, 127
        %v3217 = vpop.permute.xlu0 %3216
        %3218 = vrot.lane.b32.xlu0 %v2772, 127
        %v3219 = vpop.permute.xlu0 %3218
        %3220 = vrot.lane.b32.xlu0 %v2773, 127
        %v3221 = vpop.permute.xlu0 %3220
        %3222 = vrot.lane.b32.xlu0 %v2774, 127
        %v3223 = vpop.permute.xlu0 %3222
        %3224 = vrot.lane.b32.xlu0 %v2775, 127
        %v3225 = vpop.permute.xlu0 %3224
        %3226 = vrot.lane.b32.xlu0 %v2776, 127
        %v3227 = vpop.permute.xlu0 %3226
        %3228 = vrot.lane.b32.xlu0 %v2777, 127
        %v3229 = vpop.permute.xlu0 %3228
        %3230 = vrot.lane.b32.xlu0 %v2778, 127
        %v3231 = vpop.permute.xlu0 %3230
        %3232 = vrot.lane.b32.xlu0 %v2779, 127
        %v3233 = vpop.permute.xlu0 %3232
        %3234 = vrot.lane.b32.xlu0 %v2780, 127
        %v3235 = vpop.permute.xlu0 %3234
        %3236 = vrot.lane.b32.xlu0 %v2781, 127
        %v3237 = vpop.permute.xlu0 %3236
        %v3238 = vsel %vm1416, %v3207, %v3209
        %v3239 = vsel %vm1416, %v3211, %v3213
        %v3240 = vsel %vm1416, %v3215, %v3217
        %v3241 = vsel %vm1416, %v3219, %v3221
        %v3242 = vsel %vm1416, %v3223, %v3225
        %v3243 = vsel %vm1416, %v3227, %v3229
        %v3244 = vsel %vm1416, %v3231, %v3233
        %v3245 = vsel %vm1416, %v3235, %v3237
        %v3270 = vsel %vm1416, %v3209, %v3207
        %v3271 = vsel %vm1416, %v3213, %v3211
        %v3272 = vsel %vm1416, %v3217, %v3215
        %v3273 = vsel %vm1416, %v3221, %v3219
        %v3274 = vsel %vm1416, %v3225, %v3223
        %v3275 = vsel %vm1416, %v3229, %v3227
        %v3276 = vsel %vm1416, %v3233, %v3231
        %v3277 = vsel %vm1416, %v3237, %v3235
        %v3278 = vmul.f32 %v3238, %v1440
        %v3279 = vmul.f32 %v3270, %v1444
        %v3280 = vmul.f32 %v3239, %v1440
        %v3281 = vmul.f32 %v3271, %v1444
        %v3282 = vmul.f32 %v3240, %v1440
        %v3283 = vmul.f32 %v3272, %v1444
        %v3284 = vmul.f32 %v3241, %v1440
        %v3285 = vmul.f32 %v3273, %v1444
        %v3286 = vmul.f32 %v3242, %v1440
        %v3287 = vmul.f32 %v3274, %v1444
        %v3288 = vmul.f32 %v3243, %v1440
        %v3289 = vmul.f32 %v3275, %v1444
        %v3290 = vmul.f32 %v3244, %v1440
        %v3291 = vmul.f32 %v3276, %v1444
        %v3292 = vmul.f32 %v3245, %v1440
        %v3293 = vmul.f32 %v3277, %v1444
        %3294 = vrot.lane.b32.xlu0 %v2766, 113
        %v3295 = vpop.permute.xlu0 %3294
        %3296 = vrot.lane.b32.xlu0 %v2767, 113
        %v3297 = vpop.permute.xlu0 %3296
        %3298 = vrot.lane.b32.xlu0 %v2768, 113
        %v3299 = vpop.permute.xlu0 %3298
        %3300 = vrot.lane.b32.xlu0 %v2769, 113
        %v3301 = vpop.permute.xlu0 %3300
        %3302 = vrot.lane.b32.xlu0 %v2770, 113
        %v3303 = vpop.permute.xlu0 %3302
        %3304 = vrot.lane.b32.xlu0 %v2771, 113
        %v3305 = vpop.permute.xlu0 %3304
        %3306 = vrot.lane.b32.xlu0 %v2772, 113
        %v3307 = vpop.permute.xlu0 %3306
        %3308 = vrot.lane.b32.xlu0 %v2773, 113
        %v3309 = vpop.permute.xlu0 %3308
        %3310 = vrot.lane.b32.xlu0 %v2774, 113
        %v3311 = vpop.permute.xlu0 %3310
        %3312 = vrot.lane.b32.xlu0 %v2775, 113
        %v3313 = vpop.permute.xlu0 %3312
        %3314 = vrot.lane.b32.xlu0 %v2776, 113
        %v3315 = vpop.permute.xlu0 %3314
        %3316 = vrot.lane.b32.xlu0 %v2777, 113
        %v3317 = vpop.permute.xlu0 %3316
        %3318 = vrot.lane.b32.xlu0 %v2778, 113
        %v3319 = vpop.permute.xlu0 %3318
        %3320 = vrot.lane.b32.xlu0 %v2779, 113
        %v3321 = vpop.permute.xlu0 %3320
        %3322 = vrot.lane.b32.xlu0 %v2780, 113
        %v3323 = vpop.permute.xlu0 %3322
        %3324 = vrot.lane.b32.xlu0 %v2781, 113
        %v3325 = vpop.permute.xlu0 %3324
        %v3326 = vsel %vm1469, %v3295, %v3297
        %v3327 = vsel %vm1469, %v3299, %v3301
        %v3328 = vsel %vm1469, %v3303, %v3305
        %v3329 = vsel %vm1469, %v3307, %v3309
        %v3330 = vsel %vm1469, %v3311, %v3313
        %v3331 = vsel %vm1469, %v3315, %v3317
        %v3332 = vsel %vm1469, %v3319, %v3321
        %v3333 = vsel %vm1469, %v3323, %v3325
        %v3358 = vsel %vm1469, %v3297, %v3295
        %v3359 = vsel %vm1469, %v3301, %v3299
        %v3360 = vsel %vm1469, %v3305, %v3303
        %v3361 = vsel %vm1469, %v3309, %v3307
        %v3362 = vsel %vm1469, %v3313, %v3311
        %v3363 = vsel %vm1469, %v3317, %v3315
        %v3364 = vsel %vm1469, %v3321, %v3319
        %v3365 = vsel %vm1469, %v3325, %v3323
        %v3366 = vmul.f32 %v3326, %v1493
        %v3367 = vmul.f32 %v3358, %v1497
        %v3368 = vmul.f32 %v3327, %v1493
        %v3369 = vmul.f32 %v3359, %v1497
        %v3370 = vmul.f32 %v3328, %v1493
        %v3371 = vmul.f32 %v3360, %v1497
        %v3372 = vmul.f32 %v3329, %v1493
        %v3373 = vmul.f32 %v3361, %v1497
        %v3374 = vmul.f32 %v3330, %v1493
        %v3375 = vmul.f32 %v3362, %v1497
        %v3376 = vmul.f32 %v3331, %v1493
        %v3377 = vmul.f32 %v3363, %v1497
        %v3378 = vmul.f32 %v3332, %v1493
        %v3379 = vmul.f32 %v3364, %v1497
        %v3380 = vmul.f32 %v3333, %v1493
        %v3381 = vmul.f32 %v3365, %v1497
        %3382 = vrot.lane.b32.xlu0 %v2766, 112
        %v3383 = vpop.permute.xlu0 %3382
        %3384 = vrot.lane.b32.xlu0 %v2767, 112
        %v3385 = vpop.permute.xlu0 %3384
        %3386 = vrot.lane.b32.xlu0 %v2768, 112
        %v3387 = vpop.permute.xlu0 %3386
        %3388 = vrot.lane.b32.xlu0 %v2769, 112
        %v3389 = vpop.permute.xlu0 %3388
        %3390 = vrot.lane.b32.xlu0 %v2770, 112
        %v3391 = vpop.permute.xlu0 %3390
        %3392 = vrot.lane.b32.xlu0 %v2771, 112
        %v3393 = vpop.permute.xlu0 %3392
        %3394 = vrot.lane.b32.xlu0 %v2772, 112
        %v3395 = vpop.permute.xlu0 %3394
        %3396 = vrot.lane.b32.xlu0 %v2773, 112
        %v3397 = vpop.permute.xlu0 %3396
        %3398 = vrot.lane.b32.xlu0 %v2774, 112
        %v3399 = vpop.permute.xlu0 %3398
        %3400 = vrot.lane.b32.xlu0 %v2775, 112
        %v3401 = vpop.permute.xlu0 %3400
        %3402 = vrot.lane.b32.xlu0 %v2776, 112
        %v3403 = vpop.permute.xlu0 %3402
        %3404 = vrot.lane.b32.xlu0 %v2777, 112
        %v3405 = vpop.permute.xlu0 %3404
        %3406 = vrot.lane.b32.xlu0 %v2778, 112
        %v3407 = vpop.permute.xlu0 %3406
        %3408 = vrot.lane.b32.xlu0 %v2779, 112
        %v3409 = vpop.permute.xlu0 %3408
        %3410 = vrot.lane.b32.xlu0 %v2780, 112
        %v3411 = vpop.permute.xlu0 %3410
        %3412 = vrot.lane.b32.xlu0 %v2781, 112
        %v3413 = vpop.permute.xlu0 %3412
        %v3414 = vsel %vm1522, %v3383, %v3385
        %v3415 = vsel %vm1522, %v3387, %v3389
        %v3416 = vsel %vm1522, %v3391, %v3393
        %v3417 = vsel %vm1522, %v3395, %v3397
        %v3418 = vsel %vm1522, %v3399, %v3401
        %v3419 = vsel %vm1522, %v3403, %v3405
        %v3420 = vsel %vm1522, %v3407, %v3409
        %v3421 = vsel %vm1522, %v3411, %v3413
        %v3446 = vsel %vm1522, %v3385, %v3383
        %v3447 = vsel %vm1522, %v3389, %v3387
        %v3448 = vsel %vm1522, %v3393, %v3391
        %v3449 = vsel %vm1522, %v3397, %v3395
        %v3450 = vsel %vm1522, %v3401, %v3399
        %v3451 = vsel %vm1522, %v3405, %v3403
        %v3452 = vsel %vm1522, %v3409, %v3407
        %v3453 = vsel %vm1522, %v3413, %v3411
        %v3454 = vmul.f32 %v3414, %v1546
        %v3455 = vmul.f32 %v3446, %v1550
        %v3456 = vmul.f32 %v3415, %v1546
        %v3457 = vmul.f32 %v3447, %v1550
        %v3458 = vmul.f32 %v3416, %v1546
        %v3459 = vmul.f32 %v3448, %v1550
        %v3460 = vmul.f32 %v3417, %v1546
        %v3461 = vmul.f32 %v3449, %v1550
        %v3462 = vmul.f32 %v3418, %v1546
        %v3463 = vmul.f32 %v3450, %v1550
        %v3464 = vmul.f32 %v3419, %v1546
        %v3465 = vmul.f32 %v3451, %v1550
        %v3466 = vmul.f32 %v3420, %v1546
        %v3467 = vmul.f32 %v3452, %v1550
        %v3468 = vmul.f32 %v3421, %v1546
        %v3469 = vmul.f32 %v3453, %v1550
        %3470 = vrot.lane.b32.xlu0 %v2766, 111
        %v3471 = vpop.permute.xlu0 %3470
        %3472 = vrot.lane.b32.xlu0 %v2767, 111
        %v3473 = vpop.permute.xlu0 %3472
        %3474 = vrot.lane.b32.xlu0 %v2768, 111
        %v3475 = vpop.permute.xlu0 %3474
        %3476 = vrot.lane.b32.xlu0 %v2769, 111
        %v3477 = vpop.permute.xlu0 %3476
        %3478 = vrot.lane.b32.xlu0 %v2770, 111
        %v3479 = vpop.permute.xlu0 %3478
        %3480 = vrot.lane.b32.xlu0 %v2771, 111
        %v3481 = vpop.permute.xlu0 %3480
        %3482 = vrot.lane.b32.xlu0 %v2772, 111
        %v3483 = vpop.permute.xlu0 %3482
        %3484 = vrot.lane.b32.xlu0 %v2773, 111
        %v3485 = vpop.permute.xlu0 %3484
        %3486 = vrot.lane.b32.xlu0 %v2774, 111
        %v3487 = vpop.permute.xlu0 %3486
        %3488 = vrot.lane.b32.xlu0 %v2775, 111
        %v3489 = vpop.permute.xlu0 %3488
        %3490 = vrot.lane.b32.xlu0 %v2776, 111
        %v3491 = vpop.permute.xlu0 %3490
        %3492 = vrot.lane.b32.xlu0 %v2777, 111
        %v3493 = vpop.permute.xlu0 %3492
        %3494 = vrot.lane.b32.xlu0 %v2778, 111
        %v3495 = vpop.permute.xlu0 %3494
        %3496 = vrot.lane.b32.xlu0 %v2779, 111
        %v3497 = vpop.permute.xlu0 %3496
        %3498 = vrot.lane.b32.xlu0 %v2780, 111
        %v3499 = vpop.permute.xlu0 %3498
        %3500 = vrot.lane.b32.xlu0 %v2781, 111
        %v3501 = vpop.permute.xlu0 %3500
        %v3502 = vsel %vm1575, %v3471, %v3473
        %v3503 = vsel %vm1575, %v3475, %v3477
        %v3504 = vsel %vm1575, %v3479, %v3481
        %v3505 = vsel %vm1575, %v3483, %v3485
        %v3506 = vsel %vm1575, %v3487, %v3489
        %v3507 = vsel %vm1575, %v3491, %v3493
        %v3508 = vsel %vm1575, %v3495, %v3497
        %v3509 = vsel %vm1575, %v3499, %v3501
        %v3534 = vsel %vm1575, %v3473, %v3471
        %v3535 = vsel %vm1575, %v3477, %v3475
        %v3536 = vsel %vm1575, %v3481, %v3479
        %v3537 = vsel %vm1575, %v3485, %v3483
        %v3538 = vsel %vm1575, %v3489, %v3487
        %v3539 = vsel %vm1575, %v3493, %v3491
        %v3540 = vsel %vm1575, %v3497, %v3495
        %v3541 = vsel %vm1575, %v3501, %v3499
        %v3542 = vmul.f32 %v3502, %v1599
        %v3543 = vmul.f32 %v3534, %v1603
        %v3544 = vmul.f32 %v3503, %v1599
        %v3545 = vmul.f32 %v3535, %v1603
        %v3546 = vmul.f32 %v3504, %v1599
        %v3547 = vmul.f32 %v3536, %v1603
        %v3548 = vmul.f32 %v3505, %v1599
        %v3549 = vmul.f32 %v3537, %v1603
        %v3550 = vmul.f32 %v3506, %v1599
        %v3551 = vmul.f32 %v3538, %v1603
        %v3552 = vmul.f32 %v3507, %v1599
        %v3553 = vmul.f32 %v3539, %v1603
        %v3554 = vmul.f32 %v3508, %v1599
        %v3555 = vmul.f32 %v3540, %v1603
        %v3556 = vmul.f32 %v3509, %v1599
        %v3557 = vmul.f32 %v3541, %v1603
        %v3558 = vld [vmem:[%s13] sm:$0xff]
        %v3559 = vld [vmem:[%s13 + $0x8] sm:$0xff]
        %v3560 = vld [vmem:[%s13 + $0x10] sm:$0xff]
        %v3561 = vld [vmem:[%s13 + $0x18] sm:$0xff]
        %v3562 = vld [vmem:[%s13 + $0x20] sm:$0xff]
        %v3563 = vld [vmem:[%s13 + $0x28] sm:$0xff]
        %v3564 = vld [vmem:[%s13 + $0x30] sm:$0xff]
        %v3565 = vld [vmem:[%s13 + $0x38] sm:$0xff]
        %3567 = vset.pattern.permute.xlu0 0
        %3568 = vperm.xlu0 %3567, %v3558
        %v3569 = vpop.permute.xlu0 %3568
        %3572 = vset.pattern.permute.xlu0 0
        %3573 = vperm.xlu0 %3572, %v3559
        %v3574 = vpop.permute.xlu0 %3573
        %3577 = vset.pattern.permute.xlu0 0
        %3578 = vperm.xlu0 %3577, %v3560
        %v3579 = vpop.permute.xlu0 %3578
        %3582 = vset.pattern.permute.xlu0 0
        %3583 = vperm.xlu0 %3582, %v3561
        %v3584 = vpop.permute.xlu0 %3583
        %3587 = vset.pattern.permute.xlu0 0
        %3588 = vperm.xlu0 %3587, %v3562
        %v3589 = vpop.permute.xlu0 %3588
        %3592 = vset.pattern.permute.xlu0 0
        %3593 = vperm.xlu0 %3592, %v3563
        %v3594 = vpop.permute.xlu0 %3593
        %3597 = vset.pattern.permute.xlu0 0
        %3598 = vperm.xlu0 %3597, %v3564
        %v3599 = vpop.permute.xlu0 %3598
        %3602 = vset.pattern.permute.xlu0 0
        %3603 = vperm.xlu0 %3602, %v3565
        %v3604 = vpop.permute.xlu0 %3603
        %v3607 = vsel %vm2163, %v2786, 0
        %v3610 = vsel %vm2163, %v2791, 0
        %v3613 = vsel %vm2163, %v2796, 0
        %v3616 = vsel %vm2163, %v2801, 0
        %v3619 = vsel %vm2163, %v2806, 0
        %v3622 = vsel %vm2163, %v2811, 0
        %v3625 = vsel %vm2163, %v2816, 0
        %v3628 = vsel %vm2163, %v2821, 0
        %3630 = vmatprep.subr.mxu0 %v2911
        %3631 = vmatpush1.msra.mxu0 %v2910
        %3632 = vmatprep.subr.mxu0 %v2913
        %3633 = vmatpush1.msra.mxu0 %v2912
        %3634 = vmatprep.subr.mxu0 %v2915
        %3635 = vmatpush1.msra.mxu0 %v2914
        %3636 = vmatprep.subr.mxu0 %v2917
        %3637 = vmatpush1.msra.mxu0 %v2916
        %3638 = vmatprep.subr.mxu0 %v2919
        %3639 = vmatpush1.msra.mxu0 %v2918
        %3640 = vmatprep.subr.mxu0 %v2921
        %3641 = vmatpush1.msra.mxu0 %v2920
        %3642 = vmatprep.subr.mxu0 %v2923
        %3643 = vmatpush1.msra.mxu0 %v2922
        %3644 = vmatprep.subr.mxu0 %v2925
        %3645 = vmatpush1.msra.mxu0 %v2924
        %3646 = vmatprep.subr.mxu0 %v2999
        %3647 = vmatpush1.msra.mxu0 %v2998
        %3648 = vmatprep.subr.mxu0 %v3001
        %3649 = vmatpush1.msra.mxu0 %v3000
        %3650 = vmatprep.subr.mxu0 %v3003
        %3651 = vmatpush1.msra.mxu0 %v3002
        %3652 = vmatprep.subr.mxu0 %v3005
        %3653 = vmatpush1.msra.mxu0 %v3004
        %3654 = vmatprep.subr.mxu0 %v3007
        %3655 = vmatpush1.msra.mxu0 %v3006
        %3656 = vmatprep.subr.mxu0 %v3009
        %3657 = vmatpush1.msra.mxu0 %v3008
        %3658 = vmatprep.subr.mxu0 %v3011
        %3659 = vmatpush1.msra.mxu0 %v3010
        %3660 = vmatprep.subr.mxu0 %v3013
        %3661 = vmatpush1.msra.mxu0 %v3012
        %3662 = vmatprep.subr.mxu0 %v3087
        %3663 = vmatpush1.msra.mxu0 %v3086
        %3664 = vmatprep.subr.mxu0 %v3089
        %3665 = vmatpush1.msra.mxu0 %v3088
        %3666 = vmatprep.subr.mxu0 %v3091
        %3667 = vmatpush1.msra.mxu0 %v3090
        %3668 = vmatprep.subr.mxu0 %v3093
        %3669 = vmatpush1.msra.mxu0 %v3092
        %3670 = vmatprep.subr.mxu0 %v3095
        %3671 = vmatpush1.msra.mxu0 %v3094
        %3672 = vmatprep.subr.mxu0 %v3097
        %3673 = vmatpush1.msra.mxu0 %v3096
        %3674 = vmatprep.subr.mxu0 %v3099
        %3675 = vmatpush1.msra.mxu0 %v3098
        %3676 = vmatprep.subr.mxu0 %v3101
        %3677 = vmatpush1.msra.mxu0 %v3100
        %3678 = vmatprep.subr.mxu0 %v3175
        %3679 = vmatpush1.msra.mxu0 %v3174
        %3680 = vmatprep.subr.mxu0 %v3177
        %3681 = vmatpush1.msra.mxu0 %v3176
        %3682 = vmatprep.subr.mxu0 %v3179
        %3683 = vmatpush1.msra.mxu0 %v3178
        %3684 = vmatprep.subr.mxu0 %v3181
        %3685 = vmatpush1.msra.mxu0 %v3180
        %3686 = vmatprep.subr.mxu0 %v3183
        %3687 = vmatpush1.msra.mxu0 %v3182
        %3688 = vmatprep.subr.mxu0 %v3185
        %3689 = vmatpush1.msra.mxu0 %v3184
        %3690 = vmatprep.subr.mxu0 %v3187
        %3691 = vmatpush1.msra.mxu0 %v3186
        %3692 = vmatprep.subr.mxu0 %v3189
        %3693 = vmatpush1.msra.mxu0 %v3188
        %3694 = vmatprep.mubr.f32.mxu0 %v2783
        %3695 = vmatmul.mubr.f32.gmra.mrb[0].mxu0 %v2782
        %v3696 = vpop.f32.mrb[0].mxu0
        %v3697 = vadd.f32 %v3569, %v3696
        %v3698 = vpop.f32.mrb[0].mxu0
        %v3699 = vadd.f32 %v3569, %v3698
        %3700 = vmatprep.mubr.f32.mxu0 %v2788
        %3701 = vmatmul.mubr.f32.gmra.mrb[0].mxu0 %v2787
        %v3702 = vpop.f32.mrb[0].mxu0
        %v3703 = vadd.f32 %v3574, %v3702
        %v3704 = vpop.f32.mrb[0].mxu0
        %v3705 = vadd.f32 %v3574, %v3704
        %3706 = vmatprep.mubr.f32.mxu0 %v2793
        %3707 = vmatmul.mubr.f32.gmra.mrb[0].mxu0 %v2792
        %v3708 = vpop.f32.mrb[0].mxu0
        %v3709 = vadd.f32 %v3579, %v3708
        %v3710 = vpop.f32.mrb[0].mxu0
        %v3711 = vadd.f32 %v3579, %v3710
        %3712 = vmatprep.mubr.f32.mxu0 %v2798
        %3713 = vmatmul.mubr.f32.gmra.mrb[0].mxu0 %v2797
        %v3714 = vpop.f32.mrb[0].mxu0
        %v3715 = vadd.f32 %v3584, %v3714
        %v3716 = vpop.f32.mrb[0].mxu0
        %v3717 = vadd.f32 %v3584, %v3716
        %3718 = vmatprep.mubr.f32.mxu0 %v2803
        %3719 = vmatmul.mubr.f32.gmra.mrb[0].mxu0 %v2802
        %v3720 = vpop.f32.mrb[0].mxu0
        %v3721 = vadd.f32 %v3589, %v3720
        %v3722 = vpop.f32.mrb[0].mxu0
        %v3723 = vadd.f32 %v3589, %v3722
        %3724 = vmatprep.mubr.f32.mxu0 %v2808
        %3725 = vmatmul.mubr.f32.gmra.mrb[0].mxu0 %v2807
        %v3726 = vpop.f32.mrb[0].mxu0
        %v3727 = vadd.f32 %v3594, %v3726
        %v3728 = vpop.f32.mrb[0].mxu0
        %v3729 = vadd.f32 %v3594, %v3728
        %3730 = vmatprep.mubr.f32.mxu0 %v2813
        %3731 = vmatmul.mubr.f32.gmra.mrb[0].mxu0 %v2812
        %v3732 = vpop.f32.mrb[0].mxu0
        %v3733 = vadd.f32 %v3599, %v3732
        %v3734 = vpop.f32.mrb[0].mxu0
        %v3735 = vadd.f32 %v3599, %v3734
        %3736 = vmatprep.mubr.f32.mxu0 %v2818
        %3737 = vmatmul.mubr.f32.gmra.mrb[0].mxu0 %v2817
        %v3738 = vpop.f32.mrb[0].mxu0
        %v3739 = vadd.f32 %v3604, %v3738
        %v3740 = vpop.f32.mrb[0].mxu0
        %v3741 = vadd.f32 %v3604, %v3740
        %3742 = vdwg.mxu0
        %3743 = vmatprep.subr.mxu0 %v3191
        %3744 = vmatpush1.msra.mxu0 %v3190
        %3745 = vmatprep.subr.mxu0 %v3193
        %3746 = vmatpush1.msra.mxu0 %v3192
        %3747 = vmatprep.subr.mxu0 %v3195
        %3748 = vmatpush1.msra.mxu0 %v3194
        %3749 = vmatprep.subr.mxu0 %v3197
        %3750 = vmatpush1.msra.mxu0 %v3196
        %3751 = vmatprep.subr.mxu0 %v3199
        %3752 = vmatpush1.msra.mxu0 %v3198
        %3753 = vmatprep.subr.mxu0 %v3201
        %3754 = vmatpush1.msra.mxu0 %v3200
        %3755 = vmatprep.subr.mxu0 %v3203
        %3756 = vmatpush1.msra.mxu0 %v3202
        %3757 = vmatprep.subr.mxu0 %v3205
        %3758 = vmatpush1.msra.mxu0 %v3204
        %3759 = vmatprep.subr.mxu0 %v3279
        %3760 = vmatpush1.msra.mxu0 %v3278
        %3761 = vmatprep.subr.mxu0 %v3281
        %3762 = vmatpush1.msra.mxu0 %v3280
        %3763 = vmatprep.subr.mxu0 %v3283
        %3764 = vmatpush1.msra.mxu0 %v3282
        %3765 = vmatprep.subr.mxu0 %v3285
        %3766 = vmatpush1.msra.mxu0 %v3284
        %3767 = vmatprep.subr.mxu0 %v3287
        %3768 = vmatpush1.msra.mxu0 %v3286
        %3769 = vmatprep.subr.mxu0 %v3289
        %3770 = vmatpush1.msra.mxu0 %v3288
        %3771 = vmatprep.subr.mxu0 %v3291
        %3772 = vmatpush1.msra.mxu0 %v3290
        %3773 = vmatprep.subr.mxu0 %v3293
        %3774 = vmatpush1.msra.mxu0 %v3292
        %3775 = vmatprep.subr.mxu0 %v3367
        %3776 = vmatpush1.msra.mxu0 %v3366
        %3777 = vmatprep.subr.mxu0 %v3369
        %3778 = vmatpush1.msra.mxu0 %v3368
        %3779 = vmatprep.subr.mxu0 %v3371
        %3780 = vmatpush1.msra.mxu0 %v3370
        %3781 = vmatprep.subr.mxu0 %v3373
        %3782 = vmatpush1.msra.mxu0 %v3372
        %3783 = vmatprep.subr.mxu0 %v3375
        %3784 = vmatpush1.msra.mxu0 %v3374
        %3785 = vmatprep.subr.mxu0 %v3377
        %3786 = vmatpush1.msra.mxu0 %v3376
        %3787 = vmatprep.subr.mxu0 %v3379
        %3788 = vmatpush1.msra.mxu0 %v3378
        %3789 = vmatprep.subr.mxu0 %v3381
        %3790 = vmatpush1.msra.mxu0 %v3380
        %3791 = vmatprep.subr.mxu0 %v3455
        %3792 = vmatpush1.msra.mxu0 %v3454
        %3793 = vmatprep.subr.mxu0 %v3457
        %3794 = vmatpush1.msra.mxu0 %v3456
        %3795 = vmatprep.subr.mxu0 %v3459
        %3796 = vmatpush1.msra.mxu0 %v3458
        %3797 = vmatprep.subr.mxu0 %v3461
        %3798 = vmatpush1.msra.mxu0 %v3460
        %3799 = vmatprep.subr.mxu0 %v3463
        %3800 = vmatpush1.msra.mxu0 %v3462
        %3801 = vmatprep.subr.mxu0 %v3465
        %3802 = vmatpush1.msra.mxu0 %v3464
        %3803 = vmatprep.subr.mxu0 %v3467
        %3804 = vmatpush1.msra.mxu0 %v3466
        %3805 = vmatprep.subr.mxu0 %v3469
        %3806 = vmatpush1.msra.mxu0 %v3468
        %3807 = vmatprep.mubr.f32.mxu0 %v2785
        %3808 = vmatmul.mubr.f32.gmra.mrb[0].mxu0 %v2784
        %v3809 = vpop.f32.mrb[0].mxu0
        %v3810 = vadd.f32 %v3697, %v3809
        %v3811 = vpop.f32.mrb[0].mxu0
        %v3812 = vadd.f32 %v3699, %v3811
        %3813 = vmatprep.mubr.f32.mxu0 %v2790
        %3814 = vmatmul.mubr.f32.gmra.mrb[0].mxu0 %v2789
        %v3815 = vpop.f32.mrb[0].mxu0
        %v3816 = vadd.f32 %v3703, %v3815
        %v3817 = vpop.f32.mrb[0].mxu0
        %v3818 = vadd.f32 %v3705, %v3817
        %3819 = vmatprep.mubr.f32.mxu0 %v2795
        %3820 = vmatmul.mubr.f32.gmra.mrb[0].mxu0 %v2794
        %v3821 = vpop.f32.mrb[0].mxu0
        %v3822 = vadd.f32 %v3709, %v3821
        %v3823 = vpop.f32.mrb[0].mxu0
        %v3824 = vadd.f32 %v3711, %v3823
        %3825 = vmatprep.mubr.f32.mxu0 %v2800
        %3826 = vmatmul.mubr.f32.gmra.mrb[0].mxu0 %v2799
        %v3827 = vpop.f32.mrb[0].mxu0
        %v3828 = vadd.f32 %v3715, %v3827
        %v3829 = vpop.f32.mrb[0].mxu0
        %v3830 = vadd.f32 %v3717, %v3829
        %3831 = vmatprep.mubr.f32.mxu0 %v2805
        %3832 = vmatmul.mubr.f32.gmra.mrb[0].mxu0 %v2804
        %v3833 = vpop.f32.mrb[0].mxu0
        %v3834 = vadd.f32 %v3721, %v3833
        %v3835 = vpop.f32.mrb[0].mxu0
        %v3836 = vadd.f32 %v3723, %v3835
        %3837 = vmatprep.mubr.f32.mxu0 %v2810
        %3838 = vmatmul.mubr.f32.gmra.mrb[0].mxu0 %v2809
        %v3839 = vpop.f32.mrb[0].mxu0
        %v3840 = vadd.f32 %v3727, %v3839
        %v3841 = vpop.f32.mrb[0].mxu0
        %v3842 = vadd.f32 %v3729, %v3841
        %3843 = vmatprep.mubr.f32.mxu0 %v2815
        %3844 = vmatmul.mubr.f32.gmra.mrb[0].mxu0 %v2814
        %v3845 = vpop.f32.mrb[0].mxu0
        %v3846 = vadd.f32 %v3733, %v3845
        %v3847 = vpop.f32.mrb[0].mxu0
        %v3848 = vadd.f32 %v3735, %v3847
        %3849 = vmatprep.mubr.f32.mxu0 %v2820
        %3850 = vmatmul.mubr.f32.gmra.mrb[0].mxu0 %v2819
        %v3851 = vpop.f32.mrb[0].mxu0
        %v3852 = vadd.f32 %v3739, %v3851
        %v3853 = vpop.f32.mrb[0].mxu0
        %v3854 = vadd.f32 %v3741, %v3853
        %3855 = vdwg.mxu0
        %3856 = vmatprep.subr.mxu0 %v3543
        %3857 = vmatpush1.msra.mxu0 %v3542
        %3858 = vmatprep.subr.mxu0 %v3545
        %3859 = vmatpush1.msra.mxu0 %v3544
        %3860 = vmatprep.subr.mxu0 %v3547
        %3861 = vmatpush1.msra.mxu0 %v3546
        %3862 = vmatprep.subr.mxu0 %v3549
        %3863 = vmatpush1.msra.mxu0 %v3548
        %3864 = vmatprep.subr.mxu0 %v3551
        %3865 = vmatpush1.msra.mxu0 %v3550
        %3866 = vmatprep.subr.mxu0 %v3553
        %3867 = vmatpush1.msra.mxu0 %v3552
        %3868 = vmatprep.subr.mxu0 %v3555
        %3869 = vmatpush1.msra.mxu0 %v3554
        %3870 = vmatprep.subr.mxu0 %v3557
        %3871 = vmatpush1.msra.mxu0 %v3556
        %3872 = vmatprep.subr.mxu0 0.0
        %3873 = vmatpush1.msra.mxu0 0.0
        %3874 = vmatprep.subr.mxu0 0.0
        %3875 = vmatpush1.msra.mxu0 0.0
        %3876 = vmatprep.subr.mxu0 0.0
        %3877 = vmatpush1.msra.mxu0 0.0
        %3878 = vmatprep.subr.mxu0 0.0
        %3879 = vmatpush1.msra.mxu0 0.0
        %3880 = vmatprep.subr.mxu0 0.0
        %3881 = vmatpush1.msra.mxu0 0.0
        %3882 = vmatprep.subr.mxu0 0.0
        %3883 = vmatpush1.msra.mxu0 0.0
        %3884 = vmatprep.subr.mxu0 0.0
        %3885 = vmatpush1.msra.mxu0 0.0
        %3886 = vmatprep.subr.mxu0 0.0
        %3887 = vmatpush1.msra.mxu0 0.0
        %3888 = vmatprep.subr.mxu0 0.0
        %3889 = vmatpush1.msra.mxu0 0.0
        %3890 = vmatprep.subr.mxu0 0.0
        %3891 = vmatpush1.msra.mxu0 0.0
        %3892 = vmatprep.subr.mxu0 0.0
        %3893 = vmatpush1.msra.mxu0 0.0
        %3894 = vmatprep.subr.mxu0 0.0
        %3895 = vmatpush1.msra.mxu0 0.0
        %3896 = vmatprep.subr.mxu0 0.0
        %3897 = vmatpush1.msra.mxu0 0.0
        %3898 = vmatprep.subr.mxu0 0.0
        %3899 = vmatpush1.msra.mxu0 0.0
        %3900 = vmatprep.subr.mxu0 0.0
        %3901 = vmatpush1.msra.mxu0 0.0
        %3902 = vmatprep.subr.mxu0 0.0
        %3903 = vmatpush1.msra.mxu0 0.0
        %3904 = vmatprep.subr.mxu0 0.0
        %3905 = vmatpush1.msra.mxu0 0.0
        %3906 = vmatprep.subr.mxu0 0.0
        %3907 = vmatpush1.msra.mxu0 0.0
        %3908 = vmatprep.subr.mxu0 0.0
        %3909 = vmatpush1.msra.mxu0 0.0
        %3910 = vmatprep.subr.mxu0 0.0
        %3911 = vmatpush1.msra.mxu0 0.0
        %3912 = vmatprep.subr.mxu0 0.0
        %3913 = vmatpush1.msra.mxu0 0.0
        %3914 = vmatprep.subr.mxu0 0.0
        %3915 = vmatpush1.msra.mxu0 0.0
        %3916 = vmatprep.subr.mxu0 0.0
        %3917 = vmatpush1.msra.mxu0 0.0
        %3918 = vmatprep.subr.mxu0 0.0
        %3919 = vmatpush1.msra.mxu0 0.0
        %3920 = vmatprep.mubr.f32.mxu0 0.0
        %3921 = vmatmul.mubr.f32.gmra.mrb[0].mxu0 %v3607
        %v3922 = vpop.f32.mrb[0].mxu0
        %v3923 = vadd.f32 %v3810, %v3922
        %v3924 = vpop.f32.mrb[0].mxu0
        %v3925 = vadd.f32 %v3812, %v3924
        %3926 = vmatprep.mubr.f32.mxu0 0.0
        %3927 = vmatmul.mubr.f32.gmra.mrb[0].mxu0 %v3610
        %v3928 = vpop.f32.mrb[0].mxu0
        %v3929 = vadd.f32 %v3816, %v3928
        %v3930 = vpop.f32.mrb[0].mxu0
        %v3931 = vadd.f32 %v3818, %v3930
        %3932 = vmatprep.mubr.f32.mxu0 0.0
        %3933 = vmatmul.mubr.f32.gmra.mrb[0].mxu0 %v3613
        %v3934 = vpop.f32.mrb[0].mxu0
        %v3935 = vadd.f32 %v3822, %v3934
        %v3936 = vpop.f32.mrb[0].mxu0
        %v3937 = vadd.f32 %v3824, %v3936
        %3938 = vmatprep.mubr.f32.mxu0 0.0
        %3939 = vmatmul.mubr.f32.gmra.mrb[0].mxu0 %v3616
        %v3940 = vpop.f32.mrb[0].mxu0
        %v3941 = vadd.f32 %v3828, %v3940
        %v3942 = vpop.f32.mrb[0].mxu0
        %v3943 = vadd.f32 %v3830, %v3942
        %3944 = vmatprep.mubr.f32.mxu0 0.0
        %3945 = vmatmul.mubr.f32.gmra.mrb[0].mxu0 %v3619
        %v3946 = vpop.f32.mrb[0].mxu0
        %v3947 = vadd.f32 %v3834, %v3946
        %v3948 = vpop.f32.mrb[0].mxu0
        %v3949 = vadd.f32 %v3836, %v3948
        %3950 = vmatprep.mubr.f32.mxu0 0.0
        %3951 = vmatmul.mubr.f32.gmra.mrb[0].mxu0 %v3622
        %v3952 = vpop.f32.mrb[0].mxu0
        %v3953 = vadd.f32 %v3840, %v3952
        %v3954 = vpop.f32.mrb[0].mxu0
        %v3955 = vadd.f32 %v3842, %v3954
        %3956 = vmatprep.mubr.f32.mxu0 0.0
        %3957 = vmatmul.mubr.f32.gmra.mrb[0].mxu0 %v3625
        %v3958 = vpop.f32.mrb[0].mxu0
        %v3959 = vadd.f32 %v3846, %v3958
        %v3960 = vpop.f32.mrb[0].mxu0
        %v3961 = vadd.f32 %v3848, %v3960
        %3962 = vmatprep.mubr.f32.mxu0 0.0
        %3963 = vmatmul.mubr.f32.gmra.mrb[0].mxu0 %v3628
        %v3964 = vpop.f32.mrb[0].mxu0
        %v3965 = vadd.f32 %v3852, %v3964
        %v3966 = vpop.f32.mrb[0].mxu0
        %v3967 = vadd.f32 %v3854, %v3966
        %3968 = vdwg.mxu0
        %v3969 = vld [vmem:[%s14] sm:$0xff]
        %v3970 = vld [vmem:[%s14 + $0x8] sm:$0xff]
        %v3971 = vld [vmem:[%s14 + $0x10] sm:$0xff]
        %v3972 = vld [vmem:[%s14 + $0x18] sm:$0xff]
        %v3973 = vld [vmem:[%s14 + $0x20] sm:$0xff]
        %v3974 = vld [vmem:[%s14 + $0x28] sm:$0xff]
        %v3975 = vld [vmem:[%s14 + $0x30] sm:$0xff]
        %v3976 = vld [vmem:[%s14 + $0x38] sm:$0xff]
        %v3978 = vsel %vm765, %v3969, 0
        %v3981 = vsel %vm765, %v3970, 0
        %v3984 = vsel %vm765, %v3971, 0
        %v3987 = vsel %vm765, %v3972, 0
        %v3990 = vsel %vm765, %v3973, 0
        %v3993 = vsel %vm765, %v3974, 0
        %v3996 = vsel %vm765, %v3975, 0
        %v3999 = vsel %vm765, %v3976, 0
        %4001 = vmatprep.subr.mxu0 %v716
        %4002 = vmatpush1.msra.mxu0 %v715
        %4003 = vmatprep.subr.mxu0 %v718
        %4004 = vmatpush1.msra.mxu0 %v717
        %4005 = vmatprep.subr.mxu0 %v720
        %4006 = vmatpush1.msra.mxu0 %v719
        %4007 = vmatprep.subr.mxu0 %v722
        %4008 = vmatpush1.msra.mxu0 %v721
        %4009 = vmatprep.subr.mxu0 0.0
        %4010 = vmatpush1.msra.mxu0 0.0
        %4011 = vmatprep.subr.mxu0 0.0
        %4012 = vmatpush1.msra.mxu0 0.0
        %4013 = vmatprep.subr.mxu0 0.0
        %4014 = vmatpush1.msra.mxu0 0.0
        %4015 = vmatprep.subr.mxu0 0.0
        %4016 = vmatpush1.msra.mxu0 0.0
        %4017 = vmatprep.subr.mxu0 0.0
        %4018 = vmatpush1.msra.mxu0 0.0
        %4019 = vmatprep.subr.mxu0 0.0
        %4020 = vmatpush1.msra.mxu0 0.0
        %4021 = vmatprep.subr.mxu0 0.0
        %4022 = vmatpush1.msra.mxu0 0.0
        %4023 = vmatprep.subr.mxu0 0.0
        %4024 = vmatpush1.msra.mxu0 0.0
        %4025 = vmatprep.subr.mxu0 0.0
        %4026 = vmatpush1.msra.mxu0 0.0
        %4027 = vmatprep.subr.mxu0 0.0
        %4028 = vmatpush1.msra.mxu0 0.0
        %4029 = vmatprep.subr.mxu0 0.0
        %4030 = vmatpush1.msra.mxu0 0.0
        %4031 = vmatprep.subr.mxu0 0.0
        %4032 = vmatpush1.msra.mxu0 0.0
        %4033 = vmatprep.subr.mxu0 0.0
        %4034 = vmatpush1.msra.mxu0 0.0
        %4035 = vmatprep.subr.mxu0 0.0
        %4036 = vmatpush1.msra.mxu0 0.0
        %4037 = vmatprep.subr.mxu0 0.0
        %4038 = vmatpush1.msra.mxu0 0.0
        %4039 = vmatprep.subr.mxu0 0.0
        %4040 = vmatpush1.msra.mxu0 0.0
        %4041 = vmatprep.subr.mxu0 0.0
        %4042 = vmatpush1.msra.mxu0 0.0
        %4043 = vmatprep.subr.mxu0 0.0
        %4044 = vmatpush1.msra.mxu0 0.0
        %4045 = vmatprep.subr.mxu0 0.0
        %4046 = vmatpush1.msra.mxu0 0.0
        %4047 = vmatprep.subr.mxu0 0.0
        %4048 = vmatpush1.msra.mxu0 0.0
        %4049 = vmatprep.subr.mxu0 0.0
        %4050 = vmatpush1.msra.mxu0 0.0
        %4051 = vmatprep.subr.mxu0 0.0
        %4052 = vmatpush1.msra.mxu0 0.0
        %4053 = vmatprep.subr.mxu0 0.0
        %4054 = vmatpush1.msra.mxu0 0.0
        %4055 = vmatprep.subr.mxu0 0.0
        %4056 = vmatpush1.msra.mxu0 0.0
        %4057 = vmatprep.subr.mxu0 0.0
        %4058 = vmatpush1.msra.mxu0 0.0
        %4059 = vmatprep.subr.mxu0 0.0
        %4060 = vmatpush1.msra.mxu0 0.0
        %4061 = vmatprep.subr.mxu0 0.0
        %4062 = vmatpush1.msra.mxu0 0.0
        %4063 = vmatprep.subr.mxu0 0.0
        %4064 = vmatpush1.msra.mxu0 0.0
        %4065 = vmatprep.mubr.f32.mxu0 0.0
        %4066 = vmatmul.mubr.f32.gmra.mrb[0].mxu0 %v3978
        %v4067 = vpop.f32.mrb[0].mxu0
        %v4068 = vadd.f32 0.0, %v4067
        %v4069 = vpop.f32.mrb[0].mxu0
        %v4070 = vadd.f32 0.0, %v4069
        %4071 = vmatprep.mubr.f32.mxu0 0.0
        %4072 = vmatmul.mubr.f32.gmra.mrb[0].mxu0 %v3981
        %v4073 = vpop.f32.mrb[0].mxu0
        %v4074 = vadd.f32 0.0, %v4073
        %v4075 = vpop.f32.mrb[0].mxu0
        %v4076 = vadd.f32 0.0, %v4075
        %4077 = vmatprep.mubr.f32.mxu0 0.0
        %4078 = vmatmul.mubr.f32.gmra.mrb[0].mxu0 %v3984
        %v4079 = vpop.f32.mrb[0].mxu0
        %v4080 = vadd.f32 0.0, %v4079
        %v4081 = vpop.f32.mrb[0].mxu0
        %v4082 = vadd.f32 0.0, %v4081
        %4083 = vmatprep.mubr.f32.mxu0 0.0
        %4084 = vmatmul.mubr.f32.gmra.mrb[0].mxu0 %v3987
        %v4085 = vpop.f32.mrb[0].mxu0
        %v4086 = vadd.f32 0.0, %v4085
        %v4087 = vpop.f32.mrb[0].mxu0
        %v4088 = vadd.f32 0.0, %v4087
        %4089 = vmatprep.mubr.f32.mxu0 0.0
        %4090 = vmatmul.mubr.f32.gmra.mrb[0].mxu0 %v3990
        %v4091 = vpop.f32.mrb[0].mxu0
        %v4092 = vadd.f32 0.0, %v4091
        %v4093 = vpop.f32.mrb[0].mxu0
        %v4094 = vadd.f32 0.0, %v4093
        %4095 = vmatprep.mubr.f32.mxu0 0.0
        %4096 = vmatmul.mubr.f32.gmra.mrb[0].mxu0 %v3993
        %v4097 = vpop.f32.mrb[0].mxu0
        %v4098 = vadd.f32 0.0, %v4097
        %v4099 = vpop.f32.mrb[0].mxu0
        %v4100 = vadd.f32 0.0, %v4099
        %4101 = vmatprep.mubr.f32.mxu0 0.0
        %4102 = vmatmul.mubr.f32.gmra.mrb[0].mxu0 %v3996
        %v4103 = vpop.f32.mrb[0].mxu0
        %v4104 = vadd.f32 0.0, %v4103
        %v4105 = vpop.f32.mrb[0].mxu0
        %v4106 = vadd.f32 0.0, %v4105
        %4107 = vmatprep.mubr.f32.mxu0 0.0
        %4108 = vmatmul.mubr.f32.gmra.mrb[0].mxu0 %v3999
        %v4109 = vpop.f32.mrb[0].mxu0
        %v4110 = vadd.f32 0.0, %v4109
        %v4111 = vpop.f32.mrb[0].mxu0
        %v4112 = vadd.f32 0.0, %v4111
        %4113 = vdwg.mxu0
        %v4114 = vadd.f32 %v3923, %v4068
        %v4115 = vadd.f32 %v3925, %v4070
        %v4116 = vadd.f32 %v3929, %v4074
        %v4117 = vadd.f32 %v3931, %v4076
        %v4118 = vadd.f32 %v3935, %v4080
        %v4119 = vadd.f32 %v3937, %v4082
        %v4120 = vadd.f32 %v3941, %v4086
        %v4121 = vadd.f32 %v3943, %v4088
        %v4122 = vadd.f32 %v3947, %v4092
        %v4123 = vadd.f32 %v3949, %v4094
        %v4124 = vadd.f32 %v3953, %v4098
        %v4125 = vadd.f32 %v3955, %v4100
        %v4126 = vadd.f32 %v3959, %v4104
        %v4127 = vadd.f32 %v3961, %v4106
        %v4128 = vadd.f32 %v3965, %v4110
        %v4129 = vadd.f32 %v3967, %v4112
        %v4130 = vld [vmem:[%s15] sm:$0xff]
        %v4131 = vld [vmem:[%s15 + $0x8] sm:$0xff]
        %v4132 = vld [vmem:[%s15 + $0x10] sm:$0xff]
        %v4133 = vld [vmem:[%s15 + $0x18] sm:$0xff]
        %v4134 = vld [vmem:[%s15 + $0x20] sm:$0xff]
        %v4135 = vld [vmem:[%s15 + $0x28] sm:$0xff]
        %v4136 = vld [vmem:[%s15 + $0x30] sm:$0xff]
        %v4137 = vld [vmem:[%s15 + $0x38] sm:$0xff]
        %4139 = vset.pattern.permute.xlu0 0
        %4140 = vperm.xlu0 %4139, %v4130
        %v4141 = vpop.permute.xlu0 %4140
        %4144 = vset.pattern.permute.xlu0 0
        %4145 = vperm.xlu0 %4144, %v4131
        %v4146 = vpop.permute.xlu0 %4145
        %4149 = vset.pattern.permute.xlu0 0
        %4150 = vperm.xlu0 %4149, %v4132
        %v4151 = vpop.permute.xlu0 %4150
        %4154 = vset.pattern.permute.xlu0 0
        %4155 = vperm.xlu0 %4154, %v4133
        %v4156 = vpop.permute.xlu0 %4155
        %4159 = vset.pattern.permute.xlu0 0
        %4160 = vperm.xlu0 %4159, %v4134
        %v4161 = vpop.permute.xlu0 %4160
        %4164 = vset.pattern.permute.xlu0 0
        %4165 = vperm.xlu0 %4164, %v4135
        %v4166 = vpop.permute.xlu0 %4165
        %4169 = vset.pattern.permute.xlu0 0
        %4170 = vperm.xlu0 %4169, %v4136
        %v4171 = vpop.permute.xlu0 %4170
        %4174 = vset.pattern.permute.xlu0 0
        %4175 = vperm.xlu0 %4174, %v4137
        %v4176 = vpop.permute.xlu0 %4175
        %v4178 = vadd.f32 %v4114, %v4141
        %v4179 = vadd.f32 %v4115, %v4141
        %v4180 = vadd.f32 %v4116, %v4146
        %v4181 = vadd.f32 %v4117, %v4146
        %v4182 = vadd.f32 %v4118, %v4151
        %v4183 = vadd.f32 %v4119, %v4151
        %v4184 = vadd.f32 %v4120, %v4156
        %v4185 = vadd.f32 %v4121, %v4156
        %v4186 = vadd.f32 %v4122, %v4161
        %v4187 = vadd.f32 %v4123, %v4161
        %v4188 = vadd.f32 %v4124, %v4166
        %v4189 = vadd.f32 %v4125, %v4166
        %v4190 = vadd.f32 %v4126, %v4171
        %v4191 = vadd.f32 %v4127, %v4171
        %v4192 = vadd.f32 %v4128, %v4176
        %v4193 = vadd.f32 %v4129, %v4176
        %v4194 = vadd.f32 %v4178, %v4179
        %4195 = vadd.xlane.f32.xlu0 %v4194
        %v4196 = vpop.xlane.xlu0 %4195
        %v4197 = vadd.f32 %v4180, %v4181
        %4198 = vadd.xlane.f32.xlu0 %v4197
        %v4199 = vpop.xlane.xlu0 %4198
        %v4200 = vadd.f32 %v4182, %v4183
        %4201 = vadd.xlane.f32.xlu0 %v4200
        %v4202 = vpop.xlane.xlu0 %4201
        %v4203 = vadd.f32 %v4184, %v4185
        %4204 = vadd.xlane.f32.xlu0 %v4203
        %v4205 = vpop.xlane.xlu0 %4204
        %v4206 = vadd.f32 %v4186, %v4187
        %4207 = vadd.xlane.f32.xlu0 %v4206
        %v4208 = vpop.xlane.xlu0 %4207
        %v4209 = vadd.f32 %v4188, %v4189
        %4210 = vadd.xlane.f32.xlu0 %v4209
        %v4211 = vpop.xlane.xlu0 %4210
        %v4212 = vadd.f32 %v4190, %v4191
        %4213 = vadd.xlane.f32.xlu0 %v4212
        %v4214 = vpop.xlane.xlu0 %4213
        %v4215 = vadd.f32 %v4192, %v4193
        %4216 = vadd.xlane.f32.xlu0 %v4215
        %v4217 = vpop.xlane.xlu0 %4216
        %v4218 = vrcp.pop 256.0
        %v4219 = vmul.f32 %v4196, %v4218
        %v4220 = vmul.f32 %v4199, %v4218
        %v4221 = vmul.f32 %v4202, %v4218
        %v4222 = vmul.f32 %v4205, %v4218
        %v4223 = vmul.f32 %v4208, %v4218
        %v4224 = vmul.f32 %v4211, %v4218
        %v4225 = vmul.f32 %v4214, %v4218
        %v4226 = vmul.f32 %v4217, %v4218
        %v4227 = vmax.f32 %v4178, %v4179
        %4228 = vmax.xlane.f32.xlu0 %v4227
        %v4229 = vpop.xlane.xlu0 %4228
        %v4230 = vmax.f32 %v4180, %v4181
        %4231 = vmax.xlane.f32.xlu0 %v4230
        %v4232 = vpop.xlane.xlu0 %4231
        %v4233 = vmax.f32 %v4182, %v4183
        %4234 = vmax.xlane.f32.xlu0 %v4233
        %v4235 = vpop.xlane.xlu0 %4234
        %v4236 = vmax.f32 %v4184, %v4185
        %4237 = vmax.xlane.f32.xlu0 %v4236
        %v4238 = vpop.xlane.xlu0 %4237
        %v4239 = vmax.f32 %v4186, %v4187
        %4240 = vmax.xlane.f32.xlu0 %v4239
        %v4241 = vpop.xlane.xlu0 %4240
        %v4242 = vmax.f32 %v4188, %v4189
        %4243 = vmax.xlane.f32.xlu0 %v4242
        %v4244 = vpop.xlane.xlu0 %4243
        %v4245 = vmax.f32 %v4190, %v4191
        %4246 = vmax.xlane.f32.xlu0 %v4245
        %v4247 = vpop.xlane.xlu0 %4246
        %v4248 = vmax.f32 %v4192, %v4193
        %4249 = vmax.xlane.f32.xlu0 %v4248
        %v4250 = vpop.xlane.xlu0 %4249
        %v4251 = vsel %vm1351, %v4219, %v4229
        %v4252 = vsel %vm1351, %v4220, %v4232
        %v4253 = vsel %vm1351, %v4221, %v4235
        %v4254 = vsel %vm1351, %v4222, %v4238
        %v4255 = vsel %vm1351, %v4223, %v4241
        %v4256 = vsel %vm1351, %v4224, %v4244
        %v4257 = vsel %vm1351, %v4225, %v4247
        %v4258 = vsel %vm1351, %v4226, %v4250
        %v4259 = vld [vmem:[#allocation5] sm:$0xf]
        %v4261 = vsel %vm2163, %v4259, 0
        %4263 = vmatprep.subr.mxu0 0.0
        %4264 = vmatpush1.msra.mxu0 %v4251
        %4265 = vmatprep.subr.mxu0 0.0
        %4266 = vmatpush1.msra.mxu0 %v4252
        %4267 = vmatprep.subr.mxu0 0.0
        %4268 = vmatpush1.msra.mxu0 %v4253
        %4269 = vmatprep.subr.mxu0 0.0
        %4270 = vmatpush1.msra.mxu0 %v4254
        %4271 = vmatprep.subr.mxu0 0.0
        %4272 = vmatpush1.msra.mxu0 %v4255
        %4273 = vmatprep.subr.mxu0 0.0
        %4274 = vmatpush1.msra.mxu0 %v4256
        %4275 = vmatprep.subr.mxu0 0.0
        %4276 = vmatpush1.msra.mxu0 %v4257
        %4277 = vmatprep.subr.mxu0 0.0
        %4278 = vmatpush1.msra.mxu0 %v4258
        %4279 = vmatprep.subr.mxu0 0.0
        %4280 = vmatpush1.msra.mxu0 0.0
        %4281 = vmatprep.subr.mxu0 0.0
        %4282 = vmatpush1.msra.mxu0 0.0
        %4283 = vmatprep.subr.mxu0 0.0
        %4284 = vmatpush1.msra.mxu0 0.0
        %4285 = vmatprep.subr.mxu0 0.0
        %4286 = vmatpush1.msra.mxu0 0.0
        %4287 = vmatprep.subr.mxu0 0.0
        %4288 = vmatpush1.msra.mxu0 0.0
        %4289 = vmatprep.subr.mxu0 0.0
        %4290 = vmatpush1.msra.mxu0 0.0
        %4291 = vmatprep.subr.mxu0 0.0
        %4292 = vmatpush1.msra.mxu0 0.0
        %4293 = vmatprep.subr.mxu0 0.0
        %4294 = vmatpush1.msra.mxu0 0.0
        %4295 = vmatprep.subr.mxu0 0.0
        %4296 = vmatpush1.msra.mxu0 0.0
        %4297 = vmatprep.subr.mxu0 0.0
        %4298 = vmatpush1.msra.mxu0 0.0
        %4299 = vmatprep.subr.mxu0 0.0
        %4300 = vmatpush1.msra.mxu0 0.0
        %4301 = vmatprep.subr.mxu0 0.0
        %4302 = vmatpush1.msra.mxu0 0.0
        %4303 = vmatprep.subr.mxu0 0.0
        %4304 = vmatpush1.msra.mxu0 0.0
        %4305 = vmatprep.subr.mxu0 0.0
        %4306 = vmatpush1.msra.mxu0 0.0
        %4307 = vmatprep.subr.mxu0 0.0
        %4308 = vmatpush1.msra.mxu0 0.0
        %4309 = vmatprep.subr.mxu0 0.0
        %4310 = vmatpush1.msra.mxu0 0.0
        %4311 = vmatprep.subr.mxu0 0.0
        %4312 = vmatpush1.msra.mxu0 0.0
        %4313 = vmatprep.subr.mxu0 0.0
        %4314 = vmatpush1.msra.mxu0 0.0
        %4315 = vmatprep.subr.mxu0 0.0
        %4316 = vmatpush1.msra.mxu0 0.0
        %4317 = vmatprep.subr.mxu0 0.0
        %4318 = vmatpush1.msra.mxu0 0.0
        %4319 = vmatprep.subr.mxu0 0.0
        %4320 = vmatpush1.msra.mxu0 0.0
        %4321 = vmatprep.subr.mxu0 0.0
        %4322 = vmatpush1.msra.mxu0 0.0
        %4323 = vmatprep.subr.mxu0 0.0
        %4324 = vmatpush1.msra.mxu0 0.0
        %4325 = vmatprep.subr.mxu0 0.0
        %4326 = vmatpush1.msra.mxu0 0.0
        %4327 = vmatprep.mubr.f32.mxu0 0.0
        %4328 = vmatmul.mubr.f32.gmra.mrb[0].mxu0 %v4261
        %v4329 = vpop.f32.mrb[0].mxu0
        %v4330 = vadd.f32 0.0, %v4329
        %v4331 = vpop.f32.mrb[0].mxu0
        %4332 = vdwg.mxu0
        %v4333 = vmax.f32 %v4330, 0.0
        %v4334 = vld [vmem:[%s17] sm:$0xff]
        %v4335 = vld [vmem:[%s17 + $0x8] sm:$0xff]
        %v4336 = vld [vmem:[%s17 + $0x10] sm:$0xff]
        %v4337 = vld [vmem:[%s17 + $0x18] sm:$0xff]
        %v4338 = vld [vmem:[%s17 + $0x20] sm:$0xff]
        %v4339 = vld [vmem:[%s17 + $0x28] sm:$0xff]
        %v4340 = vld [vmem:[%s17 + $0x30] sm:$0xff]
        %v4341 = vld [vmem:[%s17 + $0x38] sm:$0xff]
        %vm4342 = vcmask 31744
        %v4344 = vsel %vm4342, %v4334, 0
        %v4347 = vsel %vm4342, %v4335, 0
        %v4350 = vsel %vm4342, %v4336, 0
        %v4353 = vsel %vm4342, %v4337, 0
        %v4356 = vsel %vm4342, %v4338, 0
        %v4359 = vsel %vm4342, %v4339, 0
        %v4362 = vsel %vm4342, %v4340, 0
        %v4365 = vsel %vm4342, %v4341, 0
        %vm4367 = vcmask 1043456
        %v4369 = vsel %vm4367, %v4333, 0
        %4371 = vmatprep.subr.mxu0 0.0
        %4372 = vmatpush1.msra.mxu0 %v4369
        %4373 = vmatprep.subr.mxu0 0.0
        %4374 = vmatpush1.msra.mxu0 0.0
        %4375 = vmatprep.subr.mxu0 0.0
        %4376 = vmatpush1.msra.mxu0 0.0
        %4377 = vmatprep.subr.mxu0 0.0
        %4378 = vmatpush1.msra.mxu0 0.0
        %4379 = vmatprep.subr.mxu0 0.0
        %4380 = vmatpush1.msra.mxu0 0.0
        %4381 = vmatprep.subr.mxu0 0.0
        %4382 = vmatpush1.msra.mxu0 0.0
        %4383 = vmatprep.subr.mxu0 0.0
        %4384 = vmatpush1.msra.mxu0 0.0
        %4385 = vmatprep.subr.mxu0 0.0
        %4386 = vmatpush1.msra.mxu0 0.0
        %4387 = vmatprep.subr.mxu0 0.0
        %4388 = vmatpush1.msra.mxu0 0.0
        %4389 = vmatprep.subr.mxu0 0.0
        %4390 = vmatpush1.msra.mxu0 0.0
        %4391 = vmatprep.subr.mxu0 0.0
        %4392 = vmatpush1.msra.mxu0 0.0
        %4393 = vmatprep.subr.mxu0 0.0
        %4394 = vmatpush1.msra.mxu0 0.0
        %4395 = vmatprep.subr.mxu0 0.0
        %4396 = vmatpush1.msra.mxu0 0.0
        %4397 = vmatprep.subr.mxu0 0.0
        %4398 = vmatpush1.msra.mxu0 0.0
        %4399 = vmatprep.subr.mxu0 0.0
        %4400 = vmatpush1.msra.mxu0 0.0
        %4401 = vmatprep.subr.mxu0 0.0
        %4402 = vmatpush1.msra.mxu0 0.0
        %4403 = vmatprep.subr.mxu0 0.0
        %4404 = vmatpush1.msra.mxu0 0.0
        %4405 = vmatprep.subr.mxu0 0.0
        %4406 = vmatpush1.msra.mxu0 0.0
        %4407 = vmatprep.subr.mxu0 0.0
        %4408 = vmatpush1.msra.mxu0 0.0
        %4409 = vmatprep.subr.mxu0 0.0
        %4410 = vmatpush1.msra.mxu0 0.0
        %4411 = vmatprep.subr.mxu0 0.0
        %4412 = vmatpush1.msra.mxu0 0.0
        %4413 = vmatprep.subr.mxu0 0.0
        %4414 = vmatpush1.msra.mxu0 0.0
        %4415 = vmatprep.subr.mxu0 0.0
        %4416 = vmatpush1.msra.mxu0 0.0
        %4417 = vmatprep.subr.mxu0 0.0
        %4418 = vmatpush1.msra.mxu0 0.0
        %4419 = vmatprep.subr.mxu0 0.0
        %4420 = vmatpush1.msra.mxu0 0.0
        %4421 = vmatprep.subr.mxu0 0.0
        %4422 = vmatpush1.msra.mxu0 0.0
        %4423 = vmatprep.subr.mxu0 0.0
        %4424 = vmatpush1.msra.mxu0 0.0
        %4425 = vmatprep.subr.mxu0 0.0
        %4426 = vmatpush1.msra.mxu0 0.0
        %4427 = vmatprep.subr.mxu0 0.0
        %4428 = vmatpush1.msra.mxu0 0.0
        %4429 = vmatprep.subr.mxu0 0.0
        %4430 = vmatpush1.msra.mxu0 0.0
        %4431 = vmatprep.subr.mxu0 0.0
        %4432 = vmatpush1.msra.mxu0 0.0
        %4433 = vmatprep.subr.mxu0 0.0
        %4434 = vmatpush1.msra.mxu0 0.0
        %4435 = vmatprep.mubr.f32.mxu0 0.0
        %4436 = vmatmul.mubr.f32.gmra.mrb[0].mxu0 %v4344
        %v4437 = vpop.f32.mrb[0].mxu0
        %v4438 = vadd.f32 0.0, %v4437
        %v4439 = vpop.f32.mrb[0].mxu0
        %4440 = vmatprep.mubr.f32.mxu0 0.0
        %4441 = vmatmul.mubr.f32.gmra.mrb[0].mxu0 %v4347
        %v4442 = vpop.f32.mrb[0].mxu0
        %v4443 = vadd.f32 0.0, %v4442
        %v4444 = vpop.f32.mrb[0].mxu0
        %4445 = vmatprep.mubr.f32.mxu0 0.0
        %4446 = vmatmul.mubr.f32.gmra.mrb[0].mxu0 %v4350
        %v4447 = vpop.f32.mrb[0].mxu0
        %v4448 = vadd.f32 0.0, %v4447
        %v4449 = vpop.f32.mrb[0].mxu0
        %4450 = vmatprep.mubr.f32.mxu0 0.0
        %4451 = vmatmul.mubr.f32.gmra.mrb[0].mxu0 %v4353
        %v4452 = vpop.f32.mrb[0].mxu0
        %v4453 = vadd.f32 0.0, %v4452
        %v4454 = vpop.f32.mrb[0].mxu0
        %4455 = vmatprep.mubr.f32.mxu0 0.0
        %4456 = vmatmul.mubr.f32.gmra.mrb[0].mxu0 %v4356
        %v4457 = vpop.f32.mrb[0].mxu0
        %v4458 = vadd.f32 0.0, %v4457
        %v4459 = vpop.f32.mrb[0].mxu0
        %4460 = vmatprep.mubr.f32.mxu0 0.0
        %4461 = vmatmul.mubr.f32.gmra.mrb[0].mxu0 %v4359
        %v4462 = vpop.f32.mrb[0].mxu0
        %v4463 = vadd.f32 0.0, %v4462
        %v4464 = vpop.f32.mrb[0].mxu0
        %4465 = vmatprep.mubr.f32.mxu0 0.0
        %4466 = vmatmul.mubr.f32.gmra.mrb[0].mxu0 %v4362
        %v4467 = vpop.f32.mrb[0].mxu0
        %v4468 = vadd.f32 0.0, %v4467
        %v4469 = vpop.f32.mrb[0].mxu0
        %4470 = vmatprep.mubr.f32.mxu0 0.0
        %4471 = vmatmul.mubr.f32.gmra.mrb[0].mxu0 %v4365
        %v4472 = vpop.f32.mrb[0].mxu0
        %v4473 = vadd.f32 0.0, %v4472
        %v4474 = vpop.f32.mrb[0].mxu0
        %4475 = vdwg.mxu0
        %4484 = vrot.lane.b32.xlu0 %v4438, 127
        %v4485 = vpop.permute.xlu0 %4484
        %4486 = vrot.lane.b32.xlu0 %v4443, 127
        %v4487 = vpop.permute.xlu0 %4486
        %4488 = vrot.lane.b32.xlu0 %v4448, 127
        %v4489 = vpop.permute.xlu0 %4488
        %4490 = vrot.lane.b32.xlu0 %v4453, 127
        %v4491 = vpop.permute.xlu0 %4490
        %4492 = vrot.lane.b32.xlu0 %v4458, 127
        %v4493 = vpop.permute.xlu0 %4492
        %4494 = vrot.lane.b32.xlu0 %v4463, 127
        %v4495 = vpop.permute.xlu0 %4494
        %4496 = vrot.lane.b32.xlu0 %v4468, 127
        %v4497 = vpop.permute.xlu0 %4496
        %4498 = vrot.lane.b32.xlu0 %v4473, 127
        %v4499 = vpop.permute.xlu0 %4498
        %v4508 = vadd.f32 %v4438, %v4485
        %v4509 = vadd.f32 %v4443, %v4487
        %v4510 = vadd.f32 %v4448, %v4489
        %v4511 = vadd.f32 %v4453, %v4491
        %v4512 = vadd.f32 %v4458, %v4493
        %v4513 = vadd.f32 %v4463, %v4495
        %v4514 = vadd.f32 %v4468, %v4497
        %v4515 = vadd.f32 %v4473, %v4499
        %v4516 = vxor.u32 %v4508, 2147483648
        %v4517 = vxor.u32 %v4509, 2147483648
        %v4518 = vxor.u32 %v4510, 2147483648
        %v4519 = vxor.u32 %v4511, 2147483648
        %v4520 = vxor.u32 %v4512, 2147483648
        %v4521 = vxor.u32 %v4513, 2147483648
        %v4522 = vxor.u32 %v4514, 2147483648
        %v4523 = vxor.u32 %v4515, 2147483648
        %v4524 = vmul.f32 %v4516, 1.442695
        %v4525 = vpow.pop %v4524
        %v4526 = vmul.f32 %v4517, 1.442695
        %v4527 = vpow.pop %v4526
        %v4528 = vmul.f32 %v4518, 1.442695
        %v4529 = vpow.pop %v4528
        %v4530 = vmul.f32 %v4519, 1.442695
        %v4531 = vpow.pop %v4530
        %v4532 = vmul.f32 %v4520, 1.442695
        %v4533 = vpow.pop %v4532
        %v4534 = vmul.f32 %v4521, 1.442695
        %v4535 = vpow.pop %v4534
        %v4536 = vmul.f32 %v4522, 1.442695
        %v4537 = vpow.pop %v4536
        %v4538 = vmul.f32 %v4523, 1.442695
        %v4539 = vpow.pop %v4538
        %v4540 = vadd.f32 %v4525, 1.0
        %v4541 = vadd.f32 %v4527, 1.0
        %v4542 = vadd.f32 %v4529, 1.0
        %v4543 = vadd.f32 %v4531, 1.0
        %v4544 = vadd.f32 %v4533, 1.0
        %v4545 = vadd.f32 %v4535, 1.0
        %v4546 = vadd.f32 %v4537, 1.0
        %v4547 = vadd.f32 %v4539, 1.0
        %v4548 = vrcp.pop %v4540
        %v4549 = vmul.f32 1.0, %v4548
        %v4550 = vrcp.pop %v4541
        %v4551 = vmul.f32 1.0, %v4550
        %v4552 = vrcp.pop %v4542
        %v4553 = vmul.f32 1.0, %v4552
        %v4554 = vrcp.pop %v4543
        %v4555 = vmul.f32 1.0, %v4554
        %v4556 = vrcp.pop %v4544
        %v4557 = vmul.f32 1.0, %v4556
        %v4558 = vrcp.pop %v4545
        %v4559 = vmul.f32 1.0, %v4558
        %v4560 = vrcp.pop %v4546
        %v4561 = vmul.f32 1.0, %v4560
        %v4562 = vrcp.pop %v4547
        %v4563 = vmul.f32 1.0, %v4562
        %4565 = vset.pattern.permute.xlu0 0
        %4566 = vperm.xlu0 %4565, %v4549
        %v4567 = vpop.permute.xlu0 %4566
        %4570 = vset.pattern.permute.xlu0 0
        %4571 = vperm.xlu0 %4570, %v4551
        %v4572 = vpop.permute.xlu0 %4571
        %4575 = vset.pattern.permute.xlu0 0
        %4576 = vperm.xlu0 %4575, %v4553
        %v4577 = vpop.permute.xlu0 %4576
        %4580 = vset.pattern.permute.xlu0 0
        %4581 = vperm.xlu0 %4580, %v4555
        %v4582 = vpop.permute.xlu0 %4581
        %4585 = vset.pattern.permute.xlu0 0
        %4586 = vperm.xlu0 %4585, %v4557
        %v4587 = vpop.permute.xlu0 %4586
        %4590 = vset.pattern.permute.xlu0 0
        %4591 = vperm.xlu0 %4590, %v4559
        %v4592 = vpop.permute.xlu0 %4591
        %4595 = vset.pattern.permute.xlu0 0
        %4596 = vperm.xlu0 %4595, %v4561
        %v4597 = vpop.permute.xlu0 %4596
        %4600 = vset.pattern.permute.xlu0 0
        %4601 = vperm.xlu0 %4600, %v4563
        %v4602 = vpop.permute.xlu0 %4601
        %v4604 = vmul.f32 %v4178, %v4567
        %v4605 = vmul.f32 %v4179, %v4567
        %v4606 = vmul.f32 %v4180, %v4572
        %v4607 = vmul.f32 %v4181, %v4572
        %v4608 = vmul.f32 %v4182, %v4577
        %v4609 = vmul.f32 %v4183, %v4577
        %v4610 = vmul.f32 %v4184, %v4582
        %v4611 = vmul.f32 %v4185, %v4582
        %v4612 = vmul.f32 %v4186, %v4587
        %v4613 = vmul.f32 %v4187, %v4587
        %v4614 = vmul.f32 %v4188, %v4592
        %v4615 = vmul.f32 %v4189, %v4592
        %v4616 = vmul.f32 %v4190, %v4597
        %v4617 = vmul.f32 %v4191, %v4597
        %v4618 = vmul.f32 %v4192, %v4602
        %v4619 = vmul.f32 %v4193, %v4602
        %v4620 = vadd.f32 %v4604, %v4606
        %v4621 = vadd.f32 %v4620, %v4608
        %v4622 = vadd.f32 %v4621, %v4610
        %v4623 = vadd.f32 %v4622, %v4612
        %v4624 = vadd.f32 %v4623, %v4614
        %v4625 = vadd.f32 %v4624, %v4616
        %v4626 = vadd.f32 %v4625, %v4618
        %v4627 = vrot.slane %v4626, 4
        %v4628 = vadd.f32 %v4626, %v4627
        %v4629 = vrot.slane %v4628, 2
        %v4630 = vadd.f32 %v4628, %v4629
        %v4631 = vrot.slane %v4630, 1
        %v4632 = vadd.f32 %v4630, %v4631
        %v4633 = vadd.f32 %v4605, %v4607
        %v4634 = vadd.f32 %v4633, %v4609
        %v4635 = vadd.f32 %v4634, %v4611
        %v4636 = vadd.f32 %v4635, %v4613
        %v4637 = vadd.f32 %v4636, %v4615
        %v4638 = vadd.f32 %v4637, %v4617
        %v4639 = vadd.f32 %v4638, %v4619
        %v4640 = vrot.slane %v4639, 4
        %v4641 = vadd.f32 %v4639, %v4640
        %v4642 = vrot.slane %v4641, 2
        %v4643 = vadd.f32 %v4641, %v4642
        %v4644 = vrot.slane %v4643, 1
        %v4645 = vadd.f32 %v4643, %v4644
        %v4646 = vrcp.pop 64.0
        %v4647 = vmul.f32 %v4632, %v4646
        %v4648 = vmul.f32 %v4645, %v4646
        %v4649 = vmax.f32 %v4604, %v4608
        %v4650 = vmax.f32 %v4606, %v4610
        %v4651 = vmax.f32 %v4649, %v4612
        %v4652 = vmax.f32 %v4650, %v4614
        %v4653 = vmax.f32 %v4651, %v4616
        %v4654 = vmax.f32 %v4652, %v4618
        %v4655 = vmax.f32 %v4653, %v4654
        %v4656 = vrot.slane %v4655, 4
        %v4657 = vmax.f32 %v4655, %v4656
        %v4658 = vrot.slane %v4657, 2
        %v4659 = vmax.f32 %v4657, %v4658
        %v4660 = vrot.slane %v4659, 1
        %v4661 = vmax.f32 %v4659, %v4660
        %v4662 = vmax.f32 %v4605, %v4609
        %v4663 = vmax.f32 %v4607, %v4611
        %v4664 = vmax.f32 %v4662, %v4613
        %v4665 = vmax.f32 %v4663, %v4615
        %v4666 = vmax.f32 %v4664, %v4617
        %v4667 = vmax.f32 %v4665, %v4619
        %v4668 = vmax.f32 %v4666, %v4667
        %v4669 = vrot.slane %v4668, 4
        %v4670 = vmax.f32 %v4668, %v4669
        %v4671 = vrot.slane %v4670, 2
        %v4672 = vmax.f32 %v4670, %v4671
        %v4673 = vrot.slane %v4672, 1
        %v4674 = vmax.f32 %v4672, %v4673
        %vm4675 = vcmask 1040384
        %v4676 = vsel %vm4675, %v4647, %v4661
        %v4677 = vsel %vm4675, %v4648, %v4674
        %v4678 = vld [vmem:[#allocation7] sm:$0x1]
        %4680 = vrot.lane.b32.xlu0 %v4677, 51
        %v4681 = vpop.permute.xlu0 %4680
        %4684 = vrot.lane.b32.xlu0 %v4676, 51
        %v4685 = vpop.permute.xlu0 %4684
        %vm4686 = vcmask 416768
        %v4687 = vsel %vm4686, %v4685, %v4681
        %v4690 = vsel %vm4686, %v4681, %v4685
        %v4691 = vlaneseq
        %v4692 = vshrl.u32 %v4691, 7
        %v4693 = vsub.s32 0, %v4692
        %v4694 = vrot.slane %v727, %v4693
        %v4695 = vlaneseq
        %v4696 = vshrl.u32 %v4695, 7
        %v4697 = vsub.s32 0, %v4696
        %v4698 = vrot.slane %v728, %v4697
        %v4699 = vmul.f32 %v4690, %v4694
        %v4700 = vmul.f32 %v4687, %v4698
        %4701 = vrot.lane.b32.xlu0 %v4677, 50
        %v4702 = vpop.permute.xlu0 %4701
        %4704 = vrot.lane.b32.xlu0 %v4676, 50
        %v4705 = vpop.permute.xlu0 %4704
        %vm4706 = vcmask 408576
        %v4707 = vsel %vm4706, %v4705, %v4702
        %v4710 = vsel %vm4706, %v4702, %v4705
        %v4711 = vlaneseq
        %v4712 = vshrl.u32 %v4711, 7
        %v4713 = vsub.s32 1, %v4712
        %v4714 = vrot.slane %v727, %v4713
        %v4715 = vlaneseq
        %v4716 = vshrl.u32 %v4715, 7
        %v4717 = vsub.s32 1, %v4716
        %v4718 = vrot.slane %v728, %v4717
        %v4719 = vmul.f32 %v4710, %v4714
        %v4720 = vmul.f32 %v4707, %v4718
        %4721 = vrot.lane.b32.xlu0 %v4677, 49
        %v4722 = vpop.permute.xlu0 %4721
        %4724 = vrot.lane.b32.xlu0 %v4676, 49
        %v4725 = vpop.permute.xlu0 %4724
        %vm4726 = vcmask 400384
        %v4727 = vsel %vm4726, %v4725, %v4722
        %v4730 = vsel %vm4726, %v4722, %v4725
        %v4731 = vlaneseq
        %v4732 = vshrl.u32 %v4731, 7
        %v4733 = vsub.s32 2, %v4732
        %v4734 = vrot.slane %v727, %v4733
        %v4735 = vlaneseq
        %v4736 = vshrl.u32 %v4735, 7
        %v4737 = vsub.s32 2, %v4736
        %v4738 = vrot.slane %v728, %v4737
        %v4739 = vmul.f32 %v4730, %v4734
        %v4740 = vmul.f32 %v4727, %v4738
        %4741 = vrot.lane.b32.xlu0 %v4677, 48
        %v4742 = vpop.permute.xlu0 %4741
        %4744 = vrot.lane.b32.xlu0 %v4676, 48
        %v4745 = vpop.permute.xlu0 %4744
        %vm4746 = vcmask 392192
        %v4747 = vsel %vm4746, %v4745, %v4742
        %v4750 = vsel %vm4746, %v4742, %v4745
        %v4751 = vlaneseq
        %v4752 = vshrl.u32 %v4751, 7
        %v4753 = vsub.s32 3, %v4752
        %v4754 = vrot.slane %v727, %v4753
        %v4755 = vlaneseq
        %v4756 = vshrl.u32 %v4755, 7
        %v4757 = vsub.s32 3, %v4756
        %v4758 = vrot.slane %v728, %v4757
        %v4759 = vmul.f32 %v4750, %v4754
        %v4760 = vmul.f32 %v4747, %v4758
        %4761 = vrot.lane.b32.xlu0 %v4677, 47
        %v4762 = vpop.permute.xlu0 %4761
        %4764 = vrot.lane.b32.xlu0 %v4676, 47
        %v4765 = vpop.permute.xlu0 %4764
        %vm4766 = vcmask 384000
        %v4767 = vsel %vm4766, %v4765, %v4762
        %v4770 = vsel %vm4766, %v4762, %v4765
        %v4771 = vlaneseq
        %v4772 = vshrl.u32 %v4771, 7
        %v4773 = vsub.s32 4, %v4772
        %v4774 = vrot.slane %v727, %v4773
        %v4775 = vlaneseq
        %v4776 = vshrl.u32 %v4775, 7
        %v4777 = vsub.s32 4, %v4776
        %v4778 = vrot.slane %v728, %v4777
        %v4779 = vmul.f32 %v4770, %v4774
        %v4780 = vmul.f32 %v4767, %v4778
        %4781 = vrot.lane.b32.xlu0 %v4677, 46
        %v4782 = vpop.permute.xlu0 %4781
        %4784 = vrot.lane.b32.xlu0 %v4676, 46
        %v4785 = vpop.permute.xlu0 %4784
        %vm4786 = vcmask 375808
        %v4787 = vsel %vm4786, %v4785, %v4782
        %v4790 = vsel %vm4786, %v4782, %v4785
        %v4791 = vlaneseq
        %v4792 = vshrl.u32 %v4791, 7
        %v4793 = vsub.s32 5, %v4792
        %v4794 = vrot.slane %v727, %v4793
        %v4795 = vlaneseq
        %v4796 = vshrl.u32 %v4795, 7
        %v4797 = vsub.s32 5, %v4796
        %v4798 = vrot.slane %v728, %v4797
        %v4799 = vmul.f32 %v4790, %v4794
        %v4800 = vmul.f32 %v4787, %v4798
        %4801 = vrot.lane.b32.xlu0 %v4677, 45
        %v4802 = vpop.permute.xlu0 %4801
        %4804 = vrot.lane.b32.xlu0 %v4676, 45
        %v4805 = vpop.permute.xlu0 %4804
        %vm4806 = vcmask 367616
        %v4807 = vsel %vm4806, %v4805, %v4802
        %v4810 = vsel %vm4806, %v4802, %v4805
        %v4811 = vlaneseq
        %v4812 = vshrl.u32 %v4811, 7
        %v4813 = vsub.s32 6, %v4812
        %v4814 = vrot.slane %v727, %v4813
        %v4815 = vlaneseq
        %v4816 = vshrl.u32 %v4815, 7
        %v4817 = vsub.s32 6, %v4816
        %v4818 = vrot.slane %v728, %v4817
        %v4819 = vmul.f32 %v4810, %v4814
        %v4820 = vmul.f32 %v4807, %v4818
        %4821 = vrot.lane.b32.xlu0 %v4677, 35
        %v4822 = vpop.permute.xlu0 %4821
        %4824 = vrot.lane.b32.xlu0 %v4676, 35
        %v4825 = vpop.permute.xlu0 %4824
        %vm4826 = vcmask 285696
        %v4827 = vsel %vm4826, %v4825, %v4822
        %v4830 = vsel %vm4826, %v4822, %v4825
        %v4831 = vlaneseq
        %v4832 = vshrl.u32 %v4831, 7
        %v4833 = vsub.s32 7, %v4832
        %v4834 = vrot.slane %v727, %v4833
        %v4835 = vlaneseq
        %v4836 = vshrl.u32 %v4835, 7
        %v4837 = vsub.s32 7, %v4836
        %v4838 = vrot.slane %v728, %v4837
        %v4839 = vmul.f32 %v4830, %v4834
        %v4840 = vmul.f32 %v4827, %v4838
        %4841 = vrot.lane.b32.xlu0 %v4677, 34
        %v4842 = vpop.permute.xlu0 %4841
        %4844 = vrot.lane.b32.xlu0 %v4676, 34
        %v4845 = vpop.permute.xlu0 %4844
        %vm4846 = vcmask 277504
        %v4847 = vsel %vm4846, %v4845, %v4842
        %v4850 = vsel %vm4846, %v4842, %v4845
        %v4851 = vlaneseq
        %v4852 = vshrl.u32 %v4851, 7
        %v4853 = vsub.s32 0, %v4852
        %v4854 = vrot.slane %v729, %v4853
        %v4855 = vlaneseq
        %v4856 = vshrl.u32 %v4855, 7
        %v4857 = vsub.s32 0, %v4856
        %v4858 = vrot.slane %v730, %v4857
        %v4859 = vmul.f32 %v4850, %v4854
        %v4860 = vmul.f32 %v4847, %v4858
        %4861 = vrot.lane.b32.xlu0 %v4677, 33
        %v4862 = vpop.permute.xlu0 %4861
        %4864 = vrot.lane.b32.xlu0 %v4676, 33
        %v4865 = vpop.permute.xlu0 %4864
        %vm4866 = vcmask 269312
        %v4867 = vsel %vm4866, %v4865, %v4862
        %v4870 = vsel %vm4866, %v4862, %v4865
        %v4871 = vlaneseq
        %v4872 = vshrl.u32 %v4871, 7
        %v4873 = vsub.s32 1, %v4872
        %v4874 = vrot.slane %v729, %v4873
        %v4875 = vlaneseq
        %v4876 = vshrl.u32 %v4875, 7
        %v4877 = vsub.s32 1, %v4876
        %v4878 = vrot.slane %v730, %v4877
        %v4879 = vmul.f32 %v4870, %v4874
        %v4880 = vmul.f32 %v4867, %v4878
        %4881 = vrot.lane.b32.xlu0 %v4677, 32
        %v4882 = vpop.permute.xlu0 %4881
        %4884 = vrot.lane.b32.xlu0 %v4676, 32
        %v4885 = vpop.permute.xlu0 %4884
        %v4886 = vsel %vm765, %v4885, %v4882
        %v4889 = vsel %vm765, %v4882, %v4885
        %v4890 = vlaneseq
        %v4891 = vshrl.u32 %v4890, 7
        %v4892 = vsub.s32 2, %v4891
        %v4893 = vrot.slane %v729, %v4892
        %v4894 = vlaneseq
        %v4895 = vshrl.u32 %v4894, 7
        %v4896 = vsub.s32 2, %v4895
        %v4897 = vrot.slane %v730, %v4896
        %v4898 = vmul.f32 %v4889, %v4893
        %v4899 = vmul.f32 %v4886, %v4897
        %4900 = vrot.lane.b32.xlu0 %v4677, 31
        %v4901 = vpop.permute.xlu0 %4900
        %4903 = vrot.lane.b32.xlu0 %v4676, 31
        %v4904 = vpop.permute.xlu0 %4903
        %vm4905 = vcmask 252928
        %v4906 = vsel %vm4905, %v4904, %v4901
        %v4909 = vsel %vm4905, %v4901, %v4904
        %v4910 = vlaneseq
        %v4911 = vshrl.u32 %v4910, 7
        %v4912 = vsub.s32 3, %v4911
        %v4913 = vrot.slane %v729, %v4912
        %v4914 = vlaneseq
        %v4915 = vshrl.u32 %v4914, 7
        %v4916 = vsub.s32 3, %v4915
        %v4917 = vrot.slane %v730, %v4916
        %v4918 = vmul.f32 %v4909, %v4913
        %v4919 = vmul.f32 %v4906, %v4917
        %4920 = vrot.lane.b32.xlu0 %v4677, 30
        %v4921 = vpop.permute.xlu0 %4920
        %4923 = vrot.lane.b32.xlu0 %v4676, 30
        %v4924 = vpop.permute.xlu0 %4923
        %vm4925 = vcmask 244736
        %v4926 = vsel %vm4925, %v4924, %v4921
        %v4929 = vsel %vm4925, %v4921, %v4924
        %v4930 = vlaneseq
        %v4931 = vshrl.u32 %v4930, 7
        %v4932 = vsub.s32 4, %v4931
        %v4933 = vrot.slane %v729, %v4932
        %v4934 = vlaneseq
        %v4935 = vshrl.u32 %v4934, 7
        %v4936 = vsub.s32 4, %v4935
        %v4937 = vrot.slane %v730, %v4936
        %v4938 = vmul.f32 %v4929, %v4933
        %v4939 = vmul.f32 %v4926, %v4937
        %4940 = vrot.lane.b32.xlu0 %v4677, 29
        %v4941 = vpop.permute.xlu0 %4940
        %4943 = vrot.lane.b32.xlu0 %v4676, 29
        %v4944 = vpop.permute.xlu0 %4943
        %vm4945 = vcmask 236544
        %v4946 = vsel %vm4945, %v4944, %v4941
        %v4949 = vsel %vm4945, %v4941, %v4944
        %v4950 = vlaneseq
        %v4951 = vshrl.u32 %v4950, 7
        %v4952 = vsub.s32 5, %v4951
        %v4953 = vrot.slane %v729, %v4952
        %v4954 = vlaneseq
        %v4955 = vshrl.u32 %v4954, 7
        %v4956 = vsub.s32 5, %v4955
        %v4957 = vrot.slane %v730, %v4956
        %v4958 = vmul.f32 %v4949, %v4953
        %v4959 = vmul.f32 %v4946, %v4957
        %4960 = vrot.lane.b32.xlu0 %v4677, 19
        %v4961 = vpop.permute.xlu0 %4960
        %4963 = vrot.lane.b32.xlu0 %v4676, 19
        %v4964 = vpop.permute.xlu0 %4963
        %vm4965 = vcmask 154624
        %v4966 = vsel %vm4965, %v4964, %v4961
        %v4969 = vsel %vm4965, %v4961, %v4964
        %v4970 = vlaneseq
        %v4971 = vshrl.u32 %v4970, 7
        %v4972 = vsub.s32 6, %v4971
        %v4973 = vrot.slane %v729, %v4972
        %v4974 = vlaneseq
        %v4975 = vshrl.u32 %v4974, 7
        %v4976 = vsub.s32 6, %v4975
        %v4977 = vrot.slane %v730, %v4976
        %v4978 = vmul.f32 %v4969, %v4973
        %v4979 = vmul.f32 %v4966, %v4977
        %4980 = vrot.lane.b32.xlu0 %v4677, 18
        %v4981 = vpop.permute.xlu0 %4980
        %4983 = vrot.lane.b32.xlu0 %v4676, 18
        %v4984 = vpop.permute.xlu0 %4983
        %vm4985 = vcmask 146432
        %v4986 = vsel %vm4985, %v4984, %v4981
        %v4989 = vsel %vm4985, %v4981, %v4984
        %v4990 = vlaneseq
        %v4991 = vshrl.u32 %v4990, 7
        %v4992 = vsub.s32 7, %v4991
        %v4993 = vrot.slane %v729, %v4992
        %v4994 = vlaneseq
        %v4995 = vshrl.u32 %v4994, 7
        %v4996 = vsub.s32 7, %v4995
        %v4997 = vrot.slane %v730, %v4996
        %v4998 = vmul.f32 %v4989, %v4993
        %v4999 = vmul.f32 %v4986, %v4997
        %5000 = vrot.lane.b32.xlu0 %v4677, 17
        %v5001 = vpop.permute.xlu0 %5000
        %5003 = vrot.lane.b32.xlu0 %v4676, 17
        %v5004 = vpop.permute.xlu0 %5003
        %v5005 = vsel %vm1192, %v5004, %v5001
        %v5008 = vsel %vm1192, %v5001, %v5004
        %v5009 = vlaneseq
        %v5010 = vshrl.u32 %v5009, 7
        %v5011 = vsub.s32 0, %v5010
        %v5012 = vrot.slane %v731, %v5011
        %v5013 = vlaneseq
        %v5014 = vshrl.u32 %v5013, 7
        %v5015 = vsub.s32 0, %v5014
        %v5016 = vrot.slane %v732, %v5015
        %v5017 = vmul.f32 %v5008, %v5012
        %v5018 = vmul.f32 %v5005, %v5016
        %5019 = vrot.lane.b32.xlu0 %v4677, 16
        %v5020 = vpop.permute.xlu0 %5019
        %5022 = vrot.lane.b32.xlu0 %v4676, 16
        %v5023 = vpop.permute.xlu0 %5022
        %v5024 = vsel %vm1245, %v5023, %v5020
        %v5027 = vsel %vm1245, %v5020, %v5023
        %v5028 = vlaneseq
        %v5029 = vshrl.u32 %v5028, 7
        %v5030 = vsub.s32 1, %v5029
        %v5031 = vrot.slane %v731, %v5030
        %v5032 = vlaneseq
        %v5033 = vshrl.u32 %v5032, 7
        %v5034 = vsub.s32 1, %v5033
        %v5035 = vrot.slane %v732, %v5034
        %v5036 = vmul.f32 %v5027, %v5031
        %v5037 = vmul.f32 %v5024, %v5035
        %5038 = vrot.lane.b32.xlu0 %v4677, 15
        %v5039 = vpop.permute.xlu0 %5038
        %5041 = vrot.lane.b32.xlu0 %v4676, 15
        %v5042 = vpop.permute.xlu0 %5041
        %v5043 = vsel %vm1298, %v5042, %v5039
        %v5046 = vsel %vm1298, %v5039, %v5042
        %v5047 = vlaneseq
        %v5048 = vshrl.u32 %v5047, 7
        %v5049 = vsub.s32 2, %v5048
        %v5050 = vrot.slane %v731, %v5049
        %v5051 = vlaneseq
        %v5052 = vshrl.u32 %v5051, 7
        %v5053 = vsub.s32 2, %v5052
        %v5054 = vrot.slane %v732, %v5053
        %v5055 = vmul.f32 %v5046, %v5050
        %v5056 = vmul.f32 %v5043, %v5054
        %5057 = vrot.lane.b32.xlu0 %v4677, 14
        %v5058 = vpop.permute.xlu0 %5057
        %5060 = vrot.lane.b32.xlu0 %v4676, 14
        %v5061 = vpop.permute.xlu0 %5060
        %vm5062 = vcmask 113664
        %v5063 = vsel %vm5062, %v5061, %v5058
        %v5066 = vsel %vm5062, %v5058, %v5061
        %v5067 = vlaneseq
        %v5068 = vshrl.u32 %v5067, 7
        %v5069 = vsub.s32 3, %v5068
        %v5070 = vrot.slane %v731, %v5069
        %v5071 = vlaneseq
        %v5072 = vshrl.u32 %v5071, 7
        %v5073 = vsub.s32 3, %v5072
        %v5074 = vrot.slane %v732, %v5073
        %v5075 = vmul.f32 %v5066, %v5070
        %v5076 = vmul.f32 %v5063, %v5074
        %5077 = vrot.lane.b32.xlu0 %v4677, 13
        %v5078 = vpop.permute.xlu0 %5077
        %5080 = vrot.lane.b32.xlu0 %v4676, 13
        %v5081 = vpop.permute.xlu0 %5080
        %vm5082 = vcmask 105472
        %v5083 = vsel %vm5082, %v5081, %v5078
        %v5086 = vsel %vm5082, %v5078, %v5081
        %v5087 = vlaneseq
        %v5088 = vshrl.u32 %v5087, 7
        %v5089 = vsub.s32 4, %v5088
        %v5090 = vrot.slane %v731, %v5089
        %v5091 = vlaneseq
        %v5092 = vshrl.u32 %v5091, 7
        %v5093 = vsub.s32 4, %v5092
        %v5094 = vrot.slane %v732, %v5093
        %v5095 = vmul.f32 %v5086, %v5090
        %v5096 = vmul.f32 %v5083, %v5094
        %5097 = vrot.lane.b32.xlu0 %v4677, 3
        %v5098 = vpop.permute.xlu0 %5097
        %5100 = vrot.lane.b32.xlu0 %v4676, 3
        %v5101 = vpop.permute.xlu0 %5100
        %vm5102 = vcmask 23552
        %v5103 = vsel %vm5102, %v5101, %v5098
        %v5106 = vsel %vm5102, %v5098, %v5101
        %v5107 = vlaneseq
        %v5108 = vshrl.u32 %v5107, 7
        %v5109 = vsub.s32 5, %v5108
        %v5110 = vrot.slane %v731, %v5109
        %v5111 = vlaneseq
        %v5112 = vshrl.u32 %v5111, 7
        %v5113 = vsub.s32 5, %v5112
        %v5114 = vrot.slane %v732, %v5113
        %v5115 = vmul.f32 %v5106, %v5110
        %v5116 = vmul.f32 %v5103, %v5114
        %5117 = vrot.lane.b32.xlu0 %v4677, 2
        %v5118 = vpop.permute.xlu0 %5117
        %5120 = vrot.lane.b32.xlu0 %v4676, 2
        %v5121 = vpop.permute.xlu0 %5120
        %vm5122 = vcmask 15360
        %v5123 = vsel %vm5122, %v5121, %v5118
        %v5126 = vsel %vm5122, %v5118, %v5121
        %v5127 = vlaneseq
        %v5128 = vshrl.u32 %v5127, 7
        %v5129 = vsub.s32 6, %v5128
        %v5130 = vrot.slane %v731, %v5129
        %v5131 = vlaneseq
        %v5132 = vshrl.u32 %v5131, 7
        %v5133 = vsub.s32 6, %v5132
        %v5134 = vrot.slane %v732, %v5133
        %v5135 = vmul.f32 %v5126, %v5130
        %v5136 = vmul.f32 %v5123, %v5134
        %5137 = vrot.lane.b32.xlu0 %v4677, 1
        %v5138 = vpop.permute.xlu0 %5137
        %5140 = vrot.lane.b32.xlu0 %v4676, 1
        %v5141 = vpop.permute.xlu0 %5140
        %v5142 = vsel %vm1351, %v5141, %v5138
        %v5145 = vsel %vm1351, %v5138, %v5141
        %v5146 = vlaneseq
        %v5147 = vshrl.u32 %v5146, 7
        %v5148 = vsub.s32 7, %v5147
        %v5149 = vrot.slane %v731, %v5148
        %v5150 = vlaneseq
        %v5151 = vshrl.u32 %v5150, 7
        %v5152 = vsub.s32 7, %v5151
        %v5153 = vrot.slane %v732, %v5152
        %v5154 = vmul.f32 %v5145, %v5149
        %v5155 = vmul.f32 %v5142, %v5153
        %v5156 = vlaneseq
        %v5157 = vshrl.u32 %v5156, 7
        %v5158 = vsub.s32 0, %v5157
        %v5159 = vrot.slane %v733, %v5158
        %v5160 = vlaneseq
        %v5161 = vshrl.u32 %v5160, 7
        %v5162 = vsub.s32 0, %v5161
        %v5163 = vrot.slane %v734, %v5162
        %v5164 = vmul.f32 %v4676, %v5159
        %v5165 = vmul.f32 %v4677, %v5163
        %5166 = vrot.lane.b32.xlu0 %v4676, 127
        %v5167 = vpop.permute.xlu0 %5166
        %5168 = vrot.lane.b32.xlu0 %v4677, 127
        %v5169 = vpop.permute.xlu0 %5168
        %v5170 = vsel %vm1416, %v5167, %v5169
        %v5174 = vsel %vm1416, %v5169, %v5167
        %v5175 = vlaneseq
        %v5176 = vshrl.u32 %v5175, 7
        %v5177 = vsub.s32 1, %v5176
        %v5178 = vrot.slane %v733, %v5177
        %v5179 = vlaneseq
        %v5180 = vshrl.u32 %v5179, 7
        %v5181 = vsub.s32 1, %v5180
        %v5182 = vrot.slane %v734, %v5181
        %v5183 = vmul.f32 %v5170, %v5178
        %v5184 = vmul.f32 %v5174, %v5182
        %5185 = vrot.lane.b32.xlu0 %v4676, 126
        %v5186 = vpop.permute.xlu0 %5185
        %5187 = vrot.lane.b32.xlu0 %v4677, 126
        %v5188 = vpop.permute.xlu0 %5187
        %vm5189 = vcmask 1031168
        %v5190 = vsel %vm5189, %v5186, %v5188
        %v5194 = vsel %vm5189, %v5188, %v5186
        %v5195 = vlaneseq
        %v5196 = vshrl.u32 %v5195, 7
        %v5197 = vsub.s32 2, %v5196
        %v5198 = vrot.slane %v733, %v5197
        %v5199 = vlaneseq
        %v5200 = vshrl.u32 %v5199, 7
        %v5201 = vsub.s32 2, %v5200
        %v5202 = vrot.slane %v734, %v5201
        %v5203 = vmul.f32 %v5190, %v5198
        %v5204 = vmul.f32 %v5194, %v5202
        %5205 = vrot.lane.b32.xlu0 %v4676, 125
        %v5206 = vpop.permute.xlu0 %5205
        %5207 = vrot.lane.b32.xlu0 %v4677, 125
        %v5208 = vpop.permute.xlu0 %5207
        %vm5209 = vcmask 1022976
        %v5210 = vsel %vm5209, %v5206, %v5208
        %v5214 = vsel %vm5209, %v5208, %v5206
        %v5215 = vlaneseq
        %v5216 = vshrl.u32 %v5215, 7
        %v5217 = vsub.s32 3, %v5216
        %v5218 = vrot.slane %v733, %v5217
        %v5219 = vlaneseq
        %v5220 = vshrl.u32 %v5219, 7
        %v5221 = vsub.s32 3, %v5220
        %v5222 = vrot.slane %v734, %v5221
        %v5223 = vmul.f32 %v5210, %v5218
        %v5224 = vmul.f32 %v5214, %v5222
        %5225 = vrot.lane.b32.xlu0 %v4676, 115
        %v5226 = vpop.permute.xlu0 %5225
        %5227 = vrot.lane.b32.xlu0 %v4677, 115
        %v5228 = vpop.permute.xlu0 %5227
        %vm5229 = vcmask 941056
        %v5230 = vsel %vm5229, %v5226, %v5228
        %v5234 = vsel %vm5229, %v5228, %v5226
        %v5235 = vlaneseq
        %v5236 = vshrl.u32 %v5235, 7
        %v5237 = vsub.s32 4, %v5236
        %v5238 = vrot.slane %v733, %v5237
        %v5239 = vlaneseq
        %v5240 = vshrl.u32 %v5239, 7
        %v5241 = vsub.s32 4, %v5240
        %v5242 = vrot.slane %v734, %v5241
        %v5243 = vmul.f32 %v5230, %v5238
        %v5244 = vmul.f32 %v5234, %v5242
        %5245 = vrot.lane.b32.xlu0 %v4676, 114
        %v5246 = vpop.permute.xlu0 %5245
        %5247 = vrot.lane.b32.xlu0 %v4677, 114
        %v5248 = vpop.permute.xlu0 %5247
        %vm5249 = vcmask 932864
        %v5250 = vsel %vm5249, %v5246, %v5248
        %v5254 = vsel %vm5249, %v5248, %v5246
        %v5255 = vlaneseq
        %v5256 = vshrl.u32 %v5255, 7
        %v5257 = vsub.s32 5, %v5256
        %v5258 = vrot.slane %v733, %v5257
        %v5259 = vlaneseq
        %v5260 = vshrl.u32 %v5259, 7
        %v5261 = vsub.s32 5, %v5260
        %v5262 = vrot.slane %v734, %v5261
        %v5263 = vmul.f32 %v5250, %v5258
        %v5264 = vmul.f32 %v5254, %v5262
        %5265 = vrot.lane.b32.xlu0 %v4676, 113
        %v5266 = vpop.permute.xlu0 %5265
        %5267 = vrot.lane.b32.xlu0 %v4677, 113
        %v5268 = vpop.permute.xlu0 %5267
        %v5269 = vsel %vm1469, %v5266, %v5268
        %v5273 = vsel %vm1469, %v5268, %v5266
        %v5274 = vlaneseq
        %v5275 = vshrl.u32 %v5274, 7
        %v5276 = vsub.s32 6, %v5275
        %v5277 = vrot.slane %v733, %v5276
        %v5278 = vlaneseq
        %v5279 = vshrl.u32 %v5278, 7
        %v5280 = vsub.s32 6, %v5279
        %v5281 = vrot.slane %v734, %v5280
        %v5282 = vmul.f32 %v5269, %v5277
        %v5283 = vmul.f32 %v5273, %v5281
        %5284 = vrot.lane.b32.xlu0 %v4676, 112
        %v5285 = vpop.permute.xlu0 %5284
        %5286 = vrot.lane.b32.xlu0 %v4677, 112
        %v5287 = vpop.permute.xlu0 %5286
        %v5288 = vsel %vm1522, %v5285, %v5287
        %v5292 = vsel %vm1522, %v5287, %v5285
        %v5293 = vlaneseq
        %v5294 = vshrl.u32 %v5293, 7
        %v5295 = vsub.s32 7, %v5294
        %v5296 = vrot.slane %v733, %v5295
        %v5297 = vlaneseq
        %v5298 = vshrl.u32 %v5297, 7
        %v5299 = vsub.s32 7, %v5298
        %v5300 = vrot.slane %v734, %v5299
        %v5301 = vmul.f32 %v5288, %v5296
        %v5302 = vmul.f32 %v5292, %v5300
        %5303 = vrot.lane.b32.xlu0 %v4676, 111
        %v5304 = vpop.permute.xlu0 %5303
        %5305 = vrot.lane.b32.xlu0 %v4677, 111
        %v5306 = vpop.permute.xlu0 %5305
        %v5307 = vsel %vm1575, %v5304, %v5306
        %v5311 = vsel %vm1575, %v5306, %v5304
        %v5312 = vlaneseq
        %v5313 = vshrl.u32 %v5312, 7
        %v5314 = vsub.s32 0, %v5313
        %v5315 = vrot.slane %v735, %v5314
        %v5316 = vlaneseq
        %v5317 = vshrl.u32 %v5316, 7
        %v5318 = vsub.s32 0, %v5317
        %v5319 = vrot.slane %v736, %v5318
        %v5320 = vmul.f32 %v5307, %v5315
        %v5321 = vmul.f32 %v5311, %v5319
        %5322 = vrot.lane.b32.xlu0 %v4676, 110
        %v5323 = vpop.permute.xlu0 %5322
        %5324 = vrot.lane.b32.xlu0 %v4677, 110
        %v5325 = vpop.permute.xlu0 %5324
        %vm5326 = vcmask 900096
        %v5327 = vsel %vm5326, %v5323, %v5325
        %v5331 = vsel %vm5326, %v5325, %v5323
        %v5332 = vlaneseq
        %v5333 = vshrl.u32 %v5332, 7
        %v5334 = vsub.s32 1, %v5333
        %v5335 = vrot.slane %v735, %v5334
        %v5336 = vlaneseq
        %v5337 = vshrl.u32 %v5336, 7
        %v5338 = vsub.s32 1, %v5337
        %v5339 = vrot.slane %v736, %v5338
        %v5340 = vmul.f32 %v5327, %v5335
        %v5341 = vmul.f32 %v5331, %v5339
        %5342 = vrot.lane.b32.xlu0 %v4676, 109
        %v5343 = vpop.permute.xlu0 %5342
        %5344 = vrot.lane.b32.xlu0 %v4677, 109
        %v5345 = vpop.permute.xlu0 %5344
        %vm5346 = vcmask 891904
        %v5347 = vsel %vm5346, %v5343, %v5345
        %v5351 = vsel %vm5346, %v5345, %v5343
        %v5352 = vlaneseq
        %v5353 = vshrl.u32 %v5352, 7
        %v5354 = vsub.s32 2, %v5353
        %v5355 = vrot.slane %v735, %v5354
        %v5356 = vlaneseq
        %v5357 = vshrl.u32 %v5356, 7
        %v5358 = vsub.s32 2, %v5357
        %v5359 = vrot.slane %v736, %v5358
        %v5360 = vmul.f32 %v5347, %v5355
        %v5361 = vmul.f32 %v5351, %v5359
        %5362 = vrot.lane.b32.xlu0 %v4676, 99
        %v5363 = vpop.permute.xlu0 %5362
        %5364 = vrot.lane.b32.xlu0 %v4677, 99
        %v5365 = vpop.permute.xlu0 %5364
        %vm5366 = vcmask 809984
        %v5367 = vsel %vm5366, %v5363, %v5365
        %v5371 = vsel %vm5366, %v5365, %v5363
        %v5372 = vlaneseq
        %v5373 = vshrl.u32 %v5372, 7
        %v5374 = vsub.s32 3, %v5373
        %v5375 = vrot.slane %v735, %v5374
        %v5376 = vlaneseq
        %v5377 = vshrl.u32 %v5376, 7
        %v5378 = vsub.s32 3, %v5377
        %v5379 = vrot.slane %v736, %v5378
        %v5380 = vmul.f32 %v5367, %v5375
        %v5381 = vmul.f32 %v5371, %v5379
        %5382 = vrot.lane.b32.xlu0 %v4676, 98
        %v5383 = vpop.permute.xlu0 %5382
        %5384 = vrot.lane.b32.xlu0 %v4677, 98
        %v5385 = vpop.permute.xlu0 %5384
        %vm5386 = vcmask 801792
        %v5387 = vsel %vm5386, %v5383, %v5385
        %v5391 = vsel %vm5386, %v5385, %v5383
        %v5392 = vlaneseq
        %v5393 = vshrl.u32 %v5392, 7
        %v5394 = vsub.s32 4, %v5393
        %v5395 = vrot.slane %v735, %v5394
        %v5396 = vlaneseq
        %v5397 = vshrl.u32 %v5396, 7
        %v5398 = vsub.s32 4, %v5397
        %v5399 = vrot.slane %v736, %v5398
        %v5400 = vmul.f32 %v5387, %v5395
        %v5401 = vmul.f32 %v5391, %v5399
        %5402 = vrot.lane.b32.xlu0 %v4676, 97
        %v5403 = vpop.permute.xlu0 %5402
        %5404 = vrot.lane.b32.xlu0 %v4677, 97
        %v5405 = vpop.permute.xlu0 %5404
        %vm5406 = vcmask 793600
        %v5407 = vsel %vm5406, %v5403, %v5405
        %v5411 = vsel %vm5406, %v5405, %v5403
        %v5412 = vlaneseq
        %v5413 = vshrl.u32 %v5412, 7
        %v5414 = vsub.s32 5, %v5413
        %v5415 = vrot.slane %v735, %v5414
        %v5416 = vlaneseq
        %v5417 = vshrl.u32 %v5416, 7
        %v5418 = vsub.s32 5, %v5417
        %v5419 = vrot.slane %v736, %v5418
        %v5420 = vmul.f32 %v5407, %v5415
        %v5421 = vmul.f32 %v5411, %v5419
        %5422 = vrot.lane.b32.xlu0 %v4676, 96
        %v5423 = vpop.permute.xlu0 %5422
        %5424 = vrot.lane.b32.xlu0 %v4677, 96
        %v5425 = vpop.permute.xlu0 %5424
        %vm5426 = vcmask 785408
        %v5427 = vsel %vm5426, %v5423, %v5425
        %v5431 = vsel %vm5426, %v5425, %v5423
        %v5432 = vlaneseq
        %v5433 = vshrl.u32 %v5432, 7
        %v5434 = vsub.s32 6, %v5433
        %v5435 = vrot.slane %v735, %v5434
        %v5436 = vlaneseq
        %v5437 = vshrl.u32 %v5436, 7
        %v5438 = vsub.s32 6, %v5437
        %v5439 = vrot.slane %v736, %v5438
        %v5440 = vmul.f32 %v5427, %v5435
        %v5441 = vmul.f32 %v5431, %v5439
        %5442 = vrot.lane.b32.xlu0 %v4676, 95
        %v5443 = vpop.permute.xlu0 %5442
        %5444 = vrot.lane.b32.xlu0 %v4677, 95
        %v5445 = vpop.permute.xlu0 %5444
        %vm5446 = vcmask 777216
        %v5447 = vsel %vm5446, %v5443, %v5445
        %v5451 = vsel %vm5446, %v5445, %v5443
        %v5452 = vlaneseq
        %v5453 = vshrl.u32 %v5452, 7
        %v5454 = vsub.s32 7, %v5453
        %v5455 = vrot.slane %v735, %v5454
        %v5456 = vlaneseq
        %v5457 = vshrl.u32 %v5456, 7
        %v5458 = vsub.s32 7, %v5457
        %v5459 = vrot.slane %v736, %v5458
        %v5460 = vmul.f32 %v5447, %v5455
        %v5461 = vmul.f32 %v5451, %v5459
        %5462 = vrot.lane.b32.xlu0 %v4676, 94
        %v5463 = vpop.permute.xlu0 %5462
        %5464 = vrot.lane.b32.xlu0 %v4677, 94
        %v5465 = vpop.permute.xlu0 %5464
        %vm5466 = vcmask 769024
        %v5467 = vsel %vm5466, %v5463, %v5465
        %v5471 = vsel %vm5466, %v5465, %v5463
        %v5472 = vlaneseq
        %v5473 = vshrl.u32 %v5472, 7
        %v5474 = vsub.s32 0, %v5473
        %v5475 = vrot.slane %v737, %v5474
        %v5476 = vlaneseq
        %v5477 = vshrl.u32 %v5476, 7
        %v5478 = vsub.s32 0, %v5477
        %v5479 = vrot.slane %v738, %v5478
        %v5480 = vmul.f32 %v5467, %v5475
        %v5481 = vmul.f32 %v5471, %v5479
        %5482 = vrot.lane.b32.xlu0 %v4676, 93
        %v5483 = vpop.permute.xlu0 %5482
        %5484 = vrot.lane.b32.xlu0 %v4677, 93
        %v5485 = vpop.permute.xlu0 %5484
        %vm5486 = vcmask 760832
        %v5487 = vsel %vm5486, %v5483, %v5485
        %v5491 = vsel %vm5486, %v5485, %v5483
        %v5492 = vlaneseq
        %v5493 = vshrl.u32 %v5492, 7
        %v5494 = vsub.s32 1, %v5493
        %v5495 = vrot.slane %v737, %v5494
        %v5496 = vlaneseq
        %v5497 = vshrl.u32 %v5496, 7
        %v5498 = vsub.s32 1, %v5497
        %v5499 = vrot.slane %v738, %v5498
        %v5500 = vmul.f32 %v5487, %v5495
        %v5501 = vmul.f32 %v5491, %v5499
        %5502 = vrot.lane.b32.xlu0 %v4676, 83
        %v5503 = vpop.permute.xlu0 %5502
        %5504 = vrot.lane.b32.xlu0 %v4677, 83
        %v5505 = vpop.permute.xlu0 %5504
        %vm5506 = vcmask 678912
        %v5507 = vsel %vm5506, %v5503, %v5505
        %v5511 = vsel %vm5506, %v5505, %v5503
        %v5512 = vlaneseq
        %v5513 = vshrl.u32 %v5512, 7
        %v5514 = vsub.s32 2, %v5513
        %v5515 = vrot.slane %v737, %v5514
        %v5516 = vlaneseq
        %v5517 = vshrl.u32 %v5516, 7
        %v5518 = vsub.s32 2, %v5517
        %v5519 = vrot.slane %v738, %v5518
        %v5520 = vmul.f32 %v5507, %v5515
        %v5521 = vmul.f32 %v5511, %v5519
        %5522 = vrot.lane.b32.xlu0 %v4676, 82
        %v5523 = vpop.permute.xlu0 %5522
        %5524 = vrot.lane.b32.xlu0 %v4677, 82
        %v5525 = vpop.permute.xlu0 %5524
        %vm5526 = vcmask 670720
        %v5527 = vsel %vm5526, %v5523, %v5525
        %v5531 = vsel %vm5526, %v5525, %v5523
        %v5532 = vlaneseq
        %v5533 = vshrl.u32 %v5532, 7
        %v5534 = vsub.s32 3, %v5533
        %v5535 = vrot.slane %v737, %v5534
        %v5536 = vlaneseq
        %v5537 = vshrl.u32 %v5536, 7
        %v5538 = vsub.s32 3, %v5537
        %v5539 = vrot.slane %v738, %v5538
        %v5540 = vmul.f32 %v5527, %v5535
        %v5541 = vmul.f32 %v5531, %v5539
        %5542 = vrot.lane.b32.xlu0 %v4676, 81
        %v5543 = vpop.permute.xlu0 %5542
        %5544 = vrot.lane.b32.xlu0 %v4677, 81
        %v5545 = vpop.permute.xlu0 %5544
        %vm5546 = vcmask 662528
        %v5547 = vsel %vm5546, %v5543, %v5545
        %v5551 = vsel %vm5546, %v5545, %v5543
        %v5552 = vlaneseq
        %v5553 = vshrl.u32 %v5552, 7
        %v5554 = vsub.s32 4, %v5553
        %v5555 = vrot.slane %v737, %v5554
        %v5556 = vlaneseq
        %v5557 = vshrl.u32 %v5556, 7
        %v5558 = vsub.s32 4, %v5557
        %v5559 = vrot.slane %v738, %v5558
        %v5560 = vmul.f32 %v5547, %v5555
        %v5561 = vmul.f32 %v5551, %v5559
        %5562 = vrot.lane.b32.xlu0 %v4676, 80
        %v5563 = vpop.permute.xlu0 %5562
        %5564 = vrot.lane.b32.xlu0 %v4677, 80
        %v5565 = vpop.permute.xlu0 %5564
        %vm5566 = vcmask 654336
        %v5567 = vsel %vm5566, %v5563, %v5565
        %v5571 = vsel %vm5566, %v5565, %v5563
        %v5572 = vlaneseq
        %v5573 = vshrl.u32 %v5572, 7
        %v5574 = vsub.s32 5, %v5573
        %v5575 = vrot.slane %v737, %v5574
        %v5576 = vlaneseq
        %v5577 = vshrl.u32 %v5576, 7
        %v5578 = vsub.s32 5, %v5577
        %v5579 = vrot.slane %v738, %v5578
        %v5580 = vmul.f32 %v5567, %v5575
        %v5581 = vmul.f32 %v5571, %v5579
        %5582 = vrot.lane.b32.xlu0 %v4676, 79
        %v5583 = vpop.permute.xlu0 %5582
        %5584 = vrot.lane.b32.xlu0 %v4677, 79
        %v5585 = vpop.permute.xlu0 %5584
        %vm5586 = vcmask 646144
        %v5587 = vsel %vm5586, %v5583, %v5585
        %v5591 = vsel %vm5586, %v5585, %v5583
        %v5592 = vlaneseq
        %v5593 = vshrl.u32 %v5592, 7
        %v5594 = vsub.s32 6, %v5593
        %v5595 = vrot.slane %v737, %v5594
        %v5596 = vlaneseq
        %v5597 = vshrl.u32 %v5596, 7
        %v5598 = vsub.s32 6, %v5597
        %v5599 = vrot.slane %v738, %v5598
        %v5600 = vmul.f32 %v5587, %v5595
        %v5601 = vmul.f32 %v5591, %v5599
        %5602 = vrot.lane.b32.xlu0 %v4676, 78
        %v5603 = vpop.permute.xlu0 %5602
        %5604 = vrot.lane.b32.xlu0 %v4677, 78
        %v5605 = vpop.permute.xlu0 %5604
        %vm5606 = vcmask 637952
        %v5607 = vsel %vm5606, %v5603, %v5605
        %v5611 = vsel %vm5606, %v5605, %v5603
        %v5612 = vlaneseq
        %v5613 = vshrl.u32 %v5612, 7
        %v5614 = vsub.s32 7, %v5613
        %v5615 = vrot.slane %v737, %v5614
        %v5616 = vlaneseq
        %v5617 = vshrl.u32 %v5616, 7
        %v5618 = vsub.s32 7, %v5617
        %v5619 = vrot.slane %v738, %v5618
        %v5620 = vmul.f32 %v5607, %v5615
        %v5621 = vmul.f32 %v5611, %v5619
        %5622 = vrot.lane.b32.xlu0 %v4676, 77
        %v5623 = vpop.permute.xlu0 %5622
        %5624 = vrot.lane.b32.xlu0 %v4677, 77
        %v5625 = vpop.permute.xlu0 %5624
        %vm5626 = vcmask 629760
        %v5627 = vsel %vm5626, %v5623, %v5625
        %v5631 = vsel %vm5626, %v5625, %v5623
        %v5632 = vlaneseq
        %v5633 = vshrl.u32 %v5632, 7
        %v5634 = vsub.s32 0, %v5633
        %v5635 = vrot.slane %v739, %v5634
        %v5636 = vlaneseq
        %v5637 = vshrl.u32 %v5636, 7
        %v5638 = vsub.s32 0, %v5637
        %v5639 = vrot.slane %v740, %v5638
        %v5640 = vmul.f32 %v5627, %v5635
        %v5641 = vmul.f32 %v5631, %v5639
        %v5644 = vrot.slane %v4719, 6
        %v5645 = vrot.slane %v4720, 6
        %v5650 = vrot.slane %v4739, 4
        %v5651 = vrot.slane %v4740, 4
        %v5656 = vrot.slane %v4759, 2
        %v5657 = vrot.slane %v4760, 2
        %v5662 = vrot.slane %v4799, 6
        %v5663 = vrot.slane %v4800, 6
        %v5668 = vrot.slane %v4819, 4
        %v5669 = vrot.slane %v4820, 4
        %v5674 = vrot.slane %v4839, 2
        %v5675 = vrot.slane %v4840, 2
        %v5680 = vrot.slane %v4879, 6
        %v5681 = vrot.slane %v4880, 6
        %v5686 = vrot.slane %v4898, 4
        %v5687 = vrot.slane %v4899, 4
        %v5692 = vrot.slane %v4918, 2
        %v5693 = vrot.slane %v4919, 2
        %v5698 = vrot.slane %v4958, 6
        %v5699 = vrot.slane %v4959, 6
        %v5704 = vrot.slane %v4978, 4
        %v5705 = vrot.slane %v4979, 4
        %v5710 = vrot.slane %v4998, 2
        %v5711 = vrot.slane %v4999, 2
        %vm5714 = vcmask 1041408
        %v5715 = vsel %vm5714, %v4699, %v5644
        %v5716 = vsel %vm5714, %v4700, %v5645
        %v5717 = vsel %vm4367, %v5715, %v5650
        %v5718 = vsel %vm4367, %v5716, %v5651
        %vm5719 = vcmask 1045504
        %v5720 = vsel %vm5719, %v5717, %v5656
        %v5721 = vsel %vm5719, %v5718, %v5657
        %v5722 = vsel %vm5714, %v4779, %v5662
        %v5723 = vsel %vm5714, %v4780, %v5663
        %v5724 = vsel %vm4367, %v5722, %v5668
        %v5725 = vsel %vm4367, %v5723, %v5669
        %v5726 = vsel %vm5719, %v5724, %v5674
        %v5727 = vsel %vm5719, %v5725, %v5675
        %v5728 = vsel %vm5714, %v4859, %v5680
        %v5729 = vsel %vm5714, %v4860, %v5681
        %v5730 = vsel %vm4367, %v5728, %v5686
        %v5731 = vsel %vm4367, %v5729, %v5687
        %v5732 = vsel %vm5719, %v5730, %v5692
        %v5733 = vsel %vm5719, %v5731, %v5693
        %v5734 = vsel %vm5714, %v4938, %v5698
        %v5735 = vsel %vm5714, %v4939, %v5699
        %v5736 = vsel %vm4367, %v5734, %v5704
        %v5737 = vsel %vm4367, %v5735, %v5705
        %v5738 = vsel %vm5719, %v5736, %v5710
        %v5739 = vsel %vm5719, %v5737, %v5711
        %v5742 = vrot.slane %v5036, 6
        %v5743 = vrot.slane %v5037, 6
        %v5748 = vrot.slane %v5055, 4
        %v5749 = vrot.slane %v5056, 4
        %v5754 = vrot.slane %v5075, 2
        %v5755 = vrot.slane %v5076, 2
        %v5760 = vrot.slane %v5115, 6
        %v5761 = vrot.slane %v5116, 6
        %v5766 = vrot.slane %v5135, 4
        %v5767 = vrot.slane %v5136, 4
        %v5772 = vrot.slane %v5154, 2
        %v5773 = vrot.slane %v5155, 2
        %v5778 = vrot.slane %v5183, 6
        %v5779 = vrot.slane %v5184, 6
        %v5784 = vrot.slane %v5203, 4
        %v5785 = vrot.slane %v5204, 4
        %v5790 = vrot.slane %v5223, 2
        %v5791 = vrot.slane %v5224, 2
        %v5796 = vrot.slane %v5263, 6
        %v5797 = vrot.slane %v5264, 6
        %v5802 = vrot.slane %v5282, 4
        %v5803 = vrot.slane %v5283, 4
        %v5808 = vrot.slane %v5301, 2
        %v5809 = vrot.slane %v5302, 2
        %v5812 = vsel %vm5714, %v5017, %v5742
        %v5813 = vsel %vm5714, %v5018, %v5743
        %v5814 = vsel %vm4367, %v5812, %v5748
        %v5815 = vsel %vm4367, %v5813, %v5749
        %v5816 = vsel %vm5719, %v5814, %v5754
        %v5817 = vsel %vm5719, %v5815, %v5755
        %v5818 = vsel %vm5714, %v5095, %v5760
        %v5819 = vsel %vm5714, %v5096, %v5761
        %v5820 = vsel %vm4367, %v5818, %v5766
        %v5821 = vsel %vm4367, %v5819, %v5767
        %v5822 = vsel %vm5719, %v5820, %v5772
        %v5823 = vsel %vm5719, %v5821, %v5773
        %v5824 = vsel %vm5714, %v5164, %v5778
        %v5825 = vsel %vm5714, %v5165, %v5779
        %v5826 = vsel %vm4367, %v5824, %v5784
        %v5827 = vsel %vm4367, %v5825, %v5785
        %v5828 = vsel %vm5719, %v5826, %v5790
        %v5829 = vsel %vm5719, %v5827, %v5791
        %v5830 = vsel %vm5714, %v5243, %v5796
        %v5831 = vsel %vm5714, %v5244, %v5797
        %v5832 = vsel %vm4367, %v5830, %v5802
        %v5833 = vsel %vm4367, %v5831, %v5803
        %v5834 = vsel %vm5719, %v5832, %v5808
        %v5835 = vsel %vm5719, %v5833, %v5809
        %v5838 = vrot.slane %v5340, 6
        %v5839 = vrot.slane %v5341, 6
        %v5844 = vrot.slane %v5360, 4
        %v5845 = vrot.slane %v5361, 4
        %v5850 = vrot.slane %v5380, 2
        %v5851 = vrot.slane %v5381, 2
        %v5856 = vrot.slane %v5420, 6
        %v5857 = vrot.slane %v5421, 6
        %v5862 = vrot.slane %v5440, 4
        %v5863 = vrot.slane %v5441, 4
        %v5868 = vrot.slane %v5460, 2
        %v5869 = vrot.slane %v5461, 2
        %v5874 = vrot.slane %v5500, 6
        %v5875 = vrot.slane %v5501, 6
        %v5880 = vrot.slane %v5520, 4
        %v5881 = vrot.slane %v5521, 4
        %v5886 = vrot.slane %v5540, 2
        %v5887 = vrot.slane %v5541, 2
        %v5892 = vrot.slane %v5580, 6
        %v5893 = vrot.slane %v5581, 6
        %v5898 = vrot.slane %v5600, 4
        %v5899 = vrot.slane %v5601, 4
        %v5904 = vrot.slane %v5620, 2
        %v5905 = vrot.slane %v5621, 2
        %v5908 = vsel %vm5714, %v5320, %v5838
        %v5909 = vsel %vm5714, %v5321, %v5839
        %v5910 = vsel %vm4367, %v5908, %v5844
        %v5911 = vsel %vm4367, %v5909, %v5845
        %v5912 = vsel %vm5719, %v5910, %v5850
        %v5913 = vsel %vm5719, %v5911, %v5851
        %v5914 = vsel %vm5714, %v5400, %v5856
        %v5915 = vsel %vm5714, %v5401, %v5857
        %v5916 = vsel %vm4367, %v5914, %v5862
        %v5917 = vsel %vm4367, %v5915, %v5863
        %v5918 = vsel %vm5719, %v5916, %v5868
        %v5919 = vsel %vm5719, %v5917, %v5869
        %v5920 = vsel %vm5714, %v5480, %v5874
        %v5921 = vsel %vm5714, %v5481, %v5875
        %v5922 = vsel %vm4367, %v5920, %v5880
        %v5923 = vsel %vm4367, %v5921, %v5881
        %v5924 = vsel %vm5719, %v5922, %v5886
        %v5925 = vsel %vm5719, %v5923, %v5887
        %v5926 = vsel %vm5714, %v5560, %v5892
        %v5927 = vsel %vm5714, %v5561, %v5893
        %v5928 = vsel %vm4367, %v5926, %v5898
        %v5929 = vsel %vm4367, %v5927, %v5899
        %v5930 = vsel %vm5719, %v5928, %v5904
        %v5931 = vsel %vm5719, %v5929, %v5905
        %v5933 = vsel %vm5386, %v4678, 0
        %v5936 = vsel %vm5714, %v5640, 0
        %v5939 = vsel %vm5714, %v5641, 0
        %5941 = vmatprep.subr.mxu0 %v5721
        %5942 = vmatpush1.msra.mxu0 %v5720
        %5943 = vmatprep.subr.mxu0 %v5727
        %5944 = vmatpush1.msra.mxu0 %v5726
        %5945 = vmatprep.subr.mxu0 %v5733
        %5946 = vmatpush1.msra.mxu0 %v5732
        %5947 = vmatprep.subr.mxu0 %v5739
        %5948 = vmatpush1.msra.mxu0 %v5738
        %5949 = vmatprep.subr.mxu0 %v5817
        %5950 = vmatpush1.msra.mxu0 %v5816
        %5951 = vmatprep.subr.mxu0 %v5823
        %5952 = vmatpush1.msra.mxu0 %v5822
        %5953 = vmatprep.subr.mxu0 %v5829
        %5954 = vmatpush1.msra.mxu0 %v5828
        %5955 = vmatprep.subr.mxu0 %v5835
        %5956 = vmatpush1.msra.mxu0 %v5834
        %5957 = vmatprep.subr.mxu0 %v5913
        %5958 = vmatpush1.msra.mxu0 %v5912
        %5959 = vmatprep.subr.mxu0 %v5919
        %5960 = vmatpush1.msra.mxu0 %v5918
        %5961 = vmatprep.subr.mxu0 %v5925
        %5962 = vmatpush1.msra.mxu0 %v5924
        %5963 = vmatprep.subr.mxu0 %v5931
        %5964 = vmatpush1.msra.mxu0 %v5930
        %5965 = vmatprep.subr.mxu0 %v5939
        %5966 = vmatpush1.msra.mxu0 %v5936
        %5967 = vmatprep.subr.mxu0 0.0
        %5968 = vmatpush1.msra.mxu0 0.0
        %5969 = vmatprep.subr.mxu0 0.0
        %5970 = vmatpush1.msra.mxu0 0.0
        %5971 = vmatprep.subr.mxu0 0.0
        %5972 = vmatpush1.msra.mxu0 0.0
        %5973 = vmatprep.subr.mxu0 0.0
        %5974 = vmatpush1.msra.mxu0 0.0
        %5975 = vmatprep.subr.mxu0 0.0
        %5976 = vmatpush1.msra.mxu0 0.0
        %5977 = vmatprep.subr.mxu0 0.0
        %5978 = vmatpush1.msra.mxu0 0.0
        %5979 = vmatprep.subr.mxu0 0.0
        %5980 = vmatpush1.msra.mxu0 0.0
        %5981 = vmatprep.subr.mxu0 0.0
        %5982 = vmatpush1.msra.mxu0 0.0
        %5983 = vmatprep.subr.mxu0 0.0
        %5984 = vmatpush1.msra.mxu0 0.0
        %5985 = vmatprep.subr.mxu0 0.0
        %5986 = vmatpush1.msra.mxu0 0.0
        %5987 = vmatprep.subr.mxu0 0.0
        %5988 = vmatpush1.msra.mxu0 0.0
        %5989 = vmatprep.subr.mxu0 0.0
        %5990 = vmatpush1.msra.mxu0 0.0
        %5991 = vmatprep.subr.mxu0 0.0
        %5992 = vmatpush1.msra.mxu0 0.0
        %5993 = vmatprep.subr.mxu0 0.0
        %5994 = vmatpush1.msra.mxu0 0.0
        %5995 = vmatprep.subr.mxu0 0.0
        %5996 = vmatpush1.msra.mxu0 0.0
        %5997 = vmatprep.subr.mxu0 0.0
        %5998 = vmatpush1.msra.mxu0 0.0
        %5999 = vmatprep.subr.mxu0 0.0
        %6000 = vmatpush1.msra.mxu0 0.0
        %6001 = vmatprep.subr.mxu0 0.0
        %6002 = vmatpush1.msra.mxu0 0.0
        %6003 = vmatprep.subr.mxu0 0.0
        %6004 = vmatpush1.msra.mxu0 0.0
        %6005 = vmatprep.mubr.f32.mxu0 0.0
        %6006 = vmatmul.mubr.f32.gmra.mrb[0].mxu0 %v5933
        %v6007 = vpop.f32.mrb[0].mxu0
        %v6008 = vadd.f32 0.0, %v6007
        %v6009 = vpop.f32.mrb[0].mxu0
        %v6010 = vadd.f32 0.0, %v6009
        %6011 = vdwg.mxu0
        %v6012 = vxor.u32 %v6008, 2147483648
        %v6013 = vxor.u32 %v6010, 2147483648
        %v6014 = vmul.f32 %v6012, 1.442695
        %v6015 = vpow.pop %v6014
        %v6016 = vmul.f32 %v6013, 1.442695
        %v6017 = vpow.pop %v6016
        %v6018 = vadd.f32 %v6015, 1.0
        %v6019 = vadd.f32 %v6017, 1.0
        %v6020 = vrcp.pop %v6018
        %v6021 = vmul.f32 1.0, %v6020
        %v6022 = vrcp.pop %v6019
        %v6023 = vmul.f32 1.0, %v6022
        %v6024 = vlaneseq
        %v6025 = vshrl.u32 %v6024, 7
        %v6026 = vsub.s32 0, %v6025
        %v6027 = vrot.slane %v6021, %v6026
        %v6028 = vlaneseq
        %v6029 = vshrl.u32 %v6028, 7
        %v6030 = vsub.s32 0, %v6029
        %v6031 = vrot.slane %v6023, %v6030
        %v6032 = vmul.f32 %v4604, %v6027
        %v6033 = vmul.f32 %v4605, %v6031
        %v6034 = vmul.f32 %v4606, %v6027
        %v6035 = vmul.f32 %v4607, %v6031
        %v6036 = vmul.f32 %v4608, %v6027
        %v6037 = vmul.f32 %v4609, %v6031
        %v6038 = vmul.f32 %v4610, %v6027
        %v6039 = vmul.f32 %v4611, %v6031
        %v6040 = vmul.f32 %v4612, %v6027
        %v6041 = vmul.f32 %v4613, %v6031
        %v6042 = vmul.f32 %v4614, %v6027
        %v6043 = vmul.f32 %v4615, %v6031
        %v6044 = vmul.f32 %v4616, %v6027
        %v6045 = vmul.f32 %v4617, %v6031
        %v6046 = vmul.f32 %v4618, %v6027
        %v6047 = vmul.f32 %v4619, %v6031
        %6048 = vst [vmem:[%s704] sm:$0xff] %v6032
        %6049 = vst [vmem:[%s704 + $0x8] sm:$0xff] %v6033
        %6050 = vst [vmem:[%s704 + $0x10] sm:$0xff] %v6034
        %6051 = vst [vmem:[%s704 + $0x18] sm:$0xff] %v6035
        %6052 = vst [vmem:[%s704 + $0x20] sm:$0xff] %v6036
        %6053 = vst [vmem:[%s704 + $0x28] sm:$0xff] %v6037
        %6054 = vst [vmem:[%s704 + $0x30] sm:$0xff] %v6038
        %6055 = vst [vmem:[%s704 + $0x38] sm:$0xff] %v6039
        %6056 = vst [vmem:[%s704 + $0x40] sm:$0xff] %v6040
        %6057 = vst [vmem:[%s704 + $0x48] sm:$0xff] %v6041
        %6058 = vst [vmem:[%s704 + $0x50] sm:$0xff] %v6042
        %6059 = vst [vmem:[%s704 + $0x58] sm:$0xff] %v6043
        %6060 = vst [vmem:[%s704 + $0x60] sm:$0xff] %v6044
        %6061 = vst [vmem:[%s704 + $0x68] sm:$0xff] %v6045
        %6062 = vst [vmem:[%s704 + $0x70] sm:$0xff] %v6046
        %6063 = vst [vmem:[%s704 + $0x78] sm:$0xff] %v6047
        %s6064 = sand.u32 %s496, 1
        %s6065 = scalar_lea.sflag [#allocation4], %s6064
        %s6066 = sand.u32 %s496, 1
        %s6067 = smul.addr %s6066, 128
        %s6068 = scalar_lea.vmem [#allocation8], %s6067
        // Predicated region
        $region117: #{tpu_custom_call.1} parent=103 // pred_check
          %p6069 = pneg %p506
        $region118: #{tpu_custom_call.1} parent=103 // pred_check_branch
          %6071 = sbr.rel (%p6069) target = $region120
        $region119: #{tpu_custom_call.1} parent=103 // pred_region
          %s6073 = ssub.s32 2048, 2048
          %6074 = vsyncadd %s6065, %s6073
          %s6075 = smul.addr %s37, 16
          %s6076 = smul.addr %s6075, 128
          %s6077 = scalar_lea.hbm %s21, %s6076
          %s6078 = sshll.u32 %s6068, 4
          %s6079 = int_to_ptr.vmem [resolvable:$true] %s6078
          %6084 = dma.vmem_to_hbm [thread:$0]  %s6079, 2048, %s6077, %s6065, 256, 256, 16
        $region120: #{tpu_custom_call.1} parent=103 // pred_fallthru
          _
      $region104: #{tpu_custom_call.1} parent=5 // pred_fallthru
        _
      %p6085 = scmp.le.s32.totalorder 2, %s32
      // Predicated region
      $region121: #{tpu_custom_call.1} parent=5 // pred_check
        %p6086 = pneg %p6085
      $region122: #{tpu_custom_call.1} parent=5 // pred_check_branch
        %6088 = sbr.rel (%p6086) target = $region124
      $region123: #{tpu_custom_call.1} parent=5 // pred_region
        %s6089 = ssub.s32 %s32, 2
        // Predicated region
        $region125: #{tpu_custom_call.1} parent=123 // pred_check
          %p6090 = pneg %p512
        $region126: #{tpu_custom_call.1} parent=123 // pred_check_branch
          %6092 = sbr.rel (%p6090) target = $region128
        $region127: #{tpu_custom_call.1} parent=123 // pred_region
          %s6093 = sand.u32 %s497, 1
          %s6094 = scalar_lea.sflag [#allocation4], %s6093
          %s6095 = sand.u32 %s497, 1
          %s6096 = smul.addr %s6095, 128
          %s6097 = scalar_lea.vmem [#allocation8], %s6096
          %6098 = dma.done %s6094, 2048
        $region128: #{tpu_custom_call.1} parent=123 // pred_fallthru
          _
      $region124: #{tpu_custom_call.1} parent=5 // pred_fallthru
        _
    $region6: #{tpu_custom_call.1} parent=1 // loop_footer
      %s36 = sadd.s32 1, %s32
    $region7: #{tpu_custom_call.1} parent=1 // loop_footer_branch
      %31 = sbr.rel target = $region3
    $region8: #{tpu_custom_call.1} parent=1 // loop_exit
      _
    %6099 = vsyncpa [#allocation3], 1
    %s6100 = scalar_lea.sflag [#allocation3], 1
    %6101 = vsyncpa %s6100, 1
    %6102 = vsyncpa [#allocation6], 1
    %6103 = vsyncpa [#allocation4], 1
    %s6104 = scalar_lea.sflag [#allocation4], 1
    %6105 = vsyncpa %s6104, 1

</llo_original>
